<compile_context>
chip_gen: v6e
topology: v6e:2x2x1
jax: 0.10.0
libtpu: 0.0.40
codegen_flags: <defaults>
</compile_context>

<pallas_src>
import functools
import math

import jax
import jax.numpy as jnp
from jax.experimental import pallas as pl
from jax.experimental.pallas import tpu as pltpu

FEATURE_DIM = 512
BN_EPS = 1e-5


# ----------------------------------------------------------------------------
# Fused kernel: conv3x3 (single K=27 matmul per row chunk) + ReLU + global
# average pool + both fully connected heads.  One batch element per grid step.
# ----------------------------------------------------------------------------
def _len_kernel(x_ref,                     # (1, Cin, L) bf16, L = (H+2)*W + 2
                wc_ref, bc_ref,            # conv: (512, Cin*9) bf16, (512, 1) f32
                wa_ref, ba_ref,            # merged [layout L1 | camera L] (1536, 512) bf16
                w2_ref, b2_ref,            # layout L2 (512, 1024) bf16
                wl_ref, bl_ref,            # [centroid|size|orient|pad] (8, 512) bf16
                wr_ref, br_ref,            # camera regressor padded (8, 512) bf16
                lay_ref, cam_ref,          # outputs, (1, 8, 1) f32 each
                patch_ref,                 # scratch (Cin*9, Ht*W) f32
                *, H, W, Cin, Ht):
    HtW = Ht * W
    n_chunks = H // Ht

    # Lane masks implementing horizontal "same" padding: the W axis is not
    # zero-padded in the flattened layout, so the two wrap-around taps are
    # masked to zero instead.
    col = jax.lax.broadcasted_iota(jnp.int32, (1, HtW), 1) % W
    keep_left = col != 0              # dj=0 tap of pixel j=0 wraps to prev row -> zero
    keep_right = col != (W - 1)       # dj=2 tap of pixel j=W-1 wraps to next row -> zero

    ones_col = jnp.ones((HtW, 1), jnp.bfloat16)
    pool = jnp.zeros((FEATURE_DIM, 1), jnp.float32)

    for ck in range(n_chunks):                       # static; tiny at test size
        r0 = ck * Ht
        # im2col patches: K axis = (c, di, dj), N axis = the Ht*W output pixels.
        for c in range(Cin):
            for di in range(3):
                # Contiguous lane slice covering all three dj taps for this row offset.
                seg = x_ref[0, c:c + 1, pl.ds((r0 + di) * W, HtW + 2)]   # (1, HtW+2) bf16
                for dj in range(3):
                    row = seg[:, dj:dj + HtW]                            # (1, HtW)
                    if dj == 0:
                        row = jnp.where(keep_left, row, 0.0)
                    elif dj == 2:
                        row = jnp.where(keep_right, row, 0.0)
                    k = (c * 3 + di) * 3 + dj
                    patch_ref[k:k + 1, :] = row.astype(jnp.float32)

        # One MXU push per chunk: (512, 27) x (27, Ht*W), f32 accumulation.
        y = jnp.dot(wc_ref[...], patch_ref[...].astype(jnp.bfloat16),
                    preferred_element_type=jnp.float32)                  # (512, HtW)
        y = jnp.maximum(y + bc_ref[...], 0.0)                            # bias + ReLU
        # Global-avg-pool partial sum as an MXU matmul (deep K, N=1).
        pool = pool + jnp.dot(y.astype(jnp.bfloat16), ones_col,
                              preferred_element_type=jnp.float32)        # (512, 1)

    feat = (pool * (1.0 / (H * W))).astype(jnp.bfloat16)                 # (512, 1)

    # ---- heads, fused epilogue (column orientation: features on sublanes) ----
    h_all = jnp.dot(wa_ref[...], feat, preferred_element_type=jnp.float32) + ba_ref[...]
    h_all = jnp.maximum(h_all, 0.0)                                      # (1536, 1)
    h_lay = h_all[0:1024, :].astype(jnp.bfloat16)                        # layout branch
    h_cam = h_all[1024:1536, :].astype(jnp.bfloat16)                     # camera branch

    h2 = jnp.dot(w2_ref[...], h_lay, preferred_element_type=jnp.float32) + b2_ref[...]
    h2 = jnp.maximum(h2, 0.0).astype(jnp.bfloat16)                       # (512, 1)

    lay = jnp.dot(wl_ref[...], h2, preferred_element_type=jnp.float32) + bl_ref[...]
    rowi = jax.lax.broadcasted_iota(jnp.int32, lay.shape, 0)
    lay = jnp.where((rowi >= 3) & (rowi < 6), jnp.exp(lay), lay)         # exp only on size

    cam = jnp.dot(wr_ref[...], h_cam, preferred_element_type=jnp.float32) + br_ref[...]

    lay_ref[0] = lay                                                     # (8, 1)
    cam_ref[0] = cam                                                     # (8, 1)


# ----------------------------------------------------------------------------
# Wrapper
# ----------------------------------------------------------------------------
@jax.jit
def layout_estimation_forward(x, params):
    """x: (B, Cin, H, W) f32 -> (layout_params (B, 7), camera_params (B, 2))."""
    B, Cin, H, W = x.shape
    Ht = next(ht for ht in (8, 4, 2, 1) if H % ht == 0)      # row-chunk height
    Hp = H + 2
    L = Hp * W + 2

    # Single cheap XLA prep pass (NO transpose): zero rows for the vertical
    # "same" padding, flatten spatial into the lane axis, one sentinel zero on
    # each end (so every 3x3 tap is a contiguous lane slice), cast to bf16.
    xp = jnp.pad(x, ((0, 0), (0, 0), (1, 1), (0, 0)))
    xf = jnp.pad(xp.reshape(B, Cin, Hp * W), ((0, 0), (0, 0), (1, 1)))
    xf = xf.astype(jnp.bfloat16)                                         # (B, Cin, L)

    kernel = functools.partial(_len_kernel, H=H, W=W, Cin=Cin, Ht=Ht)
    res = lambda b: (0, 0)                                               # resident weights

    out_lay, out_cam = pl.pallas_call(
        kernel,
        out_shape=(jax.ShapeDtypeStruct((B, 8, 1), jnp.float32),
                   jax.ShapeDtypeStruct((B, 8, 1), jnp.float32)),
        grid_spec=pltpu.PrefetchScalarGridSpec(
            num_scalar_prefetch=0,
            grid=(B,),
            in_specs=[
                pl.BlockSpec((1, Cin, L), lambda b: (b, 0, 0)),          # per-image, pipelined
                pl.BlockSpec((FEATURE_DIM, Cin * 9), res),
                pl.BlockSpec((FEATURE_DIM, 1), res),
                pl.BlockSpec((1536, FEATURE_DIM), res),
                pl.BlockSpec((1536, 1), res),
                pl.BlockSpec((512, 1024), res),
                pl.BlockSpec((512, 1), res),
                pl.BlockSpec((8, 512), res),
                pl.BlockSpec((8, 1), res),
                pl.BlockSpec((8, 512), res),
                pl.BlockSpec((8, 1), res),
            ],
            out_specs=(pl.BlockSpec((1, 8, 1), lambda b: (b, 0, 0)),
                       pl.BlockSpec((1, 8, 1), lambda b: (b, 0, 0))),
            scratch_shapes=[pltpu.VMEM((Cin * 9, Ht * W), jnp.float32)],
        ),
        compiler_params=pltpu.CompilerParams(
            dimension_semantics=("parallel",),       # megacore split over batch on v7x
            vmem_limit_bytes=32 * 1024 * 1024),
    )(xf,
      params["wconv"], params["bconv"],
      params["wa"], params["ba"],
      params["w2"], params["b2"],
      params["wlay"], params["blay"],
      params["wcam"], params["bcam"])

    layout_params = out_lay[:, :7, 0]
    camera_params = out_cam[:, :2, 0]
    return layout_params, camera_params


# ----------------------------------------------------------------------------
# Deterministic parameter construction (mirrors _initialize_weights semantics,
# BatchNorm1d eval-mode folded, Dropout eval-mode = identity).  Weights are
# stored in the native torch (out_features, in_features) orientation, bf16.
# ----------------------------------------------------------------------------
def make_params(key, cin=3):
    ks = jax.random.split(key, 8)
    bn_scale = 1.0 / math.sqrt(1.0 + BN_EPS)   # gamma=1, beta=0, mean=0, var=1

    def kaiming(k, out_f, in_f):
        # torch kaiming_normal_(mode='fan_out') on (out, in): std = sqrt(2/out)
        return jax.random.normal(k, (out_f, in_f), jnp.float32) * math.sqrt(2.0 / out_f)

    # Backbone stand-in 3x3 conv, torch layout (Cout, Cin, 3, 3) -> (Cout, Cin*9).
    conv_std = math.sqrt(2.0 / (FEATURE_DIM * 9))
    wconv = jax.random.normal(ks[0], (FEATURE_DIM, cin, 3, 3), jnp.float32) * conv_std
    wconv = wconv.reshape(FEATURE_DIM, cin * 9)
    bconv = jnp.zeros((FEATURE_DIM, 1), jnp.float32)

    w1 = kaiming(ks[1], 1024, FEATURE_DIM)     # layout_encoder Linear1
    w2 = kaiming(ks[2], 512, 1024)             # layout_encoder Linear2
    wc = kaiming(ks[3], 3, 512)                # centroid_regressor
    ws = kaiming(ks[4], 3, 512)                # size_regressor
    wo = kaiming(ks[5], 1, 512)                # orientation_regressor
    wce = kaiming(ks[6], 512, FEATURE_DIM)     # camera_encoder Linear
    wcr = kaiming(ks[7], 2, 512)               # camera_regressor

    # Merge the two feature-consuming Linears; fold BN scale into both (both
    # encoders have a BatchNorm1d right after their first Linear).
    wa = jnp.concatenate([w1, wce], axis=0) * bn_scale          # (1536, 512)
    ba = jnp.zeros((1536, 1), jnp.float32)
    w2f = w2 * bn_scale                                         # (512, 1024)
    b2 = jnp.zeros((512, 1), jnp.float32)

    # Regressors padded to 8 output rows: [centroid(3) | size(3) | orient(1) | pad(1)].
    wlay = jnp.concatenate([wc, ws, wo, jnp.zeros((1, 512), jnp.float32)], axis=0)
    blay = jnp.zeros((8, 1), jnp.float32)
    wcam = jnp.concatenate([wcr, jnp.zeros((6, 512), jnp.float32)], axis=0)
    bcam = jnp.zeros((8, 1), jnp.float32)

    return dict(
        wconv=wconv.astype(jnp.bfloat16), bconv=bconv,
        wa=wa.astype(jnp.bfloat16), ba=ba,
        w2=w2f.astype(jnp.bfloat16), b2=b2,
        wlay=wlay.astype(jnp.bfloat16), blay=blay,
        wcam=wcam.astype(jnp.bfloat16), bcam=bcam,
    )


if __name__ == "__main__":
    key = jax.random.PRNGKey(0)
    k_x, k_p = jax.random.split(key)
    B, C, H, W = 2, 3, 16, 16
    x = jax.random.normal(k_x, (B, C, H, W), jnp.float32)
    params = make_params(k_p, cin=C)

    layout_params, camera_params = layout_estimation_forward(x, params)
    layout_params = jax.block_until_ready(layout_params)
    camera_params = jax.block_until_ready(camera_params)

    assert layout_params.shape == (B, 7)
    assert camera_params.shape == (B, 2)
    assert bool(jnp.all(layout_params[:, 3:6] > 0))      # size = exp(...) strictly positive
    assert bool(jnp.all(jnp.isfinite(layout_params)))
    assert bool(jnp.all(jnp.isfinite(camera_params)))
    print("KERNEL_OK")
</pallas_src>

<mosaic_0001>
module attributes {stable_mosaic.version = 11 : i64} {
  func.func @_len_kernel(%arg0: i32, %arg1: memref<1x3x290xbf16, #tpu.memory_space<vmem>>, %arg2: memref<512x27xbf16, #tpu.memory_space<vmem>>, %arg3: memref<512x1xf32, #tpu.memory_space<vmem>>, %arg4: memref<1536x512xbf16, #tpu.memory_space<vmem>>, %arg5: memref<1536x1xf32, #tpu.memory_space<vmem>>, %arg6: memref<512x1024xbf16, #tpu.memory_space<vmem>>, %arg7: memref<512x1xf32, #tpu.memory_space<vmem>>, %arg8: memref<8x512xbf16, #tpu.memory_space<vmem>>, %arg9: memref<8x1xf32, #tpu.memory_space<vmem>>, %arg10: memref<8x512xbf16, #tpu.memory_space<vmem>>, %arg11: memref<8x1xf32, #tpu.memory_space<vmem>>, %arg12: memref<1x8x1xf32, #tpu.memory_space<vmem>>, %arg13: memref<1x8x1xf32, #tpu.memory_space<vmem>>, %arg14: memref<27x128xf32, #tpu.memory_space<vmem>>) attributes {dimension_semantics = [#tpu.dimension_semantics<parallel>], iteration_bounds = array<i64: 2>, scalar_prefetch = 0 : i64, scratch_operands = 1 : i64, tpu.core_type = #tpu.core_type<tc>, window_params = [{transform_indices = @transform_0, window_bounds = array<i64: 1, 3, 290>}, {pipeline_mode = #tpu.pipeline_mode<synchronous>, transform_indices = @transform_1, window_bounds = array<i64: 512, 27>}, {pipeline_mode = #tpu.pipeline_mode<synchronous>, transform_indices = @transform_2, window_bounds = array<i64: 512, 1>}, {pipeline_mode = #tpu.pipeline_mode<synchronous>, transform_indices = @transform_3, window_bounds = array<i64: 1536, 512>}, {pipeline_mode = #tpu.pipeline_mode<synchronous>, transform_indices = @transform_4, window_bounds = array<i64: 1536, 1>}, {pipeline_mode = #tpu.pipeline_mode<synchronous>, transform_indices = @transform_5, window_bounds = array<i64: 512, 1024>}, {pipeline_mode = #tpu.pipeline_mode<synchronous>, transform_indices = @transform_6, window_bounds = array<i64: 512, 1>}, {pipeline_mode = #tpu.pipeline_mode<synchronous>, transform_indices = @transform_7, window_bounds = array<i64: 8, 512>}, {pipeline_mode = #tpu.pipeline_mode<synchronous>, transform_indices = @transform_8, window_bounds = array<i64: 8, 1>}, {pipeline_mode = #tpu.pipeline_mode<synchronous>, transform_indices = @transform_9, window_bounds = array<i64: 8, 512>}, {pipeline_mode = #tpu.pipeline_mode<synchronous>, transform_indices = @transform_10, window_bounds = array<i64: 8, 1>}, {transform_indices = @transform_11, window_bounds = array<i64: 1, 8, 1>}, {transform_indices = @transform_12, window_bounds = array<i64: 1, 8, 1>}]} {
    %0 = tpu.iota {dimensions = array<i32: 1>} : vector<1x128xi32>
    %c16_i32 = arith.constant 16 : i32
    %c0_i32 = arith.constant 0 : i32
    %1 = arith.cmpi eq, %c16_i32, %c0_i32 : i32
    %c1_i32 = arith.constant 1 : i32
    %2 = arith.select %1, %c1_i32, %c16_i32 : i32
    %3 = vector.broadcast %2 : i32 to vector<1x128xi32>
    %4 = arith.remsi %0, %3 : vector<1x128xi32>
    %c0_i32_0 = arith.constant 0 : i32
    %5 = vector.broadcast %c0_i32_0 : i32 to vector<1x128xi32>
    %6 = arith.cmpi ne, %4, %5 : vector<1x128xi32>
    %c0_i32_1 = arith.constant 0 : i32
    %7 = vector.broadcast %c0_i32_1 : i32 to vector<1x128xi32>
    %8 = arith.cmpi slt, %4, %7 : vector<1x128xi32>
    %c0_i32_2 = arith.constant 0 : i32
    %9 = arith.cmpi slt, %2, %c0_i32_2 : i32
    %10 = vector.broadcast %9 : i1 to vector<1x128xi1>
    %11 = vector.broadcast %10 : vector<1x128xi1> to vector<1x128xi1>
    %12 = arith.xori %8, %11 : vector<1x128xi1>
    %13 = arith.andi %12, %6 : vector<1x128xi1>
    %14 = vector.broadcast %2 : i32 to vector<1x128xi32>
    %15 = arith.addi %4, %14 : vector<1x128xi32>
    %16 = arith.select %13, %15, %4 : vector<1x128xi1>, vector<1x128xi32>
    %c0_i32_3 = arith.constant 0 : i32
    %17 = vector.broadcast %c0_i32_3 : i32 to vector<1x128xi32>
    %18 = arith.cmpi ne, %16, %17 : vector<1x128xi32>
    %c15_i32 = arith.constant 15 : i32
    %19 = vector.broadcast %c15_i32 : i32 to vector<1x128xi32>
    %20 = arith.cmpi ne, %16, %19 : vector<1x128xi32>
    %cst = arith.constant 1.000000e+00 : bf16
    %21 = vector.broadcast %cst : bf16 to vector<128x1xbf16>
    %cst_4 = arith.constant 0.000000e+00 : f32
    %22 = vector.broadcast %cst_4 : f32 to vector<512x1xf32>
    %c0 = arith.constant 0 : index
    %c0_5 = arith.constant 0 : index
    %c0_6 = arith.constant 0 : index
    %23 = vector.load %arg1[%c0, %c0_5, %c0_6] : memref<1x3x290xbf16, #tpu.memory_space<vmem>>, vector<1x1x130xbf16>
    %24 = vector.shape_cast %23 : vector<1x1x130xbf16> to vector<1x130xbf16>
    %25 = vector.extract_strided_slice %24 {offsets = [0, 0], sizes = [1, 128], strides = [1, 1]} : vector<1x130xbf16> to vector<1x128xbf16>
    %cst_7 = arith.constant 0.000000e+00 : f32
    %26 = arith.truncf %cst_7 : f32 to bf16
    %27 = vector.broadcast %26 : bf16 to vector<1x128xbf16>
    %28 = arith.select %18, %25, %27 : vector<1x128xi1>, vector<1x128xbf16>
    %29 = arith.extf %28 : vector<1x128xbf16> to vector<1x128xf32>
    %c0_8 = arith.constant 0 : index
    %c0_9 = arith.constant 0 : index
    %30 = vector.load %arg14[%c0_8, %c0_9] : memref<27x128xf32, #tpu.memory_space<vmem>>, vector<1x128xf32>
    tpu.vector_store %arg14[%c0_8, %c0_9], %29 {strides = array<i32>} : memref<27x128xf32, #tpu.memory_space<vmem>>, vector<1x128xf32>,
    %31 = vector.extract_strided_slice %24 {offsets = [0, 1], sizes = [1, 128], strides = [1, 1]} : vector<1x130xbf16> to vector<1x128xbf16>
    %32 = arith.extf %31 : vector<1x128xbf16> to vector<1x128xf32>
    %c1 = arith.constant 1 : index
    %c0_10 = arith.constant 0 : index
    %33 = vector.load %arg14[%c1, %c0_10] : memref<27x128xf32, #tpu.memory_space<vmem>>, vector<1x128xf32>
    tpu.vector_store %arg14[%c1, %c0_10], %32 {strides = array<i32>} : memref<27x128xf32, #tpu.memory_space<vmem>>, vector<1x128xf32>,
    %34 = vector.extract_strided_slice %24 {offsets = [0, 2], sizes = [1, 128], strides = [1, 1]} : vector<1x130xbf16> to vector<1x128xbf16>
    %cst_11 = arith.constant 0.000000e+00 : f32
    %35 = arith.truncf %cst_11 : f32 to bf16
    %36 = vector.broadcast %35 : bf16 to vector<1x128xbf16>
    %37 = arith.select %20, %34, %36 : vector<1x128xi1>, vector<1x128xbf16>
    %38 = arith.extf %37 : vector<1x128xbf16> to vector<1x128xf32>
    %c2 = arith.constant 2 : index
    %c0_12 = arith.constant 0 : index
    %39 = vector.load %arg14[%c2, %c0_12] : memref<27x128xf32, #tpu.memory_space<vmem>>, vector<1x128xf32>
    tpu.vector_store %arg14[%c2, %c0_12], %38 {strides = array<i32>} : memref<27x128xf32, #tpu.memory_space<vmem>>, vector<1x128xf32>,
    %c0_13 = arith.constant 0 : index
    %c0_14 = arith.constant 0 : index
    %c16 = arith.constant 16 : index
    %40 = vector.load %arg1[%c0_13, %c0_14, %c16] : memref<1x3x290xbf16, #tpu.memory_space<vmem>>, vector<1x1x130xbf16>
    %41 = vector.shape_cast %40 : vector<1x1x130xbf16> to vector<1x130xbf16>
    %42 = vector.extract_strided_slice %41 {offsets = [0, 0], sizes = [1, 128], strides = [1, 1]} : vector<1x130xbf16> to vector<1x128xbf16>
    %cst_15 = arith.constant 0.000000e+00 : f32
    %43 = arith.truncf %cst_15 : f32 to bf16
    %44 = vector.broadcast %43 : bf16 to vector<1x128xbf16>
    %45 = arith.select %18, %42, %44 : vector<1x128xi1>, vector<1x128xbf16>
    %46 = arith.extf %45 : vector<1x128xbf16> to vector<1x128xf32>
    %c3 = arith.constant 3 : index
    %c0_16 = arith.constant 0 : index
    %47 = vector.load %arg14[%c3, %c0_16] : memref<27x128xf32, #tpu.memory_space<vmem>>, vector<1x128xf32>
    tpu.vector_store %arg14[%c3, %c0_16], %46 {strides = array<i32>} : memref<27x128xf32, #tpu.memory_space<vmem>>, vector<1x128xf32>,
    %48 = vector.extract_strided_slice %41 {offsets = [0, 1], sizes = [1, 128], strides = [1, 1]} : vector<1x130xbf16> to vector<1x128xbf16>
    %49 = arith.extf %48 : vector<1x128xbf16> to vector<1x128xf32>
    %c4 = arith.constant 4 : index
    %c0_17 = arith.constant 0 : index
    %50 = vector.load %arg14[%c4, %c0_17] : memref<27x128xf32, #tpu.memory_space<vmem>>, vector<1x128xf32>
    tpu.vector_store %arg14[%c4, %c0_17], %49 {strides = array<i32>} : memref<27x128xf32, #tpu.memory_space<vmem>>, vector<1x128xf32>,
    %51 = vector.extract_strided_slice %41 {offsets = [0, 2], sizes = [1, 128], strides = [1, 1]} : vector<1x130xbf16> to vector<1x128xbf16>
    %cst_18 = arith.constant 0.000000e+00 : f32
    %52 = arith.truncf %cst_18 : f32 to bf16
    %53 = vector.broadcast %52 : bf16 to vector<1x128xbf16>
    %54 = arith.select %20, %51, %53 : vector<1x128xi1>, vector<1x128xbf16>
    %55 = arith.extf %54 : vector<1x128xbf16> to vector<1x128xf32>
    %c5 = arith.constant 5 : index
    %c0_19 = arith.constant 0 : index
    %56 = vector.load %arg14[%c5, %c0_19] : memref<27x128xf32, #tpu.memory_space<vmem>>, vector<1x128xf32>
    tpu.vector_store %arg14[%c5, %c0_19], %55 {strides = array<i32>} : memref<27x128xf32, #tpu.memory_space<vmem>>, vector<1x128xf32>,
    %c0_20 = arith.constant 0 : index
    %c0_21 = arith.constant 0 : index
    %c32 = arith.constant 32 : index
    %57 = vector.load %arg1[%c0_20, %c0_21, %c32] : memref<1x3x290xbf16, #tpu.memory_space<vmem>>, vector<1x1x130xbf16>
    %58 = vector.shape_cast %57 : vector<1x1x130xbf16> to vector<1x130xbf16>
    %59 = vector.extract_strided_slice %58 {offsets = [0, 0], sizes = [1, 128], strides = [1, 1]} : vector<1x130xbf16> to vector<1x128xbf16>
    %cst_22 = arith.constant 0.000000e+00 : f32
    %60 = arith.truncf %cst_22 : f32 to bf16
    %61 = vector.broadcast %60 : bf16 to vector<1x128xbf16>
    %62 = arith.select %18, %59, %61 : vector<1x128xi1>, vector<1x128xbf16>
    %63 = arith.extf %62 : vector<1x128xbf16> to vector<1x128xf32>
    %c6 = arith.constant 6 : index
    %c0_23 = arith.constant 0 : index
    %64 = vector.load %arg14[%c6, %c0_23] : memref<27x128xf32, #tpu.memory_space<vmem>>, vector<1x128xf32>
    tpu.vector_store %arg14[%c6, %c0_23], %63 {strides = array<i32>} : memref<27x128xf32, #tpu.memory_space<vmem>>, vector<1x128xf32>,
    %65 = vector.extract_strided_slice %58 {offsets = [0, 1], sizes = [1, 128], strides = [1, 1]} : vector<1x130xbf16> to vector<1x128xbf16>
    %66 = arith.extf %65 : vector<1x128xbf16> to vector<1x128xf32>
    %c7 = arith.constant 7 : index
    %c0_24 = arith.constant 0 : index
    %67 = vector.load %arg14[%c7, %c0_24] : memref<27x128xf32, #tpu.memory_space<vmem>>, vector<1x128xf32>
    tpu.vector_store %arg14[%c7, %c0_24], %66 {strides = array<i32>} : memref<27x128xf32, #tpu.memory_space<vmem>>, vector<1x128xf32>,
    %68 = vector.extract_strided_slice %58 {offsets = [0, 2], sizes = [1, 128], strides = [1, 1]} : vector<1x130xbf16> to vector<1x128xbf16>
    %cst_25 = arith.constant 0.000000e+00 : f32
    %69 = arith.truncf %cst_25 : f32 to bf16
    %70 = vector.broadcast %69 : bf16 to vector<1x128xbf16>
    %71 = arith.select %20, %68, %70 : vector<1x128xi1>, vector<1x128xbf16>
    %72 = arith.extf %71 : vector<1x128xbf16> to vector<1x128xf32>
    %c8 = arith.constant 8 : index
    %c0_26 = arith.constant 0 : index
    %73 = vector.load %arg14[%c8, %c0_26] : memref<27x128xf32, #tpu.memory_space<vmem>>, vector<1x128xf32>
    tpu.vector_store %arg14[%c8, %c0_26], %72 {strides = array<i32>} : memref<27x128xf32, #tpu.memory_space<vmem>>, vector<1x128xf32>,
    %c0_27 = arith.constant 0 : index
    %c1_28 = arith.constant 1 : index
    %c0_29 = arith.constant 0 : index
    %74 = vector.load %arg1[%c0_27, %c1_28, %c0_29] : memref<1x3x290xbf16, #tpu.memory_space<vmem>>, vector<1x1x130xbf16>
    %75 = vector.shape_cast %74 : vector<1x1x130xbf16> to vector<1x130xbf16>
    %76 = vector.extract_strided_slice %75 {offsets = [0, 0], sizes = [1, 128], strides = [1, 1]} : vector<1x130xbf16> to vector<1x128xbf16>
    %cst_30 = arith.constant 0.000000e+00 : f32
    %77 = arith.truncf %cst_30 : f32 to bf16
    %78 = vector.broadcast %77 : bf16 to vector<1x128xbf16>
    %79 = arith.select %18, %76, %78 : vector<1x128xi1>, vector<1x128xbf16>
    %80 = arith.extf %79 : vector<1x128xbf16> to vector<1x128xf32>
    %c9 = arith.constant 9 : index
    %c0_31 = arith.constant 0 : index
    %81 = vector.load %arg14[%c9, %c0_31] : memref<27x128xf32, #tpu.memory_space<vmem>>, vector<1x128xf32>
    tpu.vector_store %arg14[%c9, %c0_31], %80 {strides = array<i32>} : memref<27x128xf32, #tpu.memory_space<vmem>>, vector<1x128xf32>,
    %82 = vector.extract_strided_slice %75 {offsets = [0, 1], sizes = [1, 128], strides = [1, 1]} : vector<1x130xbf16> to vector<1x128xbf16>
    %83 = arith.extf %82 : vector<1x128xbf16> to vector<1x128xf32>
    %c10 = arith.constant 10 : index
    %c0_32 = arith.constant 0 : index
    %84 = vector.load %arg14[%c10, %c0_32] : memref<27x128xf32, #tpu.memory_space<vmem>>, vector<1x128xf32>
    tpu.vector_store %arg14[%c10, %c0_32], %83 {strides = array<i32>} : memref<27x128xf32, #tpu.memory_space<vmem>>, vector<1x128xf32>,
    %85 = vector.extract_strided_slice %75 {offsets = [0, 2], sizes = [1, 128], strides = [1, 1]} : vector<1x130xbf16> to vector<1x128xbf16>
    %cst_33 = arith.constant 0.000000e+00 : f32
    %86 = arith.truncf %cst_33 : f32 to bf16
    %87 = vector.broadcast %86 : bf16 to vector<1x128xbf16>
    %88 = arith.select %20, %85, %87 : vector<1x128xi1>, vector<1x128xbf16>
    %89 = arith.extf %88 : vector<1x128xbf16> to vector<1x128xf32>
    %c11 = arith.constant 11 : index
    %c0_34 = arith.constant 0 : index
    %90 = vector.load %arg14[%c11, %c0_34] : memref<27x128xf32, #tpu.memory_space<vmem>>, vector<1x128xf32>
    tpu.vector_store %arg14[%c11, %c0_34], %89 {strides = array<i32>} : memref<27x128xf32, #tpu.memory_space<vmem>>, vector<1x128xf32>,
    %c0_35 = arith.constant 0 : index
    %c1_36 = arith.constant 1 : index
    %c16_37 = arith.constant 16 : index
    %91 = vector.load %arg1[%c0_35, %c1_36, %c16_37] : memref<1x3x290xbf16, #tpu.memory_space<vmem>>, vector<1x1x130xbf16>
    %92 = vector.shape_cast %91 : vector<1x1x130xbf16> to vector<1x130xbf16>
    %93 = vector.extract_strided_slice %92 {offsets = [0, 0], sizes = [1, 128], strides = [1, 1]} : vector<1x130xbf16> to vector<1x128xbf16>
    %cst_38 = arith.constant 0.000000e+00 : f32
    %94 = arith.truncf %cst_38 : f32 to bf16
    %95 = vector.broadcast %94 : bf16 to vector<1x128xbf16>
    %96 = arith.select %18, %93, %95 : vector<1x128xi1>, vector<1x128xbf16>
    %97 = arith.extf %96 : vector<1x128xbf16> to vector<1x128xf32>
    %c12 = arith.constant 12 : index
    %c0_39 = arith.constant 0 : index
    %98 = vector.load %arg14[%c12, %c0_39] : memref<27x128xf32, #tpu.memory_space<vmem>>, vector<1x128xf32>
    tpu.vector_store %arg14[%c12, %c0_39], %97 {strides = array<i32>} : memref<27x128xf32, #tpu.memory_space<vmem>>, vector<1x128xf32>,
    %99 = vector.extract_strided_slice %92 {offsets = [0, 1], sizes = [1, 128], strides = [1, 1]} : vector<1x130xbf16> to vector<1x128xbf16>
    %100 = arith.extf %99 : vector<1x128xbf16> to vector<1x128xf32>
    %c13 = arith.constant 13 : index
    %c0_40 = arith.constant 0 : index
    %101 = vector.load %arg14[%c13, %c0_40] : memref<27x128xf32, #tpu.memory_space<vmem>>, vector<1x128xf32>
    tpu.vector_store %arg14[%c13, %c0_40], %100 {strides = array<i32>} : memref<27x128xf32, #tpu.memory_space<vmem>>, vector<1x128xf32>,
    %102 = vector.extract_strided_slice %92 {offsets = [0, 2], sizes = [1, 128], strides = [1, 1]} : vector<1x130xbf16> to vector<1x128xbf16>
    %cst_41 = arith.constant 0.000000e+00 : f32
    %103 = arith.truncf %cst_41 : f32 to bf16
    %104 = vector.broadcast %103 : bf16 to vector<1x128xbf16>
    %105 = arith.select %20, %102, %104 : vector<1x128xi1>, vector<1x128xbf16>
    %106 = arith.extf %105 : vector<1x128xbf16> to vector<1x128xf32>
    %c14 = arith.constant 14 : index
    %c0_42 = arith.constant 0 : index
    %107 = vector.load %arg14[%c14, %c0_42] : memref<27x128xf32, #tpu.memory_space<vmem>>, vector<1x128xf32>
    tpu.vector_store %arg14[%c14, %c0_42], %106 {strides = array<i32>} : memref<27x128xf32, #tpu.memory_space<vmem>>, vector<1x128xf32>,
    %c0_43 = arith.constant 0 : index
    %c1_44 = arith.constant 1 : index
    %c32_45 = arith.constant 32 : index
    %108 = vector.load %arg1[%c0_43, %c1_44, %c32_45] : memref<1x3x290xbf16, #tpu.memory_space<vmem>>, vector<1x1x130xbf16>
    %109 = vector.shape_cast %108 : vector<1x1x130xbf16> to vector<1x130xbf16>
    %110 = vector.extract_strided_slice %109 {offsets = [0, 0], sizes = [1, 128], strides = [1, 1]} : vector<1x130xbf16> to vector<1x128xbf16>
    %cst_46 = arith.constant 0.000000e+00 : f32
    %111 = arith.truncf %cst_46 : f32 to bf16
    %112 = vector.broadcast %111 : bf16 to vector<1x128xbf16>
    %113 = arith.select %18, %110, %112 : vector<1x128xi1>, vector<1x128xbf16>
    %114 = arith.extf %113 : vector<1x128xbf16> to vector<1x128xf32>
    %c15 = arith.constant 15 : index
    %c0_47 = arith.constant 0 : index
    %115 = vector.load %arg14[%c15, %c0_47] : memref<27x128xf32, #tpu.memory_space<vmem>>, vector<1x128xf32>
    tpu.vector_store %arg14[%c15, %c0_47], %114 {strides = array<i32>} : memref<27x128xf32, #tpu.memory_space<vmem>>, vector<1x128xf32>,
    %116 = vector.extract_strided_slice %109 {offsets = [0, 1], sizes = [1, 128], strides = [1, 1]} : vector<1x130xbf16> to vector<1x128xbf16>
    %117 = arith.extf %116 : vector<1x128xbf16> to vector<1x128xf32>
    %c16_48 = arith.constant 16 : index
    %c0_49 = arith.constant 0 : index
    %118 = vector.load %arg14[%c16_48, %c0_49] : memref<27x128xf32, #tpu.memory_space<vmem>>, vector<1x128xf32>
    tpu.vector_store %arg14[%c16_48, %c0_49], %117 {strides = array<i32>} : memref<27x128xf32, #tpu.memory_space<vmem>>, vector<1x128xf32>,
    %119 = vector.extract_strided_slice %109 {offsets = [0, 2], sizes = [1, 128], strides = [1, 1]} : vector<1x130xbf16> to vector<1x128xbf16>
    %cst_50 = arith.constant 0.000000e+00 : f32
    %120 = arith.truncf %cst_50 : f32 to bf16
    %121 = vector.broadcast %120 : bf16 to vector<1x128xbf16>
    %122 = arith.select %20, %119, %121 : vector<1x128xi1>, vector<1x128xbf16>
    %123 = arith.extf %122 : vector<1x128xbf16> to vector<1x128xf32>
    %c17 = arith.constant 17 : index
    %c0_51 = arith.constant 0 : index
    %124 = vector.load %arg14[%c17, %c0_51] : memref<27x128xf32, #tpu.memory_space<vmem>>, vector<1x128xf32>
    tpu.vector_store %arg14[%c17, %c0_51], %123 {strides = array<i32>} : memref<27x128xf32, #tpu.memory_space<vmem>>, vector<1x128xf32>,
    %c0_52 = arith.constant 0 : index
    %c2_53 = arith.constant 2 : index
    %c0_54 = arith.constant 0 : index
    %125 = vector.load %arg1[%c0_52, %c2_53, %c0_54] : memref<1x3x290xbf16, #tpu.memory_space<vmem>>, vector<1x1x130xbf16>
    %126 = vector.shape_cast %125 : vector<1x1x130xbf16> to vector<1x130xbf16>
    %127 = vector.extract_strided_slice %126 {offsets = [0, 0], sizes = [1, 128], strides = [1, 1]} : vector<1x130xbf16> to vector<1x128xbf16>
    %cst_55 = arith.constant 0.000000e+00 : f32
    %128 = arith.truncf %cst_55 : f32 to bf16
    %129 = vector.broadcast %128 : bf16 to vector<1x128xbf16>
    %130 = arith.select %18, %127, %129 : vector<1x128xi1>, vector<1x128xbf16>
    %131 = arith.extf %130 : vector<1x128xbf16> to vector<1x128xf32>
    %c18 = arith.constant 18 : index
    %c0_56 = arith.constant 0 : index
    %132 = vector.load %arg14[%c18, %c0_56] : memref<27x128xf32, #tpu.memory_space<vmem>>, vector<1x128xf32>
    tpu.vector_store %arg14[%c18, %c0_56], %131 {strides = array<i32>} : memref<27x128xf32, #tpu.memory_space<vmem>>, vector<1x128xf32>,
    %133 = vector.extract_strided_slice %126 {offsets = [0, 1], sizes = [1, 128], strides = [1, 1]} : vector<1x130xbf16> to vector<1x128xbf16>
    %134 = arith.extf %133 : vector<1x128xbf16> to vector<1x128xf32>
    %c19 = arith.constant 19 : index
    %c0_57 = arith.constant 0 : index
    %135 = vector.load %arg14[%c19, %c0_57] : memref<27x128xf32, #tpu.memory_space<vmem>>, vector<1x128xf32>
    tpu.vector_store %arg14[%c19, %c0_57], %134 {strides = array<i32>} : memref<27x128xf32, #tpu.memory_space<vmem>>, vector<1x128xf32>,
    %136 = vector.extract_strided_slice %126 {offsets = [0, 2], sizes = [1, 128], strides = [1, 1]} : vector<1x130xbf16> to vector<1x128xbf16>
    %cst_58 = arith.constant 0.000000e+00 : f32
    %137 = arith.truncf %cst_58 : f32 to bf16
    %138 = vector.broadcast %137 : bf16 to vector<1x128xbf16>
    %139 = arith.select %20, %136, %138 : vector<1x128xi1>, vector<1x128xbf16>
    %140 = arith.extf %139 : vector<1x128xbf16> to vector<1x128xf32>
    %c20 = arith.constant 20 : index
    %c0_59 = arith.constant 0 : index
    %141 = vector.load %arg14[%c20, %c0_59] : memref<27x128xf32, #tpu.memory_space<vmem>>, vector<1x128xf32>
    tpu.vector_store %arg14[%c20, %c0_59], %140 {strides = array<i32>} : memref<27x128xf32, #tpu.memory_space<vmem>>, vector<1x128xf32>,
    %c0_60 = arith.constant 0 : index
    %c2_61 = arith.constant 2 : index
    %c16_62 = arith.constant 16 : index
    %142 = vector.load %arg1[%c0_60, %c2_61, %c16_62] : memref<1x3x290xbf16, #tpu.memory_space<vmem>>, vector<1x1x130xbf16>
    %143 = vector.shape_cast %142 : vector<1x1x130xbf16> to vector<1x130xbf16>
    %144 = vector.extract_strided_slice %143 {offsets = [0, 0], sizes = [1, 128], strides = [1, 1]} : vector<1x130xbf16> to vector<1x128xbf16>
    %cst_63 = arith.constant 0.000000e+00 : f32
    %145 = arith.truncf %cst_63 : f32 to bf16
    %146 = vector.broadcast %145 : bf16 to vector<1x128xbf16>
    %147 = arith.select %18, %144, %146 : vector<1x128xi1>, vector<1x128xbf16>
    %148 = arith.extf %147 : vector<1x128xbf16> to vector<1x128xf32>
    %c21 = arith.constant 21 : index
    %c0_64 = arith.constant 0 : index
    %149 = vector.load %arg14[%c21, %c0_64] : memref<27x128xf32, #tpu.memory_space<vmem>>, vector<1x128xf32>
    tpu.vector_store %arg14[%c21, %c0_64], %148 {strides = array<i32>} : memref<27x128xf32, #tpu.memory_space<vmem>>, vector<1x128xf32>,
    %150 = vector.extract_strided_slice %143 {offsets = [0, 1], sizes = [1, 128], strides = [1, 1]} : vector<1x130xbf16> to vector<1x128xbf16>
    %151 = arith.extf %150 : vector<1x128xbf16> to vector<1x128xf32>
    %c22 = arith.constant 22 : index
    %c0_65 = arith.constant 0 : index
    %152 = vector.load %arg14[%c22, %c0_65] : memref<27x128xf32, #tpu.memory_space<vmem>>, vector<1x128xf32>
    tpu.vector_store %arg14[%c22, %c0_65], %151 {strides = array<i32>} : memref<27x128xf32, #tpu.memory_space<vmem>>, vector<1x128xf32>,
    %153 = vector.extract_strided_slice %143 {offsets = [0, 2], sizes = [1, 128], strides = [1, 1]} : vector<1x130xbf16> to vector<1x128xbf16>
    %cst_66 = arith.constant 0.000000e+00 : f32
    %154 = arith.truncf %cst_66 : f32 to bf16
    %155 = vector.broadcast %154 : bf16 to vector<1x128xbf16>
    %156 = arith.select %20, %153, %155 : vector<1x128xi1>, vector<1x128xbf16>
    %157 = arith.extf %156 : vector<1x128xbf16> to vector<1x128xf32>
    %c23 = arith.constant 23 : index
    %c0_67 = arith.constant 0 : index
    %158 = vector.load %arg14[%c23, %c0_67] : memref<27x128xf32, #tpu.memory_space<vmem>>, vector<1x128xf32>
    tpu.vector_store %arg14[%c23, %c0_67], %157 {strides = array<i32>} : memref<27x128xf32, #tpu.memory_space<vmem>>, vector<1x128xf32>,
    %c0_68 = arith.constant 0 : index
    %c2_69 = arith.constant 2 : index
    %c32_70 = arith.constant 32 : index
    %159 = vector.load %arg1[%c0_68, %c2_69, %c32_70] : memref<1x3x290xbf16, #tpu.memory_space<vmem>>, vector<1x1x130xbf16>
    %160 = vector.shape_cast %159 : vector<1x1x130xbf16> to vector<1x130xbf16>
    %161 = vector.extract_strided_slice %160 {offsets = [0, 0], sizes = [1, 128], strides = [1, 1]} : vector<1x130xbf16> to vector<1x128xbf16>
    %cst_71 = arith.constant 0.000000e+00 : f32
    %162 = arith.truncf %cst_71 : f32 to bf16
    %163 = vector.broadcast %162 : bf16 to vector<1x128xbf16>
    %164 = arith.select %18, %161, %163 : vector<1x128xi1>, vector<1x128xbf16>
    %165 = arith.extf %164 : vector<1x128xbf16> to vector<1x128xf32>
    %c24 = arith.constant 24 : index
    %c0_72 = arith.constant 0 : index
    %166 = vector.load %arg14[%c24, %c0_72] : memref<27x128xf32, #tpu.memory_space<vmem>>, vector<1x128xf32>
    tpu.vector_store %arg14[%c24, %c0_72], %165 {strides = array<i32>} : memref<27x128xf32, #tpu.memory_space<vmem>>, vector<1x128xf32>,
    %167 = vector.extract_strided_slice %160 {offsets = [0, 1], sizes = [1, 128], strides = [1, 1]} : vector<1x130xbf16> to vector<1x128xbf16>
    %168 = arith.extf %167 : vector<1x128xbf16> to vector<1x128xf32>
    %c25 = arith.constant 25 : index
    %c0_73 = arith.constant 0 : index
    %169 = vector.load %arg14[%c25, %c0_73] : memref<27x128xf32, #tpu.memory_space<vmem>>, vector<1x128xf32>
    tpu.vector_store %arg14[%c25, %c0_73], %168 {strides = array<i32>} : memref<27x128xf32, #tpu.memory_space<vmem>>, vector<1x128xf32>,
    %170 = vector.extract_strided_slice %160 {offsets = [0, 2], sizes = [1, 128], strides = [1, 1]} : vector<1x130xbf16> to vector<1x128xbf16>
    %cst_74 = arith.constant 0.000000e+00 : f32
    %171 = arith.truncf %cst_74 : f32 to bf16
    %172 = vector.broadcast %171 : bf16 to vector<1x128xbf16>
    %173 = arith.select %20, %170, %172 : vector<1x128xi1>, vector<1x128xbf16>
    %174 = arith.extf %173 : vector<1x128xbf16> to vector<1x128xf32>
    %c26 = arith.constant 26 : index
    %c0_75 = arith.constant 0 : index
    %175 = vector.load %arg14[%c26, %c0_75] : memref<27x128xf32, #tpu.memory_space<vmem>>, vector<1x128xf32>
    tpu.vector_store %arg14[%c26, %c0_75], %174 {strides = array<i32>} : memref<27x128xf32, #tpu.memory_space<vmem>>, vector<1x128xf32>,
    %c0_76 = arith.constant 0 : index
    %c0_77 = arith.constant 0 : index
    %176 = vector.load %arg2[%c0_76, %c0_77] : memref<512x27xbf16, #tpu.memory_space<vmem>>, vector<512x27xbf16>
    %c0_78 = arith.constant 0 : index
    %c0_79 = arith.constant 0 : index
    %177 = vector.load %arg14[%c0_78, %c0_79] : memref<27x128xf32, #tpu.memory_space<vmem>>, vector<27x128xf32>
    %178 = arith.truncf %177 : vector<27x128xf32> to vector<27x128xbf16>
    %cst_80 = arith.constant dense<0.000000e+00> : vector<512x128xf32>
    %179 = tpu.matmul %176, %178, %cst_80 {dimension_numbers = #tpu.dot_dimension_numbers<[1], [0], [0], [1], [0, 0, 1, 1], [], []>} : vector<512x27xbf16>, vector<27x128xbf16>, vector<512x128xf32> -> vector<512x128xf32>
    %c0_81 = arith.constant 0 : index
    %c0_82 = arith.constant 0 : index
    %180 = vector.load %arg3[%c0_81, %c0_82] : memref<512x1xf32, #tpu.memory_space<vmem>>, vector<512x1xf32>
    %181 = vector.broadcast %180 : vector<512x1xf32> to vector<512x128xf32>
    %182 = arith.addf %179, %181 : vector<512x128xf32>
    %cst_83 = arith.constant 0.000000e+00 : f32
    %183 = vector.broadcast %cst_83 : f32 to vector<512x128xf32>
    %184 = arith.maximumf %182, %183 : vector<512x128xf32>
    %185 = arith.truncf %184 : vector<512x128xf32> to vector<512x128xbf16>
    %cst_84 = arith.constant dense<0.000000e+00> : vector<512x1xf32>
    %186 = tpu.matmul %185, %21, %cst_84 {dimension_numbers = #tpu.dot_dimension_numbers<[1], [0], [0], [1], [0, 0, 1, 1], [], []>} : vector<512x128xbf16>, vector<128x1xbf16>, vector<512x1xf32> -> vector<512x1xf32>
    %187 = arith.addf %22, %186 : vector<512x1xf32>
    %c0_85 = arith.constant 0 : index
    %c0_86 = arith.constant 0 : index
    %c128 = arith.constant 128 : index
    %188 = vector.load %arg1[%c0_85, %c0_86, %c128] : memref<1x3x290xbf16, #tpu.memory_space<vmem>>, vector<1x1x130xbf16>
    %189 = vector.shape_cast %188 : vector<1x1x130xbf16> to vector<1x130xbf16>
    %190 = vector.extract_strided_slice %189 {offsets = [0, 0], sizes = [1, 128], strides = [1, 1]} : vector<1x130xbf16> to vector<1x128xbf16>
    %cst_87 = arith.constant 0.000000e+00 : f32
    %191 = arith.truncf %cst_87 : f32 to bf16
    %192 = vector.broadcast %191 : bf16 to vector<1x128xbf16>
    %193 = arith.select %18, %190, %192 : vector<1x128xi1>, vector<1x128xbf16>
    %194 = arith.extf %193 : vector<1x128xbf16> to vector<1x128xf32>
    %c0_88 = arith.constant 0 : index
    %c0_89 = arith.constant 0 : index
    %195 = vector.load %arg14[%c0_88, %c0_89] : memref<27x128xf32, #tpu.memory_space<vmem>>, vector<1x128xf32>
    tpu.vector_store %arg14[%c0_88, %c0_89], %194 {strides = array<i32>} : memref<27x128xf32, #tpu.memory_space<vmem>>, vector<1x128xf32>,
    %196 = vector.extract_strided_slice %189 {offsets = [0, 1], sizes = [1, 128], strides = [1, 1]} : vector<1x130xbf16> to vector<1x128xbf16>
    %197 = arith.extf %196 : vector<1x128xbf16> to vector<1x128xf32>
    %c1_90 = arith.constant 1 : index
    %c0_91 = arith.constant 0 : index
    %198 = vector.load %arg14[%c1_90, %c0_91] : memref<27x128xf32, #tpu.memory_space<vmem>>, vector<1x128xf32>
    tpu.vector_store %arg14[%c1_90, %c0_91], %197 {strides = array<i32>} : memref<27x128xf32, #tpu.memory_space<vmem>>, vector<1x128xf32>,
    %199 = vector.extract_strided_slice %189 {offsets = [0, 2], sizes = [1, 128], strides = [1, 1]} : vector<1x130xbf16> to vector<1x128xbf16>
    %cst_92 = arith.constant 0.000000e+00 : f32
    %200 = arith.truncf %cst_92 : f32 to bf16
    %201 = vector.broadcast %200 : bf16 to vector<1x128xbf16>
    %202 = arith.select %20, %199, %201 : vector<1x128xi1>, vector<1x128xbf16>
    %203 = arith.extf %202 : vector<1x128xbf16> to vector<1x128xf32>
    %c2_93 = arith.constant 2 : index
    %c0_94 = arith.constant 0 : index
    %204 = vector.load %arg14[%c2_93, %c0_94] : memref<27x128xf32, #tpu.memory_space<vmem>>, vector<1x128xf32>
    tpu.vector_store %arg14[%c2_93, %c0_94], %203 {strides = array<i32>} : memref<27x128xf32, #tpu.memory_space<vmem>>, vector<1x128xf32>,
    %c0_95 = arith.constant 0 : index
    %c0_96 = arith.constant 0 : index
    %c144 = arith.constant 144 : index
    %205 = vector.load %arg1[%c0_95, %c0_96, %c144] : memref<1x3x290xbf16, #tpu.memory_space<vmem>>, vector<1x1x130xbf16>
    %206 = vector.shape_cast %205 : vector<1x1x130xbf16> to vector<1x130xbf16>
    %207 = vector.extract_strided_slice %206 {offsets = [0, 0], sizes = [1, 128], strides = [1, 1]} : vector<1x130xbf16> to vector<1x128xbf16>
    %cst_97 = arith.constant 0.000000e+00 : f32
    %208 = arith.truncf %cst_97 : f32 to bf16
    %209 = vector.broadcast %208 : bf16 to vector<1x128xbf16>
    %210 = arith.select %18, %207, %209 : vector<1x128xi1>, vector<1x128xbf16>
    %211 = arith.extf %210 : vector<1x128xbf16> to vector<1x128xf32>
    %c3_98 = arith.constant 3 : index
    %c0_99 = arith.constant 0 : index
    %212 = vector.load %arg14[%c3_98, %c0_99] : memref<27x128xf32, #tpu.memory_space<vmem>>, vector<1x128xf32>
    tpu.vector_store %arg14[%c3_98, %c0_99], %211 {strides = array<i32>} : memref<27x128xf32, #tpu.memory_space<vmem>>, vector<1x128xf32>,
    %213 = vector.extract_strided_slice %206 {offsets = [0, 1], sizes = [1, 128], strides = [1, 1]} : vector<1x130xbf16> to vector<1x128xbf16>
    %214 = arith.extf %213 : vector<1x128xbf16> to vector<1x128xf32>
    %c4_100 = arith.constant 4 : index
    %c0_101 = arith.constant 0 : index
    %215 = vector.load %arg14[%c4_100, %c0_101] : memref<27x128xf32, #tpu.memory_space<vmem>>, vector<1x128xf32>
    tpu.vector_store %arg14[%c4_100, %c0_101], %214 {strides = array<i32>} : memref<27x128xf32, #tpu.memory_space<vmem>>, vector<1x128xf32>,
    %216 = vector.extract_strided_slice %206 {offsets = [0, 2], sizes = [1, 128], strides = [1, 1]} : vector<1x130xbf16> to vector<1x128xbf16>
    %cst_102 = arith.constant 0.000000e+00 : f32
    %217 = arith.truncf %cst_102 : f32 to bf16
    %218 = vector.broadcast %217 : bf16 to vector<1x128xbf16>
    %219 = arith.select %20, %216, %218 : vector<1x128xi1>, vector<1x128xbf16>
    %220 = arith.extf %219 : vector<1x128xbf16> to vector<1x128xf32>
    %c5_103 = arith.constant 5 : index
    %c0_104 = arith.constant 0 : index
    %221 = vector.load %arg14[%c5_103, %c0_104] : memref<27x128xf32, #tpu.memory_space<vmem>>, vector<1x128xf32>
    tpu.vector_store %arg14[%c5_103, %c0_104], %220 {strides = array<i32>} : memref<27x128xf32, #tpu.memory_space<vmem>>, vector<1x128xf32>,
    %c0_105 = arith.constant 0 : index
    %c0_106 = arith.constant 0 : index
    %c160 = arith.constant 160 : index
    %222 = vector.load %arg1[%c0_105, %c0_106, %c160] : memref<1x3x290xbf16, #tpu.memory_space<vmem>>, vector<1x1x130xbf16>
    %223 = vector.shape_cast %222 : vector<1x1x130xbf16> to vector<1x130xbf16>
    %224 = vector.extract_strided_slice %223 {offsets = [0, 0], sizes = [1, 128], strides = [1, 1]} : vector<1x130xbf16> to vector<1x128xbf16>
    %cst_107 = arith.constant 0.000000e+00 : f32
    %225 = arith.truncf %cst_107 : f32 to bf16
    %226 = vector.broadcast %225 : bf16 to vector<1x128xbf16>
    %227 = arith.select %18, %224, %226 : vector<1x128xi1>, vector<1x128xbf16>
    %228 = arith.extf %227 : vector<1x128xbf16> to vector<1x128xf32>
    %c6_108 = arith.constant 6 : index
    %c0_109 = arith.constant 0 : index
    %229 = vector.load %arg14[%c6_108, %c0_109] : memref<27x128xf32, #tpu.memory_space<vmem>>, vector<1x128xf32>
    tpu.vector_store %arg14[%c6_108, %c0_109], %228 {strides = array<i32>} : memref<27x128xf32, #tpu.memory_space<vmem>>, vector<1x128xf32>,
    %230 = vector.extract_strided_slice %223 {offsets = [0, 1], sizes = [1, 128], strides = [1, 1]} : vector<1x130xbf16> to vector<1x128xbf16>
    %231 = arith.extf %230 : vector<1x128xbf16> to vector<1x128xf32>
    %c7_110 = arith.constant 7 : index
    %c0_111 = arith.constant 0 : index
    %232 = vector.load %arg14[%c7_110, %c0_111] : memref<27x128xf32, #tpu.memory_space<vmem>>, vector<1x128xf32>
    tpu.vector_store %arg14[%c7_110, %c0_111], %231 {strides = array<i32>} : memref<27x128xf32, #tpu.memory_space<vmem>>, vector<1x128xf32>,
    %233 = vector.extract_strided_slice %223 {offsets = [0, 2], sizes = [1, 128], strides = [1, 1]} : vector<1x130xbf16> to vector<1x128xbf16>
    %cst_112 = arith.constant 0.000000e+00 : f32
    %234 = arith.truncf %cst_112 : f32 to bf16
    %235 = vector.broadcast %234 : bf16 to vector<1x128xbf16>
    %236 = arith.select %20, %233, %235 : vector<1x128xi1>, vector<1x128xbf16>
    %237 = arith.extf %236 : vector<1x128xbf16> to vector<1x128xf32>
    %c8_113 = arith.constant 8 : index
    %c0_114 = arith.constant 0 : index
    %238 = vector.load %arg14[%c8_113, %c0_114] : memref<27x128xf32, #tpu.memory_space<vmem>>, vector<1x128xf32>
    tpu.vector_store %arg14[%c8_113, %c0_114], %237 {strides = array<i32>} : memref<27x128xf32, #tpu.memory_space<vmem>>, vector<1x128xf32>,
    %c0_115 = arith.constant 0 : index
    %c1_116 = arith.constant 1 : index
    %c128_117 = arith.constant 128 : index
    %239 = vector.load %arg1[%c0_115, %c1_116, %c128_117] : memref<1x3x290xbf16, #tpu.memory_space<vmem>>, vector<1x1x130xbf16>
    %240 = vector.shape_cast %239 : vector<1x1x130xbf16> to vector<1x130xbf16>
    %241 = vector.extract_strided_slice %240 {offsets = [0, 0], sizes = [1, 128], strides = [1, 1]} : vector<1x130xbf16> to vector<1x128xbf16>
    %cst_118 = arith.constant 0.000000e+00 : f32
    %242 = arith.truncf %cst_118 : f32 to bf16
    %243 = vector.broadcast %242 : bf16 to vector<1x128xbf16>
    %244 = arith.select %18, %241, %243 : vector<1x128xi1>, vector<1x128xbf16>
    %245 = arith.extf %244 : vector<1x128xbf16> to vector<1x128xf32>
    %c9_119 = arith.constant 9 : index
    %c0_120 = arith.constant 0 : index
    %246 = vector.load %arg14[%c9_119, %c0_120] : memref<27x128xf32, #tpu.memory_space<vmem>>, vector<1x128xf32>
    tpu.vector_store %arg14[%c9_119, %c0_120], %245 {strides = array<i32>} : memref<27x128xf32, #tpu.memory_space<vmem>>, vector<1x128xf32>,
    %247 = vector.extract_strided_slice %240 {offsets = [0, 1], sizes = [1, 128], strides = [1, 1]} : vector<1x130xbf16> to vector<1x128xbf16>
    %248 = arith.extf %247 : vector<1x128xbf16> to vector<1x128xf32>
    %c10_121 = arith.constant 10 : index
    %c0_122 = arith.constant 0 : index
    %249 = vector.load %arg14[%c10_121, %c0_122] : memref<27x128xf32, #tpu.memory_space<vmem>>, vector<1x128xf32>
    tpu.vector_store %arg14[%c10_121, %c0_122], %248 {strides = array<i32>} : memref<27x128xf32, #tpu.memory_space<vmem>>, vector<1x128xf32>,
    %250 = vector.extract_strided_slice %240 {offsets = [0, 2], sizes = [1, 128], strides = [1, 1]} : vector<1x130xbf16> to vector<1x128xbf16>
    %cst_123 = arith.constant 0.000000e+00 : f32
    %251 = arith.truncf %cst_123 : f32 to bf16
    %252 = vector.broadcast %251 : bf16 to vector<1x128xbf16>
    %253 = arith.select %20, %250, %252 : vector<1x128xi1>, vector<1x128xbf16>
    %254 = arith.extf %253 : vector<1x128xbf16> to vector<1x128xf32>
    %c11_124 = arith.constant 11 : index
    %c0_125 = arith.constant 0 : index
    %255 = vector.load %arg14[%c11_124, %c0_125] : memref<27x128xf32, #tpu.memory_space<vmem>>, vector<1x128xf32>
    tpu.vector_store %arg14[%c11_124, %c0_125], %254 {strides = array<i32>} : memref<27x128xf32, #tpu.memory_space<vmem>>, vector<1x128xf32>,
    %c0_126 = arith.constant 0 : index
    %c1_127 = arith.constant 1 : index
    %c144_128 = arith.constant 144 : index
    %256 = vector.load %arg1[%c0_126, %c1_127, %c144_128] : memref<1x3x290xbf16, #tpu.memory_space<vmem>>, vector<1x1x130xbf16>
    %257 = vector.shape_cast %256 : vector<1x1x130xbf16> to vector<1x130xbf16>
    %258 = vector.extract_strided_slice %257 {offsets = [0, 0], sizes = [1, 128], strides = [1, 1]} : vector<1x130xbf16> to vector<1x128xbf16>
    %cst_129 = arith.constant 0.000000e+00 : f32
    %259 = arith.truncf %cst_129 : f32 to bf16
    %260 = vector.broadcast %259 : bf16 to vector<1x128xbf16>
    %261 = arith.select %18, %258, %260 : vector<1x128xi1>, vector<1x128xbf16>
    %262 = arith.extf %261 : vector<1x128xbf16> to vector<1x128xf32>
    %c12_130 = arith.constant 12 : index
    %c0_131 = arith.constant 0 : index
    %263 = vector.load %arg14[%c12_130, %c0_131] : memref<27x128xf32, #tpu.memory_space<vmem>>, vector<1x128xf32>
    tpu.vector_store %arg14[%c12_130, %c0_131], %262 {strides = array<i32>} : memref<27x128xf32, #tpu.memory_space<vmem>>, vector<1x128xf32>,
    %264 = vector.extract_strided_slice %257 {offsets = [0, 1], sizes = [1, 128], strides = [1, 1]} : vector<1x130xbf16> to vector<1x128xbf16>
    %265 = arith.extf %264 : vector<1x128xbf16> to vector<1x128xf32>
    %c13_132 = arith.constant 13 : index
    %c0_133 = arith.constant 0 : index
    %266 = vector.load %arg14[%c13_132, %c0_133] : memref<27x128xf32, #tpu.memory_space<vmem>>, vector<1x128xf32>
    tpu.vector_store %arg14[%c13_132, %c0_133], %265 {strides = array<i32>} : memref<27x128xf32, #tpu.memory_space<vmem>>, vector<1x128xf32>,
    %267 = vector.extract_strided_slice %257 {offsets = [0, 2], sizes = [1, 128], strides = [1, 1]} : vector<1x130xbf16> to vector<1x128xbf16>
    %cst_134 = arith.constant 0.000000e+00 : f32
    %268 = arith.truncf %cst_134 : f32 to bf16
    %269 = vector.broadcast %268 : bf16 to vector<1x128xbf16>
    %270 = arith.select %20, %267, %269 : vector<1x128xi1>, vector<1x128xbf16>
    %271 = arith.extf %270 : vector<1x128xbf16> to vector<1x128xf32>
    %c14_135 = arith.constant 14 : index
    %c0_136 = arith.constant 0 : index
    %272 = vector.load %arg14[%c14_135, %c0_136] : memref<27x128xf32, #tpu.memory_space<vmem>>, vector<1x128xf32>
    tpu.vector_store %arg14[%c14_135, %c0_136], %271 {strides = array<i32>} : memref<27x128xf32, #tpu.memory_space<vmem>>, vector<1x128xf32>,
    %c0_137 = arith.constant 0 : index
    %c1_138 = arith.constant 1 : index
    %c160_139 = arith.constant 160 : index
    %273 = vector.load %arg1[%c0_137, %c1_138, %c160_139] : memref<1x3x290xbf16, #tpu.memory_space<vmem>>, vector<1x1x130xbf16>
    %274 = vector.shape_cast %273 : vector<1x1x130xbf16> to vector<1x130xbf16>
    %275 = vector.extract_strided_slice %274 {offsets = [0, 0], sizes = [1, 128], strides = [1, 1]} : vector<1x130xbf16> to vector<1x128xbf16>
    %cst_140 = arith.constant 0.000000e+00 : f32
    %276 = arith.truncf %cst_140 : f32 to bf16
    %277 = vector.broadcast %276 : bf16 to vector<1x128xbf16>
    %278 = arith.select %18, %275, %277 : vector<1x128xi1>, vector<1x128xbf16>
    %279 = arith.extf %278 : vector<1x128xbf16> to vector<1x128xf32>
    %c15_141 = arith.constant 15 : index
    %c0_142 = arith.constant 0 : index
    %280 = vector.load %arg14[%c15_141, %c0_142] : memref<27x128xf32, #tpu.memory_space<vmem>>, vector<1x128xf32>
    tpu.vector_store %arg14[%c15_141, %c0_142], %279 {strides = array<i32>} : memref<27x128xf32, #tpu.memory_space<vmem>>, vector<1x128xf32>,
    %281 = vector.extract_strided_slice %274 {offsets = [0, 1], sizes = [1, 128], strides = [1, 1]} : vector<1x130xbf16> to vector<1x128xbf16>
    %282 = arith.extf %281 : vector<1x128xbf16> to vector<1x128xf32>
    %c16_143 = arith.constant 16 : index
    %c0_144 = arith.constant 0 : index
    %283 = vector.load %arg14[%c16_143, %c0_144] : memref<27x128xf32, #tpu.memory_space<vmem>>, vector<1x128xf32>
    tpu.vector_store %arg14[%c16_143, %c0_144], %282 {strides = array<i32>} : memref<27x128xf32, #tpu.memory_space<vmem>>, vector<1x128xf32>,
    %284 = vector.extract_strided_slice %274 {offsets = [0, 2], sizes = [1, 128], strides = [1, 1]} : vector<1x130xbf16> to vector<1x128xbf16>
    %cst_145 = arith.constant 0.000000e+00 : f32
    %285 = arith.truncf %cst_145 : f32 to bf16
    %286 = vector.broadcast %285 : bf16 to vector<1x128xbf16>
    %287 = arith.select %20, %284, %286 : vector<1x128xi1>, vector<1x128xbf16>
    %288 = arith.extf %287 : vector<1x128xbf16> to vector<1x128xf32>
    %c17_146 = arith.constant 17 : index
    %c0_147 = arith.constant 0 : index
    %289 = vector.load %arg14[%c17_146, %c0_147] : memref<27x128xf32, #tpu.memory_space<vmem>>, vector<1x128xf32>
    tpu.vector_store %arg14[%c17_146, %c0_147], %288 {strides = array<i32>} : memref<27x128xf32, #tpu.memory_space<vmem>>, vector<1x128xf32>,
    %c0_148 = arith.constant 0 : index
    %c2_149 = arith.constant 2 : index
    %c128_150 = arith.constant 128 : index
    %290 = vector.load %arg1[%c0_148, %c2_149, %c128_150] : memref<1x3x290xbf16, #tpu.memory_space<vmem>>, vector<1x1x130xbf16>
    %291 = vector.shape_cast %290 : vector<1x1x130xbf16> to vector<1x130xbf16>
    %292 = vector.extract_strided_slice %291 {offsets = [0, 0], sizes = [1, 128], strides = [1, 1]} : vector<1x130xbf16> to vector<1x128xbf16>
    %cst_151 = arith.constant 0.000000e+00 : f32
    %293 = arith.truncf %cst_151 : f32 to bf16
    %294 = vector.broadcast %293 : bf16 to vector<1x128xbf16>
    %295 = arith.select %18, %292, %294 : vector<1x128xi1>, vector<1x128xbf16>
    %296 = arith.extf %295 : vector<1x128xbf16> to vector<1x128xf32>
    %c18_152 = arith.constant 18 : index
    %c0_153 = arith.constant 0 : index
    %297 = vector.load %arg14[%c18_152, %c0_153] : memref<27x128xf32, #tpu.memory_space<vmem>>, vector<1x128xf32>
    tpu.vector_store %arg14[%c18_152, %c0_153], %296 {strides = array<i32>} : memref<27x128xf32, #tpu.memory_space<vmem>>, vector<1x128xf32>,
    %298 = vector.extract_strided_slice %291 {offsets = [0, 1], sizes = [1, 128], strides = [1, 1]} : vector<1x130xbf16> to vector<1x128xbf16>
    %299 = arith.extf %298 : vector<1x128xbf16> to vector<1x128xf32>
    %c19_154 = arith.constant 19 : index
    %c0_155 = arith.constant 0 : index
    %300 = vector.load %arg14[%c19_154, %c0_155] : memref<27x128xf32, #tpu.memory_space<vmem>>, vector<1x128xf32>
    tpu.vector_store %arg14[%c19_154, %c0_155], %299 {strides = array<i32>} : memref<27x128xf32, #tpu.memory_space<vmem>>, vector<1x128xf32>,
    %301 = vector.extract_strided_slice %291 {offsets = [0, 2], sizes = [1, 128], strides = [1, 1]} : vector<1x130xbf16> to vector<1x128xbf16>
    %cst_156 = arith.constant 0.000000e+00 : f32
    %302 = arith.truncf %cst_156 : f32 to bf16
    %303 = vector.broadcast %302 : bf16 to vector<1x128xbf16>
    %304 = arith.select %20, %301, %303 : vector<1x128xi1>, vector<1x128xbf16>
    %305 = arith.extf %304 : vector<1x128xbf16> to vector<1x128xf32>
    %c20_157 = arith.constant 20 : index
    %c0_158 = arith.constant 0 : index
    %306 = vector.load %arg14[%c20_157, %c0_158] : memref<27x128xf32, #tpu.memory_space<vmem>>, vector<1x128xf32>
    tpu.vector_store %arg14[%c20_157, %c0_158], %305 {strides = array<i32>} : memref<27x128xf32, #tpu.memory_space<vmem>>, vector<1x128xf32>,
    %c0_159 = arith.constant 0 : index
    %c2_160 = arith.constant 2 : index
    %c144_161 = arith.constant 144 : index
    %307 = vector.load %arg1[%c0_159, %c2_160, %c144_161] : memref<1x3x290xbf16, #tpu.memory_space<vmem>>, vector<1x1x130xbf16>
    %308 = vector.shape_cast %307 : vector<1x1x130xbf16> to vector<1x130xbf16>
    %309 = vector.extract_strided_slice %308 {offsets = [0, 0], sizes = [1, 128], strides = [1, 1]} : vector<1x130xbf16> to vector<1x128xbf16>
    %cst_162 = arith.constant 0.000000e+00 : f32
    %310 = arith.truncf %cst_162 : f32 to bf16
    %311 = vector.broadcast %310 : bf16 to vector<1x128xbf16>
    %312 = arith.select %18, %309, %311 : vector<1x128xi1>, vector<1x128xbf16>
    %313 = arith.extf %312 : vector<1x128xbf16> to vector<1x128xf32>
    %c21_163 = arith.constant 21 : index
    %c0_164 = arith.constant 0 : index
    %314 = vector.load %arg14[%c21_163, %c0_164] : memref<27x128xf32, #tpu.memory_space<vmem>>, vector<1x128xf32>
    tpu.vector_store %arg14[%c21_163, %c0_164], %313 {strides = array<i32>} : memref<27x128xf32, #tpu.memory_space<vmem>>, vector<1x128xf32>,
    %315 = vector.extract_strided_slice %308 {offsets = [0, 1], sizes = [1, 128], strides = [1, 1]} : vector<1x130xbf16> to vector<1x128xbf16>
    %316 = arith.extf %315 : vector<1x128xbf16> to vector<1x128xf32>
    %c22_165 = arith.constant 22 : index
    %c0_166 = arith.constant 0 : index
    %317 = vector.load %arg14[%c22_165, %c0_166] : memref<27x128xf32, #tpu.memory_space<vmem>>, vector<1x128xf32>
    tpu.vector_store %arg14[%c22_165, %c0_166], %316 {strides = array<i32>} : memref<27x128xf32, #tpu.memory_space<vmem>>, vector<1x128xf32>,
    %318 = vector.extract_strided_slice %308 {offsets = [0, 2], sizes = [1, 128], strides = [1, 1]} : vector<1x130xbf16> to vector<1x128xbf16>
    %cst_167 = arith.constant 0.000000e+00 : f32
    %319 = arith.truncf %cst_167 : f32 to bf16
    %320 = vector.broadcast %319 : bf16 to vector<1x128xbf16>
    %321 = arith.select %20, %318, %320 : vector<1x128xi1>, vector<1x128xbf16>
    %322 = arith.extf %321 : vector<1x128xbf16> to vector<1x128xf32>
    %c23_168 = arith.constant 23 : index
    %c0_169 = arith.constant 0 : index
    %323 = vector.load %arg14[%c23_168, %c0_169] : memref<27x128xf32, #tpu.memory_space<vmem>>, vector<1x128xf32>
    tpu.vector_store %arg14[%c23_168, %c0_169], %322 {strides = array<i32>} : memref<27x128xf32, #tpu.memory_space<vmem>>, vector<1x128xf32>,
    %c0_170 = arith.constant 0 : index
    %c2_171 = arith.constant 2 : index
    %c160_172 = arith.constant 160 : index
    %324 = vector.load %arg1[%c0_170, %c2_171, %c160_172] : memref<1x3x290xbf16, #tpu.memory_space<vmem>>, vector<1x1x130xbf16>
    %325 = vector.shape_cast %324 : vector<1x1x130xbf16> to vector<1x130xbf16>
    %326 = vector.extract_strided_slice %325 {offsets = [0, 0], sizes = [1, 128], strides = [1, 1]} : vector<1x130xbf16> to vector<1x128xbf16>
    %cst_173 = arith.constant 0.000000e+00 : f32
    %327 = arith.truncf %cst_173 : f32 to bf16
    %328 = vector.broadcast %327 : bf16 to vector<1x128xbf16>
    %329 = arith.select %18, %326, %328 : vector<1x128xi1>, vector<1x128xbf16>
    %330 = arith.extf %329 : vector<1x128xbf16> to vector<1x128xf32>
    %c24_174 = arith.constant 24 : index
    %c0_175 = arith.constant 0 : index
    %331 = vector.load %arg14[%c24_174, %c0_175] : memref<27x128xf32, #tpu.memory_space<vmem>>, vector<1x128xf32>
    tpu.vector_store %arg14[%c24_174, %c0_175], %330 {strides = array<i32>} : memref<27x128xf32, #tpu.memory_space<vmem>>, vector<1x128xf32>,
    %332 = vector.extract_strided_slice %325 {offsets = [0, 1], sizes = [1, 128], strides = [1, 1]} : vector<1x130xbf16> to vector<1x128xbf16>
    %333 = arith.extf %332 : vector<1x128xbf16> to vector<1x128xf32>
    %c25_176 = arith.constant 25 : index
    %c0_177 = arith.constant 0 : index
    %334 = vector.load %arg14[%c25_176, %c0_177] : memref<27x128xf32, #tpu.memory_space<vmem>>, vector<1x128xf32>
    tpu.vector_store %arg14[%c25_176, %c0_177], %333 {strides = array<i32>} : memref<27x128xf32, #tpu.memory_space<vmem>>, vector<1x128xf32>,
    %335 = vector.extract_strided_slice %325 {offsets = [0, 2], sizes = [1, 128], strides = [1, 1]} : vector<1x130xbf16> to vector<1x128xbf16>
    %cst_178 = arith.constant 0.000000e+00 : f32
    %336 = arith.truncf %cst_178 : f32 to bf16
    %337 = vector.broadcast %336 : bf16 to vector<1x128xbf16>
    %338 = arith.select %20, %335, %337 : vector<1x128xi1>, vector<1x128xbf16>
    %339 = arith.extf %338 : vector<1x128xbf16> to vector<1x128xf32>
    %c26_179 = arith.constant 26 : index
    %c0_180 = arith.constant 0 : index
    %340 = vector.load %arg14[%c26_179, %c0_180] : memref<27x128xf32, #tpu.memory_space<vmem>>, vector<1x128xf32>
    tpu.vector_store %arg14[%c26_179, %c0_180], %339 {strides = array<i32>} : memref<27x128xf32, #tpu.memory_space<vmem>>, vector<1x128xf32>,
    %c0_181 = arith.constant 0 : index
    %c0_182 = arith.constant 0 : index
    %341 = vector.load %arg2[%c0_181, %c0_182] : memref<512x27xbf16, #tpu.memory_space<vmem>>, vector<512x27xbf16>
    %c0_183 = arith.constant 0 : index
    %c0_184 = arith.constant 0 : index
    %342 = vector.load %arg14[%c0_183, %c0_184] : memref<27x128xf32, #tpu.memory_space<vmem>>, vector<27x128xf32>
    %343 = arith.truncf %342 : vector<27x128xf32> to vector<27x128xbf16>
    %cst_185 = arith.constant dense<0.000000e+00> : vector<512x128xf32>
    %344 = tpu.matmul %341, %343, %cst_185 {dimension_numbers = #tpu.dot_dimension_numbers<[1], [0], [0], [1], [0, 0, 1, 1], [], []>} : vector<512x27xbf16>, vector<27x128xbf16>, vector<512x128xf32> -> vector<512x128xf32>
    %c0_186 = arith.constant 0 : index
    %c0_187 = arith.constant 0 : index
    %345 = vector.load %arg3[%c0_186, %c0_187] : memref<512x1xf32, #tpu.memory_space<vmem>>, vector<512x1xf32>
    %346 = vector.broadcast %345 : vector<512x1xf32> to vector<512x128xf32>
    %347 = arith.addf %344, %346 : vector<512x128xf32>
    %cst_188 = arith.constant 0.000000e+00 : f32
    %348 = vector.broadcast %cst_188 : f32 to vector<512x128xf32>
    %349 = arith.maximumf %347, %348 : vector<512x128xf32>
    %350 = arith.truncf %349 : vector<512x128xf32> to vector<512x128xbf16>
    %cst_189 = arith.constant dense<0.000000e+00> : vector<512x1xf32>
    %351 = tpu.matmul %350, %21, %cst_189 {dimension_numbers = #tpu.dot_dimension_numbers<[1], [0], [0], [1], [0, 0, 1, 1], [], []>} : vector<512x128xbf16>, vector<128x1xbf16>, vector<512x1xf32> -> vector<512x1xf32>
    %352 = arith.addf %187, %351 : vector<512x1xf32>
    %cst_190 = arith.constant 3.906250e-03 : f32
    %353 = vector.broadcast %cst_190 : f32 to vector<512x1xf32>
    %354 = arith.mulf %352, %353 : vector<512x1xf32>
    %355 = arith.truncf %354 : vector<512x1xf32> to vector<512x1xbf16>
    %c0_191 = arith.constant 0 : index
    %c0_192 = arith.constant 0 : index
    %356 = vector.load %arg4[%c0_191, %c0_192] : memref<1536x512xbf16, #tpu.memory_space<vmem>>, vector<1536x512xbf16>
    %cst_193 = arith.constant dense<0.000000e+00> : vector<1536x1xf32>
    %357 = tpu.matmul %356, %355, %cst_193 {dimension_numbers = #tpu.dot_dimension_numbers<[1], [0], [0], [1], [0, 0, 1, 1], [], []>} : vector<1536x512xbf16>, vector<512x1xbf16>, vector<1536x1xf32> -> vector<1536x1xf32>
    %c0_194 = arith.constant 0 : index
    %c0_195 = arith.constant 0 : index
    %358 = vector.load %arg5[%c0_194, %c0_195] : memref<1536x1xf32, #tpu.memory_space<vmem>>, vector<1536x1xf32>
    %359 = arith.addf %357, %358 : vector<1536x1xf32>
    %cst_196 = arith.constant 0.000000e+00 : f32
    %360 = vector.broadcast %cst_196 : f32 to vector<1536x1xf32>
    %361 = arith.maximumf %359, %360 : vector<1536x1xf32>
    %362 = vector.extract_strided_slice %361 {offsets = [0, 0], sizes = [1024, 1], strides = [1, 1]} : vector<1536x1xf32> to vector<1024x1xf32>
    %363 = arith.truncf %362 : vector<1024x1xf32> to vector<1024x1xbf16>
    %364 = vector.extract_strided_slice %361 {offsets = [1024, 0], sizes = [512, 1], strides = [1, 1]} : vector<1536x1xf32> to vector<512x1xf32>
    %365 = arith.truncf %364 : vector<512x1xf32> to vector<512x1xbf16>
    %c0_197 = arith.constant 0 : index
    %c0_198 = arith.constant 0 : index
    %366 = vector.load %arg6[%c0_197, %c0_198] : memref<512x1024xbf16, #tpu.memory_space<vmem>>, vector<512x1024xbf16>
    %cst_199 = arith.constant dense<0.000000e+00> : vector<512x1xf32>
    %367 = tpu.matmul %366, %363, %cst_199 {dimension_numbers = #tpu.dot_dimension_numbers<[1], [0], [0], [1], [0, 0, 1, 1], [], []>} : vector<512x1024xbf16>, vector<1024x1xbf16>, vector<512x1xf32> -> vector<512x1xf32>
    %c0_200 = arith.constant 0 : index
    %c0_201 = arith.constant 0 : index
    %368 = vector.load %arg7[%c0_200, %c0_201] : memref<512x1xf32, #tpu.memory_space<vmem>>, vector<512x1xf32>
    %369 = arith.addf %367, %368 : vector<512x1xf32>
    %cst_202 = arith.constant 0.000000e+00 : f32
    %370 = vector.broadcast %cst_202 : f32 to vector<512x1xf32>
    %371 = arith.maximumf %369, %370 : vector<512x1xf32>
    %372 = arith.truncf %371 : vector<512x1xf32> to vector<512x1xbf16>
    %c0_203 = arith.constant 0 : index
    %c0_204 = arith.constant 0 : index
    %373 = vector.load %arg8[%c0_203, %c0_204] : memref<8x512xbf16, #tpu.memory_space<vmem>>, vector<8x512xbf16>
    %cst_205 = arith.constant dense<0.000000e+00> : vector<8x1xf32>
    %374 = tpu.matmul %373, %372, %cst_205 {dimension_numbers = #tpu.dot_dimension_numbers<[1], [0], [0], [1], [0, 0, 1, 1], [], []>} : vector<8x512xbf16>, vector<512x1xbf16>, vector<8x1xf32> -> vector<8x1xf32>
    %c0_206 = arith.constant 0 : index
    %c0_207 = arith.constant 0 : index
    %375 = vector.load %arg9[%c0_206, %c0_207] : memref<8x1xf32, #tpu.memory_space<vmem>>, vector<8x1xf32>
    %376 = arith.addf %374, %375 : vector<8x1xf32>
    %377 = tpu.iota {dimensions = array<i32: 0>} : vector<8x1xi32>
    %c3_i32 = arith.constant 3 : i32
    %378 = vector.broadcast %c3_i32 : i32 to vector<8x1xi32>
    %379 = arith.cmpi sge, %377, %378 : vector<8x1xi32>
    %c6_i32 = arith.constant 6 : i32
    %380 = vector.broadcast %c6_i32 : i32 to vector<8x1xi32>
    %381 = arith.cmpi slt, %377, %380 : vector<8x1xi32>
    %382 = arith.andi %379, %381 : vector<8x1xi1>
    %383 = math.exp %376 : vector<8x1xf32>
    %384 = arith.select %382, %383, %376 : vector<8x1xi1>, vector<8x1xf32>
    %c0_208 = arith.constant 0 : index
    %c0_209 = arith.constant 0 : index
    %385 = vector.load %arg10[%c0_208, %c0_209] : memref<8x512xbf16, #tpu.memory_space<vmem>>, vector<8x512xbf16>
    %cst_210 = arith.constant dense<0.000000e+00> : vector<8x1xf32>
    %386 = tpu.matmul %385, %365, %cst_210 {dimension_numbers = #tpu.dot_dimension_numbers<[1], [0], [0], [1], [0, 0, 1, 1], [], []>} : vector<8x512xbf16>, vector<512x1xbf16>, vector<8x1xf32> -> vector<8x1xf32>
    %c0_211 = arith.constant 0 : index
    %c0_212 = arith.constant 0 : index
    %387 = vector.load %arg11[%c0_211, %c0_212] : memref<8x1xf32, #tpu.memory_space<vmem>>, vector<8x1xf32>
    %388 = arith.addf %386, %387 : vector<8x1xf32>
    %c0_213 = arith.constant 0 : index
    %c0_214 = arith.constant 0 : index
    %c0_215 = arith.constant 0 : index
    %389 = vector.load %arg12[%c0_213, %c0_214, %c0_215] : memref<1x8x1xf32, #tpu.memory_space<vmem>>, vector<1x8x1xf32>
    %390 = vector.shape_cast %389 : vector<1x8x1xf32> to vector<8x1xf32>
    %391 = vector.shape_cast %384 : vector<8x1xf32> to vector<1x8x1xf32>
    tpu.vector_store %arg12[%c0_213, %c0_214, %c0_215], %391 {strides = array<i32>} : memref<1x8x1xf32, #tpu.memory_space<vmem>>, vector<1x8x1xf32>,
    %c0_216 = arith.constant 0 : index
    %c0_217 = arith.constant 0 : index
    %c0_218 = arith.constant 0 : index
    %392 = vector.load %arg13[%c0_216, %c0_217, %c0_218] : memref<1x8x1xf32, #tpu.memory_space<vmem>>, vector<1x8x1xf32>
    %393 = vector.shape_cast %392 : vector<1x8x1xf32> to vector<8x1xf32>
    %394 = vector.shape_cast %388 : vector<8x1xf32> to vector<1x8x1xf32>
    tpu.vector_store %arg13[%c0_216, %c0_217, %c0_218], %394 {strides = array<i32>} : memref<1x8x1xf32, #tpu.memory_space<vmem>>, vector<1x8x1xf32>,
    return
  }
  func.func @transform_0(%arg0: i32) -> (i32, i32, i32) {
    %c0_i32 = arith.constant 0 : i32
    %c0_i32_0 = arith.constant 0 : i32
    %c0_i32_1 = arith.constant 0 : i32
    return %arg0, %c0_i32, %c0_i32_0 : i32, i32, i32
  }
  func.func @transform_1(%arg0: i32) -> (i32, i32) {
    %c0_i32 = arith.constant 0 : i32
    %c0_i32_0 = arith.constant 0 : i32
    %c0_i32_1 = arith.constant 0 : i32
    return %c0_i32, %c0_i32_0 : i32, i32
  }
  func.func @transform_2(%arg0: i32) -> (i32, i32) {
    %c0_i32 = arith.constant 0 : i32
    %c0_i32_0 = arith.constant 0 : i32
    %c0_i32_1 = arith.constant 0 : i32
    return %c0_i32, %c0_i32_0 : i32, i32
  }
  func.func @transform_3(%arg0: i32) -> (i32, i32) {
    %c0_i32 = arith.constant 0 : i32
    %c0_i32_0 = arith.constant 0 : i32
    %c0_i32_1 = arith.constant 0 : i32
    return %c0_i32, %c0_i32_0 : i32, i32
  }
  func.func @transform_4(%arg0: i32) -> (i32, i32) {
    %c0_i32 = arith.constant 0 : i32
    %c0_i32_0 = arith.constant 0 : i32
    %c0_i32_1 = arith.constant 0 : i32
    return %c0_i32, %c0_i32_0 : i32, i32
  }
  func.func @transform_5(%arg0: i32) -> (i32, i32) {
    %c0_i32 = arith.constant 0 : i32
    %c0_i32_0 = arith.constant 0 : i32
    %c0_i32_1 = arith.constant 0 : i32
    return %c0_i32, %c0_i32_0 : i32, i32
  }
  func.func @transform_6(%arg0: i32) -> (i32, i32) {
    %c0_i32 = arith.constant 0 : i32
    %c0_i32_0 = arith.constant 0 : i32
    %c0_i32_1 = arith.constant 0 : i32
    return %c0_i32, %c0_i32_0 : i32, i32
  }
  func.func @transform_7(%arg0: i32) -> (i32, i32) {
    %c0_i32 = arith.constant 0 : i32
    %c0_i32_0 = arith.constant 0 : i32
    %c0_i32_1 = arith.constant 0 : i32
    return %c0_i32, %c0_i32_0 : i32, i32
  }
  func.func @transform_8(%arg0: i32) -> (i32, i32) {
    %c0_i32 = arith.constant 0 : i32
    %c0_i32_0 = arith.constant 0 : i32
    %c0_i32_1 = arith.constant 0 : i32
    return %c0_i32, %c0_i32_0 : i32, i32
  }
  func.func @transform_9(%arg0: i32) -> (i32, i32) {
    %c0_i32 = arith.constant 0 : i32
    %c0_i32_0 = arith.constant 0 : i32
    %c0_i32_1 = arith.constant 0 : i32
    return %c0_i32, %c0_i32_0 : i32, i32
  }
  func.func @transform_10(%arg0: i32) -> (i32, i32) {
    %c0_i32 = arith.constant 0 : i32
    %c0_i32_0 = arith.constant 0 : i32
    %c0_i32_1 = arith.constant 0 : i32
    return %c0_i32, %c0_i32_0 : i32, i32
  }
  func.func @transform_11(%arg0: i32) -> (i32, i32, i32) {
    %c0_i32 = arith.constant 0 : i32
    %c0_i32_0 = arith.constant 0 : i32
    %c0_i32_1 = arith.constant 0 : i32
    return %arg0, %c0_i32, %c0_i32_0 : i32, i32, i32
  }
  func.func @transform_12(%arg0: i32) -> (i32, i32, i32) {
    %c0_i32 = arith.constant 0 : i32
    %c0_i32_0 = arith.constant 0 : i32
    %c0_i32_1 = arith.constant 0 : i32
    return %arg0, %c0_i32, %c0_i32_0 : i32, i32, i32
  }
}

</mosaic_0001>

<llo_original>
// kernel: layout_estimation_forward.1
$region0: #{layout_estimation_forward.1}
  #allocation0 [shape = 'u32[]', space=smem, size = 0x4, offset = 0x4, fixed_abs, tag = 'smem constant byte address 0x4 - core index']
  #allocation1 [shape = 'u32[144,128]{1,0:T(1,128)}', space=vmem, size = 0x12000, scoped, tag = 'internal scratch']
  #allocation2 [shape = 'f32[27,128]{1,0:T(8,128)}', space=vmem, size = 0x4000, scoped, tag = 'scratch operand']
  %s0 = inlined_call_operand.vmem [shape: bf16[2,3,290], index: 0, kind: input, shape index: {}]
  %s1 = inlined_call_operand.vmem [shape: bf16[512,27], index: 1, kind: input, shape index: {}]
  %s2 = inlined_call_operand.vmem [shape: f32[512,1], index: 2, kind: input, shape index: {}]
  %s3 = inlined_call_operand.vmem [shape: bf16[1536,512], index: 3, kind: input, shape index: {}]
  %s4 = inlined_call_operand.vmem [shape: f32[1536,1], index: 4, kind: input, shape index: {}]
  %s5 = inlined_call_operand.hbm [shape: bf16[512,1024], index: 5, kind: input, shape index: {}]
  %s6 = inlined_call_operand.vmem [shape: f32[512,1], index: 6, kind: input, shape index: {}]
  %s7 = inlined_call_operand.vmem [shape: bf16[8,512], index: 7, kind: input, shape index: {}]
  %s8 = inlined_call_operand.vmem [shape: f32[8,1], index: 8, kind: input, shape index: {}]
  %s9 = inlined_call_operand.vmem [shape: bf16[8,512], index: 9, kind: input, shape index: {}]
  %s10 = inlined_call_operand.vmem [shape: f32[8,1], index: 10, kind: input, shape index: {}]
  %s11 = inlined_call_operand.vmem [shape: f32[2,8,1], index: 11, kind: output, shape index: {0}]
  %s12 = inlined_call_operand.vmem [shape: f32[2,8,1], index: 12, kind: output, shape index: {1}]
  %13 = xla_tuple %s11, %s12
  %s14 = sld [smem:[#allocation0]]
  $region89: #{layout_estimation_forward.1} parent=0
    _
  %s16 = ssub.s32 1, %s14
  %s17 = scalar_select 0, %s16, %s14
  $region1: #{layout_estimation_forward.1} parent=0
    #allocation3 [shape = 'u8[1048576]{0}', space=vmem, size = 0x100000, scoped, tag = 'input window, operand 5, single buffered']
    #allocation4 [shape = 's32[2]{0}', space=sflag, size = 0x8, scoped, tag = 'scoped memory for layout_estimation_forward.1']
    %18 = vsyncpa [#allocation4], 0
    loop: start=0, step=1, limit=4
    $region2: #{layout_estimation_forward.1} parent=1 // loop_pre_header
      _
    $region3: #{layout_estimation_forward.1} parent=1 // loop_header
      %s20 = sphi 0, %s24
      %p21 = scmp.ge.s32.totalorder %s20, 4
      %s30 = sphi 0, %s32
      %s33 = sphi 0, %s30
      %s34 = sphi 0, %s33
      %s50 = sphi 0, %s34
      %s54 = sphi 0, %s54
      %s56 = sphi 0, %s54
      %s57 = sphi 0, %s56
      %s71 = sphi 0, %s57
      %s75 = sphi 0, %s75
      %s77 = sphi 0, %s75
      %s78 = sphi 0, %s77
      %s92 = sphi 0, %s78
      %s96 = sphi 0, %s96
      %s98 = sphi 0, %s96
      %s99 = sphi 0, %s98
      %s113 = sphi 0, %s99
      %s117 = sphi 0, %s117
      %s119 = sphi 0, %s117
      %s120 = sphi 0, %s119
      %s134 = sphi 0, %s120
      %s138 = sphi 0, %s138
      %s140 = sphi 0, %s138
      %s141 = sphi 0, %s140
      %s155 = sphi 0, %s141
      %s159 = sphi 0, %s159
      %s161 = sphi 0, %s159
      %s162 = sphi 0, %s161
      %s176 = sphi 0, %s162
      %s180 = sphi 0, %s180
      %s182 = sphi 0, %s180
      %s183 = sphi 0, %s182
      %s197 = sphi 0, %s183
      %s201 = sphi 0, %s201
      %s203 = sphi 0, %s201
      %s204 = sphi 0, %s203
      %s218 = sphi 0, %s204
      %s222 = sphi 0, %s222
      %s224 = sphi 0, %s222
      %s225 = sphi 0, %s224
      %s239 = sphi 0, %s225
      %s243 = sphi 0, %s243
      %s245 = sphi 0, %s243
      %s246 = sphi 0, %s245
      %s260 = sphi 0, %s246
      %s266 = sphi 0, %s268
      %s269 = sphi 0, %s266
      %s270 = sphi 0, %s269
      %s286 = sphi 0, %s270
      %s292 = sphi 0, %s294
      %s295 = sphi 0, %s292
      %s296 = sphi 0, %s295
      %s312 = sphi 0, %s296
    $region4: #{layout_estimation_forward.1} parent=1 // loop_header_branch
      %23 = sbr.rel (%p21) target = $region8
    $region5: #{layout_estimation_forward.1} parent=1 // loop_body
      %s25 = ssub.s32 %s20, 1
      %s26 = ssub.s32 %s20, 2
      %s27 = sadd.s32 %s20, 1
      %s28 = ssub.s32 %s20, %s27
      %p29 = scmp.eq.s32.totalorder %s28, 0
      %s31 = sadd.s32 %s30, 1
      %s32 = scalar_select %p29, %s30, %s31
      %p35 = pneg %p29
      %p36 = scmp.eq.s32.totalorder %s20, 1
      %p37 = por %p35, %p36
      %p38 = scmp.ne.s32.totalorder %s30, %s33
      %p39 = scmp.eq.s32.totalorder %s20, 0
      %p40 = por %p38, %p39
      %p41 = scmp.ne.s32.totalorder %s30, %s33
      %p42 = scmp.eq.s32.totalorder %s25, 1
      %p43 = por %p41, %p42
      %p44 = scmp.ne.s32.totalorder %s33, %s34
      %p45 = scmp.eq.s32.totalorder %s25, 0
      %p46 = por %p44, %p45
      %p47 = scmp.ne.s32.totalorder %s33, %s34
      %p48 = scmp.eq.s32.totalorder %s26, 1
      %p49 = por %p47, %p48
      %p51 = scmp.ne.s32.totalorder %s34, %s50
      %p52 = scmp.eq.s32.totalorder %s26, 0
      %p53 = por %p51, %p52
      %s55 = sadd.s32 %s54, 1
      %p58 = scmp.eq.s32.totalorder %s20, 1
      %p59 = scmp.ne.s32.totalorder %s54, %s56
      %p60 = scmp.eq.s32.totalorder %s20, 0
      %p61 = por %p59, %p60
      %p62 = scmp.ne.s32.totalorder %s54, %s56
      %p63 = scmp.eq.s32.totalorder %s25, 1
      %p64 = por %p62, %p63
      %p65 = scmp.ne.s32.totalorder %s56, %s57
      %p66 = scmp.eq.s32.totalorder %s25, 0
      %p67 = por %p65, %p66
      %p68 = scmp.ne.s32.totalorder %s56, %s57
      %p69 = scmp.eq.s32.totalorder %s26, 1
      %p70 = por %p68, %p69
      %p72 = scmp.ne.s32.totalorder %s57, %s71
      %p73 = scmp.eq.s32.totalorder %s26, 0
      %p74 = por %p72, %p73
      %s76 = sadd.s32 %s75, 1
      %p79 = scmp.eq.s32.totalorder %s20, 1
      %p80 = scmp.ne.s32.totalorder %s75, %s77
      %p81 = scmp.eq.s32.totalorder %s20, 0
      %p82 = por %p80, %p81
      %p83 = scmp.ne.s32.totalorder %s75, %s77
      %p84 = scmp.eq.s32.totalorder %s25, 1
      %p85 = por %p83, %p84
      %p86 = scmp.ne.s32.totalorder %s77, %s78
      %p87 = scmp.eq.s32.totalorder %s25, 0
      %p88 = por %p86, %p87
      %p89 = scmp.ne.s32.totalorder %s77, %s78
      %p90 = scmp.eq.s32.totalorder %s26, 1
      %p91 = por %p89, %p90
      %p93 = scmp.ne.s32.totalorder %s78, %s92
      %p94 = scmp.eq.s32.totalorder %s26, 0
      %p95 = por %p93, %p94
      %s97 = sadd.s32 %s96, 1
      %p100 = scmp.eq.s32.totalorder %s20, 1
      %p101 = scmp.ne.s32.totalorder %s96, %s98
      %p102 = scmp.eq.s32.totalorder %s20, 0
      %p103 = por %p101, %p102
      %p104 = scmp.ne.s32.totalorder %s96, %s98
      %p105 = scmp.eq.s32.totalorder %s25, 1
      %p106 = por %p104, %p105
      %p107 = scmp.ne.s32.totalorder %s98, %s99
      %p108 = scmp.eq.s32.totalorder %s25, 0
      %p109 = por %p107, %p108
      %p110 = scmp.ne.s32.totalorder %s98, %s99
      %p111 = scmp.eq.s32.totalorder %s26, 1
      %p112 = por %p110, %p111
      %p114 = scmp.ne.s32.totalorder %s99, %s113
      %p115 = scmp.eq.s32.totalorder %s26, 0
      %p116 = por %p114, %p115
      %s118 = sadd.s32 %s117, 1
      %p121 = scmp.eq.s32.totalorder %s20, 1
      %p122 = scmp.ne.s32.totalorder %s117, %s119
      %p123 = scmp.eq.s32.totalorder %s20, 0
      %p124 = por %p122, %p123
      %p125 = scmp.ne.s32.totalorder %s117, %s119
      %p126 = scmp.eq.s32.totalorder %s25, 1
      %p127 = por %p125, %p126
      %p128 = scmp.ne.s32.totalorder %s119, %s120
      %p129 = scmp.eq.s32.totalorder %s25, 0
      %p130 = por %p128, %p129
      %p131 = scmp.ne.s32.totalorder %s119, %s120
      %p132 = scmp.eq.s32.totalorder %s26, 1
      %p133 = por %p131, %p132
      %p135 = scmp.ne.s32.totalorder %s120, %s134
      %p136 = scmp.eq.s32.totalorder %s26, 0
      %p137 = por %p135, %p136
      %s139 = sadd.s32 %s138, 1
      %p142 = scmp.eq.s32.totalorder %s20, 1
      %p143 = scmp.ne.s32.totalorder %s138, %s140
      %p144 = scmp.eq.s32.totalorder %s20, 0
      %p145 = por %p143, %p144
      %p146 = scmp.ne.s32.totalorder %s138, %s140
      %p147 = scmp.eq.s32.totalorder %s25, 1
      %p148 = por %p146, %p147
      %p149 = scmp.ne.s32.totalorder %s140, %s141
      %p150 = scmp.eq.s32.totalorder %s25, 0
      %p151 = por %p149, %p150
      %p152 = scmp.ne.s32.totalorder %s140, %s141
      %p153 = scmp.eq.s32.totalorder %s26, 1
      %p154 = por %p152, %p153
      %p156 = scmp.ne.s32.totalorder %s141, %s155
      %p157 = scmp.eq.s32.totalorder %s26, 0
      %p158 = por %p156, %p157
      %s160 = sadd.s32 %s159, 1
      %p163 = scmp.eq.s32.totalorder %s20, 1
      %p164 = scmp.ne.s32.totalorder %s159, %s161
      %p165 = scmp.eq.s32.totalorder %s20, 0
      %p166 = por %p164, %p165
      %p167 = scmp.ne.s32.totalorder %s159, %s161
      %p168 = scmp.eq.s32.totalorder %s25, 1
      %p169 = por %p167, %p168
      %p170 = scmp.ne.s32.totalorder %s161, %s162
      %p171 = scmp.eq.s32.totalorder %s25, 0
      %p172 = por %p170, %p171
      %p173 = scmp.ne.s32.totalorder %s161, %s162
      %p174 = scmp.eq.s32.totalorder %s26, 1
      %p175 = por %p173, %p174
      %p177 = scmp.ne.s32.totalorder %s162, %s176
      %p178 = scmp.eq.s32.totalorder %s26, 0
      %p179 = por %p177, %p178
      %s181 = sadd.s32 %s180, 1
      %p184 = scmp.eq.s32.totalorder %s20, 1
      %p185 = scmp.ne.s32.totalorder %s180, %s182
      %p186 = scmp.eq.s32.totalorder %s20, 0
      %p187 = por %p185, %p186
      %p188 = scmp.ne.s32.totalorder %s180, %s182
      %p189 = scmp.eq.s32.totalorder %s25, 1
      %p190 = por %p188, %p189
      %p191 = scmp.ne.s32.totalorder %s182, %s183
      %p192 = scmp.eq.s32.totalorder %s25, 0
      %p193 = por %p191, %p192
      %p194 = scmp.ne.s32.totalorder %s182, %s183
      %p195 = scmp.eq.s32.totalorder %s26, 1
      %p196 = por %p194, %p195
      %p198 = scmp.ne.s32.totalorder %s183, %s197
      %p199 = scmp.eq.s32.totalorder %s26, 0
      %p200 = por %p198, %p199
      %s202 = sadd.s32 %s201, 1
      %p205 = scmp.eq.s32.totalorder %s20, 1
      %p206 = scmp.ne.s32.totalorder %s201, %s203
      %p207 = scmp.eq.s32.totalorder %s20, 0
      %p208 = por %p206, %p207
      %p209 = scmp.ne.s32.totalorder %s201, %s203
      %p210 = scmp.eq.s32.totalorder %s25, 1
      %p211 = por %p209, %p210
      %p212 = scmp.ne.s32.totalorder %s203, %s204
      %p213 = scmp.eq.s32.totalorder %s25, 0
      %p214 = por %p212, %p213
      %p215 = scmp.ne.s32.totalorder %s203, %s204
      %p216 = scmp.eq.s32.totalorder %s26, 1
      %p217 = por %p215, %p216
      %p219 = scmp.ne.s32.totalorder %s204, %s218
      %p220 = scmp.eq.s32.totalorder %s26, 0
      %p221 = por %p219, %p220
      %s223 = sadd.s32 %s222, 1
      %p226 = scmp.eq.s32.totalorder %s20, 1
      %p227 = scmp.ne.s32.totalorder %s222, %s224
      %p228 = scmp.eq.s32.totalorder %s20, 0
      %p229 = por %p227, %p228
      %p230 = scmp.ne.s32.totalorder %s222, %s224
      %p231 = scmp.eq.s32.totalorder %s25, 1
      %p232 = por %p230, %p231
      %p233 = scmp.ne.s32.totalorder %s224, %s225
      %p234 = scmp.eq.s32.totalorder %s25, 0
      %p235 = por %p233, %p234
      %p236 = scmp.ne.s32.totalorder %s224, %s225
      %p237 = scmp.eq.s32.totalorder %s26, 1
      %p238 = por %p236, %p237
      %p240 = scmp.ne.s32.totalorder %s225, %s239
      %p241 = scmp.eq.s32.totalorder %s26, 0
      %p242 = por %p240, %p241
      %s244 = sadd.s32 %s243, 1
      %p247 = scmp.eq.s32.totalorder %s20, 1
      %p248 = scmp.ne.s32.totalorder %s243, %s245
      %p249 = scmp.eq.s32.totalorder %s20, 0
      %p250 = por %p248, %p249
      %p251 = scmp.ne.s32.totalorder %s243, %s245
      %p252 = scmp.eq.s32.totalorder %s25, 1
      %p253 = por %p251, %p252
      %p254 = scmp.ne.s32.totalorder %s245, %s246
      %p255 = scmp.eq.s32.totalorder %s25, 0
      %p256 = por %p254, %p255
      %p257 = scmp.ne.s32.totalorder %s245, %s246
      %p258 = scmp.eq.s32.totalorder %s26, 1
      %p259 = por %p257, %p258
      %p261 = scmp.ne.s32.totalorder %s246, %s260
      %p262 = scmp.eq.s32.totalorder %s26, 0
      %p263 = por %p261, %p262
      %s264 = ssub.s32 %s20, %s27
      %p265 = scmp.eq.s32.totalorder %s264, 0
      %s267 = sadd.s32 %s266, 1
      %s268 = scalar_select %p265, %s266, %s267
      %p271 = pneg %p265
      %p272 = scmp.eq.s32.totalorder %s20, 1
      %p273 = por %p271, %p272
      %p274 = scmp.ne.s32.totalorder %s266, %s269
      %p275 = scmp.eq.s32.totalorder %s20, 0
      %p276 = por %p274, %p275
      %p277 = scmp.ne.s32.totalorder %s266, %s269
      %p278 = scmp.eq.s32.totalorder %s25, 1
      %p279 = por %p277, %p278
      %p280 = scmp.ne.s32.totalorder %s269, %s270
      %p281 = scmp.eq.s32.totalorder %s25, 0
      %p282 = por %p280, %p281
      %p283 = scmp.ne.s32.totalorder %s269, %s270
      %p284 = scmp.eq.s32.totalorder %s26, 1
      %p285 = por %p283, %p284
      %p287 = scmp.ne.s32.totalorder %s270, %s286
      %p288 = scmp.eq.s32.totalorder %s26, 0
      %p289 = por %p287, %p288
      %s290 = ssub.s32 %s20, %s27
      %p291 = scmp.eq.s32.totalorder %s290, 0
      %s293 = sadd.s32 %s292, 1
      %s294 = scalar_select %p291, %s292, %s293
      %p297 = pneg %p291
      %p298 = scmp.eq.s32.totalorder %s20, 1
      %p299 = por %p297, %p298
      %p300 = scmp.ne.s32.totalorder %s292, %s295
      %p301 = scmp.eq.s32.totalorder %s20, 0
      %p302 = por %p300, %p301
      %p303 = scmp.ne.s32.totalorder %s292, %s295
      %p304 = scmp.eq.s32.totalorder %s25, 1
      %p305 = por %p303, %p304
      %p306 = scmp.ne.s32.totalorder %s295, %s296
      %p307 = scmp.eq.s32.totalorder %s25, 0
      %p308 = por %p306, %p307
      %p309 = scmp.ne.s32.totalorder %s295, %s296
      %p310 = scmp.eq.s32.totalorder %s26, 1
      %p311 = por %p309, %p310
      %p313 = scmp.ne.s32.totalorder %s296, %s312
      %p314 = scmp.eq.s32.totalorder %s26, 0
      %p315 = por %p313, %p314
      %p316 = scmp.le.s32.totalorder 1, %s20
      %p317 = scmp.lt.s32.totalorder %s20, 3
      %p318 = pnand %p316, %p317
      %p319 = pneg %p318
      // Predicated region
      $region9: #{layout_estimation_forward.1} parent=5 // pred_check
        _
      $region10: #{layout_estimation_forward.1} parent=5 // pred_check_branch
        %321 = sbr.rel (%p318) target = $region12
      $region11: #{layout_estimation_forward.1} parent=5 // pred_region
        %s322 = ssub.s32 %s20, 1
        // Predicated region
        $region13: #{layout_estimation_forward.1} parent=11 // pred_check
          %p323 = pneg %p67
        $region14: #{layout_estimation_forward.1} parent=11 // pred_check_branch
          %325 = sbr.rel (%p323) target = $region16
        $region15: #{layout_estimation_forward.1} parent=11 // pred_region
          _
        $region16: #{layout_estimation_forward.1} parent=11 // pred_fallthru
          _
        // Predicated region
        $region17: #{layout_estimation_forward.1} parent=11 // pred_check
          %p326 = pneg %p88
        $region18: #{layout_estimation_forward.1} parent=11 // pred_check_branch
          %328 = sbr.rel (%p326) target = $region20
        $region19: #{layout_estimation_forward.1} parent=11 // pred_region
          _
        $region20: #{layout_estimation_forward.1} parent=11 // pred_fallthru
          _
        // Predicated region
        $region21: #{layout_estimation_forward.1} parent=11 // pred_check
          %p329 = pneg %p109
        $region22: #{layout_estimation_forward.1} parent=11 // pred_check_branch
          %331 = sbr.rel (%p329) target = $region24
        $region23: #{layout_estimation_forward.1} parent=11 // pred_region
          _
        $region24: #{layout_estimation_forward.1} parent=11 // pred_fallthru
          _
        // Predicated region
        $region25: #{layout_estimation_forward.1} parent=11 // pred_check
          %p332 = pneg %p130
        $region26: #{layout_estimation_forward.1} parent=11 // pred_check_branch
          %334 = sbr.rel (%p332) target = $region28
        $region27: #{layout_estimation_forward.1} parent=11 // pred_region
          _
        $region28: #{layout_estimation_forward.1} parent=11 // pred_fallthru
          _
        // Predicated region
        $region29: #{layout_estimation_forward.1} parent=11 // pred_check
          %p335 = pneg %p151
        $region30: #{layout_estimation_forward.1} parent=11 // pred_check_branch
          %337 = sbr.rel (%p335) target = $region32
        $region31: #{layout_estimation_forward.1} parent=11 // pred_region
          %s339 = ssub.s32 32768, 32768
          %340 = vsyncadd [#allocation4], %s339
          %s341 = sshll.u32 [#allocation3], 4
          %s342 = int_to_ptr.vmem [resolvable:$true] %s341
          %347 = dma.hbm_to_vmem [thread:$0]  %s5, 32768, %s342, [#allocation4], 512, 512, 32
        $region32: #{layout_estimation_forward.1} parent=11 // pred_fallthru
          _
        // Predicated region
        $region33: #{layout_estimation_forward.1} parent=11 // pred_check
          %p348 = pneg %p172
        $region34: #{layout_estimation_forward.1} parent=11 // pred_check_branch
          %350 = sbr.rel (%p348) target = $region36
        $region35: #{layout_estimation_forward.1} parent=11 // pred_region
          _
        $region36: #{layout_estimation_forward.1} parent=11 // pred_fallthru
          _
        // Predicated region
        $region37: #{layout_estimation_forward.1} parent=11 // pred_check
          %p351 = pneg %p193
        $region38: #{layout_estimation_forward.1} parent=11 // pred_check_branch
          %353 = sbr.rel (%p351) target = $region40
        $region39: #{layout_estimation_forward.1} parent=11 // pred_region
          _
        $region40: #{layout_estimation_forward.1} parent=11 // pred_fallthru
          _
        // Predicated region
        $region41: #{layout_estimation_forward.1} parent=11 // pred_check
          %p354 = pneg %p214
        $region42: #{layout_estimation_forward.1} parent=11 // pred_check_branch
          %356 = sbr.rel (%p354) target = $region44
        $region43: #{layout_estimation_forward.1} parent=11 // pred_region
          _
        $region44: #{layout_estimation_forward.1} parent=11 // pred_fallthru
          _
        // Predicated region
        $region45: #{layout_estimation_forward.1} parent=11 // pred_check
          %p357 = pneg %p235
        $region46: #{layout_estimation_forward.1} parent=11 // pred_check_branch
          %359 = sbr.rel (%p357) target = $region48
        $region47: #{layout_estimation_forward.1} parent=11 // pred_region
          _
        $region48: #{layout_estimation_forward.1} parent=11 // pred_fallthru
          _
        // Predicated region
        $region49: #{layout_estimation_forward.1} parent=11 // pred_check
          %p360 = pneg %p256
        $region50: #{layout_estimation_forward.1} parent=11 // pred_check_branch
          %362 = sbr.rel (%p360) target = $region52
        $region51: #{layout_estimation_forward.1} parent=11 // pred_region
          _
        $region52: #{layout_estimation_forward.1} parent=11 // pred_fallthru
          _
      $region12: #{layout_estimation_forward.1} parent=5 // pred_fallthru
        _
      %p363 = scmp.lt.s32.totalorder %s20, 2
      // Predicated region
      $region53: #{layout_estimation_forward.1} parent=5 // pred_check
        %p364 = pneg %p363
      $region54: #{layout_estimation_forward.1} parent=5 // pred_check_branch
        %366 = sbr.rel (%p364) target = $region56
      $region55: #{layout_estimation_forward.1} parent=5 // pred_region
        // Predicated region
        $region57: #{layout_estimation_forward.1} parent=55 // pred_check
          %p367 = pneg %p40
        $region58: #{layout_estimation_forward.1} parent=55 // pred_check_branch
          %369 = sbr.rel (%p367) target = $region60
        $region59: #{layout_estimation_forward.1} parent=55 // pred_region
          %p370 = scmp.lt.s32.totalorder %s20, 1
          %s371 = scalar_select %p370, %s20, 1
          %s372 = smul.addr %s371, 3
          %s373 = smul.addr %s372, 2
          %s374 = scalar_lea.vmem %s0, %s373
        $region60: #{layout_estimation_forward.1} parent=55 // pred_fallthru
          _
      $region56: #{layout_estimation_forward.1} parent=5 // pred_fallthru
        _
      %p375 = scmp.le.s32.totalorder 1, %s20
      %p376 = scmp.lt.s32.totalorder %s20, 3
      %p377 = pnand %p375, %p376
      %p378 = pneg %p377
      // Predicated region
      $region61: #{layout_estimation_forward.1} parent=5 // pred_check
        _
      $region62: #{layout_estimation_forward.1} parent=5 // pred_check_branch
        %380 = sbr.rel (%p377) target = $region64
      $region63: #{layout_estimation_forward.1} parent=5 // pred_region
        %s381 = ssub.s32 %s20, 1
        // Predicated region
        $region65: #{layout_estimation_forward.1} parent=63 // pred_check
          %p382 = pneg %p151
        $region66: #{layout_estimation_forward.1} parent=63 // pred_check_branch
          %384 = sbr.rel (%p382) target = $region68
        $region67: #{layout_estimation_forward.1} parent=63 // pred_region
          %385 = dma.done [#allocation4], 32768
        $region68: #{layout_estimation_forward.1} parent=63 // pred_fallthru
          _
        %p386 = scmp.lt.s32.totalorder %s25, 1
        %s387 = scalar_select %p386, %s25, 1
        %s388 = smul.addr %s387, 3
        %s389 = smul.addr %s388, 2
        %s390 = scalar_lea.vmem %s0, %s389
        %p391 = pneg %p46
        %p392 = pneg %p43
        %p393 = pneg %p67
        %p394 = pneg %p64
        %p395 = pneg %p88
        %p396 = pneg %p85
        %p397 = pneg %p109
        %p398 = pneg %p106
        %p399 = pneg %p130
        %p400 = pneg %p127
        %p401 = pneg %p151
        %p402 = pneg %p148
        %p403 = pneg %p172
        %p404 = pneg %p169
        %p405 = pneg %p193
        %p406 = pneg %p190
        %p407 = pneg %p214
        %p408 = pneg %p211
        %p409 = pneg %p235
        %p410 = pneg %p232
        %p411 = pneg %p256
        %p412 = pneg %p253
        %p413 = pneg %p282
        %p414 = pneg %p279
        %p415 = scmp.lt.s32.totalorder %s25, 1
        %s416 = scalar_select %p415, %s25, 1
        %s417 = smul.addr %s416, 8
        %s418 = scalar_lea.vmem %s11, %s417
        %p419 = pneg %p308
        %p420 = pneg %p305
        %p421 = scmp.lt.s32.totalorder %s25, 1
        %s422 = scalar_select %p421, %s25, 1
        %s423 = smul.addr %s422, 8
        %s424 = scalar_lea.vmem %s12, %s423
        %p425 = scmp.lt.s32.totalorder %s25, 1
        %s426 = scalar_select %p425, %s25, 1
        %s427 = smul.addr %s426, 3
        %s428 = smul.addr %s427, 2
        %s429 = scalar_lea.vmem %s0, %s428
        %p430 = scmp.lt.s32.totalorder %s25, 1
        %s431 = scalar_select %p430, %s25, 1
        %s432 = smul.addr %s431, 8
        %s433 = scalar_lea.vmem %s11, %s432
        %p434 = scmp.lt.s32.totalorder %s25, 1
        %s435 = scalar_select %p434, %s25, 1
        %s436 = smul.addr %s435, 8
        %s437 = scalar_lea.vmem %s12, %s436
        %v442 = vlaneseq
        %v443 = vand.u32 %v442, 127
        %vm444 = vcmp.lt.s32.totalorder %v443, 0
        %v445 = vsub.s32 0, %v443
        %v446 = vsel %vm444, %v445, %v443
        %v447 = vshrl.u32 %v446, 4
        %v448 = vand.u32 %v446, 15
        %v449 = vsub.s32 0, %v448
        %v450 = vsel %vm444, %v449, %v448
        %vm451 = vcmp.ne.s32.totalorder %v450, 0
        %vm452 = vcmp.lt.s32.totalorder %v450, 0
        %vm453 = vmand %vm452, %vm451
        %v454 = vadd.s32 %v450, 16
        %v455 = vsel %vm453, %v454, %v450
        %vm456 = vcmp.ne.s32.totalorder %v455, 0
        %vm457 = vcmp.ne.s32.totalorder %v455, 15
        %v458 = vld [vmem:[%s429] sm:$0x5]
        %v459 = vsel %vm456, 1, 0
        %v460 = vpack.c.b16 %v459, %v459
        %vm461 = vcmp.ne.s16.totalorder %v460, 0
        %v462 = vsel %vm461, %v458, 0
        %v463 = vunpack.c.l.bf16 %v462
        %464 = vst [vmem:[#allocation2] sm:$0x1] %v463
        %v465 = vunpack.c.l.bf16 %v458
        %v467 = vlaneseq
        %v468 = vshrl.u32 %v467, 7
        %v469 = vsub.s32 0, %v468
        %v470 = vrot.slane %v465, %v469
        %v471 = vlaneseq
        %v472 = vshrl.u32 %v471, 7
        %v473 = vsub.s32 4, %v472
        %v474 = vrot.slane %v465, %v473
        %475 = vrot.lane.b32.xlu0 %v470, 127
        %v476 = vpop.permute.xlu0 %475
        %477 = vrot.lane.b32.xlu0 %v474, 127
        %v478 = vpop.permute.xlu0 %477
        %vm479 = vcmask 1039360
        %v480 = vsel %vm479, %v476, %v478
        %482 = vst [vmem:[#allocation2 + $0x1] sm:$0x1] %v480
        %v483 = vsel %vm457, 1, 0
        %v484 = vpack.c.b16 %v483, %v483
        %vm485 = vcmp.ne.s16.totalorder %v484, 0
        %v486 = vsel %vm485, 65537, 0
        %487 = vrot.lane.b32.xlu0 %v486, 2
        %v488 = vpop.permute.xlu0 %487
        %v489 = vrot.slane %v488, 6
        %vm490 = vcmask 15360
        %v491 = vsel %vm490, %v489, %v488
        %vm492 = vcmp.ne.s16.totalorder %v491, 0
        %v493 = vsel %vm492, %v458, 0
        %v494 = vunpack.c.l.bf16 %v493
        %v496 = vlaneseq
        %v497 = vshrl.u32 %v496, 7
        %v498 = vsub.s32 0, %v497
        %v499 = vrot.slane %v494, %v498
        %v500 = vlaneseq
        %v501 = vshrl.u32 %v500, 7
        %v502 = vsub.s32 4, %v501
        %v503 = vrot.slane %v494, %v502
        %504 = vrot.lane.b32.xlu0 %v499, 126
        %v505 = vpop.permute.xlu0 %504
        %506 = vrot.lane.b32.xlu0 %v503, 126
        %v507 = vpop.permute.xlu0 %506
        %vm508 = vcmask 1031168
        %v509 = vsel %vm508, %v505, %v507
        %511 = vst [vmem:[#allocation2 + $0x2] sm:$0x1] %v509
        %v512 = vld [vmem:[%s429] sm:$0x5]
        %v513 = vsel %vm461, 65537, 0
        %514 = vrot.lane.b32.xlu0 %v513, 16
        %v515 = vpop.permute.xlu0 %514
        %v516 = vrot.slane %v515, 6
        %vm517 = vcmask 130048
        %v518 = vsel %vm517, %v516, %v515
        %vm519 = vcmp.ne.s16.totalorder %v518, 0
        %v520 = vsel %vm519, %v512, 0
        %v521 = vunpack.c.l.bf16 %v520
        %v523 = vlaneseq
        %v524 = vshrl.u32 %v523, 7
        %v525 = vsub.s32 0, %v524
        %v526 = vrot.slane %v521, %v525
        %v527 = vlaneseq
        %v528 = vshrl.u32 %v527, 7
        %v529 = vsub.s32 4, %v528
        %v530 = vrot.slane %v521, %v529
        %531 = vrot.lane.b32.xlu0 %v526, 112
        %v532 = vpop.permute.xlu0 %531
        %533 = vrot.lane.b32.xlu0 %v530, 112
        %v534 = vpop.permute.xlu0 %533
        %vm535 = vcmask 916480
        %v536 = vsel %vm535, %v532, %v534
        %538 = vst [vmem:[#allocation2 + $0x3] sm:$0x1] %v536
        %v539 = vunpack.c.l.bf16 %v512
        %v541 = vlaneseq
        %v542 = vshrl.u32 %v541, 7
        %v543 = vsub.s32 0, %v542
        %v544 = vrot.slane %v539, %v543
        %v545 = vlaneseq
        %v546 = vshrl.u32 %v545, 7
        %v547 = vsub.s32 4, %v546
        %v548 = vrot.slane %v539, %v547
        %549 = vrot.lane.b32.xlu0 %v544, 111
        %v550 = vpop.permute.xlu0 %549
        %551 = vrot.lane.b32.xlu0 %v548, 111
        %v552 = vpop.permute.xlu0 %551
        %vm553 = vcmask 908288
        %v554 = vsel %vm553, %v550, %v552
        %556 = vst [vmem:[#allocation2 + $0x4] sm:$0x1] %v554
        %557 = vrot.lane.b32.xlu0 %v486, 18
        %v558 = vpop.permute.xlu0 %557
        %v559 = vrot.slane %v558, 6
        %vm560 = vcmask 146432
        %v561 = vsel %vm560, %v559, %v558
        %vm562 = vcmp.ne.s16.totalorder %v561, 0
        %v563 = vsel %vm562, %v512, 0
        %v564 = vunpack.c.l.bf16 %v563
        %v566 = vlaneseq
        %v567 = vshrl.u32 %v566, 7
        %v568 = vsub.s32 0, %v567
        %v569 = vrot.slane %v564, %v568
        %v570 = vlaneseq
        %v571 = vshrl.u32 %v570, 7
        %v572 = vsub.s32 4, %v571
        %v573 = vrot.slane %v564, %v572
        %574 = vrot.lane.b32.xlu0 %v569, 110
        %v575 = vpop.permute.xlu0 %574
        %576 = vrot.lane.b32.xlu0 %v573, 110
        %v577 = vpop.permute.xlu0 %576
        %vm578 = vcmask 900096
        %v579 = vsel %vm578, %v575, %v577
        %581 = vst [vmem:[#allocation2 + $0x5] sm:$0x1] %v579
        %v582 = vld [vmem:[%s429] sm:$0x5]
        %583 = vrot.lane.b32.xlu0 %v513, 32
        %v584 = vpop.permute.xlu0 %583
        %v585 = vrot.slane %v584, 6
        %vm586 = vcmask 261120
        %v587 = vsel %vm586, %v585, %v584
        %vm588 = vcmp.ne.s16.totalorder %v587, 0
        %v589 = vsel %vm588, %v582, 0
        %v590 = vunpack.c.l.bf16 %v589
        %v592 = vlaneseq
        %v593 = vshrl.u32 %v592, 7
        %v594 = vsub.s32 0, %v593
        %v595 = vrot.slane %v590, %v594
        %v596 = vlaneseq
        %v597 = vshrl.u32 %v596, 7
        %v598 = vsub.s32 4, %v597
        %v599 = vrot.slane %v590, %v598
        %600 = vrot.lane.b32.xlu0 %v595, 96
        %v601 = vpop.permute.xlu0 %600
        %602 = vrot.lane.b32.xlu0 %v599, 96
        %v603 = vpop.permute.xlu0 %602
        %vm604 = vcmask 785408
        %v605 = vsel %vm604, %v601, %v603
        %607 = vst [vmem:[#allocation2 + $0x6] sm:$0x1] %v605
        %v608 = vunpack.c.l.bf16 %v582
        %v610 = vlaneseq
        %v611 = vshrl.u32 %v610, 7
        %v612 = vsub.s32 0, %v611
        %v613 = vrot.slane %v608, %v612
        %v614 = vlaneseq
        %v615 = vshrl.u32 %v614, 7
        %v616 = vsub.s32 4, %v615
        %v617 = vrot.slane %v608, %v616
        %618 = vrot.lane.b32.xlu0 %v613, 95
        %v619 = vpop.permute.xlu0 %618
        %620 = vrot.lane.b32.xlu0 %v617, 95
        %v621 = vpop.permute.xlu0 %620
        %vm622 = vcmask 777216
        %v623 = vsel %vm622, %v619, %v621
        %625 = vst [vmem:[#allocation2 + $0x7] sm:$0x1] %v623
        %626 = vrot.lane.b32.xlu0 %v486, 34
        %v627 = vpop.permute.xlu0 %626
        %v628 = vrot.slane %v627, 6
        %vm629 = vcmask 277504
        %v630 = vsel %vm629, %v628, %v627
        %vm631 = vcmp.ne.s16.totalorder %v630, 0
        %v632 = vsel %vm631, %v582, 0
        %v633 = vunpack.c.l.bf16 %v632
        %v635 = vlaneseq
        %v636 = vshrl.u32 %v635, 7
        %v637 = vsub.s32 0, %v636
        %v638 = vrot.slane %v633, %v637
        %v639 = vlaneseq
        %v640 = vshrl.u32 %v639, 7
        %v641 = vsub.s32 4, %v640
        %v642 = vrot.slane %v633, %v641
        %643 = vrot.lane.b32.xlu0 %v638, 94
        %v644 = vpop.permute.xlu0 %643
        %645 = vrot.lane.b32.xlu0 %v642, 94
        %v646 = vpop.permute.xlu0 %645
        %vm647 = vcmask 769024
        %v648 = vsel %vm647, %v644, %v646
        %650 = vst [vmem:[#allocation2 + $0x8] sm:$0x1] %v648
        %v651 = vld [vmem:[%s429] sm:$0x5]
        %v652 = vsel %vm461, %v651, 0
        %v653 = vunpack.c.l.bf16 %v652
        %654 = vst [vmem:[#allocation2 + $0x8] sm:$0x2] %v653
        %v655 = vunpack.c.l.bf16 %v651
        %v657 = vlaneseq
        %v658 = vshrl.u32 %v657, 7
        %v659 = vsub.s32 1, %v658
        %v660 = vrot.slane %v655, %v659
        %v661 = vlaneseq
        %v662 = vshrl.u32 %v661, 7
        %v663 = vsub.s32 5, %v662
        %v664 = vrot.slane %v655, %v663
        %665 = vrot.lane.b32.xlu0 %v660, 127
        %v666 = vpop.permute.xlu0 %665
        %667 = vrot.lane.b32.xlu0 %v664, 127
        %v668 = vpop.permute.xlu0 %667
        %v669 = vsel %vm479, %v666, %v668
        %671 = vst [vmem:[#allocation2 + $0x9] sm:$0x2] %v669
        %v672 = vsel %vm492, %v651, 0
        %v673 = vunpack.c.l.bf16 %v672
        %v675 = vlaneseq
        %v676 = vshrl.u32 %v675, 7
        %v677 = vsub.s32 1, %v676
        %v678 = vrot.slane %v673, %v677
        %v679 = vlaneseq
        %v680 = vshrl.u32 %v679, 7
        %v681 = vsub.s32 5, %v680
        %v682 = vrot.slane %v673, %v681
        %683 = vrot.lane.b32.xlu0 %v678, 126
        %v684 = vpop.permute.xlu0 %683
        %685 = vrot.lane.b32.xlu0 %v682, 126
        %v686 = vpop.permute.xlu0 %685
        %v687 = vsel %vm508, %v684, %v686
        %689 = vst [vmem:[#allocation2 + $0xa] sm:$0x2] %v687
        %v690 = vld [vmem:[%s429] sm:$0x5]
        %v691 = vsel %vm519, %v690, 0
        %v692 = vunpack.c.l.bf16 %v691
        %v694 = vlaneseq
        %v695 = vshrl.u32 %v694, 7
        %v696 = vsub.s32 1, %v695
        %v697 = vrot.slane %v692, %v696
        %v698 = vlaneseq
        %v699 = vshrl.u32 %v698, 7
        %v700 = vsub.s32 5, %v699
        %v701 = vrot.slane %v692, %v700
        %702 = vrot.lane.b32.xlu0 %v697, 112
        %v703 = vpop.permute.xlu0 %702
        %704 = vrot.lane.b32.xlu0 %v701, 112
        %v705 = vpop.permute.xlu0 %704
        %v706 = vsel %vm535, %v703, %v705
        %708 = vst [vmem:[#allocation2 + $0xb] sm:$0x2] %v706
        %v709 = vunpack.c.l.bf16 %v690
        %v711 = vlaneseq
        %v712 = vshrl.u32 %v711, 7
        %v713 = vsub.s32 1, %v712
        %v714 = vrot.slane %v709, %v713
        %v715 = vlaneseq
        %v716 = vshrl.u32 %v715, 7
        %v717 = vsub.s32 5, %v716
        %v718 = vrot.slane %v709, %v717
        %719 = vrot.lane.b32.xlu0 %v714, 111
        %v720 = vpop.permute.xlu0 %719
        %721 = vrot.lane.b32.xlu0 %v718, 111
        %v722 = vpop.permute.xlu0 %721
        %v723 = vsel %vm553, %v720, %v722
        %725 = vst [vmem:[#allocation2 + $0xc] sm:$0x2] %v723
        %v726 = vsel %vm562, %v690, 0
        %v727 = vunpack.c.l.bf16 %v726
        %v729 = vlaneseq
        %v730 = vshrl.u32 %v729, 7
        %v731 = vsub.s32 1, %v730
        %v732 = vrot.slane %v727, %v731
        %v733 = vlaneseq
        %v734 = vshrl.u32 %v733, 7
        %v735 = vsub.s32 5, %v734
        %v736 = vrot.slane %v727, %v735
        %737 = vrot.lane.b32.xlu0 %v732, 110
        %v738 = vpop.permute.xlu0 %737
        %739 = vrot.lane.b32.xlu0 %v736, 110
        %v740 = vpop.permute.xlu0 %739
        %v741 = vsel %vm578, %v738, %v740
        %743 = vst [vmem:[#allocation2 + $0xd] sm:$0x2] %v741
        %v744 = vld [vmem:[%s429] sm:$0x5]
        %v745 = vsel %vm588, %v744, 0
        %v746 = vunpack.c.l.bf16 %v745
        %v748 = vlaneseq
        %v749 = vshrl.u32 %v748, 7
        %v750 = vsub.s32 1, %v749
        %v751 = vrot.slane %v746, %v750
        %v752 = vlaneseq
        %v753 = vshrl.u32 %v752, 7
        %v754 = vsub.s32 5, %v753
        %v755 = vrot.slane %v746, %v754
        %756 = vrot.lane.b32.xlu0 %v751, 96
        %v757 = vpop.permute.xlu0 %756
        %758 = vrot.lane.b32.xlu0 %v755, 96
        %v759 = vpop.permute.xlu0 %758
        %v760 = vsel %vm604, %v757, %v759
        %762 = vst [vmem:[#allocation2 + $0xe] sm:$0x2] %v760
        %v763 = vunpack.c.l.bf16 %v744
        %v765 = vlaneseq
        %v766 = vshrl.u32 %v765, 7
        %v767 = vsub.s32 1, %v766
        %v768 = vrot.slane %v763, %v767
        %v769 = vlaneseq
        %v770 = vshrl.u32 %v769, 7
        %v771 = vsub.s32 5, %v770
        %v772 = vrot.slane %v763, %v771
        %773 = vrot.lane.b32.xlu0 %v768, 95
        %v774 = vpop.permute.xlu0 %773
        %775 = vrot.lane.b32.xlu0 %v772, 95
        %v776 = vpop.permute.xlu0 %775
        %v777 = vsel %vm622, %v774, %v776
        %779 = vst [vmem:[#allocation2 + $0xf] sm:$0x2] %v777
        %v780 = vsel %vm631, %v744, 0
        %v781 = vunpack.c.l.bf16 %v780
        %v783 = vlaneseq
        %v784 = vshrl.u32 %v783, 7
        %v785 = vsub.s32 1, %v784
        %v786 = vrot.slane %v781, %v785
        %v787 = vlaneseq
        %v788 = vshrl.u32 %v787, 7
        %v789 = vsub.s32 5, %v788
        %v790 = vrot.slane %v781, %v789
        %791 = vrot.lane.b32.xlu0 %v786, 94
        %v792 = vpop.permute.xlu0 %791
        %793 = vrot.lane.b32.xlu0 %v790, 94
        %v794 = vpop.permute.xlu0 %793
        %v795 = vsel %vm647, %v792, %v794
        %797 = vst [vmem:[#allocation2 + $0x10] sm:$0x2] %v795
        %v798 = vld [vmem:[%s429] sm:$0xa]
        %v799 = vsel %vm461, %v798, 0
        %v800 = vunpack.c.l.bf16 %v799
        %801 = vst [vmem:[#allocation2 + $0x10] sm:$0x4] %v800
        %v802 = vunpack.c.l.bf16 %v798
        %v804 = vlaneseq
        %v805 = vshrl.u32 %v804, 7
        %v806 = vsub.s32 2, %v805
        %v807 = vrot.slane %v802, %v806
        %v808 = vlaneseq
        %v809 = vshrl.u32 %v808, 7
        %v810 = vsub.s32 6, %v809
        %v811 = vrot.slane %v802, %v810
        %812 = vrot.lane.b32.xlu0 %v807, 127
        %v813 = vpop.permute.xlu0 %812
        %814 = vrot.lane.b32.xlu0 %v811, 127
        %v815 = vpop.permute.xlu0 %814
        %v816 = vsel %vm479, %v813, %v815
        %818 = vst [vmem:[#allocation2 + $0x11] sm:$0x4] %v816
        %v819 = vsel %vm492, %v798, 0
        %v820 = vunpack.c.l.bf16 %v819
        %v822 = vlaneseq
        %v823 = vshrl.u32 %v822, 7
        %v824 = vsub.s32 2, %v823
        %v825 = vrot.slane %v820, %v824
        %v826 = vlaneseq
        %v827 = vshrl.u32 %v826, 7
        %v828 = vsub.s32 6, %v827
        %v829 = vrot.slane %v820, %v828
        %830 = vrot.lane.b32.xlu0 %v825, 126
        %v831 = vpop.permute.xlu0 %830
        %832 = vrot.lane.b32.xlu0 %v829, 126
        %v833 = vpop.permute.xlu0 %832
        %v834 = vsel %vm508, %v831, %v833
        %836 = vst [vmem:[#allocation2 + $0x12] sm:$0x4] %v834
        %v837 = vld [vmem:[%s429] sm:$0xa]
        %v838 = vsel %vm519, %v837, 0
        %v839 = vunpack.c.l.bf16 %v838
        %v841 = vlaneseq
        %v842 = vshrl.u32 %v841, 7
        %v843 = vsub.s32 2, %v842
        %v844 = vrot.slane %v839, %v843
        %v845 = vlaneseq
        %v846 = vshrl.u32 %v845, 7
        %v847 = vsub.s32 6, %v846
        %v848 = vrot.slane %v839, %v847
        %849 = vrot.lane.b32.xlu0 %v844, 112
        %v850 = vpop.permute.xlu0 %849
        %851 = vrot.lane.b32.xlu0 %v848, 112
        %v852 = vpop.permute.xlu0 %851
        %v853 = vsel %vm535, %v850, %v852
        %855 = vst [vmem:[#allocation2 + $0x13] sm:$0x4] %v853
        %v856 = vunpack.c.l.bf16 %v837
        %v858 = vlaneseq
        %v859 = vshrl.u32 %v858, 7
        %v860 = vsub.s32 2, %v859
        %v861 = vrot.slane %v856, %v860
        %v862 = vlaneseq
        %v863 = vshrl.u32 %v862, 7
        %v864 = vsub.s32 6, %v863
        %v865 = vrot.slane %v856, %v864
        %866 = vrot.lane.b32.xlu0 %v861, 111
        %v867 = vpop.permute.xlu0 %866
        %868 = vrot.lane.b32.xlu0 %v865, 111
        %v869 = vpop.permute.xlu0 %868
        %v870 = vsel %vm553, %v867, %v869
        %872 = vst [vmem:[#allocation2 + $0x14] sm:$0x4] %v870
        %v873 = vsel %vm562, %v837, 0
        %v874 = vunpack.c.l.bf16 %v873
        %v876 = vlaneseq
        %v877 = vshrl.u32 %v876, 7
        %v878 = vsub.s32 2, %v877
        %v879 = vrot.slane %v874, %v878
        %v880 = vlaneseq
        %v881 = vshrl.u32 %v880, 7
        %v882 = vsub.s32 6, %v881
        %v883 = vrot.slane %v874, %v882
        %884 = vrot.lane.b32.xlu0 %v879, 110
        %v885 = vpop.permute.xlu0 %884
        %886 = vrot.lane.b32.xlu0 %v883, 110
        %v887 = vpop.permute.xlu0 %886
        %v888 = vsel %vm578, %v885, %v887
        %890 = vst [vmem:[#allocation2 + $0x15] sm:$0x4] %v888
        %v891 = vld [vmem:[%s429] sm:$0xa]
        %v892 = vsel %vm588, %v891, 0
        %v893 = vunpack.c.l.bf16 %v892
        %v895 = vlaneseq
        %v896 = vshrl.u32 %v895, 7
        %v897 = vsub.s32 2, %v896
        %v898 = vrot.slane %v893, %v897
        %v899 = vlaneseq
        %v900 = vshrl.u32 %v899, 7
        %v901 = vsub.s32 6, %v900
        %v902 = vrot.slane %v893, %v901
        %903 = vrot.lane.b32.xlu0 %v898, 96
        %v904 = vpop.permute.xlu0 %903
        %905 = vrot.lane.b32.xlu0 %v902, 96
        %v906 = vpop.permute.xlu0 %905
        %v907 = vsel %vm604, %v904, %v906
        %909 = vst [vmem:[#allocation2 + $0x16] sm:$0x4] %v907
        %v910 = vunpack.c.l.bf16 %v891
        %v912 = vlaneseq
        %v913 = vshrl.u32 %v912, 7
        %v914 = vsub.s32 2, %v913
        %v915 = vrot.slane %v910, %v914
        %v916 = vlaneseq
        %v917 = vshrl.u32 %v916, 7
        %v918 = vsub.s32 6, %v917
        %v919 = vrot.slane %v910, %v918
        %920 = vrot.lane.b32.xlu0 %v915, 95
        %v921 = vpop.permute.xlu0 %920
        %922 = vrot.lane.b32.xlu0 %v919, 95
        %v923 = vpop.permute.xlu0 %922
        %v924 = vsel %vm622, %v921, %v923
        %926 = vst [vmem:[#allocation2 + $0x17] sm:$0x4] %v924
        %v927 = vsel %vm631, %v891, 0
        %v928 = vunpack.c.l.bf16 %v927
        %v930 = vlaneseq
        %v931 = vshrl.u32 %v930, 7
        %v932 = vsub.s32 2, %v931
        %v933 = vrot.slane %v928, %v932
        %v934 = vlaneseq
        %v935 = vshrl.u32 %v934, 7
        %v936 = vsub.s32 6, %v935
        %v937 = vrot.slane %v928, %v936
        %938 = vrot.lane.b32.xlu0 %v933, 94
        %v939 = vpop.permute.xlu0 %938
        %940 = vrot.lane.b32.xlu0 %v937, 94
        %v941 = vpop.permute.xlu0 %940
        %v942 = vsel %vm647, %v939, %v941
        %944 = vst [vmem:[#allocation2 + $0x18] sm:$0x4] %v942
        %v945 = vld [vmem:[%s1] sm:$0xf]
        %v946 = vld [vmem:[%s1 + $0x4] sm:$0xf]
        %v947 = vld [vmem:[%s1 + $0x8] sm:$0xf]
        %v948 = vld [vmem:[%s1 + $0xc] sm:$0xf]
        %v949 = vld [vmem:[%s1 + $0x10] sm:$0xf]
        %v950 = vld [vmem:[%s1 + $0x14] sm:$0xf]
        %v951 = vld [vmem:[%s1 + $0x18] sm:$0xf]
        %v952 = vld [vmem:[%s1 + $0x1c] sm:$0xf]
        %v953 = vld [vmem:[%s1 + $0x20] sm:$0xf]
        %v954 = vld [vmem:[%s1 + $0x24] sm:$0xf]
        %v955 = vld [vmem:[%s1 + $0x28] sm:$0xf]
        %v956 = vld [vmem:[%s1 + $0x2c] sm:$0xf]
        %v957 = vld [vmem:[%s1 + $0x30] sm:$0xf]
        %v958 = vld [vmem:[%s1 + $0x34] sm:$0xf]
        %v959 = vld [vmem:[%s1 + $0x38] sm:$0xf]
        %v960 = vld [vmem:[%s1 + $0x3c] sm:$0xf]
        %v961 = vld [vmem:[%s1 + $0x40] sm:$0xf]
        %v962 = vld [vmem:[%s1 + $0x44] sm:$0xf]
        %v963 = vld [vmem:[%s1 + $0x48] sm:$0xf]
        %v964 = vld [vmem:[%s1 + $0x4c] sm:$0xf]
        %v965 = vld [vmem:[%s1 + $0x50] sm:$0xf]
        %v966 = vld [vmem:[%s1 + $0x54] sm:$0xf]
        %v967 = vld [vmem:[%s1 + $0x58] sm:$0xf]
        %v968 = vld [vmem:[%s1 + $0x5c] sm:$0xf]
        %v969 = vld [vmem:[%s1 + $0x60] sm:$0xf]
        %v970 = vld [vmem:[%s1 + $0x64] sm:$0xf]
        %v971 = vld [vmem:[%s1 + $0x68] sm:$0xf]
        %v972 = vld [vmem:[%s1 + $0x6c] sm:$0xf]
        %v973 = vld [vmem:[%s1 + $0x70] sm:$0xf]
        %v974 = vld [vmem:[%s1 + $0x74] sm:$0xf]
        %v975 = vld [vmem:[%s1 + $0x78] sm:$0xf]
        %v976 = vld [vmem:[%s1 + $0x7c] sm:$0xf]
        %v977 = vld [vmem:[%s1 + $0x80] sm:$0xf]
        %v978 = vld [vmem:[%s1 + $0x84] sm:$0xf]
        %v979 = vld [vmem:[%s1 + $0x88] sm:$0xf]
        %v980 = vld [vmem:[%s1 + $0x8c] sm:$0xf]
        %v981 = vld [vmem:[%s1 + $0x90] sm:$0xf]
        %v982 = vld [vmem:[%s1 + $0x94] sm:$0xf]
        %v983 = vld [vmem:[%s1 + $0x98] sm:$0xf]
        %v984 = vld [vmem:[%s1 + $0x9c] sm:$0xf]
        %v985 = vld [vmem:[%s1 + $0xa0] sm:$0xf]
        %v986 = vld [vmem:[%s1 + $0xa4] sm:$0xf]
        %v987 = vld [vmem:[%s1 + $0xa8] sm:$0xf]
        %v988 = vld [vmem:[%s1 + $0xac] sm:$0xf]
        %v989 = vld [vmem:[%s1 + $0xb0] sm:$0xf]
        %v990 = vld [vmem:[%s1 + $0xb4] sm:$0xf]
        %v991 = vld [vmem:[%s1 + $0xb8] sm:$0xf]
        %v992 = vld [vmem:[%s1 + $0xbc] sm:$0xf]
        %v993 = vld [vmem:[%s1 + $0xc0] sm:$0xf]
        %v994 = vld [vmem:[%s1 + $0xc4] sm:$0xf]
        %v995 = vld [vmem:[%s1 + $0xc8] sm:$0xf]
        %v996 = vld [vmem:[%s1 + $0xcc] sm:$0xf]
        %v997 = vld [vmem:[%s1 + $0xd0] sm:$0xf]
        %v998 = vld [vmem:[%s1 + $0xd4] sm:$0xf]
        %v999 = vld [vmem:[%s1 + $0xd8] sm:$0xf]
        %v1000 = vld [vmem:[%s1 + $0xdc] sm:$0xf]
        %v1001 = vld [vmem:[%s1 + $0xe0] sm:$0xf]
        %v1002 = vld [vmem:[%s1 + $0xe4] sm:$0xf]
        %v1003 = vld [vmem:[%s1 + $0xe8] sm:$0xf]
        %v1004 = vld [vmem:[%s1 + $0xec] sm:$0xf]
        %v1005 = vld [vmem:[%s1 + $0xf0] sm:$0xf]
        %v1006 = vld [vmem:[%s1 + $0xf4] sm:$0xf]
        %v1007 = vld [vmem:[%s1 + $0xf8] sm:$0xf]
        %v1008 = vld [vmem:[%s1 + $0xfc] sm:$0xf]
        %v1009 = vld [vmem:[#allocation2] sm:$0xff]
        %v1010 = vld [vmem:[#allocation2 + $0x8] sm:$0xff]
        %v1011 = vld [vmem:[#allocation2 + $0x10] sm:$0xff]
        %v1012 = vld [vmem:[#allocation2 + $0x18] sm:$0x7]
        %v1013 = vpack.c.bf16 %v1010, %v1009
        %v1014 = vpack.c.bf16 %v1012, %v1011
        %v1015 = vld [vmem:[%s2] sm:$0xff]
        %v1016 = vld [vmem:[%s2 + $0x8] sm:$0xff]
        %v1017 = vld [vmem:[%s2 + $0x10] sm:$0xff]
        %v1018 = vld [vmem:[%s2 + $0x18] sm:$0xff]
        %v1019 = vld [vmem:[%s2 + $0x20] sm:$0xff]
        %v1020 = vld [vmem:[%s2 + $0x28] sm:$0xff]
        %v1021 = vld [vmem:[%s2 + $0x30] sm:$0xff]
        %v1022 = vld [vmem:[%s2 + $0x38] sm:$0xff]
        %v1023 = vld [vmem:[%s2 + $0x40] sm:$0xff]
        %v1024 = vld [vmem:[%s2 + $0x48] sm:$0xff]
        %v1025 = vld [vmem:[%s2 + $0x50] sm:$0xff]
        %v1026 = vld [vmem:[%s2 + $0x58] sm:$0xff]
        %v1027 = vld [vmem:[%s2 + $0x60] sm:$0xff]
        %v1028 = vld [vmem:[%s2 + $0x68] sm:$0xff]
        %v1029 = vld [vmem:[%s2 + $0x70] sm:$0xff]
        %v1030 = vld [vmem:[%s2 + $0x78] sm:$0xff]
        %v1031 = vld [vmem:[%s2 + $0x80] sm:$0xff]
        %v1032 = vld [vmem:[%s2 + $0x88] sm:$0xff]
        %v1033 = vld [vmem:[%s2 + $0x90] sm:$0xff]
        %v1034 = vld [vmem:[%s2 + $0x98] sm:$0xff]
        %v1035 = vld [vmem:[%s2 + $0xa0] sm:$0xff]
        %v1036 = vld [vmem:[%s2 + $0xa8] sm:$0xff]
        %v1037 = vld [vmem:[%s2 + $0xb0] sm:$0xff]
        %v1038 = vld [vmem:[%s2 + $0xb8] sm:$0xff]
        %v1039 = vld [vmem:[%s2 + $0xc0] sm:$0xff]
        %v1040 = vld [vmem:[%s2 + $0xc8] sm:$0xff]
        %v1041 = vld [vmem:[%s2 + $0xd0] sm:$0xff]
        %v1042 = vld [vmem:[%s2 + $0xd8] sm:$0xff]
        %v1043 = vld [vmem:[%s2 + $0xe0] sm:$0xff]
        %v1044 = vld [vmem:[%s2 + $0xe8] sm:$0xff]
        %v1045 = vld [vmem:[%s2 + $0xf0] sm:$0xff]
        %v1046 = vld [vmem:[%s2 + $0xf8] sm:$0xff]
        %v1047 = vld [vmem:[%s2 + $0x100] sm:$0xff]
        %v1048 = vld [vmem:[%s2 + $0x108] sm:$0xff]
        %v1049 = vld [vmem:[%s2 + $0x110] sm:$0xff]
        %v1050 = vld [vmem:[%s2 + $0x118] sm:$0xff]
        %v1051 = vld [vmem:[%s2 + $0x120] sm:$0xff]
        %v1052 = vld [vmem:[%s2 + $0x128] sm:$0xff]
        %v1053 = vld [vmem:[%s2 + $0x130] sm:$0xff]
        %v1054 = vld [vmem:[%s2 + $0x138] sm:$0xff]
        %v1055 = vld [vmem:[%s2 + $0x140] sm:$0xff]
        %v1056 = vld [vmem:[%s2 + $0x148] sm:$0xff]
        %v1057 = vld [vmem:[%s2 + $0x150] sm:$0xff]
        %v1058 = vld [vmem:[%s2 + $0x158] sm:$0xff]
        %v1059 = vld [vmem:[%s2 + $0x160] sm:$0xff]
        %v1060 = vld [vmem:[%s2 + $0x168] sm:$0xff]
        %v1061 = vld [vmem:[%s2 + $0x170] sm:$0xff]
        %v1062 = vld [vmem:[%s2 + $0x178] sm:$0xff]
        %v1063 = vld [vmem:[%s2 + $0x180] sm:$0xff]
        %v1064 = vld [vmem:[%s2 + $0x188] sm:$0xff]
        %v1065 = vld [vmem:[%s2 + $0x190] sm:$0xff]
        %v1066 = vld [vmem:[%s2 + $0x198] sm:$0xff]
        %v1067 = vld [vmem:[%s2 + $0x1a0] sm:$0xff]
        %v1068 = vld [vmem:[%s2 + $0x1a8] sm:$0xff]
        %v1069 = vld [vmem:[%s2 + $0x1b0] sm:$0xff]
        %v1070 = vld [vmem:[%s2 + $0x1b8] sm:$0xff]
        %v1071 = vld [vmem:[%s2 + $0x1c0] sm:$0xff]
        %v1072 = vld [vmem:[%s2 + $0x1c8] sm:$0xff]
        %v1073 = vld [vmem:[%s2 + $0x1d0] sm:$0xff]
        %v1074 = vld [vmem:[%s2 + $0x1d8] sm:$0xff]
        %v1075 = vld [vmem:[%s2 + $0x1e0] sm:$0xff]
        %v1076 = vld [vmem:[%s2 + $0x1e8] sm:$0xff]
        %v1077 = vld [vmem:[%s2 + $0x1f0] sm:$0xff]
        %v1078 = vld [vmem:[%s2 + $0x1f8] sm:$0xff]
        %1080 = vset.pattern.permute.xlu0 0
        %1081 = vperm.xlu0 %1080, %v1015
        %v1082 = vpop.permute.xlu0 %1081
        %1085 = vset.pattern.permute.xlu0 0
        %1086 = vperm.xlu0 %1085, %v1016
        %v1087 = vpop.permute.xlu0 %1086
        %1090 = vset.pattern.permute.xlu0 0
        %1091 = vperm.xlu0 %1090, %v1017
        %v1092 = vpop.permute.xlu0 %1091
        %1095 = vset.pattern.permute.xlu0 0
        %1096 = vperm.xlu0 %1095, %v1018
        %v1097 = vpop.permute.xlu0 %1096
        %1100 = vset.pattern.permute.xlu0 0
        %1101 = vperm.xlu0 %1100, %v1019
        %v1102 = vpop.permute.xlu0 %1101
        %1105 = vset.pattern.permute.xlu0 0
        %1106 = vperm.xlu0 %1105, %v1020
        %v1107 = vpop.permute.xlu0 %1106
        %1110 = vset.pattern.permute.xlu0 0
        %1111 = vperm.xlu0 %1110, %v1021
        %v1112 = vpop.permute.xlu0 %1111
        %1115 = vset.pattern.permute.xlu0 0
        %1116 = vperm.xlu0 %1115, %v1022
        %v1117 = vpop.permute.xlu0 %1116
        %1120 = vset.pattern.permute.xlu0 0
        %1121 = vperm.xlu0 %1120, %v1023
        %v1122 = vpop.permute.xlu0 %1121
        %1125 = vset.pattern.permute.xlu0 0
        %1126 = vperm.xlu0 %1125, %v1024
        %v1127 = vpop.permute.xlu0 %1126
        %1130 = vset.pattern.permute.xlu0 0
        %1131 = vperm.xlu0 %1130, %v1025
        %v1132 = vpop.permute.xlu0 %1131
        %1135 = vset.pattern.permute.xlu0 0
        %1136 = vperm.xlu0 %1135, %v1026
        %v1137 = vpop.permute.xlu0 %1136
        %1140 = vset.pattern.permute.xlu0 0
        %1141 = vperm.xlu0 %1140, %v1027
        %v1142 = vpop.permute.xlu0 %1141
        %1145 = vset.pattern.permute.xlu0 0
        %1146 = vperm.xlu0 %1145, %v1028
        %v1147 = vpop.permute.xlu0 %1146
        %1150 = vset.pattern.permute.xlu0 0
        %1151 = vperm.xlu0 %1150, %v1029
        %v1152 = vpop.permute.xlu0 %1151
        %1155 = vset.pattern.permute.xlu0 0
        %1156 = vperm.xlu0 %1155, %v1030
        %v1157 = vpop.permute.xlu0 %1156
        %1160 = vset.pattern.permute.xlu0 0
        %1161 = vperm.xlu0 %1160, %v1031
        %v1162 = vpop.permute.xlu0 %1161
        %1165 = vset.pattern.permute.xlu0 0
        %1166 = vperm.xlu0 %1165, %v1032
        %v1167 = vpop.permute.xlu0 %1166
        %1170 = vset.pattern.permute.xlu0 0
        %1171 = vperm.xlu0 %1170, %v1033
        %v1172 = vpop.permute.xlu0 %1171
        %1175 = vset.pattern.permute.xlu0 0
        %1176 = vperm.xlu0 %1175, %v1034
        %v1177 = vpop.permute.xlu0 %1176
        %1180 = vset.pattern.permute.xlu0 0
        %1181 = vperm.xlu0 %1180, %v1035
        %v1182 = vpop.permute.xlu0 %1181
        %1185 = vset.pattern.permute.xlu0 0
        %1186 = vperm.xlu0 %1185, %v1036
        %v1187 = vpop.permute.xlu0 %1186
        %1190 = vset.pattern.permute.xlu0 0
        %1191 = vperm.xlu0 %1190, %v1037
        %v1192 = vpop.permute.xlu0 %1191
        %1195 = vset.pattern.permute.xlu0 0
        %1196 = vperm.xlu0 %1195, %v1038
        %v1197 = vpop.permute.xlu0 %1196
        %1200 = vset.pattern.permute.xlu0 0
        %1201 = vperm.xlu0 %1200, %v1039
        %v1202 = vpop.permute.xlu0 %1201
        %1205 = vset.pattern.permute.xlu0 0
        %1206 = vperm.xlu0 %1205, %v1040
        %v1207 = vpop.permute.xlu0 %1206
        %1210 = vset.pattern.permute.xlu0 0
        %1211 = vperm.xlu0 %1210, %v1041
        %v1212 = vpop.permute.xlu0 %1211
        %1215 = vset.pattern.permute.xlu0 0
        %1216 = vperm.xlu0 %1215, %v1042
        %v1217 = vpop.permute.xlu0 %1216
        %1220 = vset.pattern.permute.xlu0 0
        %1221 = vperm.xlu0 %1220, %v1043
        %v1222 = vpop.permute.xlu0 %1221
        %1225 = vset.pattern.permute.xlu0 0
        %1226 = vperm.xlu0 %1225, %v1044
        %v1227 = vpop.permute.xlu0 %1226
        %1230 = vset.pattern.permute.xlu0 0
        %1231 = vperm.xlu0 %1230, %v1045
        %v1232 = vpop.permute.xlu0 %1231
        %1235 = vset.pattern.permute.xlu0 0
        %1236 = vperm.xlu0 %1235, %v1046
        %v1237 = vpop.permute.xlu0 %1236
        %1240 = vset.pattern.permute.xlu0 0
        %1241 = vperm.xlu0 %1240, %v1047
        %v1242 = vpop.permute.xlu0 %1241
        %1245 = vset.pattern.permute.xlu0 0
        %1246 = vperm.xlu0 %1245, %v1048
        %v1247 = vpop.permute.xlu0 %1246
        %1250 = vset.pattern.permute.xlu0 0
        %1251 = vperm.xlu0 %1250, %v1049
        %v1252 = vpop.permute.xlu0 %1251
        %1255 = vset.pattern.permute.xlu0 0
        %1256 = vperm.xlu0 %1255, %v1050
        %v1257 = vpop.permute.xlu0 %1256
        %1260 = vset.pattern.permute.xlu0 0
        %1261 = vperm.xlu0 %1260, %v1051
        %v1262 = vpop.permute.xlu0 %1261
        %1265 = vset.pattern.permute.xlu0 0
        %1266 = vperm.xlu0 %1265, %v1052
        %v1267 = vpop.permute.xlu0 %1266
        %1270 = vset.pattern.permute.xlu0 0
        %1271 = vperm.xlu0 %1270, %v1053
        %v1272 = vpop.permute.xlu0 %1271
        %1275 = vset.pattern.permute.xlu0 0
        %1276 = vperm.xlu0 %1275, %v1054
        %v1277 = vpop.permute.xlu0 %1276
        %1280 = vset.pattern.permute.xlu0 0
        %1281 = vperm.xlu0 %1280, %v1055
        %v1282 = vpop.permute.xlu0 %1281
        %1285 = vset.pattern.permute.xlu0 0
        %1286 = vperm.xlu0 %1285, %v1056
        %v1287 = vpop.permute.xlu0 %1286
        %1290 = vset.pattern.permute.xlu0 0
        %1291 = vperm.xlu0 %1290, %v1057
        %v1292 = vpop.permute.xlu0 %1291
        %1295 = vset.pattern.permute.xlu0 0
        %1296 = vperm.xlu0 %1295, %v1058
        %v1297 = vpop.permute.xlu0 %1296
        %1300 = vset.pattern.permute.xlu0 0
        %1301 = vperm.xlu0 %1300, %v1059
        %v1302 = vpop.permute.xlu0 %1301
        %1305 = vset.pattern.permute.xlu0 0
        %1306 = vperm.xlu0 %1305, %v1060
        %v1307 = vpop.permute.xlu0 %1306
        %1310 = vset.pattern.permute.xlu0 0
        %1311 = vperm.xlu0 %1310, %v1061
        %v1312 = vpop.permute.xlu0 %1311
        %1315 = vset.pattern.permute.xlu0 0
        %1316 = vperm.xlu0 %1315, %v1062
        %v1317 = vpop.permute.xlu0 %1316
        %1320 = vset.pattern.permute.xlu0 0
        %1321 = vperm.xlu0 %1320, %v1063
        %v1322 = vpop.permute.xlu0 %1321
        %1325 = vset.pattern.permute.xlu0 0
        %1326 = vperm.xlu0 %1325, %v1064
        %v1327 = vpop.permute.xlu0 %1326
        %1330 = vset.pattern.permute.xlu0 0
        %1331 = vperm.xlu0 %1330, %v1065
        %v1332 = vpop.permute.xlu0 %1331
        %1335 = vset.pattern.permute.xlu0 0
        %1336 = vperm.xlu0 %1335, %v1066
        %v1337 = vpop.permute.xlu0 %1336
        %1340 = vset.pattern.permute.xlu0 0
        %1341 = vperm.xlu0 %1340, %v1067
        %v1342 = vpop.permute.xlu0 %1341
        %1345 = vset.pattern.permute.xlu0 0
        %1346 = vperm.xlu0 %1345, %v1068
        %v1347 = vpop.permute.xlu0 %1346
        %1350 = vset.pattern.permute.xlu0 0
        %1351 = vperm.xlu0 %1350, %v1069
        %v1352 = vpop.permute.xlu0 %1351
        %1355 = vset.pattern.permute.xlu0 0
        %1356 = vperm.xlu0 %1355, %v1070
        %v1357 = vpop.permute.xlu0 %1356
        %1360 = vset.pattern.permute.xlu0 0
        %1361 = vperm.xlu0 %1360, %v1071
        %v1362 = vpop.permute.xlu0 %1361
        %1365 = vset.pattern.permute.xlu0 0
        %1366 = vperm.xlu0 %1365, %v1072
        %v1367 = vpop.permute.xlu0 %1366
        %1370 = vset.pattern.permute.xlu0 0
        %1371 = vperm.xlu0 %1370, %v1073
        %v1372 = vpop.permute.xlu0 %1371
        %1375 = vset.pattern.permute.xlu0 0
        %1376 = vperm.xlu0 %1375, %v1074
        %v1377 = vpop.permute.xlu0 %1376
        %1380 = vset.pattern.permute.xlu0 0
        %1381 = vperm.xlu0 %1380, %v1075
        %v1382 = vpop.permute.xlu0 %1381
        %1385 = vset.pattern.permute.xlu0 0
        %1386 = vperm.xlu0 %1385, %v1076
        %v1387 = vpop.permute.xlu0 %1386
        %1390 = vset.pattern.permute.xlu0 0
        %1391 = vperm.xlu0 %1390, %v1077
        %v1392 = vpop.permute.xlu0 %1391
        %1395 = vset.pattern.permute.xlu0 0
        %1396 = vperm.xlu0 %1395, %v1078
        %v1397 = vpop.permute.xlu0 %1396
        %v1463 = vunpack.c.l.b16 %v945
        %v1464 = vunpack.c.l.b16 %v946
        %v1465 = vunpack.c.l.b16 %v947
        %v1466 = vunpack.c.l.b16 %v948
        %v1467 = vunpack.c.l.b16 %v949
        %v1468 = vunpack.c.l.b16 %v950
        %v1469 = vunpack.c.l.b16 %v951
        %v1470 = vunpack.c.l.b16 %v952
        %v1471 = vunpack.c.l.b16 %v953
        %v1472 = vunpack.c.l.b16 %v954
        %v1473 = vunpack.c.l.b16 %v955
        %v1474 = vunpack.c.l.b16 %v956
        %v1475 = vunpack.c.l.b16 %v957
        %v1476 = vunpack.c.l.b16 %v958
        %v1477 = vunpack.c.l.b16 %v959
        %v1478 = vunpack.c.l.b16 %v960
        %v1479 = vunpack.c.l.b16 %v961
        %v1480 = vunpack.c.l.b16 %v962
        %v1481 = vunpack.c.l.b16 %v963
        %v1482 = vunpack.c.l.b16 %v964
        %v1483 = vunpack.c.l.b16 %v965
        %v1484 = vunpack.c.l.b16 %v966
        %v1485 = vunpack.c.l.b16 %v967
        %v1486 = vunpack.c.l.b16 %v968
        %v1487 = vunpack.c.l.b16 %v969
        %v1488 = vunpack.c.l.b16 %v970
        %v1489 = vunpack.c.l.b16 %v971
        %v1490 = vunpack.c.l.b16 %v972
        %v1491 = vunpack.c.l.b16 %v973
        %v1492 = vunpack.c.l.b16 %v974
        %v1493 = vunpack.c.l.b16 %v975
        %v1494 = vunpack.c.l.b16 %v976
        %v1495 = vunpack.c.l.b16 %v977
        %v1496 = vunpack.c.l.b16 %v978
        %v1497 = vunpack.c.l.b16 %v979
        %v1498 = vunpack.c.l.b16 %v980
        %v1499 = vunpack.c.l.b16 %v981
        %v1500 = vunpack.c.l.b16 %v982
        %v1501 = vunpack.c.l.b16 %v983
        %v1502 = vunpack.c.l.b16 %v984
        %v1503 = vunpack.c.l.b16 %v985
        %v1504 = vunpack.c.l.b16 %v986
        %v1505 = vunpack.c.l.b16 %v987
        %v1506 = vunpack.c.l.b16 %v988
        %v1507 = vunpack.c.l.b16 %v989
        %v1508 = vunpack.c.l.b16 %v990
        %v1509 = vunpack.c.l.b16 %v991
        %v1510 = vunpack.c.l.b16 %v992
        %v1511 = vunpack.c.l.b16 %v993
        %v1512 = vunpack.c.l.b16 %v994
        %v1513 = vunpack.c.l.b16 %v995
        %v1514 = vunpack.c.l.b16 %v996
        %v1515 = vunpack.c.l.b16 %v997
        %v1516 = vunpack.c.l.b16 %v998
        %v1517 = vunpack.c.l.b16 %v999
        %v1518 = vunpack.c.l.b16 %v1000
        %v1519 = vunpack.c.l.b16 %v1001
        %v1520 = vunpack.c.l.b16 %v1002
        %v1521 = vunpack.c.l.b16 %v1003
        %v1522 = vunpack.c.l.b16 %v1004
        %v1523 = vunpack.c.l.b16 %v1005
        %v1524 = vunpack.c.l.b16 %v1006
        %v1525 = vunpack.c.l.b16 %v1007
        %v1526 = vunpack.c.l.b16 %v1008
        %v1527 = vpack.c.b16 %v1464, %v1463
        %v1528 = vpack.c.b16 %v1466, %v1465
        %v1529 = vpack.c.b16 %v1468, %v1467
        %v1530 = vpack.c.b16 %v1470, %v1469
        %v1531 = vpack.c.b16 %v1472, %v1471
        %v1532 = vpack.c.b16 %v1474, %v1473
        %v1533 = vpack.c.b16 %v1476, %v1475
        %v1534 = vpack.c.b16 %v1478, %v1477
        %v1535 = vpack.c.b16 %v1480, %v1479
        %v1536 = vpack.c.b16 %v1482, %v1481
        %v1537 = vpack.c.b16 %v1484, %v1483
        %v1538 = vpack.c.b16 %v1486, %v1485
        %v1539 = vpack.c.b16 %v1488, %v1487
        %v1540 = vpack.c.b16 %v1490, %v1489
        %v1541 = vpack.c.b16 %v1492, %v1491
        %v1542 = vpack.c.b16 %v1494, %v1493
        %v1543 = vpack.c.b16 %v1496, %v1495
        %v1544 = vpack.c.b16 %v1498, %v1497
        %v1545 = vpack.c.b16 %v1500, %v1499
        %v1546 = vpack.c.b16 %v1502, %v1501
        %v1547 = vpack.c.b16 %v1504, %v1503
        %v1548 = vpack.c.b16 %v1506, %v1505
        %v1549 = vpack.c.b16 %v1508, %v1507
        %v1550 = vpack.c.b16 %v1510, %v1509
        %v1551 = vpack.c.b16 %v1512, %v1511
        %v1552 = vpack.c.b16 %v1514, %v1513
        %v1553 = vpack.c.b16 %v1516, %v1515
        %v1554 = vpack.c.b16 %v1518, %v1517
        %v1555 = vpack.c.b16 %v1520, %v1519
        %v1556 = vpack.c.b16 %v1522, %v1521
        %v1557 = vpack.c.b16 %v1524, %v1523
        %v1558 = vpack.c.b16 %v1526, %v1525
        %vm1559 = vcmask 220160
        %v1561 = vsel %vm1559, %v1527, 0
        %v1564 = vsel %vm1559, %v1528, 0
        %v1567 = vsel %vm1559, %v1529, 0
        %v1570 = vsel %vm1559, %v1530, 0
        %v1573 = vsel %vm1559, %v1531, 0
        %v1576 = vsel %vm1559, %v1532, 0
        %v1579 = vsel %vm1559, %v1533, 0
        %v1582 = vsel %vm1559, %v1534, 0
        %v1585 = vsel %vm1559, %v1535, 0
        %v1588 = vsel %vm1559, %v1536, 0
        %v1591 = vsel %vm1559, %v1537, 0
        %v1594 = vsel %vm1559, %v1538, 0
        %v1597 = vsel %vm1559, %v1539, 0
        %v1600 = vsel %vm1559, %v1540, 0
        %v1603 = vsel %vm1559, %v1541, 0
        %v1606 = vsel %vm1559, %v1542, 0
        %v1609 = vsel %vm1559, %v1543, 0
        %v1612 = vsel %vm1559, %v1544, 0
        %v1615 = vsel %vm1559, %v1545, 0
        %v1618 = vsel %vm1559, %v1546, 0
        %v1621 = vsel %vm1559, %v1547, 0
        %v1624 = vsel %vm1559, %v1548, 0
        %v1627 = vsel %vm1559, %v1549, 0
        %v1630 = vsel %vm1559, %v1550, 0
        %v1633 = vsel %vm1559, %v1551, 0
        %v1636 = vsel %vm1559, %v1552, 0
        %v1639 = vsel %vm1559, %v1553, 0
        %v1642 = vsel %vm1559, %v1554, 0
        %v1645 = vsel %vm1559, %v1555, 0
        %v1648 = vsel %vm1559, %v1556, 0
        %v1651 = vsel %vm1559, %v1557, 0
        %v1654 = vsel %vm1559, %v1558, 0
        %vm1656 = vcmask 1044480
        %vm1657 = vcmask 1045504
        %v1658 = vsel %vm1656, 4294967295, 65535
        %v1659 = vsel %vm1657, %v1658, 0
        %v1661 = vand.u32 %v1014, %v1659
        %1663 = vmatprep.subr.bf16.mxu0 0
        %1664 = vmatpush1.bf16.msra.mxu0 0
        %1665 = vmatprep.subr.bf16.mxu0 0
        %1666 = vmatpush1.bf16.msra.mxu0 0
        %1667 = vmatprep.subr.bf16.mxu0 0
        %1668 = vmatpush1.bf16.msra.mxu0 0
        %1669 = vmatprep.subr.bf16.mxu0 0
        %1670 = vmatpush1.bf16.msra.mxu0 0
        %1671 = vmatprep.subr.bf16.mxu0 0
        %1672 = vmatpush1.bf16.msra.mxu0 0
        %1673 = vmatprep.subr.bf16.mxu0 0
        %1674 = vmatpush1.bf16.msra.mxu0 0
        %1675 = vmatprep.subr.bf16.mxu0 0
        %1676 = vmatpush1.bf16.msra.mxu0 %v1661
        %1677 = vmatprep.subr.bf16.mxu0 0
        %1678 = vmatpush1.bf16.msra.mxu0 %v1013
        %1679 = vmatprep.subr.bf16.mxu0 0
        %1680 = vmatpush2.bf16.msra.mxu0 0
        %1681 = vmatprep.subr.bf16.mxu0 0
        %1682 = vmatpush2.bf16.msra.mxu0 0
        %1683 = vmatprep.subr.bf16.mxu0 0
        %1684 = vmatpush2.bf16.msra.mxu0 0
        %1685 = vmatprep.subr.bf16.mxu0 0
        %1686 = vmatpush2.bf16.msra.mxu0 0
        %1687 = vmatprep.subr.bf16.mxu0 0
        %1688 = vmatpush2.bf16.msra.mxu0 0
        %1689 = vmatprep.subr.bf16.mxu0 0
        %1690 = vmatpush2.bf16.msra.mxu0 0
        %1691 = vmatprep.subr.bf16.mxu0 0
        %1692 = vmatpush2.bf16.msra.mxu0 0
        %1693 = vmatprep.subr.bf16.mxu0 0
        %1694 = vmatpush2.bf16.msra.mxu0 0
        %1695 = vmatprep.mubr.bf16.mxu0 0
        %1696 = vmatmul.mubr.bf16.gmra.mxu0 %v1561
        %v1697 = vpop.f32.mrf.mxu0
        %v1698 = vadd.f32 %v1082, %v1697
        %v1699 = vpop.f32.mrf.mxu0
        %v1700 = vpop.f32.mrf.mxu0
        %v1701 = vadd.f32 %v1087, %v1700
        %v1702 = vpop.f32.mrf.mxu0
        %1703 = vmatprep.mubr.bf16.mxu0 0
        %1704 = vmatmul.mubr.bf16.gmra.mxu0 %v1564
        %v1705 = vpop.f32.mrf.mxu0
        %v1706 = vadd.f32 %v1092, %v1705
        %v1707 = vpop.f32.mrf.mxu0
        %v1708 = vpop.f32.mrf.mxu0
        %v1709 = vadd.f32 %v1097, %v1708
        %v1710 = vpop.f32.mrf.mxu0
        %1711 = vmatprep.mubr.bf16.mxu0 0
        %1712 = vmatmul.mubr.bf16.gmra.mxu0 %v1567
        %v1713 = vpop.f32.mrf.mxu0
        %v1714 = vadd.f32 %v1102, %v1713
        %v1715 = vpop.f32.mrf.mxu0
        %v1716 = vpop.f32.mrf.mxu0
        %v1717 = vadd.f32 %v1107, %v1716
        %v1718 = vpop.f32.mrf.mxu0
        %1719 = vmatprep.mubr.bf16.mxu0 0
        %1720 = vmatmul.mubr.bf16.gmra.mxu0 %v1570
        %v1721 = vpop.f32.mrf.mxu0
        %v1722 = vadd.f32 %v1112, %v1721
        %v1723 = vpop.f32.mrf.mxu0
        %v1724 = vpop.f32.mrf.mxu0
        %v1725 = vadd.f32 %v1117, %v1724
        %v1726 = vpop.f32.mrf.mxu0
        %1727 = vmatprep.mubr.bf16.mxu0 0
        %1728 = vmatmul.mubr.bf16.gmra.mxu0 %v1573
        %v1729 = vpop.f32.mrf.mxu0
        %v1730 = vadd.f32 %v1122, %v1729
        %v1731 = vpop.f32.mrf.mxu0
        %v1732 = vpop.f32.mrf.mxu0
        %v1733 = vadd.f32 %v1127, %v1732
        %v1734 = vpop.f32.mrf.mxu0
        %1735 = vmatprep.mubr.bf16.mxu0 0
        %1736 = vmatmul.mubr.bf16.gmra.mxu0 %v1576
        %v1737 = vpop.f32.mrf.mxu0
        %v1738 = vadd.f32 %v1132, %v1737
        %v1739 = vpop.f32.mrf.mxu0
        %v1740 = vpop.f32.mrf.mxu0
        %v1741 = vadd.f32 %v1137, %v1740
        %v1742 = vpop.f32.mrf.mxu0
        %1743 = vmatprep.mubr.bf16.mxu0 0
        %1744 = vmatmul.mubr.bf16.gmra.mxu0 %v1579
        %v1745 = vpop.f32.mrf.mxu0
        %v1746 = vadd.f32 %v1142, %v1745
        %v1747 = vpop.f32.mrf.mxu0
        %v1748 = vpop.f32.mrf.mxu0
        %v1749 = vadd.f32 %v1147, %v1748
        %v1750 = vpop.f32.mrf.mxu0
        %1751 = vmatprep.mubr.bf16.mxu0 0
        %1752 = vmatmul.mubr.bf16.gmra.mxu0 %v1582
        %v1753 = vpop.f32.mrf.mxu0
        %v1754 = vadd.f32 %v1152, %v1753
        %v1755 = vpop.f32.mrf.mxu0
        %v1756 = vpop.f32.mrf.mxu0
        %v1757 = vadd.f32 %v1157, %v1756
        %v1758 = vpop.f32.mrf.mxu0
        %1759 = vmatprep.mubr.bf16.mxu0 0
        %1760 = vmatmul.mubr.bf16.gmra.mxu0 %v1585
        %v1761 = vpop.f32.mrf.mxu0
        %v1762 = vadd.f32 %v1162, %v1761
        %v1763 = vpop.f32.mrf.mxu0
        %v1764 = vpop.f32.mrf.mxu0
        %v1765 = vadd.f32 %v1167, %v1764
        %v1766 = vpop.f32.mrf.mxu0
        %1767 = vmatprep.mubr.bf16.mxu0 0
        %1768 = vmatmul.mubr.bf16.gmra.mxu0 %v1588
        %v1769 = vpop.f32.mrf.mxu0
        %v1770 = vadd.f32 %v1172, %v1769
        %v1771 = vpop.f32.mrf.mxu0
        %v1772 = vpop.f32.mrf.mxu0
        %v1773 = vadd.f32 %v1177, %v1772
        %v1774 = vpop.f32.mrf.mxu0
        %1775 = vmatprep.mubr.bf16.mxu0 0
        %1776 = vmatmul.mubr.bf16.gmra.mxu0 %v1591
        %v1777 = vpop.f32.mrf.mxu0
        %v1778 = vadd.f32 %v1182, %v1777
        %v1779 = vpop.f32.mrf.mxu0
        %v1780 = vpop.f32.mrf.mxu0
        %v1781 = vadd.f32 %v1187, %v1780
        %v1782 = vpop.f32.mrf.mxu0
        %1783 = vmatprep.mubr.bf16.mxu0 0
        %1784 = vmatmul.mubr.bf16.gmra.mxu0 %v1594
        %v1785 = vpop.f32.mrf.mxu0
        %v1786 = vadd.f32 %v1192, %v1785
        %v1787 = vpop.f32.mrf.mxu0
        %v1788 = vpop.f32.mrf.mxu0
        %v1789 = vadd.f32 %v1197, %v1788
        %v1790 = vpop.f32.mrf.mxu0
        %1791 = vmatprep.mubr.bf16.mxu0 0
        %1792 = vmatmul.mubr.bf16.gmra.mxu0 %v1597
        %v1793 = vpop.f32.mrf.mxu0
        %v1794 = vadd.f32 %v1202, %v1793
        %v1795 = vpop.f32.mrf.mxu0
        %v1796 = vpop.f32.mrf.mxu0
        %v1797 = vadd.f32 %v1207, %v1796
        %v1798 = vpop.f32.mrf.mxu0
        %1799 = vmatprep.mubr.bf16.mxu0 0
        %1800 = vmatmul.mubr.bf16.gmra.mxu0 %v1600
        %v1801 = vpop.f32.mrf.mxu0
        %v1802 = vadd.f32 %v1212, %v1801
        %v1803 = vpop.f32.mrf.mxu0
        %v1804 = vpop.f32.mrf.mxu0
        %v1805 = vadd.f32 %v1217, %v1804
        %v1806 = vpop.f32.mrf.mxu0
        %1807 = vmatprep.mubr.bf16.mxu0 0
        %1808 = vmatmul.mubr.bf16.gmra.mxu0 %v1603
        %v1809 = vpop.f32.mrf.mxu0
        %v1810 = vadd.f32 %v1222, %v1809
        %v1811 = vpop.f32.mrf.mxu0
        %v1812 = vpop.f32.mrf.mxu0
        %v1813 = vadd.f32 %v1227, %v1812
        %v1814 = vpop.f32.mrf.mxu0
        %1815 = vmatprep.mubr.bf16.mxu0 0
        %1816 = vmatmul.mubr.bf16.gmra.mxu0 %v1606
        %v1817 = vpop.f32.mrf.mxu0
        %v1818 = vadd.f32 %v1232, %v1817
        %v1819 = vpop.f32.mrf.mxu0
        %v1820 = vpop.f32.mrf.mxu0
        %v1821 = vadd.f32 %v1237, %v1820
        %v1822 = vpop.f32.mrf.mxu0
        %1823 = vmatprep.mubr.bf16.mxu0 0
        %1824 = vmatmul.mubr.bf16.gmra.mxu0 %v1609
        %v1825 = vpop.f32.mrf.mxu0
        %v1826 = vadd.f32 %v1242, %v1825
        %v1827 = vpop.f32.mrf.mxu0
        %v1828 = vpop.f32.mrf.mxu0
        %v1829 = vadd.f32 %v1247, %v1828
        %v1830 = vpop.f32.mrf.mxu0
        %1831 = vmatprep.mubr.bf16.mxu0 0
        %1832 = vmatmul.mubr.bf16.gmra.mxu0 %v1612
        %v1833 = vpop.f32.mrf.mxu0
        %v1834 = vadd.f32 %v1252, %v1833
        %v1835 = vpop.f32.mrf.mxu0
        %v1836 = vpop.f32.mrf.mxu0
        %v1837 = vadd.f32 %v1257, %v1836
        %v1838 = vpop.f32.mrf.mxu0
        %1839 = vmatprep.mubr.bf16.mxu0 0
        %1840 = vmatmul.mubr.bf16.gmra.mxu0 %v1615
        %v1841 = vpop.f32.mrf.mxu0
        %v1842 = vadd.f32 %v1262, %v1841
        %v1843 = vpop.f32.mrf.mxu0
        %v1844 = vpop.f32.mrf.mxu0
        %v1845 = vadd.f32 %v1267, %v1844
        %v1846 = vpop.f32.mrf.mxu0
        %1847 = vmatprep.mubr.bf16.mxu0 0
        %1848 = vmatmul.mubr.bf16.gmra.mxu0 %v1618
        %v1849 = vpop.f32.mrf.mxu0
        %v1850 = vadd.f32 %v1272, %v1849
        %v1851 = vpop.f32.mrf.mxu0
        %v1852 = vpop.f32.mrf.mxu0
        %v1853 = vadd.f32 %v1277, %v1852
        %v1854 = vpop.f32.mrf.mxu0
        %1855 = vmatprep.mubr.bf16.mxu0 0
        %1856 = vmatmul.mubr.bf16.gmra.mxu0 %v1621
        %v1857 = vpop.f32.mrf.mxu0
        %v1858 = vadd.f32 %v1282, %v1857
        %v1859 = vpop.f32.mrf.mxu0
        %v1860 = vpop.f32.mrf.mxu0
        %v1861 = vadd.f32 %v1287, %v1860
        %v1862 = vpop.f32.mrf.mxu0
        %1863 = vmatprep.mubr.bf16.mxu0 0
        %1864 = vmatmul.mubr.bf16.gmra.mxu0 %v1624
        %v1865 = vpop.f32.mrf.mxu0
        %v1866 = vadd.f32 %v1292, %v1865
        %v1867 = vpop.f32.mrf.mxu0
        %v1868 = vpop.f32.mrf.mxu0
        %v1869 = vadd.f32 %v1297, %v1868
        %v1870 = vpop.f32.mrf.mxu0
        %1871 = vmatprep.mubr.bf16.mxu0 0
        %1872 = vmatmul.mubr.bf16.gmra.mxu0 %v1627
        %v1873 = vpop.f32.mrf.mxu0
        %v1874 = vadd.f32 %v1302, %v1873
        %v1875 = vpop.f32.mrf.mxu0
        %v1876 = vpop.f32.mrf.mxu0
        %v1877 = vadd.f32 %v1307, %v1876
        %v1878 = vpop.f32.mrf.mxu0
        %1879 = vmatprep.mubr.bf16.mxu0 0
        %1880 = vmatmul.mubr.bf16.gmra.mxu0 %v1630
        %v1881 = vpop.f32.mrf.mxu0
        %v1882 = vadd.f32 %v1312, %v1881
        %v1883 = vpop.f32.mrf.mxu0
        %v1884 = vpop.f32.mrf.mxu0
        %v1885 = vadd.f32 %v1317, %v1884
        %v1886 = vpop.f32.mrf.mxu0
        %1887 = vmatprep.mubr.bf16.mxu0 0
        %1888 = vmatmul.mubr.bf16.gmra.mxu0 %v1633
        %v1889 = vpop.f32.mrf.mxu0
        %v1890 = vadd.f32 %v1322, %v1889
        %v1891 = vpop.f32.mrf.mxu0
        %v1892 = vpop.f32.mrf.mxu0
        %v1893 = vadd.f32 %v1327, %v1892
        %v1894 = vpop.f32.mrf.mxu0
        %1895 = vmatprep.mubr.bf16.mxu0 0
        %1896 = vmatmul.mubr.bf16.gmra.mxu0 %v1636
        %v1897 = vpop.f32.mrf.mxu0
        %v1898 = vadd.f32 %v1332, %v1897
        %v1899 = vpop.f32.mrf.mxu0
        %v1900 = vpop.f32.mrf.mxu0
        %v1901 = vadd.f32 %v1337, %v1900
        %v1902 = vpop.f32.mrf.mxu0
        %1903 = vmatprep.mubr.bf16.mxu0 0
        %1904 = vmatmul.mubr.bf16.gmra.mxu0 %v1639
        %v1905 = vpop.f32.mrf.mxu0
        %v1906 = vadd.f32 %v1342, %v1905
        %v1907 = vpop.f32.mrf.mxu0
        %v1908 = vpop.f32.mrf.mxu0
        %v1909 = vadd.f32 %v1347, %v1908
        %v1910 = vpop.f32.mrf.mxu0
        %1911 = vmatprep.mubr.bf16.mxu0 0
        %1912 = vmatmul.mubr.bf16.gmra.mxu0 %v1642
        %v1913 = vpop.f32.mrf.mxu0
        %v1914 = vadd.f32 %v1352, %v1913
        %v1915 = vpop.f32.mrf.mxu0
        %v1916 = vpop.f32.mrf.mxu0
        %v1917 = vadd.f32 %v1357, %v1916
        %v1918 = vpop.f32.mrf.mxu0
        %1919 = vmatprep.mubr.bf16.mxu0 0
        %1920 = vmatmul.mubr.bf16.gmra.mxu0 %v1645
        %v1921 = vpop.f32.mrf.mxu0
        %v1922 = vadd.f32 %v1362, %v1921
        %v1923 = vpop.f32.mrf.mxu0
        %v1924 = vpop.f32.mrf.mxu0
        %v1925 = vadd.f32 %v1367, %v1924
        %v1926 = vpop.f32.mrf.mxu0
        %1927 = vmatprep.mubr.bf16.mxu0 0
        %1928 = vmatmul.mubr.bf16.gmra.mxu0 %v1648
        %v1929 = vpop.f32.mrf.mxu0
        %v1930 = vadd.f32 %v1372, %v1929
        %v1931 = vpop.f32.mrf.mxu0
        %v1932 = vpop.f32.mrf.mxu0
        %v1933 = vadd.f32 %v1377, %v1932
        %v1934 = vpop.f32.mrf.mxu0
        %1935 = vmatprep.mubr.bf16.mxu0 0
        %1936 = vmatmul.mubr.bf16.gmra.mxu0 %v1651
        %v1937 = vpop.f32.mrf.mxu0
        %v1938 = vadd.f32 %v1382, %v1937
        %v1939 = vpop.f32.mrf.mxu0
        %v1940 = vpop.f32.mrf.mxu0
        %v1941 = vadd.f32 %v1387, %v1940
        %v1942 = vpop.f32.mrf.mxu0
        %1943 = vmatprep.mubr.bf16.mxu0 0
        %1944 = vmatmul.mubr.bf16.gmra.mxu0 %v1654
        %v1945 = vpop.f32.mrf.mxu0
        %v1946 = vadd.f32 %v1392, %v1945
        %v1947 = vpop.f32.mrf.mxu0
        %v1948 = vpop.f32.mrf.mxu0
        %v1949 = vadd.f32 %v1397, %v1948
        %v1950 = vpop.f32.mrf.mxu0
        %1951 = vdwg.mxu0
        %v1952 = vmax.f32 %v1698, 0.0
        %v1953 = vmax.f32 %v1701, 0.0
        %v1954 = vmax.f32 %v1706, 0.0
        %v1955 = vmax.f32 %v1709, 0.0
        %v1956 = vmax.f32 %v1714, 0.0
        %v1957 = vmax.f32 %v1717, 0.0
        %v1958 = vmax.f32 %v1722, 0.0
        %v1959 = vmax.f32 %v1725, 0.0
        %v1960 = vmax.f32 %v1730, 0.0
        %v1961 = vmax.f32 %v1733, 0.0
        %v1962 = vmax.f32 %v1738, 0.0
        %v1963 = vmax.f32 %v1741, 0.0
        %v1964 = vmax.f32 %v1746, 0.0
        %v1965 = vmax.f32 %v1749, 0.0
        %v1966 = vmax.f32 %v1754, 0.0
        %v1967 = vmax.f32 %v1757, 0.0
        %v1968 = vmax.f32 %v1762, 0.0
        %v1969 = vmax.f32 %v1765, 0.0
        %v1970 = vmax.f32 %v1770, 0.0
        %v1971 = vmax.f32 %v1773, 0.0
        %v1972 = vmax.f32 %v1778, 0.0
        %v1973 = vmax.f32 %v1781, 0.0
        %v1974 = vmax.f32 %v1786, 0.0
        %v1975 = vmax.f32 %v1789, 0.0
        %v1976 = vmax.f32 %v1794, 0.0
        %v1977 = vmax.f32 %v1797, 0.0
        %v1978 = vmax.f32 %v1802, 0.0
        %v1979 = vmax.f32 %v1805, 0.0
        %v1980 = vmax.f32 %v1810, 0.0
        %v1981 = vmax.f32 %v1813, 0.0
        %v1982 = vmax.f32 %v1818, 0.0
        %v1983 = vmax.f32 %v1821, 0.0
        %v1984 = vmax.f32 %v1826, 0.0
        %v1985 = vmax.f32 %v1829, 0.0
        %v1986 = vmax.f32 %v1834, 0.0
        %v1987 = vmax.f32 %v1837, 0.0
        %v1988 = vmax.f32 %v1842, 0.0
        %v1989 = vmax.f32 %v1845, 0.0
        %v1990 = vmax.f32 %v1850, 0.0
        %v1991 = vmax.f32 %v1853, 0.0
        %v1992 = vmax.f32 %v1858, 0.0
        %v1993 = vmax.f32 %v1861, 0.0
        %v1994 = vmax.f32 %v1866, 0.0
        %v1995 = vmax.f32 %v1869, 0.0
        %v1996 = vmax.f32 %v1874, 0.0
        %v1997 = vmax.f32 %v1877, 0.0
        %v1998 = vmax.f32 %v1882, 0.0
        %v1999 = vmax.f32 %v1885, 0.0
        %v2000 = vmax.f32 %v1890, 0.0
        %v2001 = vmax.f32 %v1893, 0.0
        %v2002 = vmax.f32 %v1898, 0.0
        %v2003 = vmax.f32 %v1901, 0.0
        %v2004 = vmax.f32 %v1906, 0.0
        %v2005 = vmax.f32 %v1909, 0.0
        %v2006 = vmax.f32 %v1914, 0.0
        %v2007 = vmax.f32 %v1917, 0.0
        %v2008 = vmax.f32 %v1922, 0.0
        %v2009 = vmax.f32 %v1925, 0.0
        %v2010 = vmax.f32 %v1930, 0.0
        %v2011 = vmax.f32 %v1933, 0.0
        %v2012 = vmax.f32 %v1938, 0.0
        %v2013 = vmax.f32 %v1941, 0.0
        %v2014 = vmax.f32 %v1946, 0.0
        %v2015 = vmax.f32 %v1949, 0.0
        %v2016 = vpack.c.bf16 %v1953, %v1952
        %v2017 = vpack.c.bf16 %v1955, %v1954
        %v2018 = vpack.c.bf16 %v1957, %v1956
        %v2019 = vpack.c.bf16 %v1959, %v1958
        %v2020 = vpack.c.bf16 %v1961, %v1960
        %v2021 = vpack.c.bf16 %v1963, %v1962
        %v2022 = vpack.c.bf16 %v1965, %v1964
        %v2023 = vpack.c.bf16 %v1967, %v1966
        %v2024 = vpack.c.bf16 %v1969, %v1968
        %v2025 = vpack.c.bf16 %v1971, %v1970
        %v2026 = vpack.c.bf16 %v1973, %v1972
        %v2027 = vpack.c.bf16 %v1975, %v1974
        %v2028 = vpack.c.bf16 %v1977, %v1976
        %v2029 = vpack.c.bf16 %v1979, %v1978
        %v2030 = vpack.c.bf16 %v1981, %v1980
        %v2031 = vpack.c.bf16 %v1983, %v1982
        %v2032 = vpack.c.bf16 %v1985, %v1984
        %v2033 = vpack.c.bf16 %v1987, %v1986
        %v2034 = vpack.c.bf16 %v1989, %v1988
        %v2035 = vpack.c.bf16 %v1991, %v1990
        %v2036 = vpack.c.bf16 %v1993, %v1992
        %v2037 = vpack.c.bf16 %v1995, %v1994
        %v2038 = vpack.c.bf16 %v1997, %v1996
        %v2039 = vpack.c.bf16 %v1999, %v1998
        %v2040 = vpack.c.bf16 %v2001, %v2000
        %v2041 = vpack.c.bf16 %v2003, %v2002
        %v2042 = vpack.c.bf16 %v2005, %v2004
        %v2043 = vpack.c.bf16 %v2007, %v2006
        %v2044 = vpack.c.bf16 %v2009, %v2008
        %v2045 = vpack.c.bf16 %v2011, %v2010
        %v2046 = vpack.c.bf16 %v2013, %v2012
        %v2047 = vpack.c.bf16 %v2015, %v2014
        %v2048 = vld [vmem:[%s429 + $0x2] sm:$0x5]
        %v2049 = vsel %vm461, %v2048, 0
        %v2050 = vunpack.c.l.bf16 %v2049
        %2051 = vst [vmem:[#allocation2] sm:$0x1] %v2050
        %v2052 = vunpack.c.l.bf16 %v2048
        %v2054 = vlaneseq
        %v2055 = vshrl.u32 %v2054, 7
        %v2056 = vsub.s32 0, %v2055
        %v2057 = vrot.slane %v2052, %v2056
        %v2058 = vlaneseq
        %v2059 = vshrl.u32 %v2058, 7
        %v2060 = vsub.s32 4, %v2059
        %v2061 = vrot.slane %v2052, %v2060
        %2062 = vrot.lane.b32.xlu0 %v2057, 127
        %v2063 = vpop.permute.xlu0 %2062
        %2064 = vrot.lane.b32.xlu0 %v2061, 127
        %v2065 = vpop.permute.xlu0 %2064
        %v2066 = vsel %vm479, %v2063, %v2065
        %2068 = vst [vmem:[#allocation2 + $0x1] sm:$0x1] %v2066
        %v2069 = vsel %vm492, %v2048, 0
        %v2070 = vunpack.c.l.bf16 %v2069
        %v2072 = vlaneseq
        %v2073 = vshrl.u32 %v2072, 7
        %v2074 = vsub.s32 0, %v2073
        %v2075 = vrot.slane %v2070, %v2074
        %v2076 = vlaneseq
        %v2077 = vshrl.u32 %v2076, 7
        %v2078 = vsub.s32 4, %v2077
        %v2079 = vrot.slane %v2070, %v2078
        %2080 = vrot.lane.b32.xlu0 %v2075, 126
        %v2081 = vpop.permute.xlu0 %2080
        %2082 = vrot.lane.b32.xlu0 %v2079, 126
        %v2083 = vpop.permute.xlu0 %2082
        %v2084 = vsel %vm508, %v2081, %v2083
        %2086 = vst [vmem:[#allocation2 + $0x2] sm:$0x1] %v2084
        %v2087 = vld [vmem:[%s429 + $0x2] sm:$0x5]
        %v2088 = vsel %vm519, %v2087, 0
        %v2089 = vunpack.c.l.bf16 %v2088
        %v2091 = vlaneseq
        %v2092 = vshrl.u32 %v2091, 7
        %v2093 = vsub.s32 0, %v2092
        %v2094 = vrot.slane %v2089, %v2093
        %v2095 = vlaneseq
        %v2096 = vshrl.u32 %v2095, 7
        %v2097 = vsub.s32 4, %v2096
        %v2098 = vrot.slane %v2089, %v2097
        %2099 = vrot.lane.b32.xlu0 %v2094, 112
        %v2100 = vpop.permute.xlu0 %2099
        %2101 = vrot.lane.b32.xlu0 %v2098, 112
        %v2102 = vpop.permute.xlu0 %2101
        %v2103 = vsel %vm535, %v2100, %v2102
        %2105 = vst [vmem:[#allocation2 + $0x3] sm:$0x1] %v2103
        %v2106 = vunpack.c.l.bf16 %v2087
        %v2108 = vlaneseq
        %v2109 = vshrl.u32 %v2108, 7
        %v2110 = vsub.s32 0, %v2109
        %v2111 = vrot.slane %v2106, %v2110
        %v2112 = vlaneseq
        %v2113 = vshrl.u32 %v2112, 7
        %v2114 = vsub.s32 4, %v2113
        %v2115 = vrot.slane %v2106, %v2114
        %2116 = vrot.lane.b32.xlu0 %v2111, 111
        %v2117 = vpop.permute.xlu0 %2116
        %2118 = vrot.lane.b32.xlu0 %v2115, 111
        %v2119 = vpop.permute.xlu0 %2118
        %v2120 = vsel %vm553, %v2117, %v2119
        %2122 = vst [vmem:[#allocation2 + $0x4] sm:$0x1] %v2120
        %v2123 = vsel %vm562, %v2087, 0
        %v2124 = vunpack.c.l.bf16 %v2123
        %v2126 = vlaneseq
        %v2127 = vshrl.u32 %v2126, 7
        %v2128 = vsub.s32 0, %v2127
        %v2129 = vrot.slane %v2124, %v2128
        %v2130 = vlaneseq
        %v2131 = vshrl.u32 %v2130, 7
        %v2132 = vsub.s32 4, %v2131
        %v2133 = vrot.slane %v2124, %v2132
        %2134 = vrot.lane.b32.xlu0 %v2129, 110
        %v2135 = vpop.permute.xlu0 %2134
        %2136 = vrot.lane.b32.xlu0 %v2133, 110
        %v2137 = vpop.permute.xlu0 %2136
        %v2138 = vsel %vm578, %v2135, %v2137
        %2140 = vst [vmem:[#allocation2 + $0x5] sm:$0x1] %v2138
        %v2141 = vld [vmem:[%s429 + $0x2] sm:$0x5]
        %v2142 = vsel %vm588, %v2141, 0
        %v2143 = vunpack.c.l.bf16 %v2142
        %v2145 = vlaneseq
        %v2146 = vshrl.u32 %v2145, 7
        %v2147 = vsub.s32 0, %v2146
        %v2148 = vrot.slane %v2143, %v2147
        %v2149 = vlaneseq
        %v2150 = vshrl.u32 %v2149, 7
        %v2151 = vsub.s32 4, %v2150
        %v2152 = vrot.slane %v2143, %v2151
        %2153 = vrot.lane.b32.xlu0 %v2148, 96
        %v2154 = vpop.permute.xlu0 %2153
        %2155 = vrot.lane.b32.xlu0 %v2152, 96
        %v2156 = vpop.permute.xlu0 %2155
        %v2157 = vsel %vm604, %v2154, %v2156
        %2159 = vst [vmem:[#allocation2 + $0x6] sm:$0x1] %v2157
        %v2160 = vunpack.c.l.bf16 %v2141
        %v2162 = vlaneseq
        %v2163 = vshrl.u32 %v2162, 7
        %v2164 = vsub.s32 0, %v2163
        %v2165 = vrot.slane %v2160, %v2164
        %v2166 = vlaneseq
        %v2167 = vshrl.u32 %v2166, 7
        %v2168 = vsub.s32 4, %v2167
        %v2169 = vrot.slane %v2160, %v2168
        %2170 = vrot.lane.b32.xlu0 %v2165, 95
        %v2171 = vpop.permute.xlu0 %2170
        %2172 = vrot.lane.b32.xlu0 %v2169, 95
        %v2173 = vpop.permute.xlu0 %2172
        %v2174 = vsel %vm622, %v2171, %v2173
        %2176 = vst [vmem:[#allocation2 + $0x7] sm:$0x1] %v2174
        %v2177 = vsel %vm631, %v2141, 0
        %v2178 = vunpack.c.l.bf16 %v2177
        %v2180 = vlaneseq
        %v2181 = vshrl.u32 %v2180, 7
        %v2182 = vsub.s32 0, %v2181
        %v2183 = vrot.slane %v2178, %v2182
        %v2184 = vlaneseq
        %v2185 = vshrl.u32 %v2184, 7
        %v2186 = vsub.s32 4, %v2185
        %v2187 = vrot.slane %v2178, %v2186
        %2188 = vrot.lane.b32.xlu0 %v2183, 94
        %v2189 = vpop.permute.xlu0 %2188
        %2190 = vrot.lane.b32.xlu0 %v2187, 94
        %v2191 = vpop.permute.xlu0 %2190
        %v2192 = vsel %vm647, %v2189, %v2191
        %2194 = vst [vmem:[#allocation2 + $0x8] sm:$0x1] %v2192
        %v2195 = vld [vmem:[%s429 + $0x2] sm:$0x5]
        %v2196 = vsel %vm461, %v2195, 0
        %v2197 = vunpack.c.l.bf16 %v2196
        %2198 = vst [vmem:[#allocation2 + $0x8] sm:$0x2] %v2197
        %v2199 = vunpack.c.l.bf16 %v2195
        %v2201 = vlaneseq
        %v2202 = vshrl.u32 %v2201, 7
        %v2203 = vsub.s32 1, %v2202
        %v2204 = vrot.slane %v2199, %v2203
        %v2205 = vlaneseq
        %v2206 = vshrl.u32 %v2205, 7
        %v2207 = vsub.s32 5, %v2206
        %v2208 = vrot.slane %v2199, %v2207
        %2209 = vrot.lane.b32.xlu0 %v2204, 127
        %v2210 = vpop.permute.xlu0 %2209
        %2211 = vrot.lane.b32.xlu0 %v2208, 127
        %v2212 = vpop.permute.xlu0 %2211
        %v2213 = vsel %vm479, %v2210, %v2212
        %2215 = vst [vmem:[#allocation2 + $0x9] sm:$0x2] %v2213
        %v2216 = vsel %vm492, %v2195, 0
        %v2217 = vunpack.c.l.bf16 %v2216
        %v2219 = vlaneseq
        %v2220 = vshrl.u32 %v2219, 7
        %v2221 = vsub.s32 1, %v2220
        %v2222 = vrot.slane %v2217, %v2221
        %v2223 = vlaneseq
        %v2224 = vshrl.u32 %v2223, 7
        %v2225 = vsub.s32 5, %v2224
        %v2226 = vrot.slane %v2217, %v2225
        %2227 = vrot.lane.b32.xlu0 %v2222, 126
        %v2228 = vpop.permute.xlu0 %2227
        %2229 = vrot.lane.b32.xlu0 %v2226, 126
        %v2230 = vpop.permute.xlu0 %2229
        %v2231 = vsel %vm508, %v2228, %v2230
        %2233 = vst [vmem:[#allocation2 + $0xa] sm:$0x2] %v2231
        %v2234 = vld [vmem:[%s429 + $0x2] sm:$0x5]
        %v2235 = vsel %vm519, %v2234, 0
        %v2236 = vunpack.c.l.bf16 %v2235
        %v2238 = vlaneseq
        %v2239 = vshrl.u32 %v2238, 7
        %v2240 = vsub.s32 1, %v2239
        %v2241 = vrot.slane %v2236, %v2240
        %v2242 = vlaneseq
        %v2243 = vshrl.u32 %v2242, 7
        %v2244 = vsub.s32 5, %v2243
        %v2245 = vrot.slane %v2236, %v2244
        %2246 = vrot.lane.b32.xlu0 %v2241, 112
        %v2247 = vpop.permute.xlu0 %2246
        %2248 = vrot.lane.b32.xlu0 %v2245, 112
        %v2249 = vpop.permute.xlu0 %2248
        %v2250 = vsel %vm535, %v2247, %v2249
        %2252 = vst [vmem:[#allocation2 + $0xb] sm:$0x2] %v2250
        %v2253 = vunpack.c.l.bf16 %v2234
        %v2255 = vlaneseq
        %v2256 = vshrl.u32 %v2255, 7
        %v2257 = vsub.s32 1, %v2256
        %v2258 = vrot.slane %v2253, %v2257
        %v2259 = vlaneseq
        %v2260 = vshrl.u32 %v2259, 7
        %v2261 = vsub.s32 5, %v2260
        %v2262 = vrot.slane %v2253, %v2261
        %2263 = vrot.lane.b32.xlu0 %v2258, 111
        %v2264 = vpop.permute.xlu0 %2263
        %2265 = vrot.lane.b32.xlu0 %v2262, 111
        %v2266 = vpop.permute.xlu0 %2265
        %v2267 = vsel %vm553, %v2264, %v2266
        %2269 = vst [vmem:[#allocation2 + $0xc] sm:$0x2] %v2267
        %v2270 = vsel %vm562, %v2234, 0
        %v2271 = vunpack.c.l.bf16 %v2270
        %v2273 = vlaneseq
        %v2274 = vshrl.u32 %v2273, 7
        %v2275 = vsub.s32 1, %v2274
        %v2276 = vrot.slane %v2271, %v2275
        %v2277 = vlaneseq
        %v2278 = vshrl.u32 %v2277, 7
        %v2279 = vsub.s32 5, %v2278
        %v2280 = vrot.slane %v2271, %v2279
        %2281 = vrot.lane.b32.xlu0 %v2276, 110
        %v2282 = vpop.permute.xlu0 %2281
        %2283 = vrot.lane.b32.xlu0 %v2280, 110
        %v2284 = vpop.permute.xlu0 %2283
        %v2285 = vsel %vm578, %v2282, %v2284
        %2287 = vst [vmem:[#allocation2 + $0xd] sm:$0x2] %v2285
        %v2288 = vld [vmem:[%s429 + $0x2] sm:$0x5]
        %v2289 = vsel %vm588, %v2288, 0
        %v2290 = vunpack.c.l.bf16 %v2289
        %v2292 = vlaneseq
        %v2293 = vshrl.u32 %v2292, 7
        %v2294 = vsub.s32 1, %v2293
        %v2295 = vrot.slane %v2290, %v2294
        %v2296 = vlaneseq
        %v2297 = vshrl.u32 %v2296, 7
        %v2298 = vsub.s32 5, %v2297
        %v2299 = vrot.slane %v2290, %v2298
        %2300 = vrot.lane.b32.xlu0 %v2295, 96
        %v2301 = vpop.permute.xlu0 %2300
        %2302 = vrot.lane.b32.xlu0 %v2299, 96
        %v2303 = vpop.permute.xlu0 %2302
        %v2304 = vsel %vm604, %v2301, %v2303
        %2306 = vst [vmem:[#allocation2 + $0xe] sm:$0x2] %v2304
        %v2307 = vunpack.c.l.bf16 %v2288
        %v2309 = vlaneseq
        %v2310 = vshrl.u32 %v2309, 7
        %v2311 = vsub.s32 1, %v2310
        %v2312 = vrot.slane %v2307, %v2311
        %v2313 = vlaneseq
        %v2314 = vshrl.u32 %v2313, 7
        %v2315 = vsub.s32 5, %v2314
        %v2316 = vrot.slane %v2307, %v2315
        %2317 = vrot.lane.b32.xlu0 %v2312, 95
        %v2318 = vpop.permute.xlu0 %2317
        %2319 = vrot.lane.b32.xlu0 %v2316, 95
        %v2320 = vpop.permute.xlu0 %2319
        %v2321 = vsel %vm622, %v2318, %v2320
        %2323 = vst [vmem:[#allocation2 + $0xf] sm:$0x2] %v2321
        %v2324 = vsel %vm631, %v2288, 0
        %v2325 = vunpack.c.l.bf16 %v2324
        %v2327 = vlaneseq
        %v2328 = vshrl.u32 %v2327, 7
        %v2329 = vsub.s32 1, %v2328
        %v2330 = vrot.slane %v2325, %v2329
        %v2331 = vlaneseq
        %v2332 = vshrl.u32 %v2331, 7
        %v2333 = vsub.s32 5, %v2332
        %v2334 = vrot.slane %v2325, %v2333
        %2335 = vrot.lane.b32.xlu0 %v2330, 94
        %v2336 = vpop.permute.xlu0 %2335
        %2337 = vrot.lane.b32.xlu0 %v2334, 94
        %v2338 = vpop.permute.xlu0 %2337
        %v2339 = vsel %vm647, %v2336, %v2338
        %2341 = vst [vmem:[#allocation2 + $0x10] sm:$0x2] %v2339
        %v2342 = vld [vmem:[%s429 + $0x2] sm:$0xa]
        %v2343 = vsel %vm461, %v2342, 0
        %v2344 = vunpack.c.l.bf16 %v2343
        %2345 = vst [vmem:[#allocation2 + $0x10] sm:$0x4] %v2344
        %v2346 = vunpack.c.l.bf16 %v2342
        %v2348 = vlaneseq
        %v2349 = vshrl.u32 %v2348, 7
        %v2350 = vsub.s32 2, %v2349
        %v2351 = vrot.slane %v2346, %v2350
        %v2352 = vlaneseq
        %v2353 = vshrl.u32 %v2352, 7
        %v2354 = vsub.s32 6, %v2353
        %v2355 = vrot.slane %v2346, %v2354
        %2356 = vrot.lane.b32.xlu0 %v2351, 127
        %v2357 = vpop.permute.xlu0 %2356
        %2358 = vrot.lane.b32.xlu0 %v2355, 127
        %v2359 = vpop.permute.xlu0 %2358
        %v2360 = vsel %vm479, %v2357, %v2359
        %2362 = vst [vmem:[#allocation2 + $0x11] sm:$0x4] %v2360
        %v2363 = vsel %vm492, %v2342, 0
        %v2364 = vunpack.c.l.bf16 %v2363
        %v2366 = vlaneseq
        %v2367 = vshrl.u32 %v2366, 7
        %v2368 = vsub.s32 2, %v2367
        %v2369 = vrot.slane %v2364, %v2368
        %v2370 = vlaneseq
        %v2371 = vshrl.u32 %v2370, 7
        %v2372 = vsub.s32 6, %v2371
        %v2373 = vrot.slane %v2364, %v2372
        %2374 = vrot.lane.b32.xlu0 %v2369, 126
        %v2375 = vpop.permute.xlu0 %2374
        %2376 = vrot.lane.b32.xlu0 %v2373, 126
        %v2377 = vpop.permute.xlu0 %2376
        %v2378 = vsel %vm508, %v2375, %v2377
        %2380 = vst [vmem:[#allocation2 + $0x12] sm:$0x4] %v2378
        %v2381 = vld [vmem:[%s429 + $0x2] sm:$0xa]
        %v2382 = vsel %vm519, %v2381, 0
        %v2383 = vunpack.c.l.bf16 %v2382
        %v2385 = vlaneseq
        %v2386 = vshrl.u32 %v2385, 7
        %v2387 = vsub.s32 2, %v2386
        %v2388 = vrot.slane %v2383, %v2387
        %v2389 = vlaneseq
        %v2390 = vshrl.u32 %v2389, 7
        %v2391 = vsub.s32 6, %v2390
        %v2392 = vrot.slane %v2383, %v2391
        %2393 = vrot.lane.b32.xlu0 %v2388, 112
        %v2394 = vpop.permute.xlu0 %2393
        %2395 = vrot.lane.b32.xlu0 %v2392, 112
        %v2396 = vpop.permute.xlu0 %2395
        %v2397 = vsel %vm535, %v2394, %v2396
        %2399 = vst [vmem:[#allocation2 + $0x13] sm:$0x4] %v2397
        %v2400 = vunpack.c.l.bf16 %v2381
        %v2402 = vlaneseq
        %v2403 = vshrl.u32 %v2402, 7
        %v2404 = vsub.s32 2, %v2403
        %v2405 = vrot.slane %v2400, %v2404
        %v2406 = vlaneseq
        %v2407 = vshrl.u32 %v2406, 7
        %v2408 = vsub.s32 6, %v2407
        %v2409 = vrot.slane %v2400, %v2408
        %2410 = vrot.lane.b32.xlu0 %v2405, 111
        %v2411 = vpop.permute.xlu0 %2410
        %2412 = vrot.lane.b32.xlu0 %v2409, 111
        %v2413 = vpop.permute.xlu0 %2412
        %v2414 = vsel %vm553, %v2411, %v2413
        %2416 = vst [vmem:[#allocation2 + $0x14] sm:$0x4] %v2414
        %v2417 = vsel %vm562, %v2381, 0
        %v2418 = vunpack.c.l.bf16 %v2417
        %v2420 = vlaneseq
        %v2421 = vshrl.u32 %v2420, 7
        %v2422 = vsub.s32 2, %v2421
        %v2423 = vrot.slane %v2418, %v2422
        %v2424 = vlaneseq
        %v2425 = vshrl.u32 %v2424, 7
        %v2426 = vsub.s32 6, %v2425
        %v2427 = vrot.slane %v2418, %v2426
        %2428 = vrot.lane.b32.xlu0 %v2423, 110
        %v2429 = vpop.permute.xlu0 %2428
        %2430 = vrot.lane.b32.xlu0 %v2427, 110
        %v2431 = vpop.permute.xlu0 %2430
        %v2432 = vsel %vm578, %v2429, %v2431
        %2434 = vst [vmem:[#allocation2 + $0x15] sm:$0x4] %v2432
        %v2435 = vld [vmem:[%s429 + $0x2] sm:$0xa]
        %v2436 = vsel %vm588, %v2435, 0
        %v2437 = vunpack.c.l.bf16 %v2436
        %v2439 = vlaneseq
        %v2440 = vshrl.u32 %v2439, 7
        %v2441 = vsub.s32 2, %v2440
        %v2442 = vrot.slane %v2437, %v2441
        %v2443 = vlaneseq
        %v2444 = vshrl.u32 %v2443, 7
        %v2445 = vsub.s32 6, %v2444
        %v2446 = vrot.slane %v2437, %v2445
        %2447 = vrot.lane.b32.xlu0 %v2442, 96
        %v2448 = vpop.permute.xlu0 %2447
        %2449 = vrot.lane.b32.xlu0 %v2446, 96
        %v2450 = vpop.permute.xlu0 %2449
        %v2451 = vsel %vm604, %v2448, %v2450
        %2453 = vst [vmem:[#allocation2 + $0x16] sm:$0x4] %v2451
        %v2454 = vunpack.c.l.bf16 %v2435
        %v2456 = vlaneseq
        %v2457 = vshrl.u32 %v2456, 7
        %v2458 = vsub.s32 2, %v2457
        %v2459 = vrot.slane %v2454, %v2458
        %v2460 = vlaneseq
        %v2461 = vshrl.u32 %v2460, 7
        %v2462 = vsub.s32 6, %v2461
        %v2463 = vrot.slane %v2454, %v2462
        %2464 = vrot.lane.b32.xlu0 %v2459, 95
        %v2465 = vpop.permute.xlu0 %2464
        %2466 = vrot.lane.b32.xlu0 %v2463, 95
        %v2467 = vpop.permute.xlu0 %2466
        %v2468 = vsel %vm622, %v2465, %v2467
        %2470 = vst [vmem:[#allocation2 + $0x17] sm:$0x4] %v2468
        %v2471 = vsel %vm631, %v2435, 0
        %v2472 = vunpack.c.l.bf16 %v2471
        %v2474 = vlaneseq
        %v2475 = vshrl.u32 %v2474, 7
        %v2476 = vsub.s32 2, %v2475
        %v2477 = vrot.slane %v2472, %v2476
        %v2478 = vlaneseq
        %v2479 = vshrl.u32 %v2478, 7
        %v2480 = vsub.s32 6, %v2479
        %v2481 = vrot.slane %v2472, %v2480
        %2482 = vrot.lane.b32.xlu0 %v2477, 94
        %v2483 = vpop.permute.xlu0 %2482
        %2484 = vrot.lane.b32.xlu0 %v2481, 94
        %v2485 = vpop.permute.xlu0 %2484
        %v2486 = vsel %vm647, %v2483, %v2485
        %2488 = vst [vmem:[#allocation2 + $0x18] sm:$0x4] %v2486
        %v2489 = vld [vmem:[%s1] sm:$0xf]
        %v2490 = vld [vmem:[%s1 + $0x4] sm:$0xf]
        %v2491 = vld [vmem:[%s1 + $0x8] sm:$0xf]
        %v2492 = vld [vmem:[%s1 + $0xc] sm:$0xf]
        %v2493 = vld [vmem:[%s1 + $0x10] sm:$0xf]
        %v2494 = vld [vmem:[%s1 + $0x14] sm:$0xf]
        %v2495 = vld [vmem:[%s1 + $0x18] sm:$0xf]
        %v2496 = vld [vmem:[%s1 + $0x1c] sm:$0xf]
        %v2497 = vld [vmem:[%s1 + $0x20] sm:$0xf]
        %v2498 = vld [vmem:[%s1 + $0x24] sm:$0xf]
        %v2499 = vld [vmem:[%s1 + $0x28] sm:$0xf]
        %v2500 = vld [vmem:[%s1 + $0x2c] sm:$0xf]
        %v2501 = vld [vmem:[%s1 + $0x30] sm:$0xf]
        %v2502 = vld [vmem:[%s1 + $0x34] sm:$0xf]
        %v2503 = vld [vmem:[%s1 + $0x38] sm:$0xf]
        %v2504 = vld [vmem:[%s1 + $0x3c] sm:$0xf]
        %v2505 = vld [vmem:[%s1 + $0x40] sm:$0xf]
        %v2506 = vld [vmem:[%s1 + $0x44] sm:$0xf]
        %v2507 = vld [vmem:[%s1 + $0x48] sm:$0xf]
        %v2508 = vld [vmem:[%s1 + $0x4c] sm:$0xf]
        %v2509 = vld [vmem:[%s1 + $0x50] sm:$0xf]
        %v2510 = vld [vmem:[%s1 + $0x54] sm:$0xf]
        %v2511 = vld [vmem:[%s1 + $0x58] sm:$0xf]
        %v2512 = vld [vmem:[%s1 + $0x5c] sm:$0xf]
        %v2513 = vld [vmem:[%s1 + $0x60] sm:$0xf]
        %v2514 = vld [vmem:[%s1 + $0x64] sm:$0xf]
        %v2515 = vld [vmem:[%s1 + $0x68] sm:$0xf]
        %v2516 = vld [vmem:[%s1 + $0x6c] sm:$0xf]
        %v2517 = vld [vmem:[%s1 + $0x70] sm:$0xf]
        %v2518 = vld [vmem:[%s1 + $0x74] sm:$0xf]
        %v2519 = vld [vmem:[%s1 + $0x78] sm:$0xf]
        %v2520 = vld [vmem:[%s1 + $0x7c] sm:$0xf]
        %v2521 = vld [vmem:[%s1 + $0x80] sm:$0xf]
        %v2522 = vld [vmem:[%s1 + $0x84] sm:$0xf]
        %v2523 = vld [vmem:[%s1 + $0x88] sm:$0xf]
        %v2524 = vld [vmem:[%s1 + $0x8c] sm:$0xf]
        %v2525 = vld [vmem:[%s1 + $0x90] sm:$0xf]
        %v2526 = vld [vmem:[%s1 + $0x94] sm:$0xf]
        %v2527 = vld [vmem:[%s1 + $0x98] sm:$0xf]
        %v2528 = vld [vmem:[%s1 + $0x9c] sm:$0xf]
        %v2529 = vld [vmem:[%s1 + $0xa0] sm:$0xf]
        %v2530 = vld [vmem:[%s1 + $0xa4] sm:$0xf]
        %v2531 = vld [vmem:[%s1 + $0xa8] sm:$0xf]
        %v2532 = vld [vmem:[%s1 + $0xac] sm:$0xf]
        %v2533 = vld [vmem:[%s1 + $0xb0] sm:$0xf]
        %v2534 = vld [vmem:[%s1 + $0xb4] sm:$0xf]
        %v2535 = vld [vmem:[%s1 + $0xb8] sm:$0xf]
        %v2536 = vld [vmem:[%s1 + $0xbc] sm:$0xf]
        %v2537 = vld [vmem:[%s1 + $0xc0] sm:$0xf]
        %v2538 = vld [vmem:[%s1 + $0xc4] sm:$0xf]
        %v2539 = vld [vmem:[%s1 + $0xc8] sm:$0xf]
        %v2540 = vld [vmem:[%s1 + $0xcc] sm:$0xf]
        %v2541 = vld [vmem:[%s1 + $0xd0] sm:$0xf]
        %v2542 = vld [vmem:[%s1 + $0xd4] sm:$0xf]
        %v2543 = vld [vmem:[%s1 + $0xd8] sm:$0xf]
        %v2544 = vld [vmem:[%s1 + $0xdc] sm:$0xf]
        %v2545 = vld [vmem:[%s1 + $0xe0] sm:$0xf]
        %v2546 = vld [vmem:[%s1 + $0xe4] sm:$0xf]
        %v2547 = vld [vmem:[%s1 + $0xe8] sm:$0xf]
        %v2548 = vld [vmem:[%s1 + $0xec] sm:$0xf]
        %v2549 = vld [vmem:[%s1 + $0xf0] sm:$0xf]
        %v2550 = vld [vmem:[%s1 + $0xf4] sm:$0xf]
        %v2551 = vld [vmem:[%s1 + $0xf8] sm:$0xf]
        %v2552 = vld [vmem:[%s1 + $0xfc] sm:$0xf]
        %v2553 = vld [vmem:[#allocation2] sm:$0xff]
        %v2554 = vld [vmem:[#allocation2 + $0x8] sm:$0xff]
        %v2555 = vld [vmem:[#allocation2 + $0x10] sm:$0xff]
        %v2556 = vld [vmem:[#allocation2 + $0x18] sm:$0x7]
        %v2557 = vpack.c.bf16 %v2554, %v2553
        %v2558 = vpack.c.bf16 %v2556, %v2555
        %v2559 = vld [vmem:[%s2] sm:$0xff]
        %v2560 = vld [vmem:[%s2 + $0x8] sm:$0xff]
        %v2561 = vld [vmem:[%s2 + $0x10] sm:$0xff]
        %v2562 = vld [vmem:[%s2 + $0x18] sm:$0xff]
        %v2563 = vld [vmem:[%s2 + $0x20] sm:$0xff]
        %v2564 = vld [vmem:[%s2 + $0x28] sm:$0xff]
        %v2565 = vld [vmem:[%s2 + $0x30] sm:$0xff]
        %v2566 = vld [vmem:[%s2 + $0x38] sm:$0xff]
        %v2567 = vld [vmem:[%s2 + $0x40] sm:$0xff]
        %v2568 = vld [vmem:[%s2 + $0x48] sm:$0xff]
        %v2569 = vld [vmem:[%s2 + $0x50] sm:$0xff]
        %v2570 = vld [vmem:[%s2 + $0x58] sm:$0xff]
        %v2571 = vld [vmem:[%s2 + $0x60] sm:$0xff]
        %v2572 = vld [vmem:[%s2 + $0x68] sm:$0xff]
        %v2573 = vld [vmem:[%s2 + $0x70] sm:$0xff]
        %v2574 = vld [vmem:[%s2 + $0x78] sm:$0xff]
        %v2575 = vld [vmem:[%s2 + $0x80] sm:$0xff]
        %v2576 = vld [vmem:[%s2 + $0x88] sm:$0xff]
        %v2577 = vld [vmem:[%s2 + $0x90] sm:$0xff]
        %v2578 = vld [vmem:[%s2 + $0x98] sm:$0xff]
        %v2579 = vld [vmem:[%s2 + $0xa0] sm:$0xff]
        %v2580 = vld [vmem:[%s2 + $0xa8] sm:$0xff]
        %v2581 = vld [vmem:[%s2 + $0xb0] sm:$0xff]
        %v2582 = vld [vmem:[%s2 + $0xb8] sm:$0xff]
        %v2583 = vld [vmem:[%s2 + $0xc0] sm:$0xff]
        %v2584 = vld [vmem:[%s2 + $0xc8] sm:$0xff]
        %v2585 = vld [vmem:[%s2 + $0xd0] sm:$0xff]
        %v2586 = vld [vmem:[%s2 + $0xd8] sm:$0xff]
        %v2587 = vld [vmem:[%s2 + $0xe0] sm:$0xff]
        %v2588 = vld [vmem:[%s2 + $0xe8] sm:$0xff]
        %v2589 = vld [vmem:[%s2 + $0xf0] sm:$0xff]
        %v2590 = vld [vmem:[%s2 + $0xf8] sm:$0xff]
        %v2591 = vld [vmem:[%s2 + $0x100] sm:$0xff]
        %v2592 = vld [vmem:[%s2 + $0x108] sm:$0xff]
        %v2593 = vld [vmem:[%s2 + $0x110] sm:$0xff]
        %v2594 = vld [vmem:[%s2 + $0x118] sm:$0xff]
        %v2595 = vld [vmem:[%s2 + $0x120] sm:$0xff]
        %v2596 = vld [vmem:[%s2 + $0x128] sm:$0xff]
        %v2597 = vld [vmem:[%s2 + $0x130] sm:$0xff]
        %v2598 = vld [vmem:[%s2 + $0x138] sm:$0xff]
        %v2599 = vld [vmem:[%s2 + $0x140] sm:$0xff]
        %v2600 = vld [vmem:[%s2 + $0x148] sm:$0xff]
        %v2601 = vld [vmem:[%s2 + $0x150] sm:$0xff]
        %v2602 = vld [vmem:[%s2 + $0x158] sm:$0xff]
        %v2603 = vld [vmem:[%s2 + $0x160] sm:$0xff]
        %v2604 = vld [vmem:[%s2 + $0x168] sm:$0xff]
        %v2605 = vld [vmem:[%s2 + $0x170] sm:$0xff]
        %v2606 = vld [vmem:[%s2 + $0x178] sm:$0xff]
        %v2607 = vld [vmem:[%s2 + $0x180] sm:$0xff]
        %v2608 = vld [vmem:[%s2 + $0x188] sm:$0xff]
        %v2609 = vld [vmem:[%s2 + $0x190] sm:$0xff]
        %v2610 = vld [vmem:[%s2 + $0x198] sm:$0xff]
        %v2611 = vld [vmem:[%s2 + $0x1a0] sm:$0xff]
        %v2612 = vld [vmem:[%s2 + $0x1a8] sm:$0xff]
        %v2613 = vld [vmem:[%s2 + $0x1b0] sm:$0xff]
        %v2614 = vld [vmem:[%s2 + $0x1b8] sm:$0xff]
        %v2615 = vld [vmem:[%s2 + $0x1c0] sm:$0xff]
        %v2616 = vld [vmem:[%s2 + $0x1c8] sm:$0xff]
        %v2617 = vld [vmem:[%s2 + $0x1d0] sm:$0xff]
        %v2618 = vld [vmem:[%s2 + $0x1d8] sm:$0xff]
        %v2619 = vld [vmem:[%s2 + $0x1e0] sm:$0xff]
        %v2620 = vld [vmem:[%s2 + $0x1e8] sm:$0xff]
        %v2621 = vld [vmem:[%s2 + $0x1f0] sm:$0xff]
        %v2622 = vld [vmem:[%s2 + $0x1f8] sm:$0xff]
        %2624 = vset.pattern.permute.xlu0 0
        %2625 = vperm.xlu0 %2624, %v2559
        %v2626 = vpop.permute.xlu0 %2625
        %2629 = vset.pattern.permute.xlu0 0
        %2630 = vperm.xlu0 %2629, %v2560
        %v2631 = vpop.permute.xlu0 %2630
        %2634 = vset.pattern.permute.xlu0 0
        %2635 = vperm.xlu0 %2634, %v2561
        %v2636 = vpop.permute.xlu0 %2635
        %2639 = vset.pattern.permute.xlu0 0
        %2640 = vperm.xlu0 %2639, %v2562
        %v2641 = vpop.permute.xlu0 %2640
        %2644 = vset.pattern.permute.xlu0 0
        %2645 = vperm.xlu0 %2644, %v2563
        %v2646 = vpop.permute.xlu0 %2645
        %2649 = vset.pattern.permute.xlu0 0
        %2650 = vperm.xlu0 %2649, %v2564
        %v2651 = vpop.permute.xlu0 %2650
        %2654 = vset.pattern.permute.xlu0 0
        %2655 = vperm.xlu0 %2654, %v2565
        %v2656 = vpop.permute.xlu0 %2655
        %2659 = vset.pattern.permute.xlu0 0
        %2660 = vperm.xlu0 %2659, %v2566
        %v2661 = vpop.permute.xlu0 %2660
        %2664 = vset.pattern.permute.xlu0 0
        %2665 = vperm.xlu0 %2664, %v2567
        %v2666 = vpop.permute.xlu0 %2665
        %2669 = vset.pattern.permute.xlu0 0
        %2670 = vperm.xlu0 %2669, %v2568
        %v2671 = vpop.permute.xlu0 %2670
        %2674 = vset.pattern.permute.xlu0 0
        %2675 = vperm.xlu0 %2674, %v2569
        %v2676 = vpop.permute.xlu0 %2675
        %2679 = vset.pattern.permute.xlu0 0
        %2680 = vperm.xlu0 %2679, %v2570
        %v2681 = vpop.permute.xlu0 %2680
        %2684 = vset.pattern.permute.xlu0 0
        %2685 = vperm.xlu0 %2684, %v2571
        %v2686 = vpop.permute.xlu0 %2685
        %2689 = vset.pattern.permute.xlu0 0
        %2690 = vperm.xlu0 %2689, %v2572
        %v2691 = vpop.permute.xlu0 %2690
        %2694 = vset.pattern.permute.xlu0 0
        %2695 = vperm.xlu0 %2694, %v2573
        %v2696 = vpop.permute.xlu0 %2695
        %2699 = vset.pattern.permute.xlu0 0
        %2700 = vperm.xlu0 %2699, %v2574
        %v2701 = vpop.permute.xlu0 %2700
        %2704 = vset.pattern.permute.xlu0 0
        %2705 = vperm.xlu0 %2704, %v2575
        %v2706 = vpop.permute.xlu0 %2705
        %2709 = vset.pattern.permute.xlu0 0
        %2710 = vperm.xlu0 %2709, %v2576
        %v2711 = vpop.permute.xlu0 %2710
        %2714 = vset.pattern.permute.xlu0 0
        %2715 = vperm.xlu0 %2714, %v2577
        %v2716 = vpop.permute.xlu0 %2715
        %2719 = vset.pattern.permute.xlu0 0
        %2720 = vperm.xlu0 %2719, %v2578
        %v2721 = vpop.permute.xlu0 %2720
        %2724 = vset.pattern.permute.xlu0 0
        %2725 = vperm.xlu0 %2724, %v2579
        %v2726 = vpop.permute.xlu0 %2725
        %2729 = vset.pattern.permute.xlu0 0
        %2730 = vperm.xlu0 %2729, %v2580
        %v2731 = vpop.permute.xlu0 %2730
        %2734 = vset.pattern.permute.xlu0 0
        %2735 = vperm.xlu0 %2734, %v2581
        %v2736 = vpop.permute.xlu0 %2735
        %2739 = vset.pattern.permute.xlu0 0
        %2740 = vperm.xlu0 %2739, %v2582
        %v2741 = vpop.permute.xlu0 %2740
        %2744 = vset.pattern.permute.xlu0 0
        %2745 = vperm.xlu0 %2744, %v2583
        %v2746 = vpop.permute.xlu0 %2745
        %2749 = vset.pattern.permute.xlu0 0
        %2750 = vperm.xlu0 %2749, %v2584
        %v2751 = vpop.permute.xlu0 %2750
        %2754 = vset.pattern.permute.xlu0 0
        %2755 = vperm.xlu0 %2754, %v2585
        %v2756 = vpop.permute.xlu0 %2755
        %2759 = vset.pattern.permute.xlu0 0
        %2760 = vperm.xlu0 %2759, %v2586
        %v2761 = vpop.permute.xlu0 %2760
        %2764 = vset.pattern.permute.xlu0 0
        %2765 = vperm.xlu0 %2764, %v2587
        %v2766 = vpop.permute.xlu0 %2765
        %2769 = vset.pattern.permute.xlu0 0
        %2770 = vperm.xlu0 %2769, %v2588
        %v2771 = vpop.permute.xlu0 %2770
        %2774 = vset.pattern.permute.xlu0 0
        %2775 = vperm.xlu0 %2774, %v2589
        %v2776 = vpop.permute.xlu0 %2775
        %2779 = vset.pattern.permute.xlu0 0
        %2780 = vperm.xlu0 %2779, %v2590
        %v2781 = vpop.permute.xlu0 %2780
        %2784 = vset.pattern.permute.xlu0 0
        %2785 = vperm.xlu0 %2784, %v2591
        %v2786 = vpop.permute.xlu0 %2785
        %2789 = vset.pattern.permute.xlu0 0
        %2790 = vperm.xlu0 %2789, %v2592
        %v2791 = vpop.permute.xlu0 %2790
        %2794 = vset.pattern.permute.xlu0 0
        %2795 = vperm.xlu0 %2794, %v2593
        %v2796 = vpop.permute.xlu0 %2795
        %2799 = vset.pattern.permute.xlu0 0
        %2800 = vperm.xlu0 %2799, %v2594
        %v2801 = vpop.permute.xlu0 %2800
        %2804 = vset.pattern.permute.xlu0 0
        %2805 = vperm.xlu0 %2804, %v2595
        %v2806 = vpop.permute.xlu0 %2805
        %2809 = vset.pattern.permute.xlu0 0
        %2810 = vperm.xlu0 %2809, %v2596
        %v2811 = vpop.permute.xlu0 %2810
        %2814 = vset.pattern.permute.xlu0 0
        %2815 = vperm.xlu0 %2814, %v2597
        %v2816 = vpop.permute.xlu0 %2815
        %2819 = vset.pattern.permute.xlu0 0
        %2820 = vperm.xlu0 %2819, %v2598
        %v2821 = vpop.permute.xlu0 %2820
        %2824 = vset.pattern.permute.xlu0 0
        %2825 = vperm.xlu0 %2824, %v2599
        %v2826 = vpop.permute.xlu0 %2825
        %2829 = vset.pattern.permute.xlu0 0
        %2830 = vperm.xlu0 %2829, %v2600
        %v2831 = vpop.permute.xlu0 %2830
        %2834 = vset.pattern.permute.xlu0 0
        %2835 = vperm.xlu0 %2834, %v2601
        %v2836 = vpop.permute.xlu0 %2835
        %2839 = vset.pattern.permute.xlu0 0
        %2840 = vperm.xlu0 %2839, %v2602
        %v2841 = vpop.permute.xlu0 %2840
        %2844 = vset.pattern.permute.xlu0 0
        %2845 = vperm.xlu0 %2844, %v2603
        %v2846 = vpop.permute.xlu0 %2845
        %2849 = vset.pattern.permute.xlu0 0
        %2850 = vperm.xlu0 %2849, %v2604
        %v2851 = vpop.permute.xlu0 %2850
        %2854 = vset.pattern.permute.xlu0 0
        %2855 = vperm.xlu0 %2854, %v2605
        %v2856 = vpop.permute.xlu0 %2855
        %2859 = vset.pattern.permute.xlu0 0
        %2860 = vperm.xlu0 %2859, %v2606
        %v2861 = vpop.permute.xlu0 %2860
        %2864 = vset.pattern.permute.xlu0 0
        %2865 = vperm.xlu0 %2864, %v2607
        %v2866 = vpop.permute.xlu0 %2865
        %2869 = vset.pattern.permute.xlu0 0
        %2870 = vperm.xlu0 %2869, %v2608
        %v2871 = vpop.permute.xlu0 %2870
        %2874 = vset.pattern.permute.xlu0 0
        %2875 = vperm.xlu0 %2874, %v2609
        %v2876 = vpop.permute.xlu0 %2875
        %2879 = vset.pattern.permute.xlu0 0
        %2880 = vperm.xlu0 %2879, %v2610
        %v2881 = vpop.permute.xlu0 %2880
        %2884 = vset.pattern.permute.xlu0 0
        %2885 = vperm.xlu0 %2884, %v2611
        %v2886 = vpop.permute.xlu0 %2885
        %2889 = vset.pattern.permute.xlu0 0
        %2890 = vperm.xlu0 %2889, %v2612
        %v2891 = vpop.permute.xlu0 %2890
        %2894 = vset.pattern.permute.xlu0 0
        %2895 = vperm.xlu0 %2894, %v2613
        %v2896 = vpop.permute.xlu0 %2895
        %2899 = vset.pattern.permute.xlu0 0
        %2900 = vperm.xlu0 %2899, %v2614
        %v2901 = vpop.permute.xlu0 %2900
        %2904 = vset.pattern.permute.xlu0 0
        %2905 = vperm.xlu0 %2904, %v2615
        %v2906 = vpop.permute.xlu0 %2905
        %2909 = vset.pattern.permute.xlu0 0
        %2910 = vperm.xlu0 %2909, %v2616
        %v2911 = vpop.permute.xlu0 %2910
        %2914 = vset.pattern.permute.xlu0 0
        %2915 = vperm.xlu0 %2914, %v2617
        %v2916 = vpop.permute.xlu0 %2915
        %2919 = vset.pattern.permute.xlu0 0
        %2920 = vperm.xlu0 %2919, %v2618
        %v2921 = vpop.permute.xlu0 %2920
        %2924 = vset.pattern.permute.xlu0 0
        %2925 = vperm.xlu0 %2924, %v2619
        %v2926 = vpop.permute.xlu0 %2925
        %2929 = vset.pattern.permute.xlu0 0
        %2930 = vperm.xlu0 %2929, %v2620
        %v2931 = vpop.permute.xlu0 %2930
        %2934 = vset.pattern.permute.xlu0 0
        %2935 = vperm.xlu0 %2934, %v2621
        %v2936 = vpop.permute.xlu0 %2935
        %2939 = vset.pattern.permute.xlu0 0
        %2940 = vperm.xlu0 %2939, %v2622
        %v2941 = vpop.permute.xlu0 %2940
        %v3007 = vunpack.c.l.b16 %v2489
        %v3008 = vunpack.c.l.b16 %v2490
        %v3009 = vunpack.c.l.b16 %v2491
        %v3010 = vunpack.c.l.b16 %v2492
        %v3011 = vunpack.c.l.b16 %v2493
        %v3012 = vunpack.c.l.b16 %v2494
        %v3013 = vunpack.c.l.b16 %v2495
        %v3014 = vunpack.c.l.b16 %v2496
        %v3015 = vunpack.c.l.b16 %v2497
        %v3016 = vunpack.c.l.b16 %v2498
        %v3017 = vunpack.c.l.b16 %v2499
        %v3018 = vunpack.c.l.b16 %v2500
        %v3019 = vunpack.c.l.b16 %v2501
        %v3020 = vunpack.c.l.b16 %v2502
        %v3021 = vunpack.c.l.b16 %v2503
        %v3022 = vunpack.c.l.b16 %v2504
        %v3023 = vunpack.c.l.b16 %v2505
        %v3024 = vunpack.c.l.b16 %v2506
        %v3025 = vunpack.c.l.b16 %v2507
        %v3026 = vunpack.c.l.b16 %v2508
        %v3027 = vunpack.c.l.b16 %v2509
        %v3028 = vunpack.c.l.b16 %v2510
        %v3029 = vunpack.c.l.b16 %v2511
        %v3030 = vunpack.c.l.b16 %v2512
        %v3031 = vunpack.c.l.b16 %v2513
        %v3032 = vunpack.c.l.b16 %v2514
        %v3033 = vunpack.c.l.b16 %v2515
        %v3034 = vunpack.c.l.b16 %v2516
        %v3035 = vunpack.c.l.b16 %v2517
        %v3036 = vunpack.c.l.b16 %v2518
        %v3037 = vunpack.c.l.b16 %v2519
        %v3038 = vunpack.c.l.b16 %v2520
        %v3039 = vunpack.c.l.b16 %v2521
        %v3040 = vunpack.c.l.b16 %v2522
        %v3041 = vunpack.c.l.b16 %v2523
        %v3042 = vunpack.c.l.b16 %v2524
        %v3043 = vunpack.c.l.b16 %v2525
        %v3044 = vunpack.c.l.b16 %v2526
        %v3045 = vunpack.c.l.b16 %v2527
        %v3046 = vunpack.c.l.b16 %v2528
        %v3047 = vunpack.c.l.b16 %v2529
        %v3048 = vunpack.c.l.b16 %v2530
        %v3049 = vunpack.c.l.b16 %v2531
        %v3050 = vunpack.c.l.b16 %v2532
        %v3051 = vunpack.c.l.b16 %v2533
        %v3052 = vunpack.c.l.b16 %v2534
        %v3053 = vunpack.c.l.b16 %v2535
        %v3054 = vunpack.c.l.b16 %v2536
        %v3055 = vunpack.c.l.b16 %v2537
        %v3056 = vunpack.c.l.b16 %v2538
        %v3057 = vunpack.c.l.b16 %v2539
        %v3058 = vunpack.c.l.b16 %v2540
        %v3059 = vunpack.c.l.b16 %v2541
        %v3060 = vunpack.c.l.b16 %v2542
        %v3061 = vunpack.c.l.b16 %v2543
        %v3062 = vunpack.c.l.b16 %v2544
        %v3063 = vunpack.c.l.b16 %v2545
        %v3064 = vunpack.c.l.b16 %v2546
        %v3065 = vunpack.c.l.b16 %v2547
        %v3066 = vunpack.c.l.b16 %v2548
        %v3067 = vunpack.c.l.b16 %v2549
        %v3068 = vunpack.c.l.b16 %v2550
        %v3069 = vunpack.c.l.b16 %v2551
        %v3070 = vunpack.c.l.b16 %v2552
        %v3071 = vpack.c.b16 %v3008, %v3007
        %v3072 = vpack.c.b16 %v3010, %v3009
        %v3073 = vpack.c.b16 %v3012, %v3011
        %v3074 = vpack.c.b16 %v3014, %v3013
        %v3075 = vpack.c.b16 %v3016, %v3015
        %v3076 = vpack.c.b16 %v3018, %v3017
        %v3077 = vpack.c.b16 %v3020, %v3019
        %v3078 = vpack.c.b16 %v3022, %v3021
        %v3079 = vpack.c.b16 %v3024, %v3023
        %v3080 = vpack.c.b16 %v3026, %v3025
        %v3081 = vpack.c.b16 %v3028, %v3027
        %v3082 = vpack.c.b16 %v3030, %v3029
        %v3083 = vpack.c.b16 %v3032, %v3031
        %v3084 = vpack.c.b16 %v3034, %v3033
        %v3085 = vpack.c.b16 %v3036, %v3035
        %v3086 = vpack.c.b16 %v3038, %v3037
        %v3087 = vpack.c.b16 %v3040, %v3039
        %v3088 = vpack.c.b16 %v3042, %v3041
        %v3089 = vpack.c.b16 %v3044, %v3043
        %v3090 = vpack.c.b16 %v3046, %v3045
        %v3091 = vpack.c.b16 %v3048, %v3047
        %v3092 = vpack.c.b16 %v3050, %v3049
        %v3093 = vpack.c.b16 %v3052, %v3051
        %v3094 = vpack.c.b16 %v3054, %v3053
        %v3095 = vpack.c.b16 %v3056, %v3055
        %v3096 = vpack.c.b16 %v3058, %v3057
        %v3097 = vpack.c.b16 %v3060, %v3059
        %v3098 = vpack.c.b16 %v3062, %v3061
        %v3099 = vpack.c.b16 %v3064, %v3063
        %v3100 = vpack.c.b16 %v3066, %v3065
        %v3101 = vpack.c.b16 %v3068, %v3067
        %v3102 = vpack.c.b16 %v3070, %v3069
        %v3104 = vsel %vm1559, %v3071, 0
        %v3107 = vsel %vm1559, %v3072, 0
        %v3110 = vsel %vm1559, %v3073, 0
        %v3113 = vsel %vm1559, %v3074, 0
        %v3116 = vsel %vm1559, %v3075, 0
        %v3119 = vsel %vm1559, %v3076, 0
        %v3122 = vsel %vm1559, %v3077, 0
        %v3125 = vsel %vm1559, %v3078, 0
        %v3128 = vsel %vm1559, %v3079, 0
        %v3131 = vsel %vm1559, %v3080, 0
        %v3134 = vsel %vm1559, %v3081, 0
        %v3137 = vsel %vm1559, %v3082, 0
        %v3140 = vsel %vm1559, %v3083, 0
        %v3143 = vsel %vm1559, %v3084, 0
        %v3146 = vsel %vm1559, %v3085, 0
        %v3149 = vsel %vm1559, %v3086, 0
        %v3152 = vsel %vm1559, %v3087, 0
        %v3155 = vsel %vm1559, %v3088, 0
        %v3158 = vsel %vm1559, %v3089, 0
        %v3161 = vsel %vm1559, %v3090, 0
        %v3164 = vsel %vm1559, %v3091, 0
        %v3167 = vsel %vm1559, %v3092, 0
        %v3170 = vsel %vm1559, %v3093, 0
        %v3173 = vsel %vm1559, %v3094, 0
        %v3176 = vsel %vm1559, %v3095, 0
        %v3179 = vsel %vm1559, %v3096, 0
        %v3182 = vsel %vm1559, %v3097, 0
        %v3185 = vsel %vm1559, %v3098, 0
        %v3188 = vsel %vm1559, %v3099, 0
        %v3191 = vsel %vm1559, %v3100, 0
        %v3194 = vsel %vm1559, %v3101, 0
        %v3197 = vsel %vm1559, %v3102, 0
        %v3200 = vand.u32 %v2558, %v1659
        %3202 = vmatprep.subr.bf16.mxu0 0
        %3203 = vmatpush1.bf16.msra.mxu0 0
        %3204 = vmatprep.subr.bf16.mxu0 0
        %3205 = vmatpush1.bf16.msra.mxu0 0
        %3206 = vmatprep.subr.bf16.mxu0 0
        %3207 = vmatpush1.bf16.msra.mxu0 0
        %3208 = vmatprep.subr.bf16.mxu0 0
        %3209 = vmatpush1.bf16.msra.mxu0 0
        %3210 = vmatprep.subr.bf16.mxu0 0
        %3211 = vmatpush1.bf16.msra.mxu0 0
        %3212 = vmatprep.subr.bf16.mxu0 0
        %3213 = vmatpush1.bf16.msra.mxu0 0
        %3214 = vmatprep.subr.bf16.mxu0 0
        %3215 = vmatpush1.bf16.msra.mxu0 %v3200
        %3216 = vmatprep.subr.bf16.mxu0 0
        %3217 = vmatpush1.bf16.msra.mxu0 %v2557
        %3218 = vmatprep.subr.bf16.mxu0 0
        %3219 = vmatpush2.bf16.msra.mxu0 0
        %3220 = vmatprep.subr.bf16.mxu0 0
        %3221 = vmatpush2.bf16.msra.mxu0 0
        %3222 = vmatprep.subr.bf16.mxu0 0
        %3223 = vmatpush2.bf16.msra.mxu0 0
        %3224 = vmatprep.subr.bf16.mxu0 0
        %3225 = vmatpush2.bf16.msra.mxu0 0
        %3226 = vmatprep.subr.bf16.mxu0 0
        %3227 = vmatpush2.bf16.msra.mxu0 0
        %3228 = vmatprep.subr.bf16.mxu0 0
        %3229 = vmatpush2.bf16.msra.mxu0 0
        %3230 = vmatprep.subr.bf16.mxu0 0
        %3231 = vmatpush2.bf16.msra.mxu0 0
        %3232 = vmatprep.subr.bf16.mxu0 0
        %3233 = vmatpush2.bf16.msra.mxu0 0
        %3234 = vmatprep.mubr.bf16.mxu0 0
        %3235 = vmatmul.mubr.bf16.gmra.mxu0 %v3104
        %v3236 = vpop.f32.mrf.mxu0
        %v3237 = vadd.f32 %v2626, %v3236
        %v3238 = vpop.f32.mrf.mxu0
        %v3239 = vpop.f32.mrf.mxu0
        %v3240 = vadd.f32 %v2631, %v3239
        %v3241 = vpop.f32.mrf.mxu0
        %3242 = vmatprep.mubr.bf16.mxu0 0
        %3243 = vmatmul.mubr.bf16.gmra.mxu0 %v3107
        %v3244 = vpop.f32.mrf.mxu0
        %v3245 = vadd.f32 %v2636, %v3244
        %v3246 = vpop.f32.mrf.mxu0
        %v3247 = vpop.f32.mrf.mxu0
        %v3248 = vadd.f32 %v2641, %v3247
        %v3249 = vpop.f32.mrf.mxu0
        %3250 = vmatprep.mubr.bf16.mxu0 0
        %3251 = vmatmul.mubr.bf16.gmra.mxu0 %v3110
        %v3252 = vpop.f32.mrf.mxu0
        %v3253 = vadd.f32 %v2646, %v3252
        %v3254 = vpop.f32.mrf.mxu0
        %v3255 = vpop.f32.mrf.mxu0
        %v3256 = vadd.f32 %v2651, %v3255
        %v3257 = vpop.f32.mrf.mxu0
        %3258 = vmatprep.mubr.bf16.mxu0 0
        %3259 = vmatmul.mubr.bf16.gmra.mxu0 %v3113
        %v3260 = vpop.f32.mrf.mxu0
        %v3261 = vadd.f32 %v2656, %v3260
        %v3262 = vpop.f32.mrf.mxu0
        %v3263 = vpop.f32.mrf.mxu0
        %v3264 = vadd.f32 %v2661, %v3263
        %v3265 = vpop.f32.mrf.mxu0
        %3266 = vmatprep.mubr.bf16.mxu0 0
        %3267 = vmatmul.mubr.bf16.gmra.mxu0 %v3116
        %v3268 = vpop.f32.mrf.mxu0
        %v3269 = vadd.f32 %v2666, %v3268
        %v3270 = vpop.f32.mrf.mxu0
        %v3271 = vpop.f32.mrf.mxu0
        %v3272 = vadd.f32 %v2671, %v3271
        %v3273 = vpop.f32.mrf.mxu0
        %3274 = vmatprep.mubr.bf16.mxu0 0
        %3275 = vmatmul.mubr.bf16.gmra.mxu0 %v3119
        %v3276 = vpop.f32.mrf.mxu0
        %v3277 = vadd.f32 %v2676, %v3276
        %v3278 = vpop.f32.mrf.mxu0
        %v3279 = vpop.f32.mrf.mxu0
        %v3280 = vadd.f32 %v2681, %v3279
        %v3281 = vpop.f32.mrf.mxu0
        %3282 = vmatprep.mubr.bf16.mxu0 0
        %3283 = vmatmul.mubr.bf16.gmra.mxu0 %v3122
        %v3284 = vpop.f32.mrf.mxu0
        %v3285 = vadd.f32 %v2686, %v3284
        %v3286 = vpop.f32.mrf.mxu0
        %v3287 = vpop.f32.mrf.mxu0
        %v3288 = vadd.f32 %v2691, %v3287
        %v3289 = vpop.f32.mrf.mxu0
        %3290 = vmatprep.mubr.bf16.mxu0 0
        %3291 = vmatmul.mubr.bf16.gmra.mxu0 %v3125
        %v3292 = vpop.f32.mrf.mxu0
        %v3293 = vadd.f32 %v2696, %v3292
        %v3294 = vpop.f32.mrf.mxu0
        %v3295 = vpop.f32.mrf.mxu0
        %v3296 = vadd.f32 %v2701, %v3295
        %v3297 = vpop.f32.mrf.mxu0
        %3298 = vmatprep.mubr.bf16.mxu0 0
        %3299 = vmatmul.mubr.bf16.gmra.mxu0 %v3128
        %v3300 = vpop.f32.mrf.mxu0
        %v3301 = vadd.f32 %v2706, %v3300
        %v3302 = vpop.f32.mrf.mxu0
        %v3303 = vpop.f32.mrf.mxu0
        %v3304 = vadd.f32 %v2711, %v3303
        %v3305 = vpop.f32.mrf.mxu0
        %3306 = vmatprep.mubr.bf16.mxu0 0
        %3307 = vmatmul.mubr.bf16.gmra.mxu0 %v3131
        %v3308 = vpop.f32.mrf.mxu0
        %v3309 = vadd.f32 %v2716, %v3308
        %v3310 = vpop.f32.mrf.mxu0
        %v3311 = vpop.f32.mrf.mxu0
        %v3312 = vadd.f32 %v2721, %v3311
        %v3313 = vpop.f32.mrf.mxu0
        %3314 = vmatprep.mubr.bf16.mxu0 0
        %3315 = vmatmul.mubr.bf16.gmra.mxu0 %v3134
        %v3316 = vpop.f32.mrf.mxu0
        %v3317 = vadd.f32 %v2726, %v3316
        %v3318 = vpop.f32.mrf.mxu0
        %v3319 = vpop.f32.mrf.mxu0
        %v3320 = vadd.f32 %v2731, %v3319
        %v3321 = vpop.f32.mrf.mxu0
        %3322 = vmatprep.mubr.bf16.mxu0 0
        %3323 = vmatmul.mubr.bf16.gmra.mxu0 %v3137
        %v3324 = vpop.f32.mrf.mxu0
        %v3325 = vadd.f32 %v2736, %v3324
        %v3326 = vpop.f32.mrf.mxu0
        %v3327 = vpop.f32.mrf.mxu0
        %v3328 = vadd.f32 %v2741, %v3327
        %v3329 = vpop.f32.mrf.mxu0
        %3330 = vmatprep.mubr.bf16.mxu0 0
        %3331 = vmatmul.mubr.bf16.gmra.mxu0 %v3140
        %v3332 = vpop.f32.mrf.mxu0
        %v3333 = vadd.f32 %v2746, %v3332
        %v3334 = vpop.f32.mrf.mxu0
        %v3335 = vpop.f32.mrf.mxu0
        %v3336 = vadd.f32 %v2751, %v3335
        %v3337 = vpop.f32.mrf.mxu0
        %3338 = vmatprep.mubr.bf16.mxu0 0
        %3339 = vmatmul.mubr.bf16.gmra.mxu0 %v3143
        %v3340 = vpop.f32.mrf.mxu0
        %v3341 = vadd.f32 %v2756, %v3340
        %v3342 = vpop.f32.mrf.mxu0
        %v3343 = vpop.f32.mrf.mxu0
        %v3344 = vadd.f32 %v2761, %v3343
        %v3345 = vpop.f32.mrf.mxu0
        %3346 = vmatprep.mubr.bf16.mxu0 0
        %3347 = vmatmul.mubr.bf16.gmra.mxu0 %v3146
        %v3348 = vpop.f32.mrf.mxu0
        %v3349 = vadd.f32 %v2766, %v3348
        %v3350 = vpop.f32.mrf.mxu0
        %v3351 = vpop.f32.mrf.mxu0
        %v3352 = vadd.f32 %v2771, %v3351
        %v3353 = vpop.f32.mrf.mxu0
        %3354 = vmatprep.mubr.bf16.mxu0 0
        %3355 = vmatmul.mubr.bf16.gmra.mxu0 %v3149
        %v3356 = vpop.f32.mrf.mxu0
        %v3357 = vadd.f32 %v2776, %v3356
        %v3358 = vpop.f32.mrf.mxu0
        %v3359 = vpop.f32.mrf.mxu0
        %v3360 = vadd.f32 %v2781, %v3359
        %v3361 = vpop.f32.mrf.mxu0
        %3362 = vmatprep.mubr.bf16.mxu0 0
        %3363 = vmatmul.mubr.bf16.gmra.mxu0 %v3152
        %v3364 = vpop.f32.mrf.mxu0
        %v3365 = vadd.f32 %v2786, %v3364
        %v3366 = vpop.f32.mrf.mxu0
        %v3367 = vpop.f32.mrf.mxu0
        %v3368 = vadd.f32 %v2791, %v3367
        %v3369 = vpop.f32.mrf.mxu0
        %3370 = vmatprep.mubr.bf16.mxu0 0
        %3371 = vmatmul.mubr.bf16.gmra.mxu0 %v3155
        %v3372 = vpop.f32.mrf.mxu0
        %v3373 = vadd.f32 %v2796, %v3372
        %v3374 = vpop.f32.mrf.mxu0
        %v3375 = vpop.f32.mrf.mxu0
        %v3376 = vadd.f32 %v2801, %v3375
        %v3377 = vpop.f32.mrf.mxu0
        %3378 = vmatprep.mubr.bf16.mxu0 0
        %3379 = vmatmul.mubr.bf16.gmra.mxu0 %v3158
        %v3380 = vpop.f32.mrf.mxu0
        %v3381 = vadd.f32 %v2806, %v3380
        %v3382 = vpop.f32.mrf.mxu0
        %v3383 = vpop.f32.mrf.mxu0
        %v3384 = vadd.f32 %v2811, %v3383
        %v3385 = vpop.f32.mrf.mxu0
        %3386 = vmatprep.mubr.bf16.mxu0 0
        %3387 = vmatmul.mubr.bf16.gmra.mxu0 %v3161
        %v3388 = vpop.f32.mrf.mxu0
        %v3389 = vadd.f32 %v2816, %v3388
        %v3390 = vpop.f32.mrf.mxu0
        %v3391 = vpop.f32.mrf.mxu0
        %v3392 = vadd.f32 %v2821, %v3391
        %v3393 = vpop.f32.mrf.mxu0
        %3394 = vmatprep.mubr.bf16.mxu0 0
        %3395 = vmatmul.mubr.bf16.gmra.mxu0 %v3164
        %v3396 = vpop.f32.mrf.mxu0
        %v3397 = vadd.f32 %v2826, %v3396
        %v3398 = vpop.f32.mrf.mxu0
        %v3399 = vpop.f32.mrf.mxu0
        %v3400 = vadd.f32 %v2831, %v3399
        %v3401 = vpop.f32.mrf.mxu0
        %3402 = vmatprep.mubr.bf16.mxu0 0
        %3403 = vmatmul.mubr.bf16.gmra.mxu0 %v3167
        %v3404 = vpop.f32.mrf.mxu0
        %v3405 = vadd.f32 %v2836, %v3404
        %v3406 = vpop.f32.mrf.mxu0
        %v3407 = vpop.f32.mrf.mxu0
        %v3408 = vadd.f32 %v2841, %v3407
        %v3409 = vpop.f32.mrf.mxu0
        %3410 = vmatprep.mubr.bf16.mxu0 0
        %3411 = vmatmul.mubr.bf16.gmra.mxu0 %v3170
        %v3412 = vpop.f32.mrf.mxu0
        %v3413 = vadd.f32 %v2846, %v3412
        %v3414 = vpop.f32.mrf.mxu0
        %v3415 = vpop.f32.mrf.mxu0
        %v3416 = vadd.f32 %v2851, %v3415
        %v3417 = vpop.f32.mrf.mxu0
        %3418 = vmatprep.mubr.bf16.mxu0 0
        %3419 = vmatmul.mubr.bf16.gmra.mxu0 %v3173
        %v3420 = vpop.f32.mrf.mxu0
        %v3421 = vadd.f32 %v2856, %v3420
        %v3422 = vpop.f32.mrf.mxu0
        %v3423 = vpop.f32.mrf.mxu0
        %v3424 = vadd.f32 %v2861, %v3423
        %v3425 = vpop.f32.mrf.mxu0
        %3426 = vmatprep.mubr.bf16.mxu0 0
        %3427 = vmatmul.mubr.bf16.gmra.mxu0 %v3176
        %v3428 = vpop.f32.mrf.mxu0
        %v3429 = vadd.f32 %v2866, %v3428
        %v3430 = vpop.f32.mrf.mxu0
        %v3431 = vpop.f32.mrf.mxu0
        %v3432 = vadd.f32 %v2871, %v3431
        %v3433 = vpop.f32.mrf.mxu0
        %3434 = vmatprep.mubr.bf16.mxu0 0
        %3435 = vmatmul.mubr.bf16.gmra.mxu0 %v3179
        %v3436 = vpop.f32.mrf.mxu0
        %v3437 = vadd.f32 %v2876, %v3436
        %v3438 = vpop.f32.mrf.mxu0
        %v3439 = vpop.f32.mrf.mxu0
        %v3440 = vadd.f32 %v2881, %v3439
        %v3441 = vpop.f32.mrf.mxu0
        %3442 = vmatprep.mubr.bf16.mxu0 0
        %3443 = vmatmul.mubr.bf16.gmra.mxu0 %v3182
        %v3444 = vpop.f32.mrf.mxu0
        %v3445 = vadd.f32 %v2886, %v3444
        %v3446 = vpop.f32.mrf.mxu0
        %v3447 = vpop.f32.mrf.mxu0
        %v3448 = vadd.f32 %v2891, %v3447
        %v3449 = vpop.f32.mrf.mxu0
        %3450 = vmatprep.mubr.bf16.mxu0 0
        %3451 = vmatmul.mubr.bf16.gmra.mxu0 %v3185
        %v3452 = vpop.f32.mrf.mxu0
        %v3453 = vadd.f32 %v2896, %v3452
        %v3454 = vpop.f32.mrf.mxu0
        %v3455 = vpop.f32.mrf.mxu0
        %v3456 = vadd.f32 %v2901, %v3455
        %v3457 = vpop.f32.mrf.mxu0
        %3458 = vmatprep.mubr.bf16.mxu0 0
        %3459 = vmatmul.mubr.bf16.gmra.mxu0 %v3188
        %v3460 = vpop.f32.mrf.mxu0
        %v3461 = vadd.f32 %v2906, %v3460
        %v3462 = vpop.f32.mrf.mxu0
        %v3463 = vpop.f32.mrf.mxu0
        %v3464 = vadd.f32 %v2911, %v3463
        %v3465 = vpop.f32.mrf.mxu0
        %3466 = vmatprep.mubr.bf16.mxu0 0
        %3467 = vmatmul.mubr.bf16.gmra.mxu0 %v3191
        %v3468 = vpop.f32.mrf.mxu0
        %v3469 = vadd.f32 %v2916, %v3468
        %v3470 = vpop.f32.mrf.mxu0
        %v3471 = vpop.f32.mrf.mxu0
        %v3472 = vadd.f32 %v2921, %v3471
        %v3473 = vpop.f32.mrf.mxu0
        %3474 = vmatprep.mubr.bf16.mxu0 0
        %3475 = vmatmul.mubr.bf16.gmra.mxu0 %v3194
        %v3476 = vpop.f32.mrf.mxu0
        %v3477 = vadd.f32 %v2926, %v3476
        %v3478 = vpop.f32.mrf.mxu0
        %v3479 = vpop.f32.mrf.mxu0
        %v3480 = vadd.f32 %v2931, %v3479
        %v3481 = vpop.f32.mrf.mxu0
        %3482 = vmatprep.mubr.bf16.mxu0 0
        %3483 = vmatmul.mubr.bf16.gmra.mxu0 %v3197
        %v3484 = vpop.f32.mrf.mxu0
        %v3485 = vadd.f32 %v2936, %v3484
        %v3486 = vpop.f32.mrf.mxu0
        %v3487 = vpop.f32.mrf.mxu0
        %v3488 = vadd.f32 %v2941, %v3487
        %v3489 = vpop.f32.mrf.mxu0
        %3490 = vdwg.mxu0
        %v3491 = vmax.f32 %v3237, 0.0
        %v3492 = vmax.f32 %v3240, 0.0
        %v3493 = vmax.f32 %v3245, 0.0
        %v3494 = vmax.f32 %v3248, 0.0
        %v3495 = vmax.f32 %v3253, 0.0
        %v3496 = vmax.f32 %v3256, 0.0
        %v3497 = vmax.f32 %v3261, 0.0
        %v3498 = vmax.f32 %v3264, 0.0
        %v3499 = vmax.f32 %v3269, 0.0
        %v3500 = vmax.f32 %v3272, 0.0
        %v3501 = vmax.f32 %v3277, 0.0
        %v3502 = vmax.f32 %v3280, 0.0
        %v3503 = vmax.f32 %v3285, 0.0
        %v3504 = vmax.f32 %v3288, 0.0
        %v3505 = vmax.f32 %v3293, 0.0
        %v3506 = vmax.f32 %v3296, 0.0
        %v3507 = vmax.f32 %v3301, 0.0
        %v3508 = vmax.f32 %v3304, 0.0
        %v3509 = vmax.f32 %v3309, 0.0
        %v3510 = vmax.f32 %v3312, 0.0
        %v3511 = vmax.f32 %v3317, 0.0
        %v3512 = vmax.f32 %v3320, 0.0
        %v3513 = vmax.f32 %v3325, 0.0
        %v3514 = vmax.f32 %v3328, 0.0
        %v3515 = vmax.f32 %v3333, 0.0
        %v3516 = vmax.f32 %v3336, 0.0
        %v3517 = vmax.f32 %v3341, 0.0
        %v3518 = vmax.f32 %v3344, 0.0
        %v3519 = vmax.f32 %v3349, 0.0
        %v3520 = vmax.f32 %v3352, 0.0
        %v3521 = vmax.f32 %v3357, 0.0
        %v3522 = vmax.f32 %v3360, 0.0
        %v3523 = vmax.f32 %v3365, 0.0
        %v3524 = vmax.f32 %v3368, 0.0
        %v3525 = vmax.f32 %v3373, 0.0
        %v3526 = vmax.f32 %v3376, 0.0
        %v3527 = vmax.f32 %v3381, 0.0
        %v3528 = vmax.f32 %v3384, 0.0
        %v3529 = vmax.f32 %v3389, 0.0
        %v3530 = vmax.f32 %v3392, 0.0
        %v3531 = vmax.f32 %v3397, 0.0
        %v3532 = vmax.f32 %v3400, 0.0
        %v3533 = vmax.f32 %v3405, 0.0
        %v3534 = vmax.f32 %v3408, 0.0
        %v3535 = vmax.f32 %v3413, 0.0
        %v3536 = vmax.f32 %v3416, 0.0
        %v3537 = vmax.f32 %v3421, 0.0
        %v3538 = vmax.f32 %v3424, 0.0
        %v3539 = vmax.f32 %v3429, 0.0
        %v3540 = vmax.f32 %v3432, 0.0
        %v3541 = vmax.f32 %v3437, 0.0
        %v3542 = vmax.f32 %v3440, 0.0
        %v3543 = vmax.f32 %v3445, 0.0
        %v3544 = vmax.f32 %v3448, 0.0
        %v3545 = vmax.f32 %v3453, 0.0
        %v3546 = vmax.f32 %v3456, 0.0
        %v3547 = vmax.f32 %v3461, 0.0
        %v3548 = vmax.f32 %v3464, 0.0
        %v3549 = vmax.f32 %v3469, 0.0
        %v3550 = vmax.f32 %v3472, 0.0
        %v3551 = vmax.f32 %v3477, 0.0
        %v3552 = vmax.f32 %v3480, 0.0
        %v3553 = vmax.f32 %v3485, 0.0
        %v3554 = vmax.f32 %v3488, 0.0
        %v3555 = vpack.c.bf16 %v3492, %v3491
        %v3556 = vpack.c.bf16 %v3494, %v3493
        %v3557 = vpack.c.bf16 %v3496, %v3495
        %v3558 = vpack.c.bf16 %v3498, %v3497
        %v3559 = vpack.c.bf16 %v3500, %v3499
        %v3560 = vpack.c.bf16 %v3502, %v3501
        %v3561 = vpack.c.bf16 %v3504, %v3503
        %v3562 = vpack.c.bf16 %v3506, %v3505
        %v3563 = vpack.c.bf16 %v3508, %v3507
        %v3564 = vpack.c.bf16 %v3510, %v3509
        %v3565 = vpack.c.bf16 %v3512, %v3511
        %v3566 = vpack.c.bf16 %v3514, %v3513
        %v3567 = vpack.c.bf16 %v3516, %v3515
        %v3568 = vpack.c.bf16 %v3518, %v3517
        %v3569 = vpack.c.bf16 %v3520, %v3519
        %v3570 = vpack.c.bf16 %v3522, %v3521
        %v3571 = vpack.c.bf16 %v3524, %v3523
        %v3572 = vpack.c.bf16 %v3526, %v3525
        %v3573 = vpack.c.bf16 %v3528, %v3527
        %v3574 = vpack.c.bf16 %v3530, %v3529
        %v3575 = vpack.c.bf16 %v3532, %v3531
        %v3576 = vpack.c.bf16 %v3534, %v3533
        %v3577 = vpack.c.bf16 %v3536, %v3535
        %v3578 = vpack.c.bf16 %v3538, %v3537
        %v3579 = vpack.c.bf16 %v3540, %v3539
        %v3580 = vpack.c.bf16 %v3542, %v3541
        %v3581 = vpack.c.bf16 %v3544, %v3543
        %v3582 = vpack.c.bf16 %v3546, %v3545
        %v3583 = vpack.c.bf16 %v3548, %v3547
        %v3584 = vpack.c.bf16 %v3550, %v3549
        %v3585 = vpack.c.bf16 %v3552, %v3551
        %v3586 = vpack.c.bf16 %v3554, %v3553
        %3587 = vmatprep.subr.bf16.mxu0 0
        %3588 = vmatpush1.bf16.msra.mxu0 1065369472
        %3589 = vmatprep.subr.bf16.mxu0 0
        %3590 = vmatpush1.bf16.msra.mxu0 1065369472
        %3591 = vmatprep.subr.bf16.mxu0 0
        %3592 = vmatpush1.bf16.msra.mxu0 1065369472
        %3593 = vmatprep.subr.bf16.mxu0 0
        %3594 = vmatpush1.bf16.msra.mxu0 1065369472
        %3595 = vmatprep.subr.bf16.mxu0 0
        %3596 = vmatpush1.bf16.msra.mxu0 1065369472
        %3597 = vmatprep.subr.bf16.mxu0 0
        %3598 = vmatpush1.bf16.msra.mxu0 1065369472
        %3599 = vmatprep.subr.bf16.mxu0 0
        %3600 = vmatpush1.bf16.msra.mxu0 1065369472
        %3601 = vmatprep.subr.bf16.mxu0 0
        %3602 = vmatpush1.bf16.msra.mxu0 1065369472
        %3603 = vmatprep.subr.bf16.mxu0 0
        %3604 = vmatpush2.bf16.msra.mxu0 0
        %3605 = vmatprep.subr.bf16.mxu0 0
        %3606 = vmatpush2.bf16.msra.mxu0 0
        %3607 = vmatprep.subr.bf16.mxu0 0
        %3608 = vmatpush2.bf16.msra.mxu0 0
        %3609 = vmatprep.subr.bf16.mxu0 0
        %3610 = vmatpush2.bf16.msra.mxu0 0
        %3611 = vmatprep.subr.bf16.mxu0 0
        %3612 = vmatpush2.bf16.msra.mxu0 0
        %3613 = vmatprep.subr.bf16.mxu0 0
        %3614 = vmatpush2.bf16.msra.mxu0 0
        %3615 = vmatprep.subr.bf16.mxu0 0
        %3616 = vmatpush2.bf16.msra.mxu0 0
        %3617 = vmatprep.subr.bf16.mxu0 0
        %3618 = vmatpush2.bf16.msra.mxu0 0
        %3619 = vmatprep.mubr.bf16.mxu0 0
        %3620 = vmatmul.mubr.bf16.gmra.mxu0 %v3555
        %v3621 = vpop.f32.mrf.mxu0
        %v3622 = vadd.f32 0.0, %v3621
        %v3623 = vpop.f32.mrf.mxu0
        %v3624 = vpop.f32.mrf.mxu0
        %v3625 = vadd.f32 0.0, %v3624
        %v3626 = vpop.f32.mrf.mxu0
        %3627 = vmatprep.mubr.bf16.mxu0 0
        %3628 = vmatmul.mubr.bf16.gmra.mxu0 %v3556
        %v3629 = vpop.f32.mrf.mxu0
        %v3630 = vadd.f32 0.0, %v3629
        %v3631 = vpop.f32.mrf.mxu0
        %v3632 = vpop.f32.mrf.mxu0
        %v3633 = vadd.f32 0.0, %v3632
        %v3634 = vpop.f32.mrf.mxu0
        %3635 = vmatprep.mubr.bf16.mxu0 0
        %3636 = vmatmul.mubr.bf16.gmra.mxu0 %v3557
        %v3637 = vpop.f32.mrf.mxu0
        %v3638 = vadd.f32 0.0, %v3637
        %v3639 = vpop.f32.mrf.mxu0
        %v3640 = vpop.f32.mrf.mxu0
        %v3641 = vadd.f32 0.0, %v3640
        %v3642 = vpop.f32.mrf.mxu0
        %3643 = vmatprep.mubr.bf16.mxu0 0
        %3644 = vmatmul.mubr.bf16.gmra.mxu0 %v3558
        %v3645 = vpop.f32.mrf.mxu0
        %v3646 = vadd.f32 0.0, %v3645
        %v3647 = vpop.f32.mrf.mxu0
        %v3648 = vpop.f32.mrf.mxu0
        %v3649 = vadd.f32 0.0, %v3648
        %v3650 = vpop.f32.mrf.mxu0
        %3651 = vmatprep.mubr.bf16.mxu0 0
        %3652 = vmatmul.mubr.bf16.gmra.mxu0 %v3559
        %v3653 = vpop.f32.mrf.mxu0
        %v3654 = vadd.f32 0.0, %v3653
        %v3655 = vpop.f32.mrf.mxu0
        %v3656 = vpop.f32.mrf.mxu0
        %v3657 = vadd.f32 0.0, %v3656
        %v3658 = vpop.f32.mrf.mxu0
        %3659 = vmatprep.mubr.bf16.mxu0 0
        %3660 = vmatmul.mubr.bf16.gmra.mxu0 %v3560
        %v3661 = vpop.f32.mrf.mxu0
        %v3662 = vadd.f32 0.0, %v3661
        %v3663 = vpop.f32.mrf.mxu0
        %v3664 = vpop.f32.mrf.mxu0
        %v3665 = vadd.f32 0.0, %v3664
        %v3666 = vpop.f32.mrf.mxu0
        %3667 = vmatprep.mubr.bf16.mxu0 0
        %3668 = vmatmul.mubr.bf16.gmra.mxu0 %v3561
        %v3669 = vpop.f32.mrf.mxu0
        %v3670 = vadd.f32 0.0, %v3669
        %v3671 = vpop.f32.mrf.mxu0
        %v3672 = vpop.f32.mrf.mxu0
        %v3673 = vadd.f32 0.0, %v3672
        %v3674 = vpop.f32.mrf.mxu0
        %3675 = vmatprep.mubr.bf16.mxu0 0
        %3676 = vmatmul.mubr.bf16.gmra.mxu0 %v3562
        %v3677 = vpop.f32.mrf.mxu0
        %v3678 = vadd.f32 0.0, %v3677
        %v3679 = vpop.f32.mrf.mxu0
        %v3680 = vpop.f32.mrf.mxu0
        %v3681 = vadd.f32 0.0, %v3680
        %v3682 = vpop.f32.mrf.mxu0
        %3683 = vmatprep.mubr.bf16.mxu0 0
        %3684 = vmatmul.mubr.bf16.gmra.mxu0 %v3563
        %v3685 = vpop.f32.mrf.mxu0
        %v3686 = vadd.f32 0.0, %v3685
        %v3687 = vpop.f32.mrf.mxu0
        %v3688 = vpop.f32.mrf.mxu0
        %v3689 = vadd.f32 0.0, %v3688
        %v3690 = vpop.f32.mrf.mxu0
        %3691 = vmatprep.mubr.bf16.mxu0 0
        %3692 = vmatmul.mubr.bf16.gmra.mxu0 %v3564
        %v3693 = vpop.f32.mrf.mxu0
        %v3694 = vadd.f32 0.0, %v3693
        %v3695 = vpop.f32.mrf.mxu0
        %v3696 = vpop.f32.mrf.mxu0
        %v3697 = vadd.f32 0.0, %v3696
        %v3698 = vpop.f32.mrf.mxu0
        %3699 = vmatprep.mubr.bf16.mxu0 0
        %3700 = vmatmul.mubr.bf16.gmra.mxu0 %v3565
        %v3701 = vpop.f32.mrf.mxu0
        %v3702 = vadd.f32 0.0, %v3701
        %v3703 = vpop.f32.mrf.mxu0
        %v3704 = vpop.f32.mrf.mxu0
        %v3705 = vadd.f32 0.0, %v3704
        %v3706 = vpop.f32.mrf.mxu0
        %3707 = vmatprep.mubr.bf16.mxu0 0
        %3708 = vmatmul.mubr.bf16.gmra.mxu0 %v3566
        %v3709 = vpop.f32.mrf.mxu0
        %v3710 = vadd.f32 0.0, %v3709
        %v3711 = vpop.f32.mrf.mxu0
        %v3712 = vpop.f32.mrf.mxu0
        %v3713 = vadd.f32 0.0, %v3712
        %v3714 = vpop.f32.mrf.mxu0
        %3715 = vmatprep.mubr.bf16.mxu0 0
        %3716 = vmatmul.mubr.bf16.gmra.mxu0 %v3567
        %v3717 = vpop.f32.mrf.mxu0
        %v3718 = vadd.f32 0.0, %v3717
        %v3719 = vpop.f32.mrf.mxu0
        %v3720 = vpop.f32.mrf.mxu0
        %v3721 = vadd.f32 0.0, %v3720
        %v3722 = vpop.f32.mrf.mxu0
        %3723 = vmatprep.mubr.bf16.mxu0 0
        %3724 = vmatmul.mubr.bf16.gmra.mxu0 %v3568
        %v3725 = vpop.f32.mrf.mxu0
        %v3726 = vadd.f32 0.0, %v3725
        %v3727 = vpop.f32.mrf.mxu0
        %v3728 = vpop.f32.mrf.mxu0
        %v3729 = vadd.f32 0.0, %v3728
        %v3730 = vpop.f32.mrf.mxu0
        %3731 = vmatprep.mubr.bf16.mxu0 0
        %3732 = vmatmul.mubr.bf16.gmra.mxu0 %v3569
        %v3733 = vpop.f32.mrf.mxu0
        %v3734 = vadd.f32 0.0, %v3733
        %v3735 = vpop.f32.mrf.mxu0
        %v3736 = vpop.f32.mrf.mxu0
        %v3737 = vadd.f32 0.0, %v3736
        %v3738 = vpop.f32.mrf.mxu0
        %3739 = vmatprep.mubr.bf16.mxu0 0
        %3740 = vmatmul.mubr.bf16.gmra.mxu0 %v3570
        %v3741 = vpop.f32.mrf.mxu0
        %v3742 = vadd.f32 0.0, %v3741
        %v3743 = vpop.f32.mrf.mxu0
        %v3744 = vpop.f32.mrf.mxu0
        %v3745 = vadd.f32 0.0, %v3744
        %v3746 = vpop.f32.mrf.mxu0
        %3747 = vmatprep.mubr.bf16.mxu0 0
        %3748 = vmatmul.mubr.bf16.gmra.mxu0 %v3571
        %v3749 = vpop.f32.mrf.mxu0
        %v3750 = vadd.f32 0.0, %v3749
        %v3751 = vpop.f32.mrf.mxu0
        %v3752 = vpop.f32.mrf.mxu0
        %v3753 = vadd.f32 0.0, %v3752
        %v3754 = vpop.f32.mrf.mxu0
        %3755 = vmatprep.mubr.bf16.mxu0 0
        %3756 = vmatmul.mubr.bf16.gmra.mxu0 %v3572
        %v3757 = vpop.f32.mrf.mxu0
        %v3758 = vadd.f32 0.0, %v3757
        %v3759 = vpop.f32.mrf.mxu0
        %v3760 = vpop.f32.mrf.mxu0
        %v3761 = vadd.f32 0.0, %v3760
        %v3762 = vpop.f32.mrf.mxu0
        %3763 = vmatprep.mubr.bf16.mxu0 0
        %3764 = vmatmul.mubr.bf16.gmra.mxu0 %v3573
        %v3765 = vpop.f32.mrf.mxu0
        %v3766 = vadd.f32 0.0, %v3765
        %v3767 = vpop.f32.mrf.mxu0
        %v3768 = vpop.f32.mrf.mxu0
        %v3769 = vadd.f32 0.0, %v3768
        %v3770 = vpop.f32.mrf.mxu0
        %3771 = vmatprep.mubr.bf16.mxu0 0
        %3772 = vmatmul.mubr.bf16.gmra.mxu0 %v3574
        %v3773 = vpop.f32.mrf.mxu0
        %v3774 = vadd.f32 0.0, %v3773
        %v3775 = vpop.f32.mrf.mxu0
        %v3776 = vpop.f32.mrf.mxu0
        %v3777 = vadd.f32 0.0, %v3776
        %v3778 = vpop.f32.mrf.mxu0
        %3779 = vmatprep.mubr.bf16.mxu0 0
        %3780 = vmatmul.mubr.bf16.gmra.mxu0 %v3575
        %v3781 = vpop.f32.mrf.mxu0
        %v3782 = vadd.f32 0.0, %v3781
        %v3783 = vpop.f32.mrf.mxu0
        %v3784 = vpop.f32.mrf.mxu0
        %v3785 = vadd.f32 0.0, %v3784
        %v3786 = vpop.f32.mrf.mxu0
        %3787 = vmatprep.mubr.bf16.mxu0 0
        %3788 = vmatmul.mubr.bf16.gmra.mxu0 %v3576
        %v3789 = vpop.f32.mrf.mxu0
        %v3790 = vadd.f32 0.0, %v3789
        %v3791 = vpop.f32.mrf.mxu0
        %v3792 = vpop.f32.mrf.mxu0
        %v3793 = vadd.f32 0.0, %v3792
        %v3794 = vpop.f32.mrf.mxu0
        %3795 = vmatprep.mubr.bf16.mxu0 0
        %3796 = vmatmul.mubr.bf16.gmra.mxu0 %v3577
        %v3797 = vpop.f32.mrf.mxu0
        %v3798 = vadd.f32 0.0, %v3797
        %v3799 = vpop.f32.mrf.mxu0
        %v3800 = vpop.f32.mrf.mxu0
        %v3801 = vadd.f32 0.0, %v3800
        %v3802 = vpop.f32.mrf.mxu0
        %3803 = vmatprep.mubr.bf16.mxu0 0
        %3804 = vmatmul.mubr.bf16.gmra.mxu0 %v3578
        %v3805 = vpop.f32.mrf.mxu0
        %v3806 = vadd.f32 0.0, %v3805
        %v3807 = vpop.f32.mrf.mxu0
        %v3808 = vpop.f32.mrf.mxu0
        %v3809 = vadd.f32 0.0, %v3808
        %v3810 = vpop.f32.mrf.mxu0
        %3811 = vmatprep.mubr.bf16.mxu0 0
        %3812 = vmatmul.mubr.bf16.gmra.mxu0 %v3579
        %v3813 = vpop.f32.mrf.mxu0
        %v3814 = vadd.f32 0.0, %v3813
        %v3815 = vpop.f32.mrf.mxu0
        %v3816 = vpop.f32.mrf.mxu0
        %v3817 = vadd.f32 0.0, %v3816
        %v3818 = vpop.f32.mrf.mxu0
        %3819 = vmatprep.mubr.bf16.mxu0 0
        %3820 = vmatmul.mubr.bf16.gmra.mxu0 %v3580
        %v3821 = vpop.f32.mrf.mxu0
        %v3822 = vadd.f32 0.0, %v3821
        %v3823 = vpop.f32.mrf.mxu0
        %v3824 = vpop.f32.mrf.mxu0
        %v3825 = vadd.f32 0.0, %v3824
        %v3826 = vpop.f32.mrf.mxu0
        %3827 = vmatprep.mubr.bf16.mxu0 0
        %3828 = vmatmul.mubr.bf16.gmra.mxu0 %v3581
        %v3829 = vpop.f32.mrf.mxu0
        %v3830 = vadd.f32 0.0, %v3829
        %v3831 = vpop.f32.mrf.mxu0
        %v3832 = vpop.f32.mrf.mxu0
        %v3833 = vadd.f32 0.0, %v3832
        %v3834 = vpop.f32.mrf.mxu0
        %3835 = vmatprep.mubr.bf16.mxu0 0
        %3836 = vmatmul.mubr.bf16.gmra.mxu0 %v3582
        %v3837 = vpop.f32.mrf.mxu0
        %v3838 = vadd.f32 0.0, %v3837
        %v3839 = vpop.f32.mrf.mxu0
        %v3840 = vpop.f32.mrf.mxu0
        %v3841 = vadd.f32 0.0, %v3840
        %v3842 = vpop.f32.mrf.mxu0
        %3843 = vmatprep.mubr.bf16.mxu0 0
        %3844 = vmatmul.mubr.bf16.gmra.mxu0 %v3583
        %v3845 = vpop.f32.mrf.mxu0
        %v3846 = vadd.f32 0.0, %v3845
        %v3847 = vpop.f32.mrf.mxu0
        %v3848 = vpop.f32.mrf.mxu0
        %v3849 = vadd.f32 0.0, %v3848
        %v3850 = vpop.f32.mrf.mxu0
        %3851 = vmatprep.mubr.bf16.mxu0 0
        %3852 = vmatmul.mubr.bf16.gmra.mxu0 %v3584
        %v3853 = vpop.f32.mrf.mxu0
        %v3854 = vadd.f32 0.0, %v3853
        %v3855 = vpop.f32.mrf.mxu0
        %v3856 = vpop.f32.mrf.mxu0
        %v3857 = vadd.f32 0.0, %v3856
        %v3858 = vpop.f32.mrf.mxu0
        %3859 = vmatprep.mubr.bf16.mxu0 0
        %3860 = vmatmul.mubr.bf16.gmra.mxu0 %v3585
        %v3861 = vpop.f32.mrf.mxu0
        %v3862 = vadd.f32 0.0, %v3861
        %v3863 = vpop.f32.mrf.mxu0
        %v3864 = vpop.f32.mrf.mxu0
        %v3865 = vadd.f32 0.0, %v3864
        %v3866 = vpop.f32.mrf.mxu0
        %3867 = vmatprep.mubr.bf16.mxu0 0
        %3868 = vmatmul.mubr.bf16.gmra.mxu0 %v3586
        %v3869 = vpop.f32.mrf.mxu0
        %v3870 = vadd.f32 0.0, %v3869
        %v3871 = vpop.f32.mrf.mxu0
        %v3872 = vpop.f32.mrf.mxu0
        %v3873 = vadd.f32 0.0, %v3872
        %v3874 = vpop.f32.mrf.mxu0
        %3875 = vdwg.mxu0
        %3876 = vmatprep.subr.bf16.mxu0 0
        %3877 = vmatpush1.bf16.msra.mxu0 1065369472
        %3878 = vmatprep.subr.bf16.mxu0 0
        %3879 = vmatpush1.bf16.msra.mxu0 1065369472
        %3880 = vmatprep.subr.bf16.mxu0 0
        %3881 = vmatpush1.bf16.msra.mxu0 1065369472
        %3882 = vmatprep.subr.bf16.mxu0 0
        %3883 = vmatpush1.bf16.msra.mxu0 1065369472
        %3884 = vmatprep.subr.bf16.mxu0 0
        %3885 = vmatpush1.bf16.msra.mxu0 1065369472
        %3886 = vmatprep.subr.bf16.mxu0 0
        %3887 = vmatpush1.bf16.msra.mxu0 1065369472
        %3888 = vmatprep.subr.bf16.mxu0 0
        %3889 = vmatpush1.bf16.msra.mxu0 1065369472
        %3890 = vmatprep.subr.bf16.mxu0 0
        %3891 = vmatpush1.bf16.msra.mxu0 1065369472
        %3892 = vmatprep.subr.bf16.mxu0 0
        %3893 = vmatpush2.bf16.msra.mxu0 0
        %3894 = vmatprep.subr.bf16.mxu0 0
        %3895 = vmatpush2.bf16.msra.mxu0 0
        %3896 = vmatprep.subr.bf16.mxu0 0
        %3897 = vmatpush2.bf16.msra.mxu0 0
        %3898 = vmatprep.subr.bf16.mxu0 0
        %3899 = vmatpush2.bf16.msra.mxu0 0
        %3900 = vmatprep.subr.bf16.mxu0 0
        %3901 = vmatpush2.bf16.msra.mxu0 0
        %3902 = vmatprep.subr.bf16.mxu0 0
        %3903 = vmatpush2.bf16.msra.mxu0 0
        %3904 = vmatprep.subr.bf16.mxu0 0
        %3905 = vmatpush2.bf16.msra.mxu0 0
        %3906 = vmatprep.subr.bf16.mxu0 0
        %3907 = vmatpush2.bf16.msra.mxu0 0
        %3908 = vmatprep.mubr.bf16.mxu0 0
        %3909 = vmatmul.mubr.bf16.gmra.mxu0 %v2016
        %v3910 = vpop.f32.mrf.mxu0
        %v3911 = vadd.f32 %v3622, %v3910
        %v3912 = vpop.f32.mrf.mxu0
        %v3913 = vpop.f32.mrf.mxu0
        %v3914 = vadd.f32 %v3625, %v3913
        %v3915 = vpop.f32.mrf.mxu0
        %3916 = vmatprep.mubr.bf16.mxu0 0
        %3917 = vmatmul.mubr.bf16.gmra.mxu0 %v2017
        %v3918 = vpop.f32.mrf.mxu0
        %v3919 = vadd.f32 %v3630, %v3918
        %v3920 = vpop.f32.mrf.mxu0
        %v3921 = vpop.f32.mrf.mxu0
        %v3922 = vadd.f32 %v3633, %v3921
        %v3923 = vpop.f32.mrf.mxu0
        %3924 = vmatprep.mubr.bf16.mxu0 0
        %3925 = vmatmul.mubr.bf16.gmra.mxu0 %v2018
        %v3926 = vpop.f32.mrf.mxu0
        %v3927 = vadd.f32 %v3638, %v3926
        %v3928 = vpop.f32.mrf.mxu0
        %v3929 = vpop.f32.mrf.mxu0
        %v3930 = vadd.f32 %v3641, %v3929
        %v3931 = vpop.f32.mrf.mxu0
        %3932 = vmatprep.mubr.bf16.mxu0 0
        %3933 = vmatmul.mubr.bf16.gmra.mxu0 %v2019
        %v3934 = vpop.f32.mrf.mxu0
        %v3935 = vadd.f32 %v3646, %v3934
        %v3936 = vpop.f32.mrf.mxu0
        %v3937 = vpop.f32.mrf.mxu0
        %v3938 = vadd.f32 %v3649, %v3937
        %v3939 = vpop.f32.mrf.mxu0
        %3940 = vmatprep.mubr.bf16.mxu0 0
        %3941 = vmatmul.mubr.bf16.gmra.mxu0 %v2020
        %v3942 = vpop.f32.mrf.mxu0
        %v3943 = vadd.f32 %v3654, %v3942
        %v3944 = vpop.f32.mrf.mxu0
        %v3945 = vpop.f32.mrf.mxu0
        %v3946 = vadd.f32 %v3657, %v3945
        %v3947 = vpop.f32.mrf.mxu0
        %3948 = vmatprep.mubr.bf16.mxu0 0
        %3949 = vmatmul.mubr.bf16.gmra.mxu0 %v2021
        %v3950 = vpop.f32.mrf.mxu0
        %v3951 = vadd.f32 %v3662, %v3950
        %v3952 = vpop.f32.mrf.mxu0
        %v3953 = vpop.f32.mrf.mxu0
        %v3954 = vadd.f32 %v3665, %v3953
        %v3955 = vpop.f32.mrf.mxu0
        %3956 = vmatprep.mubr.bf16.mxu0 0
        %3957 = vmatmul.mubr.bf16.gmra.mxu0 %v2022
        %v3958 = vpop.f32.mrf.mxu0
        %v3959 = vadd.f32 %v3670, %v3958
        %v3960 = vpop.f32.mrf.mxu0
        %v3961 = vpop.f32.mrf.mxu0
        %v3962 = vadd.f32 %v3673, %v3961
        %v3963 = vpop.f32.mrf.mxu0
        %3964 = vmatprep.mubr.bf16.mxu0 0
        %3965 = vmatmul.mubr.bf16.gmra.mxu0 %v2023
        %v3966 = vpop.f32.mrf.mxu0
        %v3967 = vadd.f32 %v3678, %v3966
        %v3968 = vpop.f32.mrf.mxu0
        %v3969 = vpop.f32.mrf.mxu0
        %v3970 = vadd.f32 %v3681, %v3969
        %v3971 = vpop.f32.mrf.mxu0
        %3972 = vmatprep.mubr.bf16.mxu0 0
        %3973 = vmatmul.mubr.bf16.gmra.mxu0 %v2024
        %v3974 = vpop.f32.mrf.mxu0
        %v3975 = vadd.f32 %v3686, %v3974
        %v3976 = vpop.f32.mrf.mxu0
        %v3977 = vpop.f32.mrf.mxu0
        %v3978 = vadd.f32 %v3689, %v3977
        %v3979 = vpop.f32.mrf.mxu0
        %3980 = vmatprep.mubr.bf16.mxu0 0
        %3981 = vmatmul.mubr.bf16.gmra.mxu0 %v2025
        %v3982 = vpop.f32.mrf.mxu0
        %v3983 = vadd.f32 %v3694, %v3982
        %v3984 = vpop.f32.mrf.mxu0
        %v3985 = vpop.f32.mrf.mxu0
        %v3986 = vadd.f32 %v3697, %v3985
        %v3987 = vpop.f32.mrf.mxu0
        %3988 = vmatprep.mubr.bf16.mxu0 0
        %3989 = vmatmul.mubr.bf16.gmra.mxu0 %v2026
        %v3990 = vpop.f32.mrf.mxu0
        %v3991 = vadd.f32 %v3702, %v3990
        %v3992 = vpop.f32.mrf.mxu0
        %v3993 = vpop.f32.mrf.mxu0
        %v3994 = vadd.f32 %v3705, %v3993
        %v3995 = vpop.f32.mrf.mxu0
        %3996 = vmatprep.mubr.bf16.mxu0 0
        %3997 = vmatmul.mubr.bf16.gmra.mxu0 %v2027
        %v3998 = vpop.f32.mrf.mxu0
        %v3999 = vadd.f32 %v3710, %v3998
        %v4000 = vpop.f32.mrf.mxu0
        %v4001 = vpop.f32.mrf.mxu0
        %v4002 = vadd.f32 %v3713, %v4001
        %v4003 = vpop.f32.mrf.mxu0
        %4004 = vmatprep.mubr.bf16.mxu0 0
        %4005 = vmatmul.mubr.bf16.gmra.mxu0 %v2028
        %v4006 = vpop.f32.mrf.mxu0
        %v4007 = vadd.f32 %v3718, %v4006
        %v4008 = vpop.f32.mrf.mxu0
        %v4009 = vpop.f32.mrf.mxu0
        %v4010 = vadd.f32 %v3721, %v4009
        %v4011 = vpop.f32.mrf.mxu0
        %4012 = vmatprep.mubr.bf16.mxu0 0
        %4013 = vmatmul.mubr.bf16.gmra.mxu0 %v2029
        %v4014 = vpop.f32.mrf.mxu0
        %v4015 = vadd.f32 %v3726, %v4014
        %v4016 = vpop.f32.mrf.mxu0
        %v4017 = vpop.f32.mrf.mxu0
        %v4018 = vadd.f32 %v3729, %v4017
        %v4019 = vpop.f32.mrf.mxu0
        %4020 = vmatprep.mubr.bf16.mxu0 0
        %4021 = vmatmul.mubr.bf16.gmra.mxu0 %v2030
        %v4022 = vpop.f32.mrf.mxu0
        %v4023 = vadd.f32 %v3734, %v4022
        %v4024 = vpop.f32.mrf.mxu0
        %v4025 = vpop.f32.mrf.mxu0
        %v4026 = vadd.f32 %v3737, %v4025
        %v4027 = vpop.f32.mrf.mxu0
        %4028 = vmatprep.mubr.bf16.mxu0 0
        %4029 = vmatmul.mubr.bf16.gmra.mxu0 %v2031
        %v4030 = vpop.f32.mrf.mxu0
        %v4031 = vadd.f32 %v3742, %v4030
        %v4032 = vpop.f32.mrf.mxu0
        %v4033 = vpop.f32.mrf.mxu0
        %v4034 = vadd.f32 %v3745, %v4033
        %v4035 = vpop.f32.mrf.mxu0
        %4036 = vmatprep.mubr.bf16.mxu0 0
        %4037 = vmatmul.mubr.bf16.gmra.mxu0 %v2032
        %v4038 = vpop.f32.mrf.mxu0
        %v4039 = vadd.f32 %v3750, %v4038
        %v4040 = vpop.f32.mrf.mxu0
        %v4041 = vpop.f32.mrf.mxu0
        %v4042 = vadd.f32 %v3753, %v4041
        %v4043 = vpop.f32.mrf.mxu0
        %4044 = vmatprep.mubr.bf16.mxu0 0
        %4045 = vmatmul.mubr.bf16.gmra.mxu0 %v2033
        %v4046 = vpop.f32.mrf.mxu0
        %v4047 = vadd.f32 %v3758, %v4046
        %v4048 = vpop.f32.mrf.mxu0
        %v4049 = vpop.f32.mrf.mxu0
        %v4050 = vadd.f32 %v3761, %v4049
        %v4051 = vpop.f32.mrf.mxu0
        %4052 = vmatprep.mubr.bf16.mxu0 0
        %4053 = vmatmul.mubr.bf16.gmra.mxu0 %v2034
        %v4054 = vpop.f32.mrf.mxu0
        %v4055 = vadd.f32 %v3766, %v4054
        %v4056 = vpop.f32.mrf.mxu0
        %v4057 = vpop.f32.mrf.mxu0
        %v4058 = vadd.f32 %v3769, %v4057
        %v4059 = vpop.f32.mrf.mxu0
        %4060 = vmatprep.mubr.bf16.mxu0 0
        %4061 = vmatmul.mubr.bf16.gmra.mxu0 %v2035
        %v4062 = vpop.f32.mrf.mxu0
        %v4063 = vadd.f32 %v3774, %v4062
        %v4064 = vpop.f32.mrf.mxu0
        %v4065 = vpop.f32.mrf.mxu0
        %v4066 = vadd.f32 %v3777, %v4065
        %v4067 = vpop.f32.mrf.mxu0
        %4068 = vmatprep.mubr.bf16.mxu0 0
        %4069 = vmatmul.mubr.bf16.gmra.mxu0 %v2036
        %v4070 = vpop.f32.mrf.mxu0
        %v4071 = vadd.f32 %v3782, %v4070
        %v4072 = vpop.f32.mrf.mxu0
        %v4073 = vpop.f32.mrf.mxu0
        %v4074 = vadd.f32 %v3785, %v4073
        %v4075 = vpop.f32.mrf.mxu0
        %4076 = vmatprep.mubr.bf16.mxu0 0
        %4077 = vmatmul.mubr.bf16.gmra.mxu0 %v2037
        %v4078 = vpop.f32.mrf.mxu0
        %v4079 = vadd.f32 %v3790, %v4078
        %v4080 = vpop.f32.mrf.mxu0
        %v4081 = vpop.f32.mrf.mxu0
        %v4082 = vadd.f32 %v3793, %v4081
        %v4083 = vpop.f32.mrf.mxu0
        %4084 = vmatprep.mubr.bf16.mxu0 0
        %4085 = vmatmul.mubr.bf16.gmra.mxu0 %v2038
        %v4086 = vpop.f32.mrf.mxu0
        %v4087 = vadd.f32 %v3798, %v4086
        %v4088 = vpop.f32.mrf.mxu0
        %v4089 = vpop.f32.mrf.mxu0
        %v4090 = vadd.f32 %v3801, %v4089
        %v4091 = vpop.f32.mrf.mxu0
        %4092 = vmatprep.mubr.bf16.mxu0 0
        %4093 = vmatmul.mubr.bf16.gmra.mxu0 %v2039
        %v4094 = vpop.f32.mrf.mxu0
        %v4095 = vadd.f32 %v3806, %v4094
        %v4096 = vpop.f32.mrf.mxu0
        %v4097 = vpop.f32.mrf.mxu0
        %v4098 = vadd.f32 %v3809, %v4097
        %v4099 = vpop.f32.mrf.mxu0
        %4100 = vmatprep.mubr.bf16.mxu0 0
        %4101 = vmatmul.mubr.bf16.gmra.mxu0 %v2040
        %v4102 = vpop.f32.mrf.mxu0
        %v4103 = vadd.f32 %v3814, %v4102
        %v4104 = vpop.f32.mrf.mxu0
        %v4105 = vpop.f32.mrf.mxu0
        %v4106 = vadd.f32 %v3817, %v4105
        %v4107 = vpop.f32.mrf.mxu0
        %4108 = vmatprep.mubr.bf16.mxu0 0
        %4109 = vmatmul.mubr.bf16.gmra.mxu0 %v2041
        %v4110 = vpop.f32.mrf.mxu0
        %v4111 = vadd.f32 %v3822, %v4110
        %v4112 = vpop.f32.mrf.mxu0
        %v4113 = vpop.f32.mrf.mxu0
        %v4114 = vadd.f32 %v3825, %v4113
        %v4115 = vpop.f32.mrf.mxu0
        %4116 = vmatprep.mubr.bf16.mxu0 0
        %4117 = vmatmul.mubr.bf16.gmra.mxu0 %v2042
        %v4118 = vpop.f32.mrf.mxu0
        %v4119 = vadd.f32 %v3830, %v4118
        %v4120 = vpop.f32.mrf.mxu0
        %v4121 = vpop.f32.mrf.mxu0
        %v4122 = vadd.f32 %v3833, %v4121
        %v4123 = vpop.f32.mrf.mxu0
        %4124 = vmatprep.mubr.bf16.mxu0 0
        %4125 = vmatmul.mubr.bf16.gmra.mxu0 %v2043
        %v4126 = vpop.f32.mrf.mxu0
        %v4127 = vadd.f32 %v3838, %v4126
        %v4128 = vpop.f32.mrf.mxu0
        %v4129 = vpop.f32.mrf.mxu0
        %v4130 = vadd.f32 %v3841, %v4129
        %v4131 = vpop.f32.mrf.mxu0
        %4132 = vmatprep.mubr.bf16.mxu0 0
        %4133 = vmatmul.mubr.bf16.gmra.mxu0 %v2044
        %v4134 = vpop.f32.mrf.mxu0
        %v4135 = vadd.f32 %v3846, %v4134
        %v4136 = vpop.f32.mrf.mxu0
        %v4137 = vpop.f32.mrf.mxu0
        %v4138 = vadd.f32 %v3849, %v4137
        %v4139 = vpop.f32.mrf.mxu0
        %4140 = vmatprep.mubr.bf16.mxu0 0
        %4141 = vmatmul.mubr.bf16.gmra.mxu0 %v2045
        %v4142 = vpop.f32.mrf.mxu0
        %v4143 = vadd.f32 %v3854, %v4142
        %v4144 = vpop.f32.mrf.mxu0
        %v4145 = vpop.f32.mrf.mxu0
        %v4146 = vadd.f32 %v3857, %v4145
        %v4147 = vpop.f32.mrf.mxu0
        %4148 = vmatprep.mubr.bf16.mxu0 0
        %4149 = vmatmul.mubr.bf16.gmra.mxu0 %v2046
        %v4150 = vpop.f32.mrf.mxu0
        %v4151 = vadd.f32 %v3862, %v4150
        %v4152 = vpop.f32.mrf.mxu0
        %v4153 = vpop.f32.mrf.mxu0
        %v4154 = vadd.f32 %v3865, %v4153
        %v4155 = vpop.f32.mrf.mxu0
        %4156 = vmatprep.mubr.bf16.mxu0 0
        %4157 = vmatmul.mubr.bf16.gmra.mxu0 %v2047
        %v4158 = vpop.f32.mrf.mxu0
        %v4159 = vadd.f32 %v3870, %v4158
        %v4160 = vpop.f32.mrf.mxu0
        %v4161 = vpop.f32.mrf.mxu0
        %v4162 = vadd.f32 %v3873, %v4161
        %v4163 = vpop.f32.mrf.mxu0
        %4164 = vdwg.mxu0
        %v4165 = vmul.f32 %v3911, 0.00390625
        %v4166 = vmul.f32 %v3914, 0.00390625
        %v4167 = vmul.f32 %v3919, 0.00390625
        %v4168 = vmul.f32 %v3922, 0.00390625
        %v4169 = vmul.f32 %v3927, 0.00390625
        %v4170 = vmul.f32 %v3930, 0.00390625
        %v4171 = vmul.f32 %v3935, 0.00390625
        %v4172 = vmul.f32 %v3938, 0.00390625
        %v4173 = vmul.f32 %v3943, 0.00390625
        %v4174 = vmul.f32 %v3946, 0.00390625
        %v4175 = vmul.f32 %v3951, 0.00390625
        %v4176 = vmul.f32 %v3954, 0.00390625
        %v4177 = vmul.f32 %v3959, 0.00390625
        %v4178 = vmul.f32 %v3962, 0.00390625
        %v4179 = vmul.f32 %v3967, 0.00390625
        %v4180 = vmul.f32 %v3970, 0.00390625
        %v4181 = vmul.f32 %v3975, 0.00390625
        %v4182 = vmul.f32 %v3978, 0.00390625
        %v4183 = vmul.f32 %v3983, 0.00390625
        %v4184 = vmul.f32 %v3986, 0.00390625
        %v4185 = vmul.f32 %v3991, 0.00390625
        %v4186 = vmul.f32 %v3994, 0.00390625
        %v4187 = vmul.f32 %v3999, 0.00390625
        %v4188 = vmul.f32 %v4002, 0.00390625
        %v4189 = vmul.f32 %v4007, 0.00390625
        %v4190 = vmul.f32 %v4010, 0.00390625
        %v4191 = vmul.f32 %v4015, 0.00390625
        %v4192 = vmul.f32 %v4018, 0.00390625
        %v4193 = vmul.f32 %v4023, 0.00390625
        %v4194 = vmul.f32 %v4026, 0.00390625
        %v4195 = vmul.f32 %v4031, 0.00390625
        %v4196 = vmul.f32 %v4034, 0.00390625
        %v4197 = vmul.f32 %v4039, 0.00390625
        %v4198 = vmul.f32 %v4042, 0.00390625
        %v4199 = vmul.f32 %v4047, 0.00390625
        %v4200 = vmul.f32 %v4050, 0.00390625
        %v4201 = vmul.f32 %v4055, 0.00390625
        %v4202 = vmul.f32 %v4058, 0.00390625
        %v4203 = vmul.f32 %v4063, 0.00390625
        %v4204 = vmul.f32 %v4066, 0.00390625
        %v4205 = vmul.f32 %v4071, 0.00390625
        %v4206 = vmul.f32 %v4074, 0.00390625
        %v4207 = vmul.f32 %v4079, 0.00390625
        %v4208 = vmul.f32 %v4082, 0.00390625
        %v4209 = vmul.f32 %v4087, 0.00390625
        %v4210 = vmul.f32 %v4090, 0.00390625
        %v4211 = vmul.f32 %v4095, 0.00390625
        %v4212 = vmul.f32 %v4098, 0.00390625
        %v4213 = vmul.f32 %v4103, 0.00390625
        %v4214 = vmul.f32 %v4106, 0.00390625
        %v4215 = vmul.f32 %v4111, 0.00390625
        %v4216 = vmul.f32 %v4114, 0.00390625
        %v4217 = vmul.f32 %v4119, 0.00390625
        %v4218 = vmul.f32 %v4122, 0.00390625
        %v4219 = vmul.f32 %v4127, 0.00390625
        %v4220 = vmul.f32 %v4130, 0.00390625
        %v4221 = vmul.f32 %v4135, 0.00390625
        %v4222 = vmul.f32 %v4138, 0.00390625
        %v4223 = vmul.f32 %v4143, 0.00390625
        %v4224 = vmul.f32 %v4146, 0.00390625
        %v4225 = vmul.f32 %v4151, 0.00390625
        %v4226 = vmul.f32 %v4154, 0.00390625
        %v4227 = vmul.f32 %v4159, 0.00390625
        %v4228 = vmul.f32 %v4162, 0.00390625
        %v4229 = vpack.c.bf16 %v4166, %v4165
        %v4230 = vpack.c.bf16 %v4168, %v4167
        %v4231 = vpack.c.bf16 %v4170, %v4169
        %v4232 = vpack.c.bf16 %v4172, %v4171
        %v4233 = vpack.c.bf16 %v4174, %v4173
        %v4234 = vpack.c.bf16 %v4176, %v4175
        %v4235 = vpack.c.bf16 %v4178, %v4177
        %v4236 = vpack.c.bf16 %v4180, %v4179
        %v4237 = vpack.c.bf16 %v4182, %v4181
        %v4238 = vpack.c.bf16 %v4184, %v4183
        %v4239 = vpack.c.bf16 %v4186, %v4185
        %v4240 = vpack.c.bf16 %v4188, %v4187
        %v4241 = vpack.c.bf16 %v4190, %v4189
        %v4242 = vpack.c.bf16 %v4192, %v4191
        %v4243 = vpack.c.bf16 %v4194, %v4193
        %v4244 = vpack.c.bf16 %v4196, %v4195
        %v4245 = vpack.c.bf16 %v4198, %v4197
        %v4246 = vpack.c.bf16 %v4200, %v4199
        %v4247 = vpack.c.bf16 %v4202, %v4201
        %v4248 = vpack.c.bf16 %v4204, %v4203
        %v4249 = vpack.c.bf16 %v4206, %v4205
        %v4250 = vpack.c.bf16 %v4208, %v4207
        %v4251 = vpack.c.bf16 %v4210, %v4209
        %v4252 = vpack.c.bf16 %v4212, %v4211
        %v4253 = vpack.c.bf16 %v4214, %v4213
        %v4254 = vpack.c.bf16 %v4216, %v4215
        %v4255 = vpack.c.bf16 %v4218, %v4217
        %v4256 = vpack.c.bf16 %v4220, %v4219
        %v4257 = vpack.c.bf16 %v4222, %v4221
        %v4258 = vpack.c.bf16 %v4224, %v4223
        %v4259 = vpack.c.bf16 %v4226, %v4225
        %v4260 = vpack.c.bf16 %v4228, %v4227
        %v4261 = vld [vmem:[%s3] sm:$0xff]
        %v4262 = vld [vmem:[%s3 + $0x8] sm:$0xff]
        %v4263 = vld [vmem:[%s3 + $0x10] sm:$0xff]
        %v4264 = vld [vmem:[%s3 + $0x18] sm:$0xff]
        %v4265 = vld [vmem:[%s3 + $0x20] sm:$0xff]
        %v4266 = vld [vmem:[%s3 + $0x28] sm:$0xff]
        %v4267 = vld [vmem:[%s3 + $0x30] sm:$0xff]
        %v4268 = vld [vmem:[%s3 + $0x38] sm:$0xff]
        %v4269 = vld [vmem:[%s3 + $0x40] sm:$0xff]
        %v4270 = vld [vmem:[%s3 + $0x48] sm:$0xff]
        %v4271 = vld [vmem:[%s3 + $0x50] sm:$0xff]
        %v4272 = vld [vmem:[%s3 + $0x58] sm:$0xff]
        %v4273 = vld [vmem:[%s3 + $0x60] sm:$0xff]
        %v4274 = vld [vmem:[%s3 + $0x68] sm:$0xff]
        %v4275 = vld [vmem:[%s3 + $0x70] sm:$0xff]
        %v4276 = vld [vmem:[%s3 + $0x78] sm:$0xff]
        %v4277 = vld [vmem:[%s3 + $0x80] sm:$0xff]
        %v4278 = vld [vmem:[%s3 + $0x88] sm:$0xff]
        %v4279 = vld [vmem:[%s3 + $0x90] sm:$0xff]
        %v4280 = vld [vmem:[%s3 + $0x98] sm:$0xff]
        %v4281 = vld [vmem:[%s3 + $0xa0] sm:$0xff]
        %v4282 = vld [vmem:[%s3 + $0xa8] sm:$0xff]
        %v4283 = vld [vmem:[%s3 + $0xb0] sm:$0xff]
        %v4284 = vld [vmem:[%s3 + $0xb8] sm:$0xff]
        %v4285 = vld [vmem:[%s3 + $0xc0] sm:$0xff]
        %v4286 = vld [vmem:[%s3 + $0xc8] sm:$0xff]
        %v4287 = vld [vmem:[%s3 + $0xd0] sm:$0xff]
        %v4288 = vld [vmem:[%s3 + $0xd8] sm:$0xff]
        %v4289 = vld [vmem:[%s3 + $0xe0] sm:$0xff]
        %v4290 = vld [vmem:[%s3 + $0xe8] sm:$0xff]
        %v4291 = vld [vmem:[%s3 + $0xf0] sm:$0xff]
        %v4292 = vld [vmem:[%s3 + $0xf8] sm:$0xff]
        %v4293 = vld [vmem:[%s3 + $0x100] sm:$0xff]
        %v4294 = vld [vmem:[%s3 + $0x108] sm:$0xff]
        %v4295 = vld [vmem:[%s3 + $0x110] sm:$0xff]
        %v4296 = vld [vmem:[%s3 + $0x118] sm:$0xff]
        %v4297 = vld [vmem:[%s3 + $0x120] sm:$0xff]
        %v4298 = vld [vmem:[%s3 + $0x128] sm:$0xff]
        %v4299 = vld [vmem:[%s3 + $0x130] sm:$0xff]
        %v4300 = vld [vmem:[%s3 + $0x138] sm:$0xff]
        %v4301 = vld [vmem:[%s3 + $0x140] sm:$0xff]
        %v4302 = vld [vmem:[%s3 + $0x148] sm:$0xff]
        %v4303 = vld [vmem:[%s3 + $0x150] sm:$0xff]
        %v4304 = vld [vmem:[%s3 + $0x158] sm:$0xff]
        %v4305 = vld [vmem:[%s3 + $0x160] sm:$0xff]
        %v4306 = vld [vmem:[%s3 + $0x168] sm:$0xff]
        %v4307 = vld [vmem:[%s3 + $0x170] sm:$0xff]
        %v4308 = vld [vmem:[%s3 + $0x178] sm:$0xff]
        %v4309 = vld [vmem:[%s3 + $0x180] sm:$0xff]
        %v4310 = vld [vmem:[%s3 + $0x188] sm:$0xff]
        %v4311 = vld [vmem:[%s3 + $0x190] sm:$0xff]
        %v4312 = vld [vmem:[%s3 + $0x198] sm:$0xff]
        %v4313 = vld [vmem:[%s3 + $0x1a0] sm:$0xff]
        %v4314 = vld [vmem:[%s3 + $0x1a8] sm:$0xff]
        %v4315 = vld [vmem:[%s3 + $0x1b0] sm:$0xff]
        %v4316 = vld [vmem:[%s3 + $0x1b8] sm:$0xff]
        %v4317 = vld [vmem:[%s3 + $0x1c0] sm:$0xff]
        %v4318 = vld [vmem:[%s3 + $0x1c8] sm:$0xff]
        %v4319 = vld [vmem:[%s3 + $0x1d0] sm:$0xff]
        %v4320 = vld [vmem:[%s3 + $0x1d8] sm:$0xff]
        %v4321 = vld [vmem:[%s3 + $0x1e0] sm:$0xff]
        %v4322 = vld [vmem:[%s3 + $0x1e8] sm:$0xff]
        %v4323 = vld [vmem:[%s3 + $0x1f0] sm:$0xff]
        %v4324 = vld [vmem:[%s3 + $0x1f8] sm:$0xff]
        %v4325 = vld [vmem:[%s3 + $0x200] sm:$0xff]
        %v4326 = vld [vmem:[%s3 + $0x208] sm:$0xff]
        %v4327 = vld [vmem:[%s3 + $0x210] sm:$0xff]
        %v4328 = vld [vmem:[%s3 + $0x218] sm:$0xff]
        %v4329 = vld [vmem:[%s3 + $0x220] sm:$0xff]
        %v4330 = vld [vmem:[%s3 + $0x228] sm:$0xff]
        %v4331 = vld [vmem:[%s3 + $0x230] sm:$0xff]
        %v4332 = vld [vmem:[%s3 + $0x238] sm:$0xff]
        %v4333 = vld [vmem:[%s3 + $0x240] sm:$0xff]
        %v4334 = vld [vmem:[%s3 + $0x248] sm:$0xff]
        %v4335 = vld [vmem:[%s3 + $0x250] sm:$0xff]
        %v4336 = vld [vmem:[%s3 + $0x258] sm:$0xff]
        %v4337 = vld [vmem:[%s3 + $0x260] sm:$0xff]
        %v4338 = vld [vmem:[%s3 + $0x268] sm:$0xff]
        %v4339 = vld [vmem:[%s3 + $0x270] sm:$0xff]
        %v4340 = vld [vmem:[%s3 + $0x278] sm:$0xff]
        %v4341 = vld [vmem:[%s3 + $0x280] sm:$0xff]
        %v4342 = vld [vmem:[%s3 + $0x288] sm:$0xff]
        %v4343 = vld [vmem:[%s3 + $0x290] sm:$0xff]
        %v4344 = vld [vmem:[%s3 + $0x298] sm:$0xff]
        %v4345 = vld [vmem:[%s3 + $0x2a0] sm:$0xff]
        %v4346 = vld [vmem:[%s3 + $0x2a8] sm:$0xff]
        %v4347 = vld [vmem:[%s3 + $0x2b0] sm:$0xff]
        %v4348 = vld [vmem:[%s3 + $0x2b8] sm:$0xff]
        %v4349 = vld [vmem:[%s3 + $0x2c0] sm:$0xff]
        %v4350 = vld [vmem:[%s3 + $0x2c8] sm:$0xff]
        %v4351 = vld [vmem:[%s3 + $0x2d0] sm:$0xff]
        %v4352 = vld [vmem:[%s3 + $0x2d8] sm:$0xff]
        %v4353 = vld [vmem:[%s3 + $0x2e0] sm:$0xff]
        %v4354 = vld [vmem:[%s3 + $0x2e8] sm:$0xff]
        %v4355 = vld [vmem:[%s3 + $0x2f0] sm:$0xff]
        %v4356 = vld [vmem:[%s3 + $0x2f8] sm:$0xff]
        %v4357 = vld [vmem:[%s3 + $0x300] sm:$0xff]
        %v4358 = vld [vmem:[%s3 + $0x308] sm:$0xff]
        %v4359 = vld [vmem:[%s3 + $0x310] sm:$0xff]
        %v4360 = vld [vmem:[%s3 + $0x318] sm:$0xff]
        %v4361 = vld [vmem:[%s3 + $0x320] sm:$0xff]
        %v4362 = vld [vmem:[%s3 + $0x328] sm:$0xff]
        %v4363 = vld [vmem:[%s3 + $0x330] sm:$0xff]
        %v4364 = vld [vmem:[%s3 + $0x338] sm:$0xff]
        %v4365 = vld [vmem:[%s3 + $0x340] sm:$0xff]
        %v4366 = vld [vmem:[%s3 + $0x348] sm:$0xff]
        %v4367 = vld [vmem:[%s3 + $0x350] sm:$0xff]
        %v4368 = vld [vmem:[%s3 + $0x358] sm:$0xff]
        %v4369 = vld [vmem:[%s3 + $0x360] sm:$0xff]
        %v4370 = vld [vmem:[%s3 + $0x368] sm:$0xff]
        %v4371 = vld [vmem:[%s3 + $0x370] sm:$0xff]
        %v4372 = vld [vmem:[%s3 + $0x378] sm:$0xff]
        %v4373 = vld [vmem:[%s3 + $0x380] sm:$0xff]
        %v4374 = vld [vmem:[%s3 + $0x388] sm:$0xff]
        %v4375 = vld [vmem:[%s3 + $0x390] sm:$0xff]
        %v4376 = vld [vmem:[%s3 + $0x398] sm:$0xff]
        %v4377 = vld [vmem:[%s3 + $0x3a0] sm:$0xff]
        %v4378 = vld [vmem:[%s3 + $0x3a8] sm:$0xff]
        %v4379 = vld [vmem:[%s3 + $0x3b0] sm:$0xff]
        %v4380 = vld [vmem:[%s3 + $0x3b8] sm:$0xff]
        %v4381 = vld [vmem:[%s3 + $0x3c0] sm:$0xff]
        %v4382 = vld [vmem:[%s3 + $0x3c8] sm:$0xff]
        %v4383 = vld [vmem:[%s3 + $0x3d0] sm:$0xff]
        %v4384 = vld [vmem:[%s3 + $0x3d8] sm:$0xff]
        %v4385 = vld [vmem:[%s3 + $0x3e0] sm:$0xff]
        %v4386 = vld [vmem:[%s3 + $0x3e8] sm:$0xff]
        %v4387 = vld [vmem:[%s3 + $0x3f0] sm:$0xff]
        %v4388 = vld [vmem:[%s3 + $0x3f8] sm:$0xff]
        %v4389 = vld [vmem:[%s3 + $0x400] sm:$0xff]
        %v4390 = vld [vmem:[%s3 + $0x408] sm:$0xff]
        %v4391 = vld [vmem:[%s3 + $0x410] sm:$0xff]
        %v4392 = vld [vmem:[%s3 + $0x418] sm:$0xff]
        %v4393 = vld [vmem:[%s3 + $0x420] sm:$0xff]
        %v4394 = vld [vmem:[%s3 + $0x428] sm:$0xff]
        %v4395 = vld [vmem:[%s3 + $0x430] sm:$0xff]
        %v4396 = vld [vmem:[%s3 + $0x438] sm:$0xff]
        %v4397 = vld [vmem:[%s3 + $0x440] sm:$0xff]
        %v4398 = vld [vmem:[%s3 + $0x448] sm:$0xff]
        %v4399 = vld [vmem:[%s3 + $0x450] sm:$0xff]
        %v4400 = vld [vmem:[%s3 + $0x458] sm:$0xff]
        %v4401 = vld [vmem:[%s3 + $0x460] sm:$0xff]
        %v4402 = vld [vmem:[%s3 + $0x468] sm:$0xff]
        %v4403 = vld [vmem:[%s3 + $0x470] sm:$0xff]
        %v4404 = vld [vmem:[%s3 + $0x478] sm:$0xff]
        %v4405 = vld [vmem:[%s3 + $0x480] sm:$0xff]
        %v4406 = vld [vmem:[%s3 + $0x488] sm:$0xff]
        %v4407 = vld [vmem:[%s3 + $0x490] sm:$0xff]
        %v4408 = vld [vmem:[%s3 + $0x498] sm:$0xff]
        %v4409 = vld [vmem:[%s3 + $0x4a0] sm:$0xff]
        %v4410 = vld [vmem:[%s3 + $0x4a8] sm:$0xff]
        %v4411 = vld [vmem:[%s3 + $0x4b0] sm:$0xff]
        %v4412 = vld [vmem:[%s3 + $0x4b8] sm:$0xff]
        %v4413 = vld [vmem:[%s3 + $0x4c0] sm:$0xff]
        %v4414 = vld [vmem:[%s3 + $0x4c8] sm:$0xff]
        %v4415 = vld [vmem:[%s3 + $0x4d0] sm:$0xff]
        %v4416 = vld [vmem:[%s3 + $0x4d8] sm:$0xff]
        %v4417 = vld [vmem:[%s3 + $0x4e0] sm:$0xff]
        %v4418 = vld [vmem:[%s3 + $0x4e8] sm:$0xff]
        %v4419 = vld [vmem:[%s3 + $0x4f0] sm:$0xff]
        %v4420 = vld [vmem:[%s3 + $0x4f8] sm:$0xff]
        %v4421 = vld [vmem:[%s3 + $0x500] sm:$0xff]
        %v4422 = vld [vmem:[%s3 + $0x508] sm:$0xff]
        %v4423 = vld [vmem:[%s3 + $0x510] sm:$0xff]
        %v4424 = vld [vmem:[%s3 + $0x518] sm:$0xff]
        %v4425 = vld [vmem:[%s3 + $0x520] sm:$0xff]
        %v4426 = vld [vmem:[%s3 + $0x528] sm:$0xff]
        %v4427 = vld [vmem:[%s3 + $0x530] sm:$0xff]
        %v4428 = vld [vmem:[%s3 + $0x538] sm:$0xff]
        %v4429 = vld [vmem:[%s3 + $0x540] sm:$0xff]
        %v4430 = vld [vmem:[%s3 + $0x548] sm:$0xff]
        %v4431 = vld [vmem:[%s3 + $0x550] sm:$0xff]
        %v4432 = vld [vmem:[%s3 + $0x558] sm:$0xff]
        %v4433 = vld [vmem:[%s3 + $0x560] sm:$0xff]
        %v4434 = vld [vmem:[%s3 + $0x568] sm:$0xff]
        %v4435 = vld [vmem:[%s3 + $0x570] sm:$0xff]
        %v4436 = vld [vmem:[%s3 + $0x578] sm:$0xff]
        %v4437 = vld [vmem:[%s3 + $0x580] sm:$0xff]
        %v4438 = vld [vmem:[%s3 + $0x588] sm:$0xff]
        %v4439 = vld [vmem:[%s3 + $0x590] sm:$0xff]
        %v4440 = vld [vmem:[%s3 + $0x598] sm:$0xff]
        %v4441 = vld [vmem:[%s3 + $0x5a0] sm:$0xff]
        %v4442 = vld [vmem:[%s3 + $0x5a8] sm:$0xff]
        %v4443 = vld [vmem:[%s3 + $0x5b0] sm:$0xff]
        %v4444 = vld [vmem:[%s3 + $0x5b8] sm:$0xff]
        %v4445 = vld [vmem:[%s3 + $0x5c0] sm:$0xff]
        %v4446 = vld [vmem:[%s3 + $0x5c8] sm:$0xff]
        %v4447 = vld [vmem:[%s3 + $0x5d0] sm:$0xff]
        %v4448 = vld [vmem:[%s3 + $0x5d8] sm:$0xff]
        %v4449 = vld [vmem:[%s3 + $0x5e0] sm:$0xff]
        %v4450 = vld [vmem:[%s3 + $0x5e8] sm:$0xff]
        %v4451 = vld [vmem:[%s3 + $0x5f0] sm:$0xff]
        %v4452 = vld [vmem:[%s3 + $0x5f8] sm:$0xff]
        %v4453 = vld [vmem:[%s3 + $0x600] sm:$0xff]
        %v4454 = vld [vmem:[%s3 + $0x608] sm:$0xff]
        %v4455 = vld [vmem:[%s3 + $0x610] sm:$0xff]
        %v4456 = vld [vmem:[%s3 + $0x618] sm:$0xff]
        %v4457 = vld [vmem:[%s3 + $0x620] sm:$0xff]
        %v4458 = vld [vmem:[%s3 + $0x628] sm:$0xff]
        %v4459 = vld [vmem:[%s3 + $0x630] sm:$0xff]
        %v4460 = vld [vmem:[%s3 + $0x638] sm:$0xff]
        %v4461 = vld [vmem:[%s3 + $0x640] sm:$0xff]
        %v4462 = vld [vmem:[%s3 + $0x648] sm:$0xff]
        %v4463 = vld [vmem:[%s3 + $0x650] sm:$0xff]
        %v4464 = vld [vmem:[%s3 + $0x658] sm:$0xff]
        %v4465 = vld [vmem:[%s3 + $0x660] sm:$0xff]
        %v4466 = vld [vmem:[%s3 + $0x668] sm:$0xff]
        %v4467 = vld [vmem:[%s3 + $0x670] sm:$0xff]
        %v4468 = vld [vmem:[%s3 + $0x678] sm:$0xff]
        %v4469 = vld [vmem:[%s3 + $0x680] sm:$0xff]
        %v4470 = vld [vmem:[%s3 + $0x688] sm:$0xff]
        %v4471 = vld [vmem:[%s3 + $0x690] sm:$0xff]
        %v4472 = vld [vmem:[%s3 + $0x698] sm:$0xff]
        %v4473 = vld [vmem:[%s3 + $0x6a0] sm:$0xff]
        %v4474 = vld [vmem:[%s3 + $0x6a8] sm:$0xff]
        %v4475 = vld [vmem:[%s3 + $0x6b0] sm:$0xff]
        %v4476 = vld [vmem:[%s3 + $0x6b8] sm:$0xff]
        %v4477 = vld [vmem:[%s3 + $0x6c0] sm:$0xff]
        %v4478 = vld [vmem:[%s3 + $0x6c8] sm:$0xff]
        %v4479 = vld [vmem:[%s3 + $0x6d0] sm:$0xff]
        %v4480 = vld [vmem:[%s3 + $0x6d8] sm:$0xff]
        %v4481 = vld [vmem:[%s3 + $0x6e0] sm:$0xff]
        %v4482 = vld [vmem:[%s3 + $0x6e8] sm:$0xff]
        %v4483 = vld [vmem:[%s3 + $0x6f0] sm:$0xff]
        %v4484 = vld [vmem:[%s3 + $0x6f8] sm:$0xff]
        %v4485 = vld [vmem:[%s3 + $0x700] sm:$0xff]
        %v4486 = vld [vmem:[%s3 + $0x708] sm:$0xff]
        %v4487 = vld [vmem:[%s3 + $0x710] sm:$0xff]
        %v4488 = vld [vmem:[%s3 + $0x718] sm:$0xff]
        %v4489 = vld [vmem:[%s3 + $0x720] sm:$0xff]
        %v4490 = vld [vmem:[%s3 + $0x728] sm:$0xff]
        %v4491 = vld [vmem:[%s3 + $0x730] sm:$0xff]
        %v4492 = vld [vmem:[%s3 + $0x738] sm:$0xff]
        %v4493 = vld [vmem:[%s3 + $0x740] sm:$0xff]
        %v4494 = vld [vmem:[%s3 + $0x748] sm:$0xff]
        %v4495 = vld [vmem:[%s3 + $0x750] sm:$0xff]
        %v4496 = vld [vmem:[%s3 + $0x758] sm:$0xff]
        %v4497 = vld [vmem:[%s3 + $0x760] sm:$0xff]
        %v4498 = vld [vmem:[%s3 + $0x768] sm:$0xff]
        %v4499 = vld [vmem:[%s3 + $0x770] sm:$0xff]
        %v4500 = vld [vmem:[%s3 + $0x778] sm:$0xff]
        %v4501 = vld [vmem:[%s3 + $0x780] sm:$0xff]
        %v4502 = vld [vmem:[%s3 + $0x788] sm:$0xff]
        %v4503 = vld [vmem:[%s3 + $0x790] sm:$0xff]
        %v4504 = vld [vmem:[%s3 + $0x798] sm:$0xff]
        %v4505 = vld [vmem:[%s3 + $0x7a0] sm:$0xff]
        %v4506 = vld [vmem:[%s3 + $0x7a8] sm:$0xff]
        %v4507 = vld [vmem:[%s3 + $0x7b0] sm:$0xff]
        %v4508 = vld [vmem:[%s3 + $0x7b8] sm:$0xff]
        %v4509 = vld [vmem:[%s3 + $0x7c0] sm:$0xff]
        %v4510 = vld [vmem:[%s3 + $0x7c8] sm:$0xff]
        %v4511 = vld [vmem:[%s3 + $0x7d0] sm:$0xff]
        %v4512 = vld [vmem:[%s3 + $0x7d8] sm:$0xff]
        %v4513 = vld [vmem:[%s3 + $0x7e0] sm:$0xff]
        %v4514 = vld [vmem:[%s3 + $0x7e8] sm:$0xff]
        %v4515 = vld [vmem:[%s3 + $0x7f0] sm:$0xff]
        %v4516 = vld [vmem:[%s3 + $0x7f8] sm:$0xff]
        %v4517 = vld [vmem:[%s3 + $0x800] sm:$0xff]
        %v4518 = vld [vmem:[%s3 + $0x808] sm:$0xff]
        %v4519 = vld [vmem:[%s3 + $0x810] sm:$0xff]
        %v4520 = vld [vmem:[%s3 + $0x818] sm:$0xff]
        %v4521 = vld [vmem:[%s3 + $0x820] sm:$0xff]
        %v4522 = vld [vmem:[%s3 + $0x828] sm:$0xff]
        %v4523 = vld [vmem:[%s3 + $0x830] sm:$0xff]
        %v4524 = vld [vmem:[%s3 + $0x838] sm:$0xff]
        %v4525 = vld [vmem:[%s3 + $0x840] sm:$0xff]
        %v4526 = vld [vmem:[%s3 + $0x848] sm:$0xff]
        %v4527 = vld [vmem:[%s3 + $0x850] sm:$0xff]
        %v4528 = vld [vmem:[%s3 + $0x858] sm:$0xff]
        %v4529 = vld [vmem:[%s3 + $0x860] sm:$0xff]
        %v4530 = vld [vmem:[%s3 + $0x868] sm:$0xff]
        %v4531 = vld [vmem:[%s3 + $0x870] sm:$0xff]
        %v4532 = vld [vmem:[%s3 + $0x878] sm:$0xff]
        %v4533 = vld [vmem:[%s3 + $0x880] sm:$0xff]
        %v4534 = vld [vmem:[%s3 + $0x888] sm:$0xff]
        %v4535 = vld [vmem:[%s3 + $0x890] sm:$0xff]
        %v4536 = vld [vmem:[%s3 + $0x898] sm:$0xff]
        %v4537 = vld [vmem:[%s3 + $0x8a0] sm:$0xff]
        %v4538 = vld [vmem:[%s3 + $0x8a8] sm:$0xff]
        %v4539 = vld [vmem:[%s3 + $0x8b0] sm:$0xff]
        %v4540 = vld [vmem:[%s3 + $0x8b8] sm:$0xff]
        %v4541 = vld [vmem:[%s3 + $0x8c0] sm:$0xff]
        %v4542 = vld [vmem:[%s3 + $0x8c8] sm:$0xff]
        %v4543 = vld [vmem:[%s3 + $0x8d0] sm:$0xff]
        %v4544 = vld [vmem:[%s3 + $0x8d8] sm:$0xff]
        %v4545 = vld [vmem:[%s3 + $0x8e0] sm:$0xff]
        %v4546 = vld [vmem:[%s3 + $0x8e8] sm:$0xff]
        %v4547 = vld [vmem:[%s3 + $0x8f0] sm:$0xff]
        %v4548 = vld [vmem:[%s3 + $0x8f8] sm:$0xff]
        %v4549 = vld [vmem:[%s3 + $0x900] sm:$0xff]
        %v4550 = vld [vmem:[%s3 + $0x908] sm:$0xff]
        %v4551 = vld [vmem:[%s3 + $0x910] sm:$0xff]
        %v4552 = vld [vmem:[%s3 + $0x918] sm:$0xff]
        %v4553 = vld [vmem:[%s3 + $0x920] sm:$0xff]
        %v4554 = vld [vmem:[%s3 + $0x928] sm:$0xff]
        %v4555 = vld [vmem:[%s3 + $0x930] sm:$0xff]
        %v4556 = vld [vmem:[%s3 + $0x938] sm:$0xff]
        %v4557 = vld [vmem:[%s3 + $0x940] sm:$0xff]
        %v4558 = vld [vmem:[%s3 + $0x948] sm:$0xff]
        %v4559 = vld [vmem:[%s3 + $0x950] sm:$0xff]
        %v4560 = vld [vmem:[%s3 + $0x958] sm:$0xff]
        %v4561 = vld [vmem:[%s3 + $0x960] sm:$0xff]
        %v4562 = vld [vmem:[%s3 + $0x968] sm:$0xff]
        %v4563 = vld [vmem:[%s3 + $0x970] sm:$0xff]
        %v4564 = vld [vmem:[%s3 + $0x978] sm:$0xff]
        %v4565 = vld [vmem:[%s3 + $0x980] sm:$0xff]
        %v4566 = vld [vmem:[%s3 + $0x988] sm:$0xff]
        %v4567 = vld [vmem:[%s3 + $0x990] sm:$0xff]
        %v4568 = vld [vmem:[%s3 + $0x998] sm:$0xff]
        %v4569 = vld [vmem:[%s3 + $0x9a0] sm:$0xff]
        %v4570 = vld [vmem:[%s3 + $0x9a8] sm:$0xff]
        %v4571 = vld [vmem:[%s3 + $0x9b0] sm:$0xff]
        %v4572 = vld [vmem:[%s3 + $0x9b8] sm:$0xff]
        %v4573 = vld [vmem:[%s3 + $0x9c0] sm:$0xff]
        %v4574 = vld [vmem:[%s3 + $0x9c8] sm:$0xff]
        %v4575 = vld [vmem:[%s3 + $0x9d0] sm:$0xff]
        %v4576 = vld [vmem:[%s3 + $0x9d8] sm:$0xff]
        %v4577 = vld [vmem:[%s3 + $0x9e0] sm:$0xff]
        %v4578 = vld [vmem:[%s3 + $0x9e8] sm:$0xff]
        %v4579 = vld [vmem:[%s3 + $0x9f0] sm:$0xff]
        %v4580 = vld [vmem:[%s3 + $0x9f8] sm:$0xff]
        %v4581 = vld [vmem:[%s3 + $0xa00] sm:$0xff]
        %v4582 = vld [vmem:[%s3 + $0xa08] sm:$0xff]
        %v4583 = vld [vmem:[%s3 + $0xa10] sm:$0xff]
        %v4584 = vld [vmem:[%s3 + $0xa18] sm:$0xff]
        %v4585 = vld [vmem:[%s3 + $0xa20] sm:$0xff]
        %v4586 = vld [vmem:[%s3 + $0xa28] sm:$0xff]
        %v4587 = vld [vmem:[%s3 + $0xa30] sm:$0xff]
        %v4588 = vld [vmem:[%s3 + $0xa38] sm:$0xff]
        %v4589 = vld [vmem:[%s3 + $0xa40] sm:$0xff]
        %v4590 = vld [vmem:[%s3 + $0xa48] sm:$0xff]
        %v4591 = vld [vmem:[%s3 + $0xa50] sm:$0xff]
        %v4592 = vld [vmem:[%s3 + $0xa58] sm:$0xff]
        %v4593 = vld [vmem:[%s3 + $0xa60] sm:$0xff]
        %v4594 = vld [vmem:[%s3 + $0xa68] sm:$0xff]
        %v4595 = vld [vmem:[%s3 + $0xa70] sm:$0xff]
        %v4596 = vld [vmem:[%s3 + $0xa78] sm:$0xff]
        %v4597 = vld [vmem:[%s3 + $0xa80] sm:$0xff]
        %v4598 = vld [vmem:[%s3 + $0xa88] sm:$0xff]
        %v4599 = vld [vmem:[%s3 + $0xa90] sm:$0xff]
        %v4600 = vld [vmem:[%s3 + $0xa98] sm:$0xff]
        %v4601 = vld [vmem:[%s3 + $0xaa0] sm:$0xff]
        %v4602 = vld [vmem:[%s3 + $0xaa8] sm:$0xff]
        %v4603 = vld [vmem:[%s3 + $0xab0] sm:$0xff]
        %v4604 = vld [vmem:[%s3 + $0xab8] sm:$0xff]
        %v4605 = vld [vmem:[%s3 + $0xac0] sm:$0xff]
        %v4606 = vld [vmem:[%s3 + $0xac8] sm:$0xff]
        %v4607 = vld [vmem:[%s3 + $0xad0] sm:$0xff]
        %v4608 = vld [vmem:[%s3 + $0xad8] sm:$0xff]
        %v4609 = vld [vmem:[%s3 + $0xae0] sm:$0xff]
        %v4610 = vld [vmem:[%s3 + $0xae8] sm:$0xff]
        %v4611 = vld [vmem:[%s3 + $0xaf0] sm:$0xff]
        %v4612 = vld [vmem:[%s3 + $0xaf8] sm:$0xff]
        %v4613 = vld [vmem:[%s3 + $0xb00] sm:$0xff]
        %v4614 = vld [vmem:[%s3 + $0xb08] sm:$0xff]
        %v4615 = vld [vmem:[%s3 + $0xb10] sm:$0xff]
        %v4616 = vld [vmem:[%s3 + $0xb18] sm:$0xff]
        %v4617 = vld [vmem:[%s3 + $0xb20] sm:$0xff]
        %v4618 = vld [vmem:[%s3 + $0xb28] sm:$0xff]
        %v4619 = vld [vmem:[%s3 + $0xb30] sm:$0xff]
        %v4620 = vld [vmem:[%s3 + $0xb38] sm:$0xff]
        %v4621 = vld [vmem:[%s3 + $0xb40] sm:$0xff]
        %v4622 = vld [vmem:[%s3 + $0xb48] sm:$0xff]
        %v4623 = vld [vmem:[%s3 + $0xb50] sm:$0xff]
        %v4624 = vld [vmem:[%s3 + $0xb58] sm:$0xff]
        %v4625 = vld [vmem:[%s3 + $0xb60] sm:$0xff]
        %v4626 = vld [vmem:[%s3 + $0xb68] sm:$0xff]
        %v4627 = vld [vmem:[%s3 + $0xb70] sm:$0xff]
        %v4628 = vld [vmem:[%s3 + $0xb78] sm:$0xff]
        %v4629 = vld [vmem:[%s3 + $0xb80] sm:$0xff]
        %v4630 = vld [vmem:[%s3 + $0xb88] sm:$0xff]
        %v4631 = vld [vmem:[%s3 + $0xb90] sm:$0xff]
        %v4632 = vld [vmem:[%s3 + $0xb98] sm:$0xff]
        %v4633 = vld [vmem:[%s3 + $0xba0] sm:$0xff]
        %v4634 = vld [vmem:[%s3 + $0xba8] sm:$0xff]
        %v4635 = vld [vmem:[%s3 + $0xbb0] sm:$0xff]
        %v4636 = vld [vmem:[%s3 + $0xbb8] sm:$0xff]
        %v4637 = vld [vmem:[%s3 + $0xbc0] sm:$0xff]
        %v4638 = vld [vmem:[%s3 + $0xbc8] sm:$0xff]
        %v4639 = vld [vmem:[%s3 + $0xbd0] sm:$0xff]
        %v4640 = vld [vmem:[%s3 + $0xbd8] sm:$0xff]
        %v4641 = vld [vmem:[%s3 + $0xbe0] sm:$0xff]
        %v4642 = vld [vmem:[%s3 + $0xbe8] sm:$0xff]
        %v4643 = vld [vmem:[%s3 + $0xbf0] sm:$0xff]
        %v4644 = vld [vmem:[%s3 + $0xbf8] sm:$0xff]
        %v4645 = vld [vmem:[%s4] sm:$0xff]
        %v4646 = vld [vmem:[%s4 + $0x8] sm:$0xff]
        %v4647 = vld [vmem:[%s4 + $0x10] sm:$0xff]
        %v4648 = vld [vmem:[%s4 + $0x18] sm:$0xff]
        %v4649 = vld [vmem:[%s4 + $0x20] sm:$0xff]
        %v4650 = vld [vmem:[%s4 + $0x28] sm:$0xff]
        %v4651 = vld [vmem:[%s4 + $0x30] sm:$0xff]
        %v4652 = vld [vmem:[%s4 + $0x38] sm:$0xff]
        %v4653 = vld [vmem:[%s4 + $0x40] sm:$0xff]
        %v4654 = vld [vmem:[%s4 + $0x48] sm:$0xff]
        %v4655 = vld [vmem:[%s4 + $0x50] sm:$0xff]
        %v4656 = vld [vmem:[%s4 + $0x58] sm:$0xff]
        %v4657 = vld [vmem:[%s4 + $0x60] sm:$0xff]
        %v4658 = vld [vmem:[%s4 + $0x68] sm:$0xff]
        %v4659 = vld [vmem:[%s4 + $0x70] sm:$0xff]
        %v4660 = vld [vmem:[%s4 + $0x78] sm:$0xff]
        %v4661 = vld [vmem:[%s4 + $0x80] sm:$0xff]
        %v4662 = vld [vmem:[%s4 + $0x88] sm:$0xff]
        %v4663 = vld [vmem:[%s4 + $0x90] sm:$0xff]
        %v4664 = vld [vmem:[%s4 + $0x98] sm:$0xff]
        %v4665 = vld [vmem:[%s4 + $0xa0] sm:$0xff]
        %v4666 = vld [vmem:[%s4 + $0xa8] sm:$0xff]
        %v4667 = vld [vmem:[%s4 + $0xb0] sm:$0xff]
        %v4668 = vld [vmem:[%s4 + $0xb8] sm:$0xff]
        %v4669 = vld [vmem:[%s4 + $0xc0] sm:$0xff]
        %v4670 = vld [vmem:[%s4 + $0xc8] sm:$0xff]
        %v4671 = vld [vmem:[%s4 + $0xd0] sm:$0xff]
        %v4672 = vld [vmem:[%s4 + $0xd8] sm:$0xff]
        %v4673 = vld [vmem:[%s4 + $0xe0] sm:$0xff]
        %v4674 = vld [vmem:[%s4 + $0xe8] sm:$0xff]
        %v4675 = vld [vmem:[%s4 + $0xf0] sm:$0xff]
        %v4676 = vld [vmem:[%s4 + $0xf8] sm:$0xff]
        %v4677 = vld [vmem:[%s4 + $0x100] sm:$0xff]
        %v4678 = vld [vmem:[%s4 + $0x108] sm:$0xff]
        %v4679 = vld [vmem:[%s4 + $0x110] sm:$0xff]
        %v4680 = vld [vmem:[%s4 + $0x118] sm:$0xff]
        %v4681 = vld [vmem:[%s4 + $0x120] sm:$0xff]
        %v4682 = vld [vmem:[%s4 + $0x128] sm:$0xff]
        %v4683 = vld [vmem:[%s4 + $0x130] sm:$0xff]
        %v4684 = vld [vmem:[%s4 + $0x138] sm:$0xff]
        %v4685 = vld [vmem:[%s4 + $0x140] sm:$0xff]
        %v4686 = vld [vmem:[%s4 + $0x148] sm:$0xff]
        %v4687 = vld [vmem:[%s4 + $0x150] sm:$0xff]
        %v4688 = vld [vmem:[%s4 + $0x158] sm:$0xff]
        %v4689 = vld [vmem:[%s4 + $0x160] sm:$0xff]
        %v4690 = vld [vmem:[%s4 + $0x168] sm:$0xff]
        %v4691 = vld [vmem:[%s4 + $0x170] sm:$0xff]
        %v4692 = vld [vmem:[%s4 + $0x178] sm:$0xff]
        %v4693 = vld [vmem:[%s4 + $0x180] sm:$0xff]
        %v4694 = vld [vmem:[%s4 + $0x188] sm:$0xff]
        %v4695 = vld [vmem:[%s4 + $0x190] sm:$0xff]
        %v4696 = vld [vmem:[%s4 + $0x198] sm:$0xff]
        %v4697 = vld [vmem:[%s4 + $0x1a0] sm:$0xff]
        %v4698 = vld [vmem:[%s4 + $0x1a8] sm:$0xff]
        %v4699 = vld [vmem:[%s4 + $0x1b0] sm:$0xff]
        %v4700 = vld [vmem:[%s4 + $0x1b8] sm:$0xff]
        %v4701 = vld [vmem:[%s4 + $0x1c0] sm:$0xff]
        %v4702 = vld [vmem:[%s4 + $0x1c8] sm:$0xff]
        %v4703 = vld [vmem:[%s4 + $0x1d0] sm:$0xff]
        %v4704 = vld [vmem:[%s4 + $0x1d8] sm:$0xff]
        %v4705 = vld [vmem:[%s4 + $0x1e0] sm:$0xff]
        %v4706 = vld [vmem:[%s4 + $0x1e8] sm:$0xff]
        %v4707 = vld [vmem:[%s4 + $0x1f0] sm:$0xff]
        %v4708 = vld [vmem:[%s4 + $0x1f8] sm:$0xff]
        %v4709 = vld [vmem:[%s4 + $0x200] sm:$0xff]
        %v4710 = vld [vmem:[%s4 + $0x208] sm:$0xff]
        %v4711 = vld [vmem:[%s4 + $0x210] sm:$0xff]
        %v4712 = vld [vmem:[%s4 + $0x218] sm:$0xff]
        %v4713 = vld [vmem:[%s4 + $0x220] sm:$0xff]
        %v4714 = vld [vmem:[%s4 + $0x228] sm:$0xff]
        %v4715 = vld [vmem:[%s4 + $0x230] sm:$0xff]
        %v4716 = vld [vmem:[%s4 + $0x238] sm:$0xff]
        %v4717 = vld [vmem:[%s4 + $0x240] sm:$0xff]
        %v4718 = vld [vmem:[%s4 + $0x248] sm:$0xff]
        %v4719 = vld [vmem:[%s4 + $0x250] sm:$0xff]
        %v4720 = vld [vmem:[%s4 + $0x258] sm:$0xff]
        %v4721 = vld [vmem:[%s4 + $0x260] sm:$0xff]
        %v4722 = vld [vmem:[%s4 + $0x268] sm:$0xff]
        %v4723 = vld [vmem:[%s4 + $0x270] sm:$0xff]
        %v4724 = vld [vmem:[%s4 + $0x278] sm:$0xff]
        %v4725 = vld [vmem:[%s4 + $0x280] sm:$0xff]
        %v4726 = vld [vmem:[%s4 + $0x288] sm:$0xff]
        %v4727 = vld [vmem:[%s4 + $0x290] sm:$0xff]
        %v4728 = vld [vmem:[%s4 + $0x298] sm:$0xff]
        %v4729 = vld [vmem:[%s4 + $0x2a0] sm:$0xff]
        %v4730 = vld [vmem:[%s4 + $0x2a8] sm:$0xff]
        %v4731 = vld [vmem:[%s4 + $0x2b0] sm:$0xff]
        %v4732 = vld [vmem:[%s4 + $0x2b8] sm:$0xff]
        %v4733 = vld [vmem:[%s4 + $0x2c0] sm:$0xff]
        %v4734 = vld [vmem:[%s4 + $0x2c8] sm:$0xff]
        %v4735 = vld [vmem:[%s4 + $0x2d0] sm:$0xff]
        %v4736 = vld [vmem:[%s4 + $0x2d8] sm:$0xff]
        %v4737 = vld [vmem:[%s4 + $0x2e0] sm:$0xff]
        %v4738 = vld [vmem:[%s4 + $0x2e8] sm:$0xff]
        %v4739 = vld [vmem:[%s4 + $0x2f0] sm:$0xff]
        %v4740 = vld [vmem:[%s4 + $0x2f8] sm:$0xff]
        %v4741 = vld [vmem:[%s4 + $0x300] sm:$0xff]
        %v4742 = vld [vmem:[%s4 + $0x308] sm:$0xff]
        %v4743 = vld [vmem:[%s4 + $0x310] sm:$0xff]
        %v4744 = vld [vmem:[%s4 + $0x318] sm:$0xff]
        %v4745 = vld [vmem:[%s4 + $0x320] sm:$0xff]
        %v4746 = vld [vmem:[%s4 + $0x328] sm:$0xff]
        %v4747 = vld [vmem:[%s4 + $0x330] sm:$0xff]
        %v4748 = vld [vmem:[%s4 + $0x338] sm:$0xff]
        %v4749 = vld [vmem:[%s4 + $0x340] sm:$0xff]
        %v4750 = vld [vmem:[%s4 + $0x348] sm:$0xff]
        %v4751 = vld [vmem:[%s4 + $0x350] sm:$0xff]
        %v4752 = vld [vmem:[%s4 + $0x358] sm:$0xff]
        %v4753 = vld [vmem:[%s4 + $0x360] sm:$0xff]
        %v4754 = vld [vmem:[%s4 + $0x368] sm:$0xff]
        %v4755 = vld [vmem:[%s4 + $0x370] sm:$0xff]
        %v4756 = vld [vmem:[%s4 + $0x378] sm:$0xff]
        %v4757 = vld [vmem:[%s4 + $0x380] sm:$0xff]
        %v4758 = vld [vmem:[%s4 + $0x388] sm:$0xff]
        %v4759 = vld [vmem:[%s4 + $0x390] sm:$0xff]
        %v4760 = vld [vmem:[%s4 + $0x398] sm:$0xff]
        %v4761 = vld [vmem:[%s4 + $0x3a0] sm:$0xff]
        %v4762 = vld [vmem:[%s4 + $0x3a8] sm:$0xff]
        %v4763 = vld [vmem:[%s4 + $0x3b0] sm:$0xff]
        %v4764 = vld [vmem:[%s4 + $0x3b8] sm:$0xff]
        %v4765 = vld [vmem:[%s4 + $0x3c0] sm:$0xff]
        %v4766 = vld [vmem:[%s4 + $0x3c8] sm:$0xff]
        %v4767 = vld [vmem:[%s4 + $0x3d0] sm:$0xff]
        %v4768 = vld [vmem:[%s4 + $0x3d8] sm:$0xff]
        %v4769 = vld [vmem:[%s4 + $0x3e0] sm:$0xff]
        %v4770 = vld [vmem:[%s4 + $0x3e8] sm:$0xff]
        %v4771 = vld [vmem:[%s4 + $0x3f0] sm:$0xff]
        %v4772 = vld [vmem:[%s4 + $0x3f8] sm:$0xff]
        %v4773 = vld [vmem:[%s4 + $0x400] sm:$0xff]
        %v4774 = vld [vmem:[%s4 + $0x408] sm:$0xff]
        %v4775 = vld [vmem:[%s4 + $0x410] sm:$0xff]
        %v4776 = vld [vmem:[%s4 + $0x418] sm:$0xff]
        %v4777 = vld [vmem:[%s4 + $0x420] sm:$0xff]
        %v4778 = vld [vmem:[%s4 + $0x428] sm:$0xff]
        %v4779 = vld [vmem:[%s4 + $0x430] sm:$0xff]
        %v4780 = vld [vmem:[%s4 + $0x438] sm:$0xff]
        %v4781 = vld [vmem:[%s4 + $0x440] sm:$0xff]
        %v4782 = vld [vmem:[%s4 + $0x448] sm:$0xff]
        %v4783 = vld [vmem:[%s4 + $0x450] sm:$0xff]
        %v4784 = vld [vmem:[%s4 + $0x458] sm:$0xff]
        %v4785 = vld [vmem:[%s4 + $0x460] sm:$0xff]
        %v4786 = vld [vmem:[%s4 + $0x468] sm:$0xff]
        %v4787 = vld [vmem:[%s4 + $0x470] sm:$0xff]
        %v4788 = vld [vmem:[%s4 + $0x478] sm:$0xff]
        %v4789 = vld [vmem:[%s4 + $0x480] sm:$0xff]
        %v4790 = vld [vmem:[%s4 + $0x488] sm:$0xff]
        %v4791 = vld [vmem:[%s4 + $0x490] sm:$0xff]
        %v4792 = vld [vmem:[%s4 + $0x498] sm:$0xff]
        %v4793 = vld [vmem:[%s4 + $0x4a0] sm:$0xff]
        %v4794 = vld [vmem:[%s4 + $0x4a8] sm:$0xff]
        %v4795 = vld [vmem:[%s4 + $0x4b0] sm:$0xff]
        %v4796 = vld [vmem:[%s4 + $0x4b8] sm:$0xff]
        %v4797 = vld [vmem:[%s4 + $0x4c0] sm:$0xff]
        %v4798 = vld [vmem:[%s4 + $0x4c8] sm:$0xff]
        %v4799 = vld [vmem:[%s4 + $0x4d0] sm:$0xff]
        %v4800 = vld [vmem:[%s4 + $0x4d8] sm:$0xff]
        %v4801 = vld [vmem:[%s4 + $0x4e0] sm:$0xff]
        %v4802 = vld [vmem:[%s4 + $0x4e8] sm:$0xff]
        %v4803 = vld [vmem:[%s4 + $0x4f0] sm:$0xff]
        %v4804 = vld [vmem:[%s4 + $0x4f8] sm:$0xff]
        %v4805 = vld [vmem:[%s4 + $0x500] sm:$0xff]
        %v4806 = vld [vmem:[%s4 + $0x508] sm:$0xff]
        %v4807 = vld [vmem:[%s4 + $0x510] sm:$0xff]
        %v4808 = vld [vmem:[%s4 + $0x518] sm:$0xff]
        %v4809 = vld [vmem:[%s4 + $0x520] sm:$0xff]
        %v4810 = vld [vmem:[%s4 + $0x528] sm:$0xff]
        %v4811 = vld [vmem:[%s4 + $0x530] sm:$0xff]
        %v4812 = vld [vmem:[%s4 + $0x538] sm:$0xff]
        %v4813 = vld [vmem:[%s4 + $0x540] sm:$0xff]
        %v4814 = vld [vmem:[%s4 + $0x548] sm:$0xff]
        %v4815 = vld [vmem:[%s4 + $0x550] sm:$0xff]
        %v4816 = vld [vmem:[%s4 + $0x558] sm:$0xff]
        %v4817 = vld [vmem:[%s4 + $0x560] sm:$0xff]
        %v4818 = vld [vmem:[%s4 + $0x568] sm:$0xff]
        %v4819 = vld [vmem:[%s4 + $0x570] sm:$0xff]
        %v4820 = vld [vmem:[%s4 + $0x578] sm:$0xff]
        %v4821 = vld [vmem:[%s4 + $0x580] sm:$0xff]
        %v4822 = vld [vmem:[%s4 + $0x588] sm:$0xff]
        %v4823 = vld [vmem:[%s4 + $0x590] sm:$0xff]
        %v4824 = vld [vmem:[%s4 + $0x598] sm:$0xff]
        %v4825 = vld [vmem:[%s4 + $0x5a0] sm:$0xff]
        %v4826 = vld [vmem:[%s4 + $0x5a8] sm:$0xff]
        %v4827 = vld [vmem:[%s4 + $0x5b0] sm:$0xff]
        %v4828 = vld [vmem:[%s4 + $0x5b8] sm:$0xff]
        %v4829 = vld [vmem:[%s4 + $0x5c0] sm:$0xff]
        %v4830 = vld [vmem:[%s4 + $0x5c8] sm:$0xff]
        %v4831 = vld [vmem:[%s4 + $0x5d0] sm:$0xff]
        %v4832 = vld [vmem:[%s4 + $0x5d8] sm:$0xff]
        %v4833 = vld [vmem:[%s4 + $0x5e0] sm:$0xff]
        %v4834 = vld [vmem:[%s4 + $0x5e8] sm:$0xff]
        %v4835 = vld [vmem:[%s4 + $0x5f0] sm:$0xff]
        %v4836 = vld [vmem:[%s4 + $0x5f8] sm:$0xff]
        %v5221 = vunpack.c.l.b16 %v4261
        %v5222 = vunpack.c.h.b16 %v4261
        %v5223 = vunpack.c.l.b16 %v4262
        %v5224 = vunpack.c.h.b16 %v4262
        %v5225 = vunpack.c.l.b16 %v4263
        %v5226 = vunpack.c.h.b16 %v4263
        %v5227 = vunpack.c.l.b16 %v4264
        %v5228 = vunpack.c.h.b16 %v4264
        %v5229 = vunpack.c.l.b16 %v4265
        %v5230 = vunpack.c.h.b16 %v4265
        %v5231 = vunpack.c.l.b16 %v4266
        %v5232 = vunpack.c.h.b16 %v4266
        %v5233 = vunpack.c.l.b16 %v4267
        %v5234 = vunpack.c.h.b16 %v4267
        %v5235 = vunpack.c.l.b16 %v4268
        %v5236 = vunpack.c.h.b16 %v4268
        %v5237 = vunpack.c.l.b16 %v4269
        %v5238 = vunpack.c.h.b16 %v4269
        %v5239 = vunpack.c.l.b16 %v4270
        %v5240 = vunpack.c.h.b16 %v4270
        %v5241 = vunpack.c.l.b16 %v4271
        %v5242 = vunpack.c.h.b16 %v4271
        %v5243 = vunpack.c.l.b16 %v4272
        %v5244 = vunpack.c.h.b16 %v4272
        %v5245 = vunpack.c.l.b16 %v4273
        %v5246 = vunpack.c.h.b16 %v4273
        %v5247 = vunpack.c.l.b16 %v4274
        %v5248 = vunpack.c.h.b16 %v4274
        %v5249 = vunpack.c.l.b16 %v4275
        %v5250 = vunpack.c.h.b16 %v4275
        %v5251 = vunpack.c.l.b16 %v4276
        %v5252 = vunpack.c.h.b16 %v4276
        %v5253 = vunpack.c.l.b16 %v4277
        %v5254 = vunpack.c.h.b16 %v4277
        %v5255 = vunpack.c.l.b16 %v4278
        %v5256 = vunpack.c.h.b16 %v4278
        %v5257 = vunpack.c.l.b16 %v4279
        %v5258 = vunpack.c.h.b16 %v4279
        %v5259 = vunpack.c.l.b16 %v4280
        %v5260 = vunpack.c.h.b16 %v4280
        %v5261 = vunpack.c.l.b16 %v4281
        %v5262 = vunpack.c.h.b16 %v4281
        %v5263 = vunpack.c.l.b16 %v4282
        %v5264 = vunpack.c.h.b16 %v4282
        %v5265 = vunpack.c.l.b16 %v4283
        %v5266 = vunpack.c.h.b16 %v4283
        %v5267 = vunpack.c.l.b16 %v4284
        %v5268 = vunpack.c.h.b16 %v4284
        %v5269 = vunpack.c.l.b16 %v4285
        %v5270 = vunpack.c.h.b16 %v4285
        %v5271 = vunpack.c.l.b16 %v4286
        %v5272 = vunpack.c.h.b16 %v4286
        %v5273 = vunpack.c.l.b16 %v4287
        %v5274 = vunpack.c.h.b16 %v4287
        %v5275 = vunpack.c.l.b16 %v4288
        %v5276 = vunpack.c.h.b16 %v4288
        %v5277 = vunpack.c.l.b16 %v4289
        %v5278 = vunpack.c.h.b16 %v4289
        %v5279 = vunpack.c.l.b16 %v4290
        %v5280 = vunpack.c.h.b16 %v4290
        %v5281 = vunpack.c.l.b16 %v4291
        %v5282 = vunpack.c.h.b16 %v4291
        %v5283 = vunpack.c.l.b16 %v4292
        %v5284 = vunpack.c.h.b16 %v4292
        %v5285 = vunpack.c.l.b16 %v4293
        %v5286 = vunpack.c.h.b16 %v4293
        %v5287 = vunpack.c.l.b16 %v4294
        %v5288 = vunpack.c.h.b16 %v4294
        %v5289 = vunpack.c.l.b16 %v4295
        %v5290 = vunpack.c.h.b16 %v4295
        %v5291 = vunpack.c.l.b16 %v4296
        %v5292 = vunpack.c.h.b16 %v4296
        %v5293 = vunpack.c.l.b16 %v4297
        %v5294 = vunpack.c.h.b16 %v4297
        %v5295 = vunpack.c.l.b16 %v4298
        %v5296 = vunpack.c.h.b16 %v4298
        %v5297 = vunpack.c.l.b16 %v4299
        %v5298 = vunpack.c.h.b16 %v4299
        %v5299 = vunpack.c.l.b16 %v4300
        %v5300 = vunpack.c.h.b16 %v4300
        %v5301 = vunpack.c.l.b16 %v4301
        %v5302 = vunpack.c.h.b16 %v4301
        %v5303 = vunpack.c.l.b16 %v4302
        %v5304 = vunpack.c.h.b16 %v4302
        %v5305 = vunpack.c.l.b16 %v4303
        %v5306 = vunpack.c.h.b16 %v4303
        %v5307 = vunpack.c.l.b16 %v4304
        %v5308 = vunpack.c.h.b16 %v4304
        %v5309 = vunpack.c.l.b16 %v4305
        %v5310 = vunpack.c.h.b16 %v4305
        %v5311 = vunpack.c.l.b16 %v4306
        %v5312 = vunpack.c.h.b16 %v4306
        %v5313 = vunpack.c.l.b16 %v4307
        %v5314 = vunpack.c.h.b16 %v4307
        %v5315 = vunpack.c.l.b16 %v4308
        %v5316 = vunpack.c.h.b16 %v4308
        %v5317 = vunpack.c.l.b16 %v4309
        %v5318 = vunpack.c.h.b16 %v4309
        %v5319 = vunpack.c.l.b16 %v4310
        %v5320 = vunpack.c.h.b16 %v4310
        %v5321 = vunpack.c.l.b16 %v4311
        %v5322 = vunpack.c.h.b16 %v4311
        %v5323 = vunpack.c.l.b16 %v4312
        %v5324 = vunpack.c.h.b16 %v4312
        %v5325 = vunpack.c.l.b16 %v4313
        %v5326 = vunpack.c.h.b16 %v4313
        %v5327 = vunpack.c.l.b16 %v4314
        %v5328 = vunpack.c.h.b16 %v4314
        %v5329 = vunpack.c.l.b16 %v4315
        %v5330 = vunpack.c.h.b16 %v4315
        %v5331 = vunpack.c.l.b16 %v4316
        %v5332 = vunpack.c.h.b16 %v4316
        %v5333 = vunpack.c.l.b16 %v4317
        %v5334 = vunpack.c.h.b16 %v4317
        %v5335 = vunpack.c.l.b16 %v4318
        %v5336 = vunpack.c.h.b16 %v4318
        %v5337 = vunpack.c.l.b16 %v4319
        %v5338 = vunpack.c.h.b16 %v4319
        %v5339 = vunpack.c.l.b16 %v4320
        %v5340 = vunpack.c.h.b16 %v4320
        %v5341 = vunpack.c.l.b16 %v4321
        %v5342 = vunpack.c.h.b16 %v4321
        %v5343 = vunpack.c.l.b16 %v4322
        %v5344 = vunpack.c.h.b16 %v4322
        %v5345 = vunpack.c.l.b16 %v4323
        %v5346 = vunpack.c.h.b16 %v4323
        %v5347 = vunpack.c.l.b16 %v4324
        %v5348 = vunpack.c.h.b16 %v4324
        %v5349 = vunpack.c.l.b16 %v4325
        %v5350 = vunpack.c.h.b16 %v4325
        %v5351 = vunpack.c.l.b16 %v4326
        %v5352 = vunpack.c.h.b16 %v4326
        %v5353 = vunpack.c.l.b16 %v4327
        %v5354 = vunpack.c.h.b16 %v4327
        %v5355 = vunpack.c.l.b16 %v4328
        %v5356 = vunpack.c.h.b16 %v4328
        %v5357 = vunpack.c.l.b16 %v4329
        %v5358 = vunpack.c.h.b16 %v4329
        %v5359 = vunpack.c.l.b16 %v4330
        %v5360 = vunpack.c.h.b16 %v4330
        %v5361 = vunpack.c.l.b16 %v4331
        %v5362 = vunpack.c.h.b16 %v4331
        %v5363 = vunpack.c.l.b16 %v4332
        %v5364 = vunpack.c.h.b16 %v4332
        %v5365 = vunpack.c.l.b16 %v4333
        %v5366 = vunpack.c.h.b16 %v4333
        %v5367 = vunpack.c.l.b16 %v4334
        %v5368 = vunpack.c.h.b16 %v4334
        %v5369 = vunpack.c.l.b16 %v4335
        %v5370 = vunpack.c.h.b16 %v4335
        %v5371 = vunpack.c.l.b16 %v4336
        %v5372 = vunpack.c.h.b16 %v4336
        %v5373 = vunpack.c.l.b16 %v4337
        %v5374 = vunpack.c.h.b16 %v4337
        %v5375 = vunpack.c.l.b16 %v4338
        %v5376 = vunpack.c.h.b16 %v4338
        %v5377 = vunpack.c.l.b16 %v4339
        %v5378 = vunpack.c.h.b16 %v4339
        %v5379 = vunpack.c.l.b16 %v4340
        %v5380 = vunpack.c.h.b16 %v4340
        %v5381 = vunpack.c.l.b16 %v4341
        %v5382 = vunpack.c.h.b16 %v4341
        %v5383 = vunpack.c.l.b16 %v4342
        %v5384 = vunpack.c.h.b16 %v4342
        %v5385 = vunpack.c.l.b16 %v4343
        %v5386 = vunpack.c.h.b16 %v4343
        %v5387 = vunpack.c.l.b16 %v4344
        %v5388 = vunpack.c.h.b16 %v4344
        %v5389 = vunpack.c.l.b16 %v4345
        %v5390 = vunpack.c.h.b16 %v4345
        %v5391 = vunpack.c.l.b16 %v4346
        %v5392 = vunpack.c.h.b16 %v4346
        %v5393 = vunpack.c.l.b16 %v4347
        %v5394 = vunpack.c.h.b16 %v4347
        %v5395 = vunpack.c.l.b16 %v4348
        %v5396 = vunpack.c.h.b16 %v4348
        %v5397 = vunpack.c.l.b16 %v4349
        %v5398 = vunpack.c.h.b16 %v4349
        %v5399 = vunpack.c.l.b16 %v4350
        %v5400 = vunpack.c.h.b16 %v4350
        %v5401 = vunpack.c.l.b16 %v4351
        %v5402 = vunpack.c.h.b16 %v4351
        %v5403 = vunpack.c.l.b16 %v4352
        %v5404 = vunpack.c.h.b16 %v4352
        %v5405 = vunpack.c.l.b16 %v4353
        %v5406 = vunpack.c.h.b16 %v4353
        %v5407 = vunpack.c.l.b16 %v4354
        %v5408 = vunpack.c.h.b16 %v4354
        %v5409 = vunpack.c.l.b16 %v4355
        %v5410 = vunpack.c.h.b16 %v4355
        %v5411 = vunpack.c.l.b16 %v4356
        %v5412 = vunpack.c.h.b16 %v4356
        %v5413 = vunpack.c.l.b16 %v4357
        %v5414 = vunpack.c.h.b16 %v4357
        %v5415 = vunpack.c.l.b16 %v4358
        %v5416 = vunpack.c.h.b16 %v4358
        %v5417 = vunpack.c.l.b16 %v4359
        %v5418 = vunpack.c.h.b16 %v4359
        %v5419 = vunpack.c.l.b16 %v4360
        %v5420 = vunpack.c.h.b16 %v4360
        %v5421 = vunpack.c.l.b16 %v4361
        %v5422 = vunpack.c.h.b16 %v4361
        %v5423 = vunpack.c.l.b16 %v4362
        %v5424 = vunpack.c.h.b16 %v4362
        %v5425 = vunpack.c.l.b16 %v4363
        %v5426 = vunpack.c.h.b16 %v4363
        %v5427 = vunpack.c.l.b16 %v4364
        %v5428 = vunpack.c.h.b16 %v4364
        %v5429 = vunpack.c.l.b16 %v4365
        %v5430 = vunpack.c.h.b16 %v4365
        %v5431 = vunpack.c.l.b16 %v4366
        %v5432 = vunpack.c.h.b16 %v4366
        %v5433 = vunpack.c.l.b16 %v4367
        %v5434 = vunpack.c.h.b16 %v4367
        %v5435 = vunpack.c.l.b16 %v4368
        %v5436 = vunpack.c.h.b16 %v4368
        %v5437 = vunpack.c.l.b16 %v4369
        %v5438 = vunpack.c.h.b16 %v4369
        %v5439 = vunpack.c.l.b16 %v4370
        %v5440 = vunpack.c.h.b16 %v4370
        %v5441 = vunpack.c.l.b16 %v4371
        %v5442 = vunpack.c.h.b16 %v4371
        %v5443 = vunpack.c.l.b16 %v4372
        %v5444 = vunpack.c.h.b16 %v4372
        %v5445 = vunpack.c.l.b16 %v4373
        %v5446 = vunpack.c.h.b16 %v4373
        %v5447 = vunpack.c.l.b16 %v4374
        %v5448 = vunpack.c.h.b16 %v4374
        %v5449 = vunpack.c.l.b16 %v4375
        %v5450 = vunpack.c.h.b16 %v4375
        %v5451 = vunpack.c.l.b16 %v4376
        %v5452 = vunpack.c.h.b16 %v4376
        %v5453 = vunpack.c.l.b16 %v4377
        %v5454 = vunpack.c.h.b16 %v4377
        %v5455 = vunpack.c.l.b16 %v4378
        %v5456 = vunpack.c.h.b16 %v4378
        %v5457 = vunpack.c.l.b16 %v4379
        %v5458 = vunpack.c.h.b16 %v4379
        %v5459 = vunpack.c.l.b16 %v4380
        %v5460 = vunpack.c.h.b16 %v4380
        %v5461 = vunpack.c.l.b16 %v4381
        %v5462 = vunpack.c.h.b16 %v4381
        %v5463 = vunpack.c.l.b16 %v4382
        %v5464 = vunpack.c.h.b16 %v4382
        %v5465 = vunpack.c.l.b16 %v4383
        %v5466 = vunpack.c.h.b16 %v4383
        %v5467 = vunpack.c.l.b16 %v4384
        %v5468 = vunpack.c.h.b16 %v4384
        %v5469 = vunpack.c.l.b16 %v4385
        %v5470 = vunpack.c.h.b16 %v4385
        %v5471 = vunpack.c.l.b16 %v4386
        %v5472 = vunpack.c.h.b16 %v4386
        %v5473 = vunpack.c.l.b16 %v4387
        %v5474 = vunpack.c.h.b16 %v4387
        %v5475 = vunpack.c.l.b16 %v4388
        %v5476 = vunpack.c.h.b16 %v4388
        %v5477 = vunpack.c.l.b16 %v4389
        %v5478 = vunpack.c.h.b16 %v4389
        %v5479 = vunpack.c.l.b16 %v4390
        %v5480 = vunpack.c.h.b16 %v4390
        %v5481 = vunpack.c.l.b16 %v4391
        %v5482 = vunpack.c.h.b16 %v4391
        %v5483 = vunpack.c.l.b16 %v4392
        %v5484 = vunpack.c.h.b16 %v4392
        %v5485 = vunpack.c.l.b16 %v4393
        %v5486 = vunpack.c.h.b16 %v4393
        %v5487 = vunpack.c.l.b16 %v4394
        %v5488 = vunpack.c.h.b16 %v4394
        %v5489 = vunpack.c.l.b16 %v4395
        %v5490 = vunpack.c.h.b16 %v4395
        %v5491 = vunpack.c.l.b16 %v4396
        %v5492 = vunpack.c.h.b16 %v4396
        %v5493 = vunpack.c.l.b16 %v4397
        %v5494 = vunpack.c.h.b16 %v4397
        %v5495 = vunpack.c.l.b16 %v4398
        %v5496 = vunpack.c.h.b16 %v4398
        %v5497 = vunpack.c.l.b16 %v4399
        %v5498 = vunpack.c.h.b16 %v4399
        %v5499 = vunpack.c.l.b16 %v4400
        %v5500 = vunpack.c.h.b16 %v4400
        %v5501 = vunpack.c.l.b16 %v4401
        %v5502 = vunpack.c.h.b16 %v4401
        %v5503 = vunpack.c.l.b16 %v4402
        %v5504 = vunpack.c.h.b16 %v4402
        %v5505 = vunpack.c.l.b16 %v4403
        %v5506 = vunpack.c.h.b16 %v4403
        %v5507 = vunpack.c.l.b16 %v4404
        %v5508 = vunpack.c.h.b16 %v4404
        %v5509 = vunpack.c.l.b16 %v4405
        %v5510 = vunpack.c.h.b16 %v4405
        %v5511 = vunpack.c.l.b16 %v4406
        %v5512 = vunpack.c.h.b16 %v4406
        %v5513 = vunpack.c.l.b16 %v4407
        %v5514 = vunpack.c.h.b16 %v4407
        %v5515 = vunpack.c.l.b16 %v4408
        %v5516 = vunpack.c.h.b16 %v4408
        %v5517 = vunpack.c.l.b16 %v4409
        %v5518 = vunpack.c.h.b16 %v4409
        %v5519 = vunpack.c.l.b16 %v4410
        %v5520 = vunpack.c.h.b16 %v4410
        %v5521 = vunpack.c.l.b16 %v4411
        %v5522 = vunpack.c.h.b16 %v4411
        %v5523 = vunpack.c.l.b16 %v4412
        %v5524 = vunpack.c.h.b16 %v4412
        %v5525 = vunpack.c.l.b16 %v4413
        %v5526 = vunpack.c.h.b16 %v4413
        %v5527 = vunpack.c.l.b16 %v4414
        %v5528 = vunpack.c.h.b16 %v4414
        %v5529 = vunpack.c.l.b16 %v4415
        %v5530 = vunpack.c.h.b16 %v4415
        %v5531 = vunpack.c.l.b16 %v4416
        %v5532 = vunpack.c.h.b16 %v4416
        %v5533 = vunpack.c.l.b16 %v4417
        %v5534 = vunpack.c.h.b16 %v4417
        %v5535 = vunpack.c.l.b16 %v4418
        %v5536 = vunpack.c.h.b16 %v4418
        %v5537 = vunpack.c.l.b16 %v4419
        %v5538 = vunpack.c.h.b16 %v4419
        %v5539 = vunpack.c.l.b16 %v4420
        %v5540 = vunpack.c.h.b16 %v4420
        %v5541 = vunpack.c.l.b16 %v4421
        %v5542 = vunpack.c.h.b16 %v4421
        %v5543 = vunpack.c.l.b16 %v4422
        %v5544 = vunpack.c.h.b16 %v4422
        %v5545 = vunpack.c.l.b16 %v4423
        %v5546 = vunpack.c.h.b16 %v4423
        %v5547 = vunpack.c.l.b16 %v4424
        %v5548 = vunpack.c.h.b16 %v4424
        %v5549 = vunpack.c.l.b16 %v4425
        %v5550 = vunpack.c.h.b16 %v4425
        %v5551 = vunpack.c.l.b16 %v4426
        %v5552 = vunpack.c.h.b16 %v4426
        %v5553 = vunpack.c.l.b16 %v4427
        %v5554 = vunpack.c.h.b16 %v4427
        %v5555 = vunpack.c.l.b16 %v4428
        %v5556 = vunpack.c.h.b16 %v4428
        %v5557 = vunpack.c.l.b16 %v4429
        %v5558 = vunpack.c.h.b16 %v4429
        %v5559 = vunpack.c.l.b16 %v4430
        %v5560 = vunpack.c.h.b16 %v4430
        %v5561 = vunpack.c.l.b16 %v4431
        %v5562 = vunpack.c.h.b16 %v4431
        %v5563 = vunpack.c.l.b16 %v4432
        %v5564 = vunpack.c.h.b16 %v4432
        %v5565 = vunpack.c.l.b16 %v4433
        %v5566 = vunpack.c.h.b16 %v4433
        %v5567 = vunpack.c.l.b16 %v4434
        %v5568 = vunpack.c.h.b16 %v4434
        %v5569 = vunpack.c.l.b16 %v4435
        %v5570 = vunpack.c.h.b16 %v4435
        %v5571 = vunpack.c.l.b16 %v4436
        %v5572 = vunpack.c.h.b16 %v4436
        %v5573 = vunpack.c.l.b16 %v4437
        %v5574 = vunpack.c.h.b16 %v4437
        %v5575 = vunpack.c.l.b16 %v4438
        %v5576 = vunpack.c.h.b16 %v4438
        %v5577 = vunpack.c.l.b16 %v4439
        %v5578 = vunpack.c.h.b16 %v4439
        %v5579 = vunpack.c.l.b16 %v4440
        %v5580 = vunpack.c.h.b16 %v4440
        %v5581 = vunpack.c.l.b16 %v4441
        %v5582 = vunpack.c.h.b16 %v4441
        %v5583 = vunpack.c.l.b16 %v4442
        %v5584 = vunpack.c.h.b16 %v4442
        %v5585 = vunpack.c.l.b16 %v4443
        %v5586 = vunpack.c.h.b16 %v4443
        %v5587 = vunpack.c.l.b16 %v4444
        %v5588 = vunpack.c.h.b16 %v4444
        %v5589 = vunpack.c.l.b16 %v4445
        %v5590 = vunpack.c.h.b16 %v4445
        %v5591 = vunpack.c.l.b16 %v4446
        %v5592 = vunpack.c.h.b16 %v4446
        %v5593 = vunpack.c.l.b16 %v4447
        %v5594 = vunpack.c.h.b16 %v4447
        %v5595 = vunpack.c.l.b16 %v4448
        %v5596 = vunpack.c.h.b16 %v4448
        %v5597 = vunpack.c.l.b16 %v4449
        %v5598 = vunpack.c.h.b16 %v4449
        %v5599 = vunpack.c.l.b16 %v4450
        %v5600 = vunpack.c.h.b16 %v4450
        %v5601 = vunpack.c.l.b16 %v4451
        %v5602 = vunpack.c.h.b16 %v4451
        %v5603 = vunpack.c.l.b16 %v4452
        %v5604 = vunpack.c.h.b16 %v4452
        %v5605 = vunpack.c.l.b16 %v4453
        %v5606 = vunpack.c.h.b16 %v4453
        %v5607 = vunpack.c.l.b16 %v4454
        %v5608 = vunpack.c.h.b16 %v4454
        %v5609 = vunpack.c.l.b16 %v4455
        %v5610 = vunpack.c.h.b16 %v4455
        %v5611 = vunpack.c.l.b16 %v4456
        %v5612 = vunpack.c.h.b16 %v4456
        %v5613 = vunpack.c.l.b16 %v4457
        %v5614 = vunpack.c.h.b16 %v4457
        %v5615 = vunpack.c.l.b16 %v4458
        %v5616 = vunpack.c.h.b16 %v4458
        %v5617 = vunpack.c.l.b16 %v4459
        %v5618 = vunpack.c.h.b16 %v4459
        %v5619 = vunpack.c.l.b16 %v4460
        %v5620 = vunpack.c.h.b16 %v4460
        %v5621 = vunpack.c.l.b16 %v4461
        %v5622 = vunpack.c.h.b16 %v4461
        %v5623 = vunpack.c.l.b16 %v4462
        %v5624 = vunpack.c.h.b16 %v4462
        %v5625 = vunpack.c.l.b16 %v4463
        %v5626 = vunpack.c.h.b16 %v4463
        %v5627 = vunpack.c.l.b16 %v4464
        %v5628 = vunpack.c.h.b16 %v4464
        %v5629 = vunpack.c.l.b16 %v4465
        %v5630 = vunpack.c.h.b16 %v4465
        %v5631 = vunpack.c.l.b16 %v4466
        %v5632 = vunpack.c.h.b16 %v4466
        %v5633 = vunpack.c.l.b16 %v4467
        %v5634 = vunpack.c.h.b16 %v4467
        %v5635 = vunpack.c.l.b16 %v4468
        %v5636 = vunpack.c.h.b16 %v4468
        %v5637 = vunpack.c.l.b16 %v4469
        %v5638 = vunpack.c.h.b16 %v4469
        %v5639 = vunpack.c.l.b16 %v4470
        %v5640 = vunpack.c.h.b16 %v4470
        %v5641 = vunpack.c.l.b16 %v4471
        %v5642 = vunpack.c.h.b16 %v4471
        %v5643 = vunpack.c.l.b16 %v4472
        %v5644 = vunpack.c.h.b16 %v4472
        %v5645 = vunpack.c.l.b16 %v4473
        %v5646 = vunpack.c.h.b16 %v4473
        %v5647 = vunpack.c.l.b16 %v4474
        %v5648 = vunpack.c.h.b16 %v4474
        %v5649 = vunpack.c.l.b16 %v4475
        %v5650 = vunpack.c.h.b16 %v4475
        %v5651 = vunpack.c.l.b16 %v4476
        %v5652 = vunpack.c.h.b16 %v4476
        %v5653 = vunpack.c.l.b16 %v4477
        %v5654 = vunpack.c.h.b16 %v4477
        %v5655 = vunpack.c.l.b16 %v4478
        %v5656 = vunpack.c.h.b16 %v4478
        %v5657 = vunpack.c.l.b16 %v4479
        %v5658 = vunpack.c.h.b16 %v4479
        %v5659 = vunpack.c.l.b16 %v4480
        %v5660 = vunpack.c.h.b16 %v4480
        %v5661 = vunpack.c.l.b16 %v4481
        %v5662 = vunpack.c.h.b16 %v4481
        %v5663 = vunpack.c.l.b16 %v4482
        %v5664 = vunpack.c.h.b16 %v4482
        %v5665 = vunpack.c.l.b16 %v4483
        %v5666 = vunpack.c.h.b16 %v4483
        %v5667 = vunpack.c.l.b16 %v4484
        %v5668 = vunpack.c.h.b16 %v4484
        %v5669 = vunpack.c.l.b16 %v4485
        %v5670 = vunpack.c.h.b16 %v4485
        %v5671 = vunpack.c.l.b16 %v4486
        %v5672 = vunpack.c.h.b16 %v4486
        %v5673 = vunpack.c.l.b16 %v4487
        %v5674 = vunpack.c.h.b16 %v4487
        %v5675 = vunpack.c.l.b16 %v4488
        %v5676 = vunpack.c.h.b16 %v4488
        %v5677 = vunpack.c.l.b16 %v4489
        %v5678 = vunpack.c.h.b16 %v4489
        %v5679 = vunpack.c.l.b16 %v4490
        %v5680 = vunpack.c.h.b16 %v4490
        %v5681 = vunpack.c.l.b16 %v4491
        %v5682 = vunpack.c.h.b16 %v4491
        %v5683 = vunpack.c.l.b16 %v4492
        %v5684 = vunpack.c.h.b16 %v4492
        %v5685 = vunpack.c.l.b16 %v4493
        %v5686 = vunpack.c.h.b16 %v4493
        %v5687 = vunpack.c.l.b16 %v4494
        %v5688 = vunpack.c.h.b16 %v4494
        %v5689 = vunpack.c.l.b16 %v4495
        %v5690 = vunpack.c.h.b16 %v4495
        %v5691 = vunpack.c.l.b16 %v4496
        %v5692 = vunpack.c.h.b16 %v4496
        %v5693 = vunpack.c.l.b16 %v4497
        %v5694 = vunpack.c.h.b16 %v4497
        %v5695 = vunpack.c.l.b16 %v4498
        %v5696 = vunpack.c.h.b16 %v4498
        %v5697 = vunpack.c.l.b16 %v4499
        %v5698 = vunpack.c.h.b16 %v4499
        %v5699 = vunpack.c.l.b16 %v4500
        %v5700 = vunpack.c.h.b16 %v4500
        %v5701 = vunpack.c.l.b16 %v4501
        %v5702 = vunpack.c.h.b16 %v4501
        %v5703 = vunpack.c.l.b16 %v4502
        %v5704 = vunpack.c.h.b16 %v4502
        %v5705 = vunpack.c.l.b16 %v4503
        %v5706 = vunpack.c.h.b16 %v4503
        %v5707 = vunpack.c.l.b16 %v4504
        %v5708 = vunpack.c.h.b16 %v4504
        %v5709 = vunpack.c.l.b16 %v4505
        %v5710 = vunpack.c.h.b16 %v4505
        %v5711 = vunpack.c.l.b16 %v4506
        %v5712 = vunpack.c.h.b16 %v4506
        %v5713 = vunpack.c.l.b16 %v4507
        %v5714 = vunpack.c.h.b16 %v4507
        %v5715 = vunpack.c.l.b16 %v4508
        %v5716 = vunpack.c.h.b16 %v4508
        %v5717 = vunpack.c.l.b16 %v4509
        %v5718 = vunpack.c.h.b16 %v4509
        %v5719 = vunpack.c.l.b16 %v4510
        %v5720 = vunpack.c.h.b16 %v4510
        %v5721 = vunpack.c.l.b16 %v4511
        %v5722 = vunpack.c.h.b16 %v4511
        %v5723 = vunpack.c.l.b16 %v4512
        %v5724 = vunpack.c.h.b16 %v4512
        %v5725 = vunpack.c.l.b16 %v4513
        %v5726 = vunpack.c.h.b16 %v4513
        %v5727 = vunpack.c.l.b16 %v4514
        %v5728 = vunpack.c.h.b16 %v4514
        %v5729 = vunpack.c.l.b16 %v4515
        %v5730 = vunpack.c.h.b16 %v4515
        %v5731 = vunpack.c.l.b16 %v4516
        %v5732 = vunpack.c.h.b16 %v4516
        %v5733 = vunpack.c.l.b16 %v4517
        %v5734 = vunpack.c.h.b16 %v4517
        %v5735 = vunpack.c.l.b16 %v4518
        %v5736 = vunpack.c.h.b16 %v4518
        %v5737 = vunpack.c.l.b16 %v4519
        %v5738 = vunpack.c.h.b16 %v4519
        %v5739 = vunpack.c.l.b16 %v4520
        %v5740 = vunpack.c.h.b16 %v4520
        %v5741 = vunpack.c.l.b16 %v4521
        %v5742 = vunpack.c.h.b16 %v4521
        %v5743 = vunpack.c.l.b16 %v4522
        %v5744 = vunpack.c.h.b16 %v4522
        %v5745 = vunpack.c.l.b16 %v4523
        %v5746 = vunpack.c.h.b16 %v4523
        %v5747 = vunpack.c.l.b16 %v4524
        %v5748 = vunpack.c.h.b16 %v4524
        %v5749 = vunpack.c.l.b16 %v4525
        %v5750 = vunpack.c.h.b16 %v4525
        %v5751 = vunpack.c.l.b16 %v4526
        %v5752 = vunpack.c.h.b16 %v4526
        %v5753 = vunpack.c.l.b16 %v4527
        %v5754 = vunpack.c.h.b16 %v4527
        %v5755 = vunpack.c.l.b16 %v4528
        %v5756 = vunpack.c.h.b16 %v4528
        %v5757 = vunpack.c.l.b16 %v4529
        %v5758 = vunpack.c.h.b16 %v4529
        %v5759 = vunpack.c.l.b16 %v4530
        %v5760 = vunpack.c.h.b16 %v4530
        %v5761 = vunpack.c.l.b16 %v4531
        %v5762 = vunpack.c.h.b16 %v4531
        %v5763 = vunpack.c.l.b16 %v4532
        %v5764 = vunpack.c.h.b16 %v4532
        %v5765 = vunpack.c.l.b16 %v4533
        %v5766 = vunpack.c.h.b16 %v4533
        %v5767 = vunpack.c.l.b16 %v4534
        %v5768 = vunpack.c.h.b16 %v4534
        %v5769 = vunpack.c.l.b16 %v4535
        %v5770 = vunpack.c.h.b16 %v4535
        %v5771 = vunpack.c.l.b16 %v4536
        %v5772 = vunpack.c.h.b16 %v4536
        %v5773 = vunpack.c.l.b16 %v4537
        %v5774 = vunpack.c.h.b16 %v4537
        %v5775 = vunpack.c.l.b16 %v4538
        %v5776 = vunpack.c.h.b16 %v4538
        %v5777 = vunpack.c.l.b16 %v4539
        %v5778 = vunpack.c.h.b16 %v4539
        %v5779 = vunpack.c.l.b16 %v4540
        %v5780 = vunpack.c.h.b16 %v4540
        %v5781 = vunpack.c.l.b16 %v4541
        %v5782 = vunpack.c.h.b16 %v4541
        %v5783 = vunpack.c.l.b16 %v4542
        %v5784 = vunpack.c.h.b16 %v4542
        %v5785 = vunpack.c.l.b16 %v4543
        %v5786 = vunpack.c.h.b16 %v4543
        %v5787 = vunpack.c.l.b16 %v4544
        %v5788 = vunpack.c.h.b16 %v4544
        %v5789 = vunpack.c.l.b16 %v4545
        %v5790 = vunpack.c.h.b16 %v4545
        %v5791 = vunpack.c.l.b16 %v4546
        %v5792 = vunpack.c.h.b16 %v4546
        %v5793 = vunpack.c.l.b16 %v4547
        %v5794 = vunpack.c.h.b16 %v4547
        %v5795 = vunpack.c.l.b16 %v4548
        %v5796 = vunpack.c.h.b16 %v4548
        %v5797 = vunpack.c.l.b16 %v4549
        %v5798 = vunpack.c.h.b16 %v4549
        %v5799 = vunpack.c.l.b16 %v4550
        %v5800 = vunpack.c.h.b16 %v4550
        %v5801 = vunpack.c.l.b16 %v4551
        %v5802 = vunpack.c.h.b16 %v4551
        %v5803 = vunpack.c.l.b16 %v4552
        %v5804 = vunpack.c.h.b16 %v4552
        %v5805 = vunpack.c.l.b16 %v4553
        %v5806 = vunpack.c.h.b16 %v4553
        %v5807 = vunpack.c.l.b16 %v4554
        %v5808 = vunpack.c.h.b16 %v4554
        %v5809 = vunpack.c.l.b16 %v4555
        %v5810 = vunpack.c.h.b16 %v4555
        %v5811 = vunpack.c.l.b16 %v4556
        %v5812 = vunpack.c.h.b16 %v4556
        %v5813 = vunpack.c.l.b16 %v4557
        %v5814 = vunpack.c.h.b16 %v4557
        %v5815 = vunpack.c.l.b16 %v4558
        %v5816 = vunpack.c.h.b16 %v4558
        %v5817 = vunpack.c.l.b16 %v4559
        %v5818 = vunpack.c.h.b16 %v4559
        %v5819 = vunpack.c.l.b16 %v4560
        %v5820 = vunpack.c.h.b16 %v4560
        %v5821 = vunpack.c.l.b16 %v4561
        %v5822 = vunpack.c.h.b16 %v4561
        %v5823 = vunpack.c.l.b16 %v4562
        %v5824 = vunpack.c.h.b16 %v4562
        %v5825 = vunpack.c.l.b16 %v4563
        %v5826 = vunpack.c.h.b16 %v4563
        %v5827 = vunpack.c.l.b16 %v4564
        %v5828 = vunpack.c.h.b16 %v4564
        %v5829 = vunpack.c.l.b16 %v4565
        %v5830 = vunpack.c.h.b16 %v4565
        %v5831 = vunpack.c.l.b16 %v4566
        %v5832 = vunpack.c.h.b16 %v4566
        %v5833 = vunpack.c.l.b16 %v4567
        %v5834 = vunpack.c.h.b16 %v4567
        %v5835 = vunpack.c.l.b16 %v4568
        %v5836 = vunpack.c.h.b16 %v4568
        %v5837 = vunpack.c.l.b16 %v4569
        %v5838 = vunpack.c.h.b16 %v4569
        %v5839 = vunpack.c.l.b16 %v4570
        %v5840 = vunpack.c.h.b16 %v4570
        %v5841 = vunpack.c.l.b16 %v4571
        %v5842 = vunpack.c.h.b16 %v4571
        %v5843 = vunpack.c.l.b16 %v4572
        %v5844 = vunpack.c.h.b16 %v4572
        %v5845 = vunpack.c.l.b16 %v4573
        %v5846 = vunpack.c.h.b16 %v4573
        %v5847 = vunpack.c.l.b16 %v4574
        %v5848 = vunpack.c.h.b16 %v4574
        %v5849 = vunpack.c.l.b16 %v4575
        %v5850 = vunpack.c.h.b16 %v4575
        %v5851 = vunpack.c.l.b16 %v4576
        %v5852 = vunpack.c.h.b16 %v4576
        %v5853 = vunpack.c.l.b16 %v4577
        %v5854 = vunpack.c.h.b16 %v4577
        %v5855 = vunpack.c.l.b16 %v4578
        %v5856 = vunpack.c.h.b16 %v4578
        %v5857 = vunpack.c.l.b16 %v4579
        %v5858 = vunpack.c.h.b16 %v4579
        %v5859 = vunpack.c.l.b16 %v4580
        %v5860 = vunpack.c.h.b16 %v4580
        %v5861 = vunpack.c.l.b16 %v4581
        %v5862 = vunpack.c.h.b16 %v4581
        %v5863 = vunpack.c.l.b16 %v4582
        %v5864 = vunpack.c.h.b16 %v4582
        %v5865 = vunpack.c.l.b16 %v4583
        %v5866 = vunpack.c.h.b16 %v4583
        %v5867 = vunpack.c.l.b16 %v4584
        %v5868 = vunpack.c.h.b16 %v4584
        %v5869 = vunpack.c.l.b16 %v4585
        %v5870 = vunpack.c.h.b16 %v4585
        %v5871 = vunpack.c.l.b16 %v4586
        %v5872 = vunpack.c.h.b16 %v4586
        %v5873 = vunpack.c.l.b16 %v4587
        %v5874 = vunpack.c.h.b16 %v4587
        %v5875 = vunpack.c.l.b16 %v4588
        %v5876 = vunpack.c.h.b16 %v4588
        %v5877 = vunpack.c.l.b16 %v4589
        %v5878 = vunpack.c.h.b16 %v4589
        %v5879 = vunpack.c.l.b16 %v4590
        %v5880 = vunpack.c.h.b16 %v4590
        %v5881 = vunpack.c.l.b16 %v4591
        %v5882 = vunpack.c.h.b16 %v4591
        %v5883 = vunpack.c.l.b16 %v4592
        %v5884 = vunpack.c.h.b16 %v4592
        %v5885 = vunpack.c.l.b16 %v4593
        %v5886 = vunpack.c.h.b16 %v4593
        %v5887 = vunpack.c.l.b16 %v4594
        %v5888 = vunpack.c.h.b16 %v4594
        %v5889 = vunpack.c.l.b16 %v4595
        %v5890 = vunpack.c.h.b16 %v4595
        %v5891 = vunpack.c.l.b16 %v4596
        %v5892 = vunpack.c.h.b16 %v4596
        %v5893 = vunpack.c.l.b16 %v4597
        %v5894 = vunpack.c.h.b16 %v4597
        %v5895 = vunpack.c.l.b16 %v4598
        %v5896 = vunpack.c.h.b16 %v4598
        %v5897 = vunpack.c.l.b16 %v4599
        %v5898 = vunpack.c.h.b16 %v4599
        %v5899 = vunpack.c.l.b16 %v4600
        %v5900 = vunpack.c.h.b16 %v4600
        %v5901 = vunpack.c.l.b16 %v4601
        %v5902 = vunpack.c.h.b16 %v4601
        %v5903 = vunpack.c.l.b16 %v4602
        %v5904 = vunpack.c.h.b16 %v4602
        %v5905 = vunpack.c.l.b16 %v4603
        %v5906 = vunpack.c.h.b16 %v4603
        %v5907 = vunpack.c.l.b16 %v4604
        %v5908 = vunpack.c.h.b16 %v4604
        %v5909 = vunpack.c.l.b16 %v4605
        %v5910 = vunpack.c.h.b16 %v4605
        %v5911 = vunpack.c.l.b16 %v4606
        %v5912 = vunpack.c.h.b16 %v4606
        %v5913 = vunpack.c.l.b16 %v4607
        %v5914 = vunpack.c.h.b16 %v4607
        %v5915 = vunpack.c.l.b16 %v4608
        %v5916 = vunpack.c.h.b16 %v4608
        %v5917 = vunpack.c.l.b16 %v4609
        %v5918 = vunpack.c.h.b16 %v4609
        %v5919 = vunpack.c.l.b16 %v4610
        %v5920 = vunpack.c.h.b16 %v4610
        %v5921 = vunpack.c.l.b16 %v4611
        %v5922 = vunpack.c.h.b16 %v4611
        %v5923 = vunpack.c.l.b16 %v4612
        %v5924 = vunpack.c.h.b16 %v4612
        %v5925 = vunpack.c.l.b16 %v4613
        %v5926 = vunpack.c.h.b16 %v4613
        %v5927 = vunpack.c.l.b16 %v4614
        %v5928 = vunpack.c.h.b16 %v4614
        %v5929 = vunpack.c.l.b16 %v4615
        %v5930 = vunpack.c.h.b16 %v4615
        %v5931 = vunpack.c.l.b16 %v4616
        %v5932 = vunpack.c.h.b16 %v4616
        %v5933 = vunpack.c.l.b16 %v4617
        %v5934 = vunpack.c.h.b16 %v4617
        %v5935 = vunpack.c.l.b16 %v4618
        %v5936 = vunpack.c.h.b16 %v4618
        %v5937 = vunpack.c.l.b16 %v4619
        %v5938 = vunpack.c.h.b16 %v4619
        %v5939 = vunpack.c.l.b16 %v4620
        %v5940 = vunpack.c.h.b16 %v4620
        %v5941 = vunpack.c.l.b16 %v4621
        %v5942 = vunpack.c.h.b16 %v4621
        %v5943 = vunpack.c.l.b16 %v4622
        %v5944 = vunpack.c.h.b16 %v4622
        %v5945 = vunpack.c.l.b16 %v4623
        %v5946 = vunpack.c.h.b16 %v4623
        %v5947 = vunpack.c.l.b16 %v4624
        %v5948 = vunpack.c.h.b16 %v4624
        %v5949 = vunpack.c.l.b16 %v4625
        %v5950 = vunpack.c.h.b16 %v4625
        %v5951 = vunpack.c.l.b16 %v4626
        %v5952 = vunpack.c.h.b16 %v4626
        %v5953 = vunpack.c.l.b16 %v4627
        %v5954 = vunpack.c.h.b16 %v4627
        %v5955 = vunpack.c.l.b16 %v4628
        %v5956 = vunpack.c.h.b16 %v4628
        %v5957 = vunpack.c.l.b16 %v4629
        %v5958 = vunpack.c.h.b16 %v4629
        %v5959 = vunpack.c.l.b16 %v4630
        %v5960 = vunpack.c.h.b16 %v4630
        %v5961 = vunpack.c.l.b16 %v4631
        %v5962 = vunpack.c.h.b16 %v4631
        %v5963 = vunpack.c.l.b16 %v4632
        %v5964 = vunpack.c.h.b16 %v4632
        %v5965 = vunpack.c.l.b16 %v4633
        %v5966 = vunpack.c.h.b16 %v4633
        %v5967 = vunpack.c.l.b16 %v4634
        %v5968 = vunpack.c.h.b16 %v4634
        %v5969 = vunpack.c.l.b16 %v4635
        %v5970 = vunpack.c.h.b16 %v4635
        %v5971 = vunpack.c.l.b16 %v4636
        %v5972 = vunpack.c.h.b16 %v4636
        %v5973 = vunpack.c.l.b16 %v4637
        %v5974 = vunpack.c.h.b16 %v4637
        %v5975 = vunpack.c.l.b16 %v4638
        %v5976 = vunpack.c.h.b16 %v4638
        %v5977 = vunpack.c.l.b16 %v4639
        %v5978 = vunpack.c.h.b16 %v4639
        %v5979 = vunpack.c.l.b16 %v4640
        %v5980 = vunpack.c.h.b16 %v4640
        %v5981 = vunpack.c.l.b16 %v4641
        %v5982 = vunpack.c.h.b16 %v4641
        %v5983 = vunpack.c.l.b16 %v4642
        %v5984 = vunpack.c.h.b16 %v4642
        %v5985 = vunpack.c.l.b16 %v4643
        %v5986 = vunpack.c.h.b16 %v4643
        %v5987 = vunpack.c.l.b16 %v4644
        %v5988 = vunpack.c.h.b16 %v4644
        %v5989 = vpack.c.b16 %v5225, %v5221
        %v5990 = vpack.c.b16 %v5226, %v5222
        %v5991 = vpack.c.b16 %v5227, %v5223
        %v5992 = vpack.c.b16 %v5228, %v5224
        %v5993 = vpack.c.b16 %v5233, %v5229
        %v5994 = vpack.c.b16 %v5234, %v5230
        %v5995 = vpack.c.b16 %v5235, %v5231
        %v5996 = vpack.c.b16 %v5236, %v5232
        %v5997 = vpack.c.b16 %v5241, %v5237
        %v5998 = vpack.c.b16 %v5242, %v5238
        %v5999 = vpack.c.b16 %v5243, %v5239
        %v6000 = vpack.c.b16 %v5244, %v5240
        %v6001 = vpack.c.b16 %v5249, %v5245
        %v6002 = vpack.c.b16 %v5250, %v5246
        %v6003 = vpack.c.b16 %v5251, %v5247
        %v6004 = vpack.c.b16 %v5252, %v5248
        %v6005 = vpack.c.b16 %v5257, %v5253
        %v6006 = vpack.c.b16 %v5258, %v5254
        %v6007 = vpack.c.b16 %v5259, %v5255
        %v6008 = vpack.c.b16 %v5260, %v5256
        %v6009 = vpack.c.b16 %v5265, %v5261
        %v6010 = vpack.c.b16 %v5266, %v5262
        %v6011 = vpack.c.b16 %v5267, %v5263
        %v6012 = vpack.c.b16 %v5268, %v5264
        %v6013 = vpack.c.b16 %v5273, %v5269
        %v6014 = vpack.c.b16 %v5274, %v5270
        %v6015 = vpack.c.b16 %v5275, %v5271
        %v6016 = vpack.c.b16 %v5276, %v5272
        %v6017 = vpack.c.b16 %v5281, %v5277
        %v6018 = vpack.c.b16 %v5282, %v5278
        %v6019 = vpack.c.b16 %v5283, %v5279
        %v6020 = vpack.c.b16 %v5284, %v5280
        %v6021 = vpack.c.b16 %v5289, %v5285
        %v6022 = vpack.c.b16 %v5290, %v5286
        %v6023 = vpack.c.b16 %v5291, %v5287
        %v6024 = vpack.c.b16 %v5292, %v5288
        %v6025 = vpack.c.b16 %v5297, %v5293
        %v6026 = vpack.c.b16 %v5298, %v5294
        %v6027 = vpack.c.b16 %v5299, %v5295
        %v6028 = vpack.c.b16 %v5300, %v5296
        %v6029 = vpack.c.b16 %v5305, %v5301
        %v6030 = vpack.c.b16 %v5306, %v5302
        %v6031 = vpack.c.b16 %v5307, %v5303
        %v6032 = vpack.c.b16 %v5308, %v5304
        %v6033 = vpack.c.b16 %v5313, %v5309
        %v6034 = vpack.c.b16 %v5314, %v5310
        %v6035 = vpack.c.b16 %v5315, %v5311
        %v6036 = vpack.c.b16 %v5316, %v5312
        %v6037 = vpack.c.b16 %v5321, %v5317
        %v6038 = vpack.c.b16 %v5322, %v5318
        %v6039 = vpack.c.b16 %v5323, %v5319
        %v6040 = vpack.c.b16 %v5324, %v5320
        %v6041 = vpack.c.b16 %v5329, %v5325
        %v6042 = vpack.c.b16 %v5330, %v5326
        %v6043 = vpack.c.b16 %v5331, %v5327
        %v6044 = vpack.c.b16 %v5332, %v5328
        %v6045 = vpack.c.b16 %v5337, %v5333
        %v6046 = vpack.c.b16 %v5338, %v5334
        %v6047 = vpack.c.b16 %v5339, %v5335
        %v6048 = vpack.c.b16 %v5340, %v5336
        %v6049 = vpack.c.b16 %v5345, %v5341
        %v6050 = vpack.c.b16 %v5346, %v5342
        %v6051 = vpack.c.b16 %v5347, %v5343
        %v6052 = vpack.c.b16 %v5348, %v5344
        %v6053 = vpack.c.b16 %v5353, %v5349
        %v6054 = vpack.c.b16 %v5354, %v5350
        %v6055 = vpack.c.b16 %v5355, %v5351
        %v6056 = vpack.c.b16 %v5356, %v5352
        %v6057 = vpack.c.b16 %v5361, %v5357
        %v6058 = vpack.c.b16 %v5362, %v5358
        %v6059 = vpack.c.b16 %v5363, %v5359
        %v6060 = vpack.c.b16 %v5364, %v5360
        %v6061 = vpack.c.b16 %v5369, %v5365
        %v6062 = vpack.c.b16 %v5370, %v5366
        %v6063 = vpack.c.b16 %v5371, %v5367
        %v6064 = vpack.c.b16 %v5372, %v5368
        %v6065 = vpack.c.b16 %v5377, %v5373
        %v6066 = vpack.c.b16 %v5378, %v5374
        %v6067 = vpack.c.b16 %v5379, %v5375
        %v6068 = vpack.c.b16 %v5380, %v5376
        %v6069 = vpack.c.b16 %v5385, %v5381
        %v6070 = vpack.c.b16 %v5386, %v5382
        %v6071 = vpack.c.b16 %v5387, %v5383
        %v6072 = vpack.c.b16 %v5388, %v5384
        %v6073 = vpack.c.b16 %v5393, %v5389
        %v6074 = vpack.c.b16 %v5394, %v5390
        %v6075 = vpack.c.b16 %v5395, %v5391
        %v6076 = vpack.c.b16 %v5396, %v5392
        %v6077 = vpack.c.b16 %v5401, %v5397
        %v6078 = vpack.c.b16 %v5402, %v5398
        %v6079 = vpack.c.b16 %v5403, %v5399
        %v6080 = vpack.c.b16 %v5404, %v5400
        %v6081 = vpack.c.b16 %v5409, %v5405
        %v6082 = vpack.c.b16 %v5410, %v5406
        %v6083 = vpack.c.b16 %v5411, %v5407
        %v6084 = vpack.c.b16 %v5412, %v5408
        %v6085 = vpack.c.b16 %v5417, %v5413
        %v6086 = vpack.c.b16 %v5418, %v5414
        %v6087 = vpack.c.b16 %v5419, %v5415
        %v6088 = vpack.c.b16 %v5420, %v5416
        %v6089 = vpack.c.b16 %v5425, %v5421
        %v6090 = vpack.c.b16 %v5426, %v5422
        %v6091 = vpack.c.b16 %v5427, %v5423
        %v6092 = vpack.c.b16 %v5428, %v5424
        %v6093 = vpack.c.b16 %v5433, %v5429
        %v6094 = vpack.c.b16 %v5434, %v5430
        %v6095 = vpack.c.b16 %v5435, %v5431
        %v6096 = vpack.c.b16 %v5436, %v5432
        %v6097 = vpack.c.b16 %v5441, %v5437
        %v6098 = vpack.c.b16 %v5442, %v5438
        %v6099 = vpack.c.b16 %v5443, %v5439
        %v6100 = vpack.c.b16 %v5444, %v5440
        %v6101 = vpack.c.b16 %v5449, %v5445
        %v6102 = vpack.c.b16 %v5450, %v5446
        %v6103 = vpack.c.b16 %v5451, %v5447
        %v6104 = vpack.c.b16 %v5452, %v5448
        %v6105 = vpack.c.b16 %v5457, %v5453
        %v6106 = vpack.c.b16 %v5458, %v5454
        %v6107 = vpack.c.b16 %v5459, %v5455
        %v6108 = vpack.c.b16 %v5460, %v5456
        %v6109 = vpack.c.b16 %v5465, %v5461
        %v6110 = vpack.c.b16 %v5466, %v5462
        %v6111 = vpack.c.b16 %v5467, %v5463
        %v6112 = vpack.c.b16 %v5468, %v5464
        %v6113 = vpack.c.b16 %v5473, %v5469
        %v6114 = vpack.c.b16 %v5474, %v5470
        %v6115 = vpack.c.b16 %v5475, %v5471
        %v6116 = vpack.c.b16 %v5476, %v5472
        %v6117 = vpack.c.b16 %v5481, %v5477
        %v6118 = vpack.c.b16 %v5482, %v5478
        %v6119 = vpack.c.b16 %v5483, %v5479
        %v6120 = vpack.c.b16 %v5484, %v5480
        %v6121 = vpack.c.b16 %v5489, %v5485
        %v6122 = vpack.c.b16 %v5490, %v5486
        %v6123 = vpack.c.b16 %v5491, %v5487
        %v6124 = vpack.c.b16 %v5492, %v5488
        %v6125 = vpack.c.b16 %v5497, %v5493
        %v6126 = vpack.c.b16 %v5498, %v5494
        %v6127 = vpack.c.b16 %v5499, %v5495
        %v6128 = vpack.c.b16 %v5500, %v5496
        %v6129 = vpack.c.b16 %v5505, %v5501
        %v6130 = vpack.c.b16 %v5506, %v5502
        %v6131 = vpack.c.b16 %v5507, %v5503
        %v6132 = vpack.c.b16 %v5508, %v5504
        %v6133 = vpack.c.b16 %v5513, %v5509
        %v6134 = vpack.c.b16 %v5514, %v5510
        %v6135 = vpack.c.b16 %v5515, %v5511
        %v6136 = vpack.c.b16 %v5516, %v5512
        %v6137 = vpack.c.b16 %v5521, %v5517
        %v6138 = vpack.c.b16 %v5522, %v5518
        %v6139 = vpack.c.b16 %v5523, %v5519
        %v6140 = vpack.c.b16 %v5524, %v5520
        %v6141 = vpack.c.b16 %v5529, %v5525
        %v6142 = vpack.c.b16 %v5530, %v5526
        %v6143 = vpack.c.b16 %v5531, %v5527
        %v6144 = vpack.c.b16 %v5532, %v5528
        %v6145 = vpack.c.b16 %v5537, %v5533
        %v6146 = vpack.c.b16 %v5538, %v5534
        %v6147 = vpack.c.b16 %v5539, %v5535
        %v6148 = vpack.c.b16 %v5540, %v5536
        %v6149 = vpack.c.b16 %v5545, %v5541
        %v6150 = vpack.c.b16 %v5546, %v5542
        %v6151 = vpack.c.b16 %v5547, %v5543
        %v6152 = vpack.c.b16 %v5548, %v5544
        %v6153 = vpack.c.b16 %v5553, %v5549
        %v6154 = vpack.c.b16 %v5554, %v5550
        %v6155 = vpack.c.b16 %v5555, %v5551
        %v6156 = vpack.c.b16 %v5556, %v5552
        %v6157 = vpack.c.b16 %v5561, %v5557
        %v6158 = vpack.c.b16 %v5562, %v5558
        %v6159 = vpack.c.b16 %v5563, %v5559
        %v6160 = vpack.c.b16 %v5564, %v5560
        %v6161 = vpack.c.b16 %v5569, %v5565
        %v6162 = vpack.c.b16 %v5570, %v5566
        %v6163 = vpack.c.b16 %v5571, %v5567
        %v6164 = vpack.c.b16 %v5572, %v5568
        %v6165 = vpack.c.b16 %v5577, %v5573
        %v6166 = vpack.c.b16 %v5578, %v5574
        %v6167 = vpack.c.b16 %v5579, %v5575
        %v6168 = vpack.c.b16 %v5580, %v5576
        %v6169 = vpack.c.b16 %v5585, %v5581
        %v6170 = vpack.c.b16 %v5586, %v5582
        %v6171 = vpack.c.b16 %v5587, %v5583
        %v6172 = vpack.c.b16 %v5588, %v5584
        %v6173 = vpack.c.b16 %v5593, %v5589
        %v6174 = vpack.c.b16 %v5594, %v5590
        %v6175 = vpack.c.b16 %v5595, %v5591
        %v6176 = vpack.c.b16 %v5596, %v5592
        %v6177 = vpack.c.b16 %v5601, %v5597
        %v6178 = vpack.c.b16 %v5602, %v5598
        %v6179 = vpack.c.b16 %v5603, %v5599
        %v6180 = vpack.c.b16 %v5604, %v5600
        %v6181 = vpack.c.b16 %v5609, %v5605
        %v6182 = vpack.c.b16 %v5610, %v5606
        %v6183 = vpack.c.b16 %v5611, %v5607
        %v6184 = vpack.c.b16 %v5612, %v5608
        %v6185 = vpack.c.b16 %v5617, %v5613
        %v6186 = vpack.c.b16 %v5618, %v5614
        %v6187 = vpack.c.b16 %v5619, %v5615
        %v6188 = vpack.c.b16 %v5620, %v5616
        %v6189 = vpack.c.b16 %v5625, %v5621
        %v6190 = vpack.c.b16 %v5626, %v5622
        %v6191 = vpack.c.b16 %v5627, %v5623
        %v6192 = vpack.c.b16 %v5628, %v5624
        %v6193 = vpack.c.b16 %v5633, %v5629
        %v6194 = vpack.c.b16 %v5634, %v5630
        %v6195 = vpack.c.b16 %v5635, %v5631
        %v6196 = vpack.c.b16 %v5636, %v5632
        %v6197 = vpack.c.b16 %v5641, %v5637
        %v6198 = vpack.c.b16 %v5642, %v5638
        %v6199 = vpack.c.b16 %v5643, %v5639
        %v6200 = vpack.c.b16 %v5644, %v5640
        %v6201 = vpack.c.b16 %v5649, %v5645
        %v6202 = vpack.c.b16 %v5650, %v5646
        %v6203 = vpack.c.b16 %v5651, %v5647
        %v6204 = vpack.c.b16 %v5652, %v5648
        %v6205 = vpack.c.b16 %v5657, %v5653
        %v6206 = vpack.c.b16 %v5658, %v5654
        %v6207 = vpack.c.b16 %v5659, %v5655
        %v6208 = vpack.c.b16 %v5660, %v5656
        %v6209 = vpack.c.b16 %v5665, %v5661
        %v6210 = vpack.c.b16 %v5666, %v5662
        %v6211 = vpack.c.b16 %v5667, %v5663
        %v6212 = vpack.c.b16 %v5668, %v5664
        %v6213 = vpack.c.b16 %v5673, %v5669
        %v6214 = vpack.c.b16 %v5674, %v5670
        %v6215 = vpack.c.b16 %v5675, %v5671
        %v6216 = vpack.c.b16 %v5676, %v5672
        %v6217 = vpack.c.b16 %v5681, %v5677
        %v6218 = vpack.c.b16 %v5682, %v5678
        %v6219 = vpack.c.b16 %v5683, %v5679
        %v6220 = vpack.c.b16 %v5684, %v5680
        %v6221 = vpack.c.b16 %v5689, %v5685
        %v6222 = vpack.c.b16 %v5690, %v5686
        %v6223 = vpack.c.b16 %v5691, %v5687
        %v6224 = vpack.c.b16 %v5692, %v5688
        %v6225 = vpack.c.b16 %v5697, %v5693
        %v6226 = vpack.c.b16 %v5698, %v5694
        %v6227 = vpack.c.b16 %v5699, %v5695
        %v6228 = vpack.c.b16 %v5700, %v5696
        %v6229 = vpack.c.b16 %v5705, %v5701
        %v6230 = vpack.c.b16 %v5706, %v5702
        %v6231 = vpack.c.b16 %v5707, %v5703
        %v6232 = vpack.c.b16 %v5708, %v5704
        %v6233 = vpack.c.b16 %v5713, %v5709
        %v6234 = vpack.c.b16 %v5714, %v5710
        %v6235 = vpack.c.b16 %v5715, %v5711
        %v6236 = vpack.c.b16 %v5716, %v5712
        %v6237 = vpack.c.b16 %v5721, %v5717
        %v6238 = vpack.c.b16 %v5722, %v5718
        %v6239 = vpack.c.b16 %v5723, %v5719
        %v6240 = vpack.c.b16 %v5724, %v5720
        %v6241 = vpack.c.b16 %v5729, %v5725
        %v6242 = vpack.c.b16 %v5730, %v5726
        %v6243 = vpack.c.b16 %v5731, %v5727
        %v6244 = vpack.c.b16 %v5732, %v5728
        %v6245 = vpack.c.b16 %v5737, %v5733
        %v6246 = vpack.c.b16 %v5738, %v5734
        %v6247 = vpack.c.b16 %v5739, %v5735
        %v6248 = vpack.c.b16 %v5740, %v5736
        %v6249 = vpack.c.b16 %v5745, %v5741
        %v6250 = vpack.c.b16 %v5746, %v5742
        %v6251 = vpack.c.b16 %v5747, %v5743
        %v6252 = vpack.c.b16 %v5748, %v5744
        %v6253 = vpack.c.b16 %v5753, %v5749
        %v6254 = vpack.c.b16 %v5754, %v5750
        %v6255 = vpack.c.b16 %v5755, %v5751
        %v6256 = vpack.c.b16 %v5756, %v5752
        %v6257 = vpack.c.b16 %v5761, %v5757
        %v6258 = vpack.c.b16 %v5762, %v5758
        %v6259 = vpack.c.b16 %v5763, %v5759
        %v6260 = vpack.c.b16 %v5764, %v5760
        %v6261 = vpack.c.b16 %v5769, %v5765
        %v6262 = vpack.c.b16 %v5770, %v5766
        %v6263 = vpack.c.b16 %v5771, %v5767
        %v6264 = vpack.c.b16 %v5772, %v5768
        %v6265 = vpack.c.b16 %v5777, %v5773
        %v6266 = vpack.c.b16 %v5778, %v5774
        %v6267 = vpack.c.b16 %v5779, %v5775
        %v6268 = vpack.c.b16 %v5780, %v5776
        %v6269 = vpack.c.b16 %v5785, %v5781
        %v6270 = vpack.c.b16 %v5786, %v5782
        %v6271 = vpack.c.b16 %v5787, %v5783
        %v6272 = vpack.c.b16 %v5788, %v5784
        %v6273 = vpack.c.b16 %v5793, %v5789
        %v6274 = vpack.c.b16 %v5794, %v5790
        %v6275 = vpack.c.b16 %v5795, %v5791
        %v6276 = vpack.c.b16 %v5796, %v5792
        %v6277 = vpack.c.b16 %v5801, %v5797
        %v6278 = vpack.c.b16 %v5802, %v5798
        %v6279 = vpack.c.b16 %v5803, %v5799
        %v6280 = vpack.c.b16 %v5804, %v5800
        %v6281 = vpack.c.b16 %v5809, %v5805
        %v6282 = vpack.c.b16 %v5810, %v5806
        %v6283 = vpack.c.b16 %v5811, %v5807
        %v6284 = vpack.c.b16 %v5812, %v5808
        %v6285 = vpack.c.b16 %v5817, %v5813
        %v6286 = vpack.c.b16 %v5818, %v5814
        %v6287 = vpack.c.b16 %v5819, %v5815
        %v6288 = vpack.c.b16 %v5820, %v5816
        %v6289 = vpack.c.b16 %v5825, %v5821
        %v6290 = vpack.c.b16 %v5826, %v5822
        %v6291 = vpack.c.b16 %v5827, %v5823
        %v6292 = vpack.c.b16 %v5828, %v5824
        %v6293 = vpack.c.b16 %v5833, %v5829
        %v6294 = vpack.c.b16 %v5834, %v5830
        %v6295 = vpack.c.b16 %v5835, %v5831
        %v6296 = vpack.c.b16 %v5836, %v5832
        %v6297 = vpack.c.b16 %v5841, %v5837
        %v6298 = vpack.c.b16 %v5842, %v5838
        %v6299 = vpack.c.b16 %v5843, %v5839
        %v6300 = vpack.c.b16 %v5844, %v5840
        %v6301 = vpack.c.b16 %v5849, %v5845
        %v6302 = vpack.c.b16 %v5850, %v5846
        %v6303 = vpack.c.b16 %v5851, %v5847
        %v6304 = vpack.c.b16 %v5852, %v5848
        %v6305 = vpack.c.b16 %v5857, %v5853
        %v6306 = vpack.c.b16 %v5858, %v5854
        %v6307 = vpack.c.b16 %v5859, %v5855
        %v6308 = vpack.c.b16 %v5860, %v5856
        %v6309 = vpack.c.b16 %v5865, %v5861
        %v6310 = vpack.c.b16 %v5866, %v5862
        %v6311 = vpack.c.b16 %v5867, %v5863
        %v6312 = vpack.c.b16 %v5868, %v5864
        %v6313 = vpack.c.b16 %v5873, %v5869
        %v6314 = vpack.c.b16 %v5874, %v5870
        %v6315 = vpack.c.b16 %v5875, %v5871
        %v6316 = vpack.c.b16 %v5876, %v5872
        %v6317 = vpack.c.b16 %v5881, %v5877
        %v6318 = vpack.c.b16 %v5882, %v5878
        %v6319 = vpack.c.b16 %v5883, %v5879
        %v6320 = vpack.c.b16 %v5884, %v5880
        %v6321 = vpack.c.b16 %v5889, %v5885
        %v6322 = vpack.c.b16 %v5890, %v5886
        %v6323 = vpack.c.b16 %v5891, %v5887
        %v6324 = vpack.c.b16 %v5892, %v5888
        %v6325 = vpack.c.b16 %v5897, %v5893
        %v6326 = vpack.c.b16 %v5898, %v5894
        %v6327 = vpack.c.b16 %v5899, %v5895
        %v6328 = vpack.c.b16 %v5900, %v5896
        %v6329 = vpack.c.b16 %v5905, %v5901
        %v6330 = vpack.c.b16 %v5906, %v5902
        %v6331 = vpack.c.b16 %v5907, %v5903
        %v6332 = vpack.c.b16 %v5908, %v5904
        %v6333 = vpack.c.b16 %v5913, %v5909
        %v6334 = vpack.c.b16 %v5914, %v5910
        %v6335 = vpack.c.b16 %v5915, %v5911
        %v6336 = vpack.c.b16 %v5916, %v5912
        %v6337 = vpack.c.b16 %v5921, %v5917
        %v6338 = vpack.c.b16 %v5922, %v5918
        %v6339 = vpack.c.b16 %v5923, %v5919
        %v6340 = vpack.c.b16 %v5924, %v5920
        %v6341 = vpack.c.b16 %v5929, %v5925
        %v6342 = vpack.c.b16 %v5930, %v5926
        %v6343 = vpack.c.b16 %v5931, %v5927
        %v6344 = vpack.c.b16 %v5932, %v5928
        %v6345 = vpack.c.b16 %v5937, %v5933
        %v6346 = vpack.c.b16 %v5938, %v5934
        %v6347 = vpack.c.b16 %v5939, %v5935
        %v6348 = vpack.c.b16 %v5940, %v5936
        %v6349 = vpack.c.b16 %v5945, %v5941
        %v6350 = vpack.c.b16 %v5946, %v5942
        %v6351 = vpack.c.b16 %v5947, %v5943
        %v6352 = vpack.c.b16 %v5948, %v5944
        %v6353 = vpack.c.b16 %v5953, %v5949
        %v6354 = vpack.c.b16 %v5954, %v5950
        %v6355 = vpack.c.b16 %v5955, %v5951
        %v6356 = vpack.c.b16 %v5956, %v5952
        %v6357 = vpack.c.b16 %v5961, %v5957
        %v6358 = vpack.c.b16 %v5962, %v5958
        %v6359 = vpack.c.b16 %v5963, %v5959
        %v6360 = vpack.c.b16 %v5964, %v5960
        %v6361 = vpack.c.b16 %v5969, %v5965
        %v6362 = vpack.c.b16 %v5970, %v5966
        %v6363 = vpack.c.b16 %v5971, %v5967
        %v6364 = vpack.c.b16 %v5972, %v5968
        %v6365 = vpack.c.b16 %v5977, %v5973
        %v6366 = vpack.c.b16 %v5978, %v5974
        %v6367 = vpack.c.b16 %v5979, %v5975
        %v6368 = vpack.c.b16 %v5980, %v5976
        %v6369 = vpack.c.b16 %v5985, %v5981
        %v6370 = vpack.c.b16 %v5986, %v5982
        %v6371 = vpack.c.b16 %v5987, %v5983
        %v6372 = vpack.c.b16 %v5988, %v5984
        %6757 = vmatprep.subr.bf16.mxu0 0
        %6758 = vmatpush1.bf16.msra.mxu0 %v4236
        %6759 = vmatprep.subr.bf16.mxu0 0
        %6760 = vmatpush1.bf16.msra.mxu0 %v4235
        %6761 = vmatprep.subr.bf16.mxu0 0
        %6762 = vmatpush1.bf16.msra.mxu0 %v4234
        %6763 = vmatprep.subr.bf16.mxu0 0
        %6764 = vmatpush1.bf16.msra.mxu0 %v4233
        %6765 = vmatprep.subr.bf16.mxu0 0
        %6766 = vmatpush1.bf16.msra.mxu0 %v4232
        %6767 = vmatprep.subr.bf16.mxu0 0
        %6768 = vmatpush1.bf16.msra.mxu0 %v4231
        %6769 = vmatprep.subr.bf16.mxu0 0
        %6770 = vmatpush1.bf16.msra.mxu0 %v4230
        %6771 = vmatprep.subr.bf16.mxu0 0
        %6772 = vmatpush1.bf16.msra.mxu0 %v4229
        %6773 = vmatprep.subr.bf16.mxu0 0
        %6774 = vmatpush2.bf16.msra.mxu0 %v4244
        %6775 = vmatprep.subr.bf16.mxu0 0
        %6776 = vmatpush2.bf16.msra.mxu0 %v4243
        %6777 = vmatprep.subr.bf16.mxu0 0
        %6778 = vmatpush2.bf16.msra.mxu0 %v4242
        %6779 = vmatprep.subr.bf16.mxu0 0
        %6780 = vmatpush2.bf16.msra.mxu0 %v4241
        %6781 = vmatprep.subr.bf16.mxu0 0
        %6782 = vmatpush2.bf16.msra.mxu0 %v4240
        %6783 = vmatprep.subr.bf16.mxu0 0
        %6784 = vmatpush2.bf16.msra.mxu0 %v4239
        %6785 = vmatprep.subr.bf16.mxu0 0
        %6786 = vmatpush2.bf16.msra.mxu0 %v4238
        %6787 = vmatprep.subr.bf16.mxu0 0
        %6788 = vmatpush2.bf16.msra.mxu0 %v4237
        %6789 = vmatprep.mubr.bf16.mxu0 %v5990
        %6790 = vmatmul.mubr.bf16.gmra.mxu0 %v5989
        %v6791 = vpop.f32.mrf.mxu0
        %v6792 = vadd.f32 %v4645, %v6791
        %v6793 = vpop.f32.mrf.mxu0
        %v6794 = vpop.f32.mrf.mxu0
        %v6795 = vadd.f32 %v4646, %v6794
        %v6796 = vpop.f32.mrf.mxu0
        %6797 = vmatprep.mubr.bf16.mxu0 %v5994
        %6798 = vmatmul.mubr.bf16.gmra.mxu0 %v5993
        %v6799 = vpop.f32.mrf.mxu0
        %v6800 = vadd.f32 %v4647, %v6799
        %v6801 = vpop.f32.mrf.mxu0
        %v6802 = vpop.f32.mrf.mxu0
        %v6803 = vadd.f32 %v4648, %v6802
        %v6804 = vpop.f32.mrf.mxu0
        %6805 = vmatprep.mubr.bf16.mxu0 %v5998
        %6806 = vmatmul.mubr.bf16.gmra.mxu0 %v5997
        %v6807 = vpop.f32.mrf.mxu0
        %v6808 = vadd.f32 %v4649, %v6807
        %v6809 = vpop.f32.mrf.mxu0
        %v6810 = vpop.f32.mrf.mxu0
        %v6811 = vadd.f32 %v4650, %v6810
        %v6812 = vpop.f32.mrf.mxu0
        %6813 = vmatprep.mubr.bf16.mxu0 %v6002
        %6814 = vmatmul.mubr.bf16.gmra.mxu0 %v6001
        %v6815 = vpop.f32.mrf.mxu0
        %v6816 = vadd.f32 %v4651, %v6815
        %v6817 = vpop.f32.mrf.mxu0
        %v6818 = vpop.f32.mrf.mxu0
        %v6819 = vadd.f32 %v4652, %v6818
        %v6820 = vpop.f32.mrf.mxu0
        %6821 = vmatprep.mubr.bf16.mxu0 %v6006
        %6822 = vmatmul.mubr.bf16.gmra.mxu0 %v6005
        %v6823 = vpop.f32.mrf.mxu0
        %v6824 = vadd.f32 %v4653, %v6823
        %v6825 = vpop.f32.mrf.mxu0
        %v6826 = vpop.f32.mrf.mxu0
        %v6827 = vadd.f32 %v4654, %v6826
        %v6828 = vpop.f32.mrf.mxu0
        %6829 = vmatprep.mubr.bf16.mxu0 %v6010
        %6830 = vmatmul.mubr.bf16.gmra.mxu0 %v6009
        %v6831 = vpop.f32.mrf.mxu0
        %v6832 = vadd.f32 %v4655, %v6831
        %v6833 = vpop.f32.mrf.mxu0
        %v6834 = vpop.f32.mrf.mxu0
        %v6835 = vadd.f32 %v4656, %v6834
        %v6836 = vpop.f32.mrf.mxu0
        %6837 = vmatprep.mubr.bf16.mxu0 %v6014
        %6838 = vmatmul.mubr.bf16.gmra.mxu0 %v6013
        %v6839 = vpop.f32.mrf.mxu0
        %v6840 = vadd.f32 %v4657, %v6839
        %v6841 = vpop.f32.mrf.mxu0
        %v6842 = vpop.f32.mrf.mxu0
        %v6843 = vadd.f32 %v4658, %v6842
        %v6844 = vpop.f32.mrf.mxu0
        %6845 = vmatprep.mubr.bf16.mxu0 %v6018
        %6846 = vmatmul.mubr.bf16.gmra.mxu0 %v6017
        %v6847 = vpop.f32.mrf.mxu0
        %v6848 = vadd.f32 %v4659, %v6847
        %v6849 = vpop.f32.mrf.mxu0
        %v6850 = vpop.f32.mrf.mxu0
        %v6851 = vadd.f32 %v4660, %v6850
        %v6852 = vpop.f32.mrf.mxu0
        %6853 = vmatprep.mubr.bf16.mxu0 %v6022
        %6854 = vmatmul.mubr.bf16.gmra.mxu0 %v6021
        %v6855 = vpop.f32.mrf.mxu0
        %v6856 = vadd.f32 %v4661, %v6855
        %v6857 = vpop.f32.mrf.mxu0
        %v6858 = vpop.f32.mrf.mxu0
        %v6859 = vadd.f32 %v4662, %v6858
        %v6860 = vpop.f32.mrf.mxu0
        %6861 = vmatprep.mubr.bf16.mxu0 %v6026
        %6862 = vmatmul.mubr.bf16.gmra.mxu0 %v6025
        %v6863 = vpop.f32.mrf.mxu0
        %v6864 = vadd.f32 %v4663, %v6863
        %v6865 = vpop.f32.mrf.mxu0
        %v6866 = vpop.f32.mrf.mxu0
        %v6867 = vadd.f32 %v4664, %v6866
        %v6868 = vpop.f32.mrf.mxu0
        %6869 = vmatprep.mubr.bf16.mxu0 %v6030
        %6870 = vmatmul.mubr.bf16.gmra.mxu0 %v6029
        %v6871 = vpop.f32.mrf.mxu0
        %v6872 = vadd.f32 %v4665, %v6871
        %v6873 = vpop.f32.mrf.mxu0
        %v6874 = vpop.f32.mrf.mxu0
        %v6875 = vadd.f32 %v4666, %v6874
        %v6876 = vpop.f32.mrf.mxu0
        %6877 = vmatprep.mubr.bf16.mxu0 %v6034
        %6878 = vmatmul.mubr.bf16.gmra.mxu0 %v6033
        %v6879 = vpop.f32.mrf.mxu0
        %v6880 = vadd.f32 %v4667, %v6879
        %v6881 = vpop.f32.mrf.mxu0
        %v6882 = vpop.f32.mrf.mxu0
        %v6883 = vadd.f32 %v4668, %v6882
        %v6884 = vpop.f32.mrf.mxu0
        %6885 = vmatprep.mubr.bf16.mxu0 %v6038
        %6886 = vmatmul.mubr.bf16.gmra.mxu0 %v6037
        %v6887 = vpop.f32.mrf.mxu0
        %v6888 = vadd.f32 %v4669, %v6887
        %v6889 = vpop.f32.mrf.mxu0
        %v6890 = vpop.f32.mrf.mxu0
        %v6891 = vadd.f32 %v4670, %v6890
        %v6892 = vpop.f32.mrf.mxu0
        %6893 = vmatprep.mubr.bf16.mxu0 %v6042
        %6894 = vmatmul.mubr.bf16.gmra.mxu0 %v6041
        %v6895 = vpop.f32.mrf.mxu0
        %v6896 = vadd.f32 %v4671, %v6895
        %v6897 = vpop.f32.mrf.mxu0
        %v6898 = vpop.f32.mrf.mxu0
        %v6899 = vadd.f32 %v4672, %v6898
        %v6900 = vpop.f32.mrf.mxu0
        %6901 = vmatprep.mubr.bf16.mxu0 %v6046
        %6902 = vmatmul.mubr.bf16.gmra.mxu0 %v6045
        %v6903 = vpop.f32.mrf.mxu0
        %v6904 = vadd.f32 %v4673, %v6903
        %v6905 = vpop.f32.mrf.mxu0
        %v6906 = vpop.f32.mrf.mxu0
        %v6907 = vadd.f32 %v4674, %v6906
        %v6908 = vpop.f32.mrf.mxu0
        %6909 = vmatprep.mubr.bf16.mxu0 %v6050
        %6910 = vmatmul.mubr.bf16.gmra.mxu0 %v6049
        %v6911 = vpop.f32.mrf.mxu0
        %v6912 = vadd.f32 %v4675, %v6911
        %v6913 = vpop.f32.mrf.mxu0
        %v6914 = vpop.f32.mrf.mxu0
        %v6915 = vadd.f32 %v4676, %v6914
        %v6916 = vpop.f32.mrf.mxu0
        %6917 = vmatprep.mubr.bf16.mxu0 %v6054
        %6918 = vmatmul.mubr.bf16.gmra.mxu0 %v6053
        %v6919 = vpop.f32.mrf.mxu0
        %v6920 = vadd.f32 %v4677, %v6919
        %v6921 = vpop.f32.mrf.mxu0
        %v6922 = vpop.f32.mrf.mxu0
        %v6923 = vadd.f32 %v4678, %v6922
        %v6924 = vpop.f32.mrf.mxu0
        %6925 = vmatprep.mubr.bf16.mxu0 %v6058
        %6926 = vmatmul.mubr.bf16.gmra.mxu0 %v6057
        %v6927 = vpop.f32.mrf.mxu0
        %v6928 = vadd.f32 %v4679, %v6927
        %v6929 = vpop.f32.mrf.mxu0
        %v6930 = vpop.f32.mrf.mxu0
        %v6931 = vadd.f32 %v4680, %v6930
        %v6932 = vpop.f32.mrf.mxu0
        %6933 = vmatprep.mubr.bf16.mxu0 %v6062
        %6934 = vmatmul.mubr.bf16.gmra.mxu0 %v6061
        %v6935 = vpop.f32.mrf.mxu0
        %v6936 = vadd.f32 %v4681, %v6935
        %v6937 = vpop.f32.mrf.mxu0
        %v6938 = vpop.f32.mrf.mxu0
        %v6939 = vadd.f32 %v4682, %v6938
        %v6940 = vpop.f32.mrf.mxu0
        %6941 = vmatprep.mubr.bf16.mxu0 %v6066
        %6942 = vmatmul.mubr.bf16.gmra.mxu0 %v6065
        %v6943 = vpop.f32.mrf.mxu0
        %v6944 = vadd.f32 %v4683, %v6943
        %v6945 = vpop.f32.mrf.mxu0
        %v6946 = vpop.f32.mrf.mxu0
        %v6947 = vadd.f32 %v4684, %v6946
        %v6948 = vpop.f32.mrf.mxu0
        %6949 = vmatprep.mubr.bf16.mxu0 %v6070
        %6950 = vmatmul.mubr.bf16.gmra.mxu0 %v6069
        %v6951 = vpop.f32.mrf.mxu0
        %v6952 = vadd.f32 %v4685, %v6951
        %v6953 = vpop.f32.mrf.mxu0
        %v6954 = vpop.f32.mrf.mxu0
        %v6955 = vadd.f32 %v4686, %v6954
        %v6956 = vpop.f32.mrf.mxu0
        %6957 = vmatprep.mubr.bf16.mxu0 %v6074
        %6958 = vmatmul.mubr.bf16.gmra.mxu0 %v6073
        %v6959 = vpop.f32.mrf.mxu0
        %v6960 = vadd.f32 %v4687, %v6959
        %v6961 = vpop.f32.mrf.mxu0
        %v6962 = vpop.f32.mrf.mxu0
        %v6963 = vadd.f32 %v4688, %v6962
        %v6964 = vpop.f32.mrf.mxu0
        %6965 = vmatprep.mubr.bf16.mxu0 %v6078
        %6966 = vmatmul.mubr.bf16.gmra.mxu0 %v6077
        %v6967 = vpop.f32.mrf.mxu0
        %v6968 = vadd.f32 %v4689, %v6967
        %v6969 = vpop.f32.mrf.mxu0
        %v6970 = vpop.f32.mrf.mxu0
        %v6971 = vadd.f32 %v4690, %v6970
        %v6972 = vpop.f32.mrf.mxu0
        %6973 = vmatprep.mubr.bf16.mxu0 %v6082
        %6974 = vmatmul.mubr.bf16.gmra.mxu0 %v6081
        %v6975 = vpop.f32.mrf.mxu0
        %v6976 = vadd.f32 %v4691, %v6975
        %v6977 = vpop.f32.mrf.mxu0
        %v6978 = vpop.f32.mrf.mxu0
        %v6979 = vadd.f32 %v4692, %v6978
        %v6980 = vpop.f32.mrf.mxu0
        %6981 = vmatprep.mubr.bf16.mxu0 %v6086
        %6982 = vmatmul.mubr.bf16.gmra.mxu0 %v6085
        %v6983 = vpop.f32.mrf.mxu0
        %v6984 = vadd.f32 %v4693, %v6983
        %v6985 = vpop.f32.mrf.mxu0
        %v6986 = vpop.f32.mrf.mxu0
        %v6987 = vadd.f32 %v4694, %v6986
        %v6988 = vpop.f32.mrf.mxu0
        %6989 = vmatprep.mubr.bf16.mxu0 %v6090
        %6990 = vmatmul.mubr.bf16.gmra.mxu0 %v6089
        %v6991 = vpop.f32.mrf.mxu0
        %v6992 = vadd.f32 %v4695, %v6991
        %v6993 = vpop.f32.mrf.mxu0
        %v6994 = vpop.f32.mrf.mxu0
        %v6995 = vadd.f32 %v4696, %v6994
        %v6996 = vpop.f32.mrf.mxu0
        %6997 = vmatprep.mubr.bf16.mxu0 %v6094
        %6998 = vmatmul.mubr.bf16.gmra.mxu0 %v6093
        %v6999 = vpop.f32.mrf.mxu0
        %v7000 = vadd.f32 %v4697, %v6999
        %v7001 = vpop.f32.mrf.mxu0
        %v7002 = vpop.f32.mrf.mxu0
        %v7003 = vadd.f32 %v4698, %v7002
        %v7004 = vpop.f32.mrf.mxu0
        %7005 = vmatprep.mubr.bf16.mxu0 %v6098
        %7006 = vmatmul.mubr.bf16.gmra.mxu0 %v6097
        %v7007 = vpop.f32.mrf.mxu0
        %v7008 = vadd.f32 %v4699, %v7007
        %v7009 = vpop.f32.mrf.mxu0
        %v7010 = vpop.f32.mrf.mxu0
        %v7011 = vadd.f32 %v4700, %v7010
        %v7012 = vpop.f32.mrf.mxu0
        %7013 = vmatprep.mubr.bf16.mxu0 %v6102
        %7014 = vmatmul.mubr.bf16.gmra.mxu0 %v6101
        %v7015 = vpop.f32.mrf.mxu0
        %v7016 = vadd.f32 %v4701, %v7015
        %v7017 = vpop.f32.mrf.mxu0
        %v7018 = vpop.f32.mrf.mxu0
        %v7019 = vadd.f32 %v4702, %v7018
        %v7020 = vpop.f32.mrf.mxu0
        %7021 = vmatprep.mubr.bf16.mxu0 %v6106
        %7022 = vmatmul.mubr.bf16.gmra.mxu0 %v6105
        %v7023 = vpop.f32.mrf.mxu0
        %v7024 = vadd.f32 %v4703, %v7023
        %v7025 = vpop.f32.mrf.mxu0
        %v7026 = vpop.f32.mrf.mxu0
        %v7027 = vadd.f32 %v4704, %v7026
        %v7028 = vpop.f32.mrf.mxu0
        %7029 = vmatprep.mubr.bf16.mxu0 %v6110
        %7030 = vmatmul.mubr.bf16.gmra.mxu0 %v6109
        %v7031 = vpop.f32.mrf.mxu0
        %v7032 = vadd.f32 %v4705, %v7031
        %v7033 = vpop.f32.mrf.mxu0
        %v7034 = vpop.f32.mrf.mxu0
        %v7035 = vadd.f32 %v4706, %v7034
        %v7036 = vpop.f32.mrf.mxu0
        %7037 = vmatprep.mubr.bf16.mxu0 %v6114
        %7038 = vmatmul.mubr.bf16.gmra.mxu0 %v6113
        %v7039 = vpop.f32.mrf.mxu0
        %v7040 = vadd.f32 %v4707, %v7039
        %v7041 = vpop.f32.mrf.mxu0
        %v7042 = vpop.f32.mrf.mxu0
        %v7043 = vadd.f32 %v4708, %v7042
        %v7044 = vpop.f32.mrf.mxu0
        %7045 = vmatprep.mubr.bf16.mxu0 %v6118
        %7046 = vmatmul.mubr.bf16.gmra.mxu0 %v6117
        %v7047 = vpop.f32.mrf.mxu0
        %v7048 = vadd.f32 %v4709, %v7047
        %v7049 = vpop.f32.mrf.mxu0
        %v7050 = vpop.f32.mrf.mxu0
        %v7051 = vadd.f32 %v4710, %v7050
        %v7052 = vpop.f32.mrf.mxu0
        %7053 = vmatprep.mubr.bf16.mxu0 %v6122
        %7054 = vmatmul.mubr.bf16.gmra.mxu0 %v6121
        %v7055 = vpop.f32.mrf.mxu0
        %v7056 = vadd.f32 %v4711, %v7055
        %v7057 = vpop.f32.mrf.mxu0
        %v7058 = vpop.f32.mrf.mxu0
        %v7059 = vadd.f32 %v4712, %v7058
        %v7060 = vpop.f32.mrf.mxu0
        %7061 = vmatprep.mubr.bf16.mxu0 %v6126
        %7062 = vmatmul.mubr.bf16.gmra.mxu0 %v6125
        %v7063 = vpop.f32.mrf.mxu0
        %v7064 = vadd.f32 %v4713, %v7063
        %v7065 = vpop.f32.mrf.mxu0
        %v7066 = vpop.f32.mrf.mxu0
        %v7067 = vadd.f32 %v4714, %v7066
        %v7068 = vpop.f32.mrf.mxu0
        %7069 = vmatprep.mubr.bf16.mxu0 %v6130
        %7070 = vmatmul.mubr.bf16.gmra.mxu0 %v6129
        %v7071 = vpop.f32.mrf.mxu0
        %v7072 = vadd.f32 %v4715, %v7071
        %v7073 = vpop.f32.mrf.mxu0
        %v7074 = vpop.f32.mrf.mxu0
        %v7075 = vadd.f32 %v4716, %v7074
        %v7076 = vpop.f32.mrf.mxu0
        %7077 = vmatprep.mubr.bf16.mxu0 %v6134
        %7078 = vmatmul.mubr.bf16.gmra.mxu0 %v6133
        %v7079 = vpop.f32.mrf.mxu0
        %v7080 = vadd.f32 %v4717, %v7079
        %v7081 = vpop.f32.mrf.mxu0
        %v7082 = vpop.f32.mrf.mxu0
        %v7083 = vadd.f32 %v4718, %v7082
        %v7084 = vpop.f32.mrf.mxu0
        %7085 = vmatprep.mubr.bf16.mxu0 %v6138
        %7086 = vmatmul.mubr.bf16.gmra.mxu0 %v6137
        %v7087 = vpop.f32.mrf.mxu0
        %v7088 = vadd.f32 %v4719, %v7087
        %v7089 = vpop.f32.mrf.mxu0
        %v7090 = vpop.f32.mrf.mxu0
        %v7091 = vadd.f32 %v4720, %v7090
        %v7092 = vpop.f32.mrf.mxu0
        %7093 = vmatprep.mubr.bf16.mxu0 %v6142
        %7094 = vmatmul.mubr.bf16.gmra.mxu0 %v6141
        %v7095 = vpop.f32.mrf.mxu0
        %v7096 = vadd.f32 %v4721, %v7095
        %v7097 = vpop.f32.mrf.mxu0
        %v7098 = vpop.f32.mrf.mxu0
        %v7099 = vadd.f32 %v4722, %v7098
        %v7100 = vpop.f32.mrf.mxu0
        %7101 = vmatprep.mubr.bf16.mxu0 %v6146
        %7102 = vmatmul.mubr.bf16.gmra.mxu0 %v6145
        %v7103 = vpop.f32.mrf.mxu0
        %v7104 = vadd.f32 %v4723, %v7103
        %v7105 = vpop.f32.mrf.mxu0
        %v7106 = vpop.f32.mrf.mxu0
        %v7107 = vadd.f32 %v4724, %v7106
        %v7108 = vpop.f32.mrf.mxu0
        %7109 = vmatprep.mubr.bf16.mxu0 %v6150
        %7110 = vmatmul.mubr.bf16.gmra.mxu0 %v6149
        %v7111 = vpop.f32.mrf.mxu0
        %v7112 = vadd.f32 %v4725, %v7111
        %v7113 = vpop.f32.mrf.mxu0
        %v7114 = vpop.f32.mrf.mxu0
        %v7115 = vadd.f32 %v4726, %v7114
        %v7116 = vpop.f32.mrf.mxu0
        %7117 = vmatprep.mubr.bf16.mxu0 %v6154
        %7118 = vmatmul.mubr.bf16.gmra.mxu0 %v6153
        %v7119 = vpop.f32.mrf.mxu0
        %v7120 = vadd.f32 %v4727, %v7119
        %v7121 = vpop.f32.mrf.mxu0
        %v7122 = vpop.f32.mrf.mxu0
        %v7123 = vadd.f32 %v4728, %v7122
        %v7124 = vpop.f32.mrf.mxu0
        %7125 = vmatprep.mubr.bf16.mxu0 %v6158
        %7126 = vmatmul.mubr.bf16.gmra.mxu0 %v6157
        %v7127 = vpop.f32.mrf.mxu0
        %v7128 = vadd.f32 %v4729, %v7127
        %v7129 = vpop.f32.mrf.mxu0
        %v7130 = vpop.f32.mrf.mxu0
        %v7131 = vadd.f32 %v4730, %v7130
        %v7132 = vpop.f32.mrf.mxu0
        %7133 = vmatprep.mubr.bf16.mxu0 %v6162
        %7134 = vmatmul.mubr.bf16.gmra.mxu0 %v6161
        %v7135 = vpop.f32.mrf.mxu0
        %v7136 = vadd.f32 %v4731, %v7135
        %v7137 = vpop.f32.mrf.mxu0
        %v7138 = vpop.f32.mrf.mxu0
        %v7139 = vadd.f32 %v4732, %v7138
        %v7140 = vpop.f32.mrf.mxu0
        %7141 = vmatprep.mubr.bf16.mxu0 %v6166
        %7142 = vmatmul.mubr.bf16.gmra.mxu0 %v6165
        %v7143 = vpop.f32.mrf.mxu0
        %v7144 = vadd.f32 %v4733, %v7143
        %v7145 = vpop.f32.mrf.mxu0
        %v7146 = vpop.f32.mrf.mxu0
        %v7147 = vadd.f32 %v4734, %v7146
        %v7148 = vpop.f32.mrf.mxu0
        %7149 = vmatprep.mubr.bf16.mxu0 %v6170
        %7150 = vmatmul.mubr.bf16.gmra.mxu0 %v6169
        %v7151 = vpop.f32.mrf.mxu0
        %v7152 = vadd.f32 %v4735, %v7151
        %v7153 = vpop.f32.mrf.mxu0
        %v7154 = vpop.f32.mrf.mxu0
        %v7155 = vadd.f32 %v4736, %v7154
        %v7156 = vpop.f32.mrf.mxu0
        %7157 = vmatprep.mubr.bf16.mxu0 %v6174
        %7158 = vmatmul.mubr.bf16.gmra.mxu0 %v6173
        %v7159 = vpop.f32.mrf.mxu0
        %v7160 = vadd.f32 %v4737, %v7159
        %v7161 = vpop.f32.mrf.mxu0
        %v7162 = vpop.f32.mrf.mxu0
        %v7163 = vadd.f32 %v4738, %v7162
        %v7164 = vpop.f32.mrf.mxu0
        %7165 = vmatprep.mubr.bf16.mxu0 %v6178
        %7166 = vmatmul.mubr.bf16.gmra.mxu0 %v6177
        %v7167 = vpop.f32.mrf.mxu0
        %v7168 = vadd.f32 %v4739, %v7167
        %v7169 = vpop.f32.mrf.mxu0
        %v7170 = vpop.f32.mrf.mxu0
        %v7171 = vadd.f32 %v4740, %v7170
        %v7172 = vpop.f32.mrf.mxu0
        %7173 = vmatprep.mubr.bf16.mxu0 %v6182
        %7174 = vmatmul.mubr.bf16.gmra.mxu0 %v6181
        %v7175 = vpop.f32.mrf.mxu0
        %v7176 = vadd.f32 %v4741, %v7175
        %v7177 = vpop.f32.mrf.mxu0
        %v7178 = vpop.f32.mrf.mxu0
        %v7179 = vadd.f32 %v4742, %v7178
        %v7180 = vpop.f32.mrf.mxu0
        %7181 = vmatprep.mubr.bf16.mxu0 %v6186
        %7182 = vmatmul.mubr.bf16.gmra.mxu0 %v6185
        %v7183 = vpop.f32.mrf.mxu0
        %v7184 = vadd.f32 %v4743, %v7183
        %v7185 = vpop.f32.mrf.mxu0
        %v7186 = vpop.f32.mrf.mxu0
        %v7187 = vadd.f32 %v4744, %v7186
        %v7188 = vpop.f32.mrf.mxu0
        %7189 = vmatprep.mubr.bf16.mxu0 %v6190
        %7190 = vmatmul.mubr.bf16.gmra.mxu0 %v6189
        %v7191 = vpop.f32.mrf.mxu0
        %v7192 = vadd.f32 %v4745, %v7191
        %v7193 = vpop.f32.mrf.mxu0
        %v7194 = vpop.f32.mrf.mxu0
        %v7195 = vadd.f32 %v4746, %v7194
        %v7196 = vpop.f32.mrf.mxu0
        %7197 = vmatprep.mubr.bf16.mxu0 %v6194
        %7198 = vmatmul.mubr.bf16.gmra.mxu0 %v6193
        %v7199 = vpop.f32.mrf.mxu0
        %v7200 = vadd.f32 %v4747, %v7199
        %v7201 = vpop.f32.mrf.mxu0
        %v7202 = vpop.f32.mrf.mxu0
        %v7203 = vadd.f32 %v4748, %v7202
        %v7204 = vpop.f32.mrf.mxu0
        %7205 = vmatprep.mubr.bf16.mxu0 %v6198
        %7206 = vmatmul.mubr.bf16.gmra.mxu0 %v6197
        %v7207 = vpop.f32.mrf.mxu0
        %v7208 = vadd.f32 %v4749, %v7207
        %v7209 = vpop.f32.mrf.mxu0
        %v7210 = vpop.f32.mrf.mxu0
        %v7211 = vadd.f32 %v4750, %v7210
        %v7212 = vpop.f32.mrf.mxu0
        %7213 = vmatprep.mubr.bf16.mxu0 %v6202
        %7214 = vmatmul.mubr.bf16.gmra.mxu0 %v6201
        %v7215 = vpop.f32.mrf.mxu0
        %v7216 = vadd.f32 %v4751, %v7215
        %v7217 = vpop.f32.mrf.mxu0
        %v7218 = vpop.f32.mrf.mxu0
        %v7219 = vadd.f32 %v4752, %v7218
        %v7220 = vpop.f32.mrf.mxu0
        %7221 = vmatprep.mubr.bf16.mxu0 %v6206
        %7222 = vmatmul.mubr.bf16.gmra.mxu0 %v6205
        %v7223 = vpop.f32.mrf.mxu0
        %v7224 = vadd.f32 %v4753, %v7223
        %v7225 = vpop.f32.mrf.mxu0
        %v7226 = vpop.f32.mrf.mxu0
        %v7227 = vadd.f32 %v4754, %v7226
        %v7228 = vpop.f32.mrf.mxu0
        %7229 = vmatprep.mubr.bf16.mxu0 %v6210
        %7230 = vmatmul.mubr.bf16.gmra.mxu0 %v6209
        %v7231 = vpop.f32.mrf.mxu0
        %v7232 = vadd.f32 %v4755, %v7231
        %v7233 = vpop.f32.mrf.mxu0
        %v7234 = vpop.f32.mrf.mxu0
        %v7235 = vadd.f32 %v4756, %v7234
        %v7236 = vpop.f32.mrf.mxu0
        %7237 = vmatprep.mubr.bf16.mxu0 %v6214
        %7238 = vmatmul.mubr.bf16.gmra.mxu0 %v6213
        %v7239 = vpop.f32.mrf.mxu0
        %v7240 = vadd.f32 %v4757, %v7239
        %v7241 = vpop.f32.mrf.mxu0
        %v7242 = vpop.f32.mrf.mxu0
        %v7243 = vadd.f32 %v4758, %v7242
        %v7244 = vpop.f32.mrf.mxu0
        %7245 = vmatprep.mubr.bf16.mxu0 %v6218
        %7246 = vmatmul.mubr.bf16.gmra.mxu0 %v6217
        %v7247 = vpop.f32.mrf.mxu0
        %v7248 = vadd.f32 %v4759, %v7247
        %v7249 = vpop.f32.mrf.mxu0
        %v7250 = vpop.f32.mrf.mxu0
        %v7251 = vadd.f32 %v4760, %v7250
        %v7252 = vpop.f32.mrf.mxu0
        %7253 = vmatprep.mubr.bf16.mxu0 %v6222
        %7254 = vmatmul.mubr.bf16.gmra.mxu0 %v6221
        %v7255 = vpop.f32.mrf.mxu0
        %v7256 = vadd.f32 %v4761, %v7255
        %v7257 = vpop.f32.mrf.mxu0
        %v7258 = vpop.f32.mrf.mxu0
        %v7259 = vadd.f32 %v4762, %v7258
        %v7260 = vpop.f32.mrf.mxu0
        %7261 = vmatprep.mubr.bf16.mxu0 %v6226
        %7262 = vmatmul.mubr.bf16.gmra.mxu0 %v6225
        %v7263 = vpop.f32.mrf.mxu0
        %v7264 = vadd.f32 %v4763, %v7263
        %v7265 = vpop.f32.mrf.mxu0
        %v7266 = vpop.f32.mrf.mxu0
        %v7267 = vadd.f32 %v4764, %v7266
        %v7268 = vpop.f32.mrf.mxu0
        %7269 = vmatprep.mubr.bf16.mxu0 %v6230
        %7270 = vmatmul.mubr.bf16.gmra.mxu0 %v6229
        %v7271 = vpop.f32.mrf.mxu0
        %v7272 = vadd.f32 %v4765, %v7271
        %v7273 = vpop.f32.mrf.mxu0
        %v7274 = vpop.f32.mrf.mxu0
        %v7275 = vadd.f32 %v4766, %v7274
        %v7276 = vpop.f32.mrf.mxu0
        %7277 = vmatprep.mubr.bf16.mxu0 %v6234
        %7278 = vmatmul.mubr.bf16.gmra.mxu0 %v6233
        %v7279 = vpop.f32.mrf.mxu0
        %v7280 = vadd.f32 %v4767, %v7279
        %v7281 = vpop.f32.mrf.mxu0
        %v7282 = vpop.f32.mrf.mxu0
        %v7283 = vadd.f32 %v4768, %v7282
        %v7284 = vpop.f32.mrf.mxu0
        %7285 = vmatprep.mubr.bf16.mxu0 %v6238
        %7286 = vmatmul.mubr.bf16.gmra.mxu0 %v6237
        %v7287 = vpop.f32.mrf.mxu0
        %v7288 = vadd.f32 %v4769, %v7287
        %v7289 = vpop.f32.mrf.mxu0
        %v7290 = vpop.f32.mrf.mxu0
        %v7291 = vadd.f32 %v4770, %v7290
        %v7292 = vpop.f32.mrf.mxu0
        %7293 = vmatprep.mubr.bf16.mxu0 %v6242
        %7294 = vmatmul.mubr.bf16.gmra.mxu0 %v6241
        %v7295 = vpop.f32.mrf.mxu0
        %v7296 = vadd.f32 %v4771, %v7295
        %v7297 = vpop.f32.mrf.mxu0
        %v7298 = vpop.f32.mrf.mxu0
        %v7299 = vadd.f32 %v4772, %v7298
        %v7300 = vpop.f32.mrf.mxu0
        %7301 = vmatprep.mubr.bf16.mxu0 %v6246
        %7302 = vmatmul.mubr.bf16.gmra.mxu0 %v6245
        %v7303 = vpop.f32.mrf.mxu0
        %v7304 = vadd.f32 %v4773, %v7303
        %v7305 = vpop.f32.mrf.mxu0
        %v7306 = vpop.f32.mrf.mxu0
        %v7307 = vadd.f32 %v4774, %v7306
        %v7308 = vpop.f32.mrf.mxu0
        %7309 = vmatprep.mubr.bf16.mxu0 %v6250
        %7310 = vmatmul.mubr.bf16.gmra.mxu0 %v6249
        %v7311 = vpop.f32.mrf.mxu0
        %v7312 = vadd.f32 %v4775, %v7311
        %v7313 = vpop.f32.mrf.mxu0
        %v7314 = vpop.f32.mrf.mxu0
        %v7315 = vadd.f32 %v4776, %v7314
        %v7316 = vpop.f32.mrf.mxu0
        %7317 = vmatprep.mubr.bf16.mxu0 %v6254
        %7318 = vmatmul.mubr.bf16.gmra.mxu0 %v6253
        %v7319 = vpop.f32.mrf.mxu0
        %v7320 = vadd.f32 %v4777, %v7319
        %v7321 = vpop.f32.mrf.mxu0
        %v7322 = vpop.f32.mrf.mxu0
        %v7323 = vadd.f32 %v4778, %v7322
        %v7324 = vpop.f32.mrf.mxu0
        %7325 = vmatprep.mubr.bf16.mxu0 %v6258
        %7326 = vmatmul.mubr.bf16.gmra.mxu0 %v6257
        %v7327 = vpop.f32.mrf.mxu0
        %v7328 = vadd.f32 %v4779, %v7327
        %v7329 = vpop.f32.mrf.mxu0
        %v7330 = vpop.f32.mrf.mxu0
        %v7331 = vadd.f32 %v4780, %v7330
        %v7332 = vpop.f32.mrf.mxu0
        %7333 = vmatprep.mubr.bf16.mxu0 %v6262
        %7334 = vmatmul.mubr.bf16.gmra.mxu0 %v6261
        %v7335 = vpop.f32.mrf.mxu0
        %v7336 = vadd.f32 %v4781, %v7335
        %v7337 = vpop.f32.mrf.mxu0
        %v7338 = vpop.f32.mrf.mxu0
        %v7339 = vadd.f32 %v4782, %v7338
        %v7340 = vpop.f32.mrf.mxu0
        %7341 = vmatprep.mubr.bf16.mxu0 %v6266
        %7342 = vmatmul.mubr.bf16.gmra.mxu0 %v6265
        %v7343 = vpop.f32.mrf.mxu0
        %v7344 = vadd.f32 %v4783, %v7343
        %v7345 = vpop.f32.mrf.mxu0
        %v7346 = vpop.f32.mrf.mxu0
        %v7347 = vadd.f32 %v4784, %v7346
        %v7348 = vpop.f32.mrf.mxu0
        %7349 = vmatprep.mubr.bf16.mxu0 %v6270
        %7350 = vmatmul.mubr.bf16.gmra.mxu0 %v6269
        %v7351 = vpop.f32.mrf.mxu0
        %v7352 = vadd.f32 %v4785, %v7351
        %v7353 = vpop.f32.mrf.mxu0
        %v7354 = vpop.f32.mrf.mxu0
        %v7355 = vadd.f32 %v4786, %v7354
        %v7356 = vpop.f32.mrf.mxu0
        %7357 = vmatprep.mubr.bf16.mxu0 %v6274
        %7358 = vmatmul.mubr.bf16.gmra.mxu0 %v6273
        %v7359 = vpop.f32.mrf.mxu0
        %v7360 = vadd.f32 %v4787, %v7359
        %v7361 = vpop.f32.mrf.mxu0
        %v7362 = vpop.f32.mrf.mxu0
        %v7363 = vadd.f32 %v4788, %v7362
        %v7364 = vpop.f32.mrf.mxu0
        %7365 = vmatprep.mubr.bf16.mxu0 %v6278
        %7366 = vmatmul.mubr.bf16.gmra.mxu0 %v6277
        %v7367 = vpop.f32.mrf.mxu0
        %v7368 = vadd.f32 %v4789, %v7367
        %v7369 = vpop.f32.mrf.mxu0
        %v7370 = vpop.f32.mrf.mxu0
        %v7371 = vadd.f32 %v4790, %v7370
        %v7372 = vpop.f32.mrf.mxu0
        %7373 = vmatprep.mubr.bf16.mxu0 %v6282
        %7374 = vmatmul.mubr.bf16.gmra.mxu0 %v6281
        %v7375 = vpop.f32.mrf.mxu0
        %v7376 = vadd.f32 %v4791, %v7375
        %v7377 = vpop.f32.mrf.mxu0
        %v7378 = vpop.f32.mrf.mxu0
        %v7379 = vadd.f32 %v4792, %v7378
        %v7380 = vpop.f32.mrf.mxu0
        %7381 = vmatprep.mubr.bf16.mxu0 %v6286
        %7382 = vmatmul.mubr.bf16.gmra.mxu0 %v6285
        %v7383 = vpop.f32.mrf.mxu0
        %v7384 = vadd.f32 %v4793, %v7383
        %v7385 = vpop.f32.mrf.mxu0
        %v7386 = vpop.f32.mrf.mxu0
        %v7387 = vadd.f32 %v4794, %v7386
        %v7388 = vpop.f32.mrf.mxu0
        %7389 = vmatprep.mubr.bf16.mxu0 %v6290
        %7390 = vmatmul.mubr.bf16.gmra.mxu0 %v6289
        %v7391 = vpop.f32.mrf.mxu0
        %v7392 = vadd.f32 %v4795, %v7391
        %v7393 = vpop.f32.mrf.mxu0
        %v7394 = vpop.f32.mrf.mxu0
        %v7395 = vadd.f32 %v4796, %v7394
        %v7396 = vpop.f32.mrf.mxu0
        %7397 = vmatprep.mubr.bf16.mxu0 %v6294
        %7398 = vmatmul.mubr.bf16.gmra.mxu0 %v6293
        %v7399 = vpop.f32.mrf.mxu0
        %v7400 = vadd.f32 %v4797, %v7399
        %v7401 = vpop.f32.mrf.mxu0
        %v7402 = vpop.f32.mrf.mxu0
        %v7403 = vadd.f32 %v4798, %v7402
        %v7404 = vpop.f32.mrf.mxu0
        %7405 = vmatprep.mubr.bf16.mxu0 %v6298
        %7406 = vmatmul.mubr.bf16.gmra.mxu0 %v6297
        %v7407 = vpop.f32.mrf.mxu0
        %v7408 = vadd.f32 %v4799, %v7407
        %v7409 = vpop.f32.mrf.mxu0
        %v7410 = vpop.f32.mrf.mxu0
        %v7411 = vadd.f32 %v4800, %v7410
        %v7412 = vpop.f32.mrf.mxu0
        %7413 = vmatprep.mubr.bf16.mxu0 %v6302
        %7414 = vmatmul.mubr.bf16.gmra.mxu0 %v6301
        %v7415 = vpop.f32.mrf.mxu0
        %v7416 = vadd.f32 %v4801, %v7415
        %v7417 = vpop.f32.mrf.mxu0
        %v7418 = vpop.f32.mrf.mxu0
        %v7419 = vadd.f32 %v4802, %v7418
        %v7420 = vpop.f32.mrf.mxu0
        %7421 = vmatprep.mubr.bf16.mxu0 %v6306
        %7422 = vmatmul.mubr.bf16.gmra.mxu0 %v6305
        %v7423 = vpop.f32.mrf.mxu0
        %v7424 = vadd.f32 %v4803, %v7423
        %v7425 = vpop.f32.mrf.mxu0
        %v7426 = vpop.f32.mrf.mxu0
        %v7427 = vadd.f32 %v4804, %v7426
        %v7428 = vpop.f32.mrf.mxu0
        %7429 = vmatprep.mubr.bf16.mxu0 %v6310
        %7430 = vmatmul.mubr.bf16.gmra.mxu0 %v6309
        %v7431 = vpop.f32.mrf.mxu0
        %v7432 = vadd.f32 %v4805, %v7431
        %v7433 = vpop.f32.mrf.mxu0
        %v7434 = vpop.f32.mrf.mxu0
        %v7435 = vadd.f32 %v4806, %v7434
        %v7436 = vpop.f32.mrf.mxu0
        %7437 = vmatprep.mubr.bf16.mxu0 %v6314
        %7438 = vmatmul.mubr.bf16.gmra.mxu0 %v6313
        %v7439 = vpop.f32.mrf.mxu0
        %v7440 = vadd.f32 %v4807, %v7439
        %v7441 = vpop.f32.mrf.mxu0
        %v7442 = vpop.f32.mrf.mxu0
        %v7443 = vadd.f32 %v4808, %v7442
        %v7444 = vpop.f32.mrf.mxu0
        %7445 = vmatprep.mubr.bf16.mxu0 %v6318
        %7446 = vmatmul.mubr.bf16.gmra.mxu0 %v6317
        %v7447 = vpop.f32.mrf.mxu0
        %v7448 = vadd.f32 %v4809, %v7447
        %v7449 = vpop.f32.mrf.mxu0
        %v7450 = vpop.f32.mrf.mxu0
        %v7451 = vadd.f32 %v4810, %v7450
        %v7452 = vpop.f32.mrf.mxu0
        %7453 = vmatprep.mubr.bf16.mxu0 %v6322
        %7454 = vmatmul.mubr.bf16.gmra.mxu0 %v6321
        %v7455 = vpop.f32.mrf.mxu0
        %v7456 = vadd.f32 %v4811, %v7455
        %v7457 = vpop.f32.mrf.mxu0
        %v7458 = vpop.f32.mrf.mxu0
        %v7459 = vadd.f32 %v4812, %v7458
        %v7460 = vpop.f32.mrf.mxu0
        %7461 = vmatprep.mubr.bf16.mxu0 %v6326
        %7462 = vmatmul.mubr.bf16.gmra.mxu0 %v6325
        %v7463 = vpop.f32.mrf.mxu0
        %v7464 = vadd.f32 %v4813, %v7463
        %v7465 = vpop.f32.mrf.mxu0
        %v7466 = vpop.f32.mrf.mxu0
        %v7467 = vadd.f32 %v4814, %v7466
        %v7468 = vpop.f32.mrf.mxu0
        %7469 = vmatprep.mubr.bf16.mxu0 %v6330
        %7470 = vmatmul.mubr.bf16.gmra.mxu0 %v6329
        %v7471 = vpop.f32.mrf.mxu0
        %v7472 = vadd.f32 %v4815, %v7471
        %v7473 = vpop.f32.mrf.mxu0
        %v7474 = vpop.f32.mrf.mxu0
        %v7475 = vadd.f32 %v4816, %v7474
        %v7476 = vpop.f32.mrf.mxu0
        %7477 = vmatprep.mubr.bf16.mxu0 %v6334
        %7478 = vmatmul.mubr.bf16.gmra.mxu0 %v6333
        %v7479 = vpop.f32.mrf.mxu0
        %v7480 = vadd.f32 %v4817, %v7479
        %v7481 = vpop.f32.mrf.mxu0
        %v7482 = vpop.f32.mrf.mxu0
        %v7483 = vadd.f32 %v4818, %v7482
        %v7484 = vpop.f32.mrf.mxu0
        %7485 = vmatprep.mubr.bf16.mxu0 %v6338
        %7486 = vmatmul.mubr.bf16.gmra.mxu0 %v6337
        %v7487 = vpop.f32.mrf.mxu0
        %v7488 = vadd.f32 %v4819, %v7487
        %v7489 = vpop.f32.mrf.mxu0
        %v7490 = vpop.f32.mrf.mxu0
        %v7491 = vadd.f32 %v4820, %v7490
        %v7492 = vpop.f32.mrf.mxu0
        %7493 = vmatprep.mubr.bf16.mxu0 %v6342
        %7494 = vmatmul.mubr.bf16.gmra.mxu0 %v6341
        %v7495 = vpop.f32.mrf.mxu0
        %v7496 = vadd.f32 %v4821, %v7495
        %v7497 = vpop.f32.mrf.mxu0
        %v7498 = vpop.f32.mrf.mxu0
        %v7499 = vadd.f32 %v4822, %v7498
        %v7500 = vpop.f32.mrf.mxu0
        %7501 = vmatprep.mubr.bf16.mxu0 %v6346
        %7502 = vmatmul.mubr.bf16.gmra.mxu0 %v6345
        %v7503 = vpop.f32.mrf.mxu0
        %v7504 = vadd.f32 %v4823, %v7503
        %v7505 = vpop.f32.mrf.mxu0
        %v7506 = vpop.f32.mrf.mxu0
        %v7507 = vadd.f32 %v4824, %v7506
        %v7508 = vpop.f32.mrf.mxu0
        %7509 = vmatprep.mubr.bf16.mxu0 %v6350
        %7510 = vmatmul.mubr.bf16.gmra.mxu0 %v6349
        %v7511 = vpop.f32.mrf.mxu0
        %v7512 = vadd.f32 %v4825, %v7511
        %v7513 = vpop.f32.mrf.mxu0
        %v7514 = vpop.f32.mrf.mxu0
        %v7515 = vadd.f32 %v4826, %v7514
        %v7516 = vpop.f32.mrf.mxu0
        %7517 = vmatprep.mubr.bf16.mxu0 %v6354
        %7518 = vmatmul.mubr.bf16.gmra.mxu0 %v6353
        %v7519 = vpop.f32.mrf.mxu0
        %v7520 = vadd.f32 %v4827, %v7519
        %v7521 = vpop.f32.mrf.mxu0
        %v7522 = vpop.f32.mrf.mxu0
        %v7523 = vadd.f32 %v4828, %v7522
        %v7524 = vpop.f32.mrf.mxu0
        %7525 = vmatprep.mubr.bf16.mxu0 %v6358
        %7526 = vmatmul.mubr.bf16.gmra.mxu0 %v6357
        %v7527 = vpop.f32.mrf.mxu0
        %v7528 = vadd.f32 %v4829, %v7527
        %v7529 = vpop.f32.mrf.mxu0
        %v7530 = vpop.f32.mrf.mxu0
        %v7531 = vadd.f32 %v4830, %v7530
        %v7532 = vpop.f32.mrf.mxu0
        %7533 = vmatprep.mubr.bf16.mxu0 %v6362
        %7534 = vmatmul.mubr.bf16.gmra.mxu0 %v6361
        %v7535 = vpop.f32.mrf.mxu0
        %v7536 = vadd.f32 %v4831, %v7535
        %v7537 = vpop.f32.mrf.mxu0
        %v7538 = vpop.f32.mrf.mxu0
        %v7539 = vadd.f32 %v4832, %v7538
        %v7540 = vpop.f32.mrf.mxu0
        %7541 = vmatprep.mubr.bf16.mxu0 %v6366
        %7542 = vmatmul.mubr.bf16.gmra.mxu0 %v6365
        %v7543 = vpop.f32.mrf.mxu0
        %v7544 = vadd.f32 %v4833, %v7543
        %v7545 = vpop.f32.mrf.mxu0
        %v7546 = vpop.f32.mrf.mxu0
        %v7547 = vadd.f32 %v4834, %v7546
        %v7548 = vpop.f32.mrf.mxu0
        %7549 = vmatprep.mubr.bf16.mxu0 %v6370
        %7550 = vmatmul.mubr.bf16.gmra.mxu0 %v6369
        %v7551 = vpop.f32.mrf.mxu0
        %v7552 = vadd.f32 %v4835, %v7551
        %v7553 = vpop.f32.mrf.mxu0
        %v7554 = vpop.f32.mrf.mxu0
        %v7555 = vadd.f32 %v4836, %v7554
        %v7556 = vpop.f32.mrf.mxu0
        %7557 = vdwg.mxu0
        %7558 = vmatprep.subr.bf16.mxu0 0
        %7559 = vmatpush1.bf16.msra.mxu0 %v4252
        %7560 = vmatprep.subr.bf16.mxu0 0
        %7561 = vmatpush1.bf16.msra.mxu0 %v4251
        %7562 = vmatprep.subr.bf16.mxu0 0
        %7563 = vmatpush1.bf16.msra.mxu0 %v4250
        %7564 = vmatprep.subr.bf16.mxu0 0
        %7565 = vmatpush1.bf16.msra.mxu0 %v4249
        %7566 = vmatprep.subr.bf16.mxu0 0
        %7567 = vmatpush1.bf16.msra.mxu0 %v4248
        %7568 = vmatprep.subr.bf16.mxu0 0
        %7569 = vmatpush1.bf16.msra.mxu0 %v4247
        %7570 = vmatprep.subr.bf16.mxu0 0
        %7571 = vmatpush1.bf16.msra.mxu0 %v4246
        %7572 = vmatprep.subr.bf16.mxu0 0
        %7573 = vmatpush1.bf16.msra.mxu0 %v4245
        %7574 = vmatprep.subr.bf16.mxu0 0
        %7575 = vmatpush2.bf16.msra.mxu0 %v4260
        %7576 = vmatprep.subr.bf16.mxu0 0
        %7577 = vmatpush2.bf16.msra.mxu0 %v4259
        %7578 = vmatprep.subr.bf16.mxu0 0
        %7579 = vmatpush2.bf16.msra.mxu0 %v4258
        %7580 = vmatprep.subr.bf16.mxu0 0
        %7581 = vmatpush2.bf16.msra.mxu0 %v4257
        %7582 = vmatprep.subr.bf16.mxu0 0
        %7583 = vmatpush2.bf16.msra.mxu0 %v4256
        %7584 = vmatprep.subr.bf16.mxu0 0
        %7585 = vmatpush2.bf16.msra.mxu0 %v4255
        %7586 = vmatprep.subr.bf16.mxu0 0
        %7587 = vmatpush2.bf16.msra.mxu0 %v4254
        %7588 = vmatprep.subr.bf16.mxu0 0
        %7589 = vmatpush2.bf16.msra.mxu0 %v4253
        %7590 = vmatprep.mubr.bf16.mxu0 %v5992
        %7591 = vmatmul.mubr.bf16.gmra.mxu0 %v5991
        %v7592 = vpop.f32.mrf.mxu0
        %v7593 = vadd.f32 %v6792, %v7592
        %v7594 = vpop.f32.mrf.mxu0
        %v7595 = vpop.f32.mrf.mxu0
        %v7596 = vadd.f32 %v6795, %v7595
        %v7597 = vpop.f32.mrf.mxu0
        %7598 = vmatprep.mubr.bf16.mxu0 %v5996
        %7599 = vmatmul.mubr.bf16.gmra.mxu0 %v5995
        %v7600 = vpop.f32.mrf.mxu0
        %v7601 = vadd.f32 %v6800, %v7600
        %v7602 = vpop.f32.mrf.mxu0
        %v7603 = vpop.f32.mrf.mxu0
        %v7604 = vadd.f32 %v6803, %v7603
        %v7605 = vpop.f32.mrf.mxu0
        %7606 = vmatprep.mubr.bf16.mxu0 %v6000
        %7607 = vmatmul.mubr.bf16.gmra.mxu0 %v5999
        %v7608 = vpop.f32.mrf.mxu0
        %v7609 = vadd.f32 %v6808, %v7608
        %v7610 = vpop.f32.mrf.mxu0
        %v7611 = vpop.f32.mrf.mxu0
        %v7612 = vadd.f32 %v6811, %v7611
        %v7613 = vpop.f32.mrf.mxu0
        %7614 = vmatprep.mubr.bf16.mxu0 %v6004
        %7615 = vmatmul.mubr.bf16.gmra.mxu0 %v6003
        %v7616 = vpop.f32.mrf.mxu0
        %v7617 = vadd.f32 %v6816, %v7616
        %v7618 = vpop.f32.mrf.mxu0
        %v7619 = vpop.f32.mrf.mxu0
        %v7620 = vadd.f32 %v6819, %v7619
        %v7621 = vpop.f32.mrf.mxu0
        %7622 = vmatprep.mubr.bf16.mxu0 %v6008
        %7623 = vmatmul.mubr.bf16.gmra.mxu0 %v6007
        %v7624 = vpop.f32.mrf.mxu0
        %v7625 = vadd.f32 %v6824, %v7624
        %v7626 = vpop.f32.mrf.mxu0
        %v7627 = vpop.f32.mrf.mxu0
        %v7628 = vadd.f32 %v6827, %v7627
        %v7629 = vpop.f32.mrf.mxu0
        %7630 = vmatprep.mubr.bf16.mxu0 %v6012
        %7631 = vmatmul.mubr.bf16.gmra.mxu0 %v6011
        %v7632 = vpop.f32.mrf.mxu0
        %v7633 = vadd.f32 %v6832, %v7632
        %v7634 = vpop.f32.mrf.mxu0
        %v7635 = vpop.f32.mrf.mxu0
        %v7636 = vadd.f32 %v6835, %v7635
        %v7637 = vpop.f32.mrf.mxu0
        %7638 = vmatprep.mubr.bf16.mxu0 %v6016
        %7639 = vmatmul.mubr.bf16.gmra.mxu0 %v6015
        %v7640 = vpop.f32.mrf.mxu0
        %v7641 = vadd.f32 %v6840, %v7640
        %v7642 = vpop.f32.mrf.mxu0
        %v7643 = vpop.f32.mrf.mxu0
        %v7644 = vadd.f32 %v6843, %v7643
        %v7645 = vpop.f32.mrf.mxu0
        %7646 = vmatprep.mubr.bf16.mxu0 %v6020
        %7647 = vmatmul.mubr.bf16.gmra.mxu0 %v6019
        %v7648 = vpop.f32.mrf.mxu0
        %v7649 = vadd.f32 %v6848, %v7648
        %v7650 = vpop.f32.mrf.mxu0
        %v7651 = vpop.f32.mrf.mxu0
        %v7652 = vadd.f32 %v6851, %v7651
        %v7653 = vpop.f32.mrf.mxu0
        %7654 = vmatprep.mubr.bf16.mxu0 %v6024
        %7655 = vmatmul.mubr.bf16.gmra.mxu0 %v6023
        %v7656 = vpop.f32.mrf.mxu0
        %v7657 = vadd.f32 %v6856, %v7656
        %v7658 = vpop.f32.mrf.mxu0
        %v7659 = vpop.f32.mrf.mxu0
        %v7660 = vadd.f32 %v6859, %v7659
        %v7661 = vpop.f32.mrf.mxu0
        %7662 = vmatprep.mubr.bf16.mxu0 %v6028
        %7663 = vmatmul.mubr.bf16.gmra.mxu0 %v6027
        %v7664 = vpop.f32.mrf.mxu0
        %v7665 = vadd.f32 %v6864, %v7664
        %v7666 = vpop.f32.mrf.mxu0
        %v7667 = vpop.f32.mrf.mxu0
        %v7668 = vadd.f32 %v6867, %v7667
        %v7669 = vpop.f32.mrf.mxu0
        %7670 = vmatprep.mubr.bf16.mxu0 %v6032
        %7671 = vmatmul.mubr.bf16.gmra.mxu0 %v6031
        %v7672 = vpop.f32.mrf.mxu0
        %v7673 = vadd.f32 %v6872, %v7672
        %v7674 = vpop.f32.mrf.mxu0
        %v7675 = vpop.f32.mrf.mxu0
        %v7676 = vadd.f32 %v6875, %v7675
        %v7677 = vpop.f32.mrf.mxu0
        %7678 = vmatprep.mubr.bf16.mxu0 %v6036
        %7679 = vmatmul.mubr.bf16.gmra.mxu0 %v6035
        %v7680 = vpop.f32.mrf.mxu0
        %v7681 = vadd.f32 %v6880, %v7680
        %v7682 = vpop.f32.mrf.mxu0
        %v7683 = vpop.f32.mrf.mxu0
        %v7684 = vadd.f32 %v6883, %v7683
        %v7685 = vpop.f32.mrf.mxu0
        %7686 = vmatprep.mubr.bf16.mxu0 %v6040
        %7687 = vmatmul.mubr.bf16.gmra.mxu0 %v6039
        %v7688 = vpop.f32.mrf.mxu0
        %v7689 = vadd.f32 %v6888, %v7688
        %v7690 = vpop.f32.mrf.mxu0
        %v7691 = vpop.f32.mrf.mxu0
        %v7692 = vadd.f32 %v6891, %v7691
        %v7693 = vpop.f32.mrf.mxu0
        %7694 = vmatprep.mubr.bf16.mxu0 %v6044
        %7695 = vmatmul.mubr.bf16.gmra.mxu0 %v6043
        %v7696 = vpop.f32.mrf.mxu0
        %v7697 = vadd.f32 %v6896, %v7696
        %v7698 = vpop.f32.mrf.mxu0
        %v7699 = vpop.f32.mrf.mxu0
        %v7700 = vadd.f32 %v6899, %v7699
        %v7701 = vpop.f32.mrf.mxu0
        %7702 = vmatprep.mubr.bf16.mxu0 %v6048
        %7703 = vmatmul.mubr.bf16.gmra.mxu0 %v6047
        %v7704 = vpop.f32.mrf.mxu0
        %v7705 = vadd.f32 %v6904, %v7704
        %v7706 = vpop.f32.mrf.mxu0
        %v7707 = vpop.f32.mrf.mxu0
        %v7708 = vadd.f32 %v6907, %v7707
        %v7709 = vpop.f32.mrf.mxu0
        %7710 = vmatprep.mubr.bf16.mxu0 %v6052
        %7711 = vmatmul.mubr.bf16.gmra.mxu0 %v6051
        %v7712 = vpop.f32.mrf.mxu0
        %v7713 = vadd.f32 %v6912, %v7712
        %v7714 = vpop.f32.mrf.mxu0
        %v7715 = vpop.f32.mrf.mxu0
        %v7716 = vadd.f32 %v6915, %v7715
        %v7717 = vpop.f32.mrf.mxu0
        %7718 = vmatprep.mubr.bf16.mxu0 %v6056
        %7719 = vmatmul.mubr.bf16.gmra.mxu0 %v6055
        %v7720 = vpop.f32.mrf.mxu0
        %v7721 = vadd.f32 %v6920, %v7720
        %v7722 = vpop.f32.mrf.mxu0
        %v7723 = vpop.f32.mrf.mxu0
        %v7724 = vadd.f32 %v6923, %v7723
        %v7725 = vpop.f32.mrf.mxu0
        %7726 = vmatprep.mubr.bf16.mxu0 %v6060
        %7727 = vmatmul.mubr.bf16.gmra.mxu0 %v6059
        %v7728 = vpop.f32.mrf.mxu0
        %v7729 = vadd.f32 %v6928, %v7728
        %v7730 = vpop.f32.mrf.mxu0
        %v7731 = vpop.f32.mrf.mxu0
        %v7732 = vadd.f32 %v6931, %v7731
        %v7733 = vpop.f32.mrf.mxu0
        %7734 = vmatprep.mubr.bf16.mxu0 %v6064
        %7735 = vmatmul.mubr.bf16.gmra.mxu0 %v6063
        %v7736 = vpop.f32.mrf.mxu0
        %v7737 = vadd.f32 %v6936, %v7736
        %v7738 = vpop.f32.mrf.mxu0
        %v7739 = vpop.f32.mrf.mxu0
        %v7740 = vadd.f32 %v6939, %v7739
        %v7741 = vpop.f32.mrf.mxu0
        %7742 = vmatprep.mubr.bf16.mxu0 %v6068
        %7743 = vmatmul.mubr.bf16.gmra.mxu0 %v6067
        %v7744 = vpop.f32.mrf.mxu0
        %v7745 = vadd.f32 %v6944, %v7744
        %v7746 = vpop.f32.mrf.mxu0
        %v7747 = vpop.f32.mrf.mxu0
        %v7748 = vadd.f32 %v6947, %v7747
        %v7749 = vpop.f32.mrf.mxu0
        %7750 = vmatprep.mubr.bf16.mxu0 %v6072
        %7751 = vmatmul.mubr.bf16.gmra.mxu0 %v6071
        %v7752 = vpop.f32.mrf.mxu0
        %v7753 = vadd.f32 %v6952, %v7752
        %v7754 = vpop.f32.mrf.mxu0
        %v7755 = vpop.f32.mrf.mxu0
        %v7756 = vadd.f32 %v6955, %v7755
        %v7757 = vpop.f32.mrf.mxu0
        %7758 = vmatprep.mubr.bf16.mxu0 %v6076
        %7759 = vmatmul.mubr.bf16.gmra.mxu0 %v6075
        %v7760 = vpop.f32.mrf.mxu0
        %v7761 = vadd.f32 %v6960, %v7760
        %v7762 = vpop.f32.mrf.mxu0
        %v7763 = vpop.f32.mrf.mxu0
        %v7764 = vadd.f32 %v6963, %v7763
        %v7765 = vpop.f32.mrf.mxu0
        %7766 = vmatprep.mubr.bf16.mxu0 %v6080
        %7767 = vmatmul.mubr.bf16.gmra.mxu0 %v6079
        %v7768 = vpop.f32.mrf.mxu0
        %v7769 = vadd.f32 %v6968, %v7768
        %v7770 = vpop.f32.mrf.mxu0
        %v7771 = vpop.f32.mrf.mxu0
        %v7772 = vadd.f32 %v6971, %v7771
        %v7773 = vpop.f32.mrf.mxu0
        %7774 = vmatprep.mubr.bf16.mxu0 %v6084
        %7775 = vmatmul.mubr.bf16.gmra.mxu0 %v6083
        %v7776 = vpop.f32.mrf.mxu0
        %v7777 = vadd.f32 %v6976, %v7776
        %v7778 = vpop.f32.mrf.mxu0
        %v7779 = vpop.f32.mrf.mxu0
        %v7780 = vadd.f32 %v6979, %v7779
        %v7781 = vpop.f32.mrf.mxu0
        %7782 = vmatprep.mubr.bf16.mxu0 %v6088
        %7783 = vmatmul.mubr.bf16.gmra.mxu0 %v6087
        %v7784 = vpop.f32.mrf.mxu0
        %v7785 = vadd.f32 %v6984, %v7784
        %v7786 = vpop.f32.mrf.mxu0
        %v7787 = vpop.f32.mrf.mxu0
        %v7788 = vadd.f32 %v6987, %v7787
        %v7789 = vpop.f32.mrf.mxu0
        %7790 = vmatprep.mubr.bf16.mxu0 %v6092
        %7791 = vmatmul.mubr.bf16.gmra.mxu0 %v6091
        %v7792 = vpop.f32.mrf.mxu0
        %v7793 = vadd.f32 %v6992, %v7792
        %v7794 = vpop.f32.mrf.mxu0
        %v7795 = vpop.f32.mrf.mxu0
        %v7796 = vadd.f32 %v6995, %v7795
        %v7797 = vpop.f32.mrf.mxu0
        %7798 = vmatprep.mubr.bf16.mxu0 %v6096
        %7799 = vmatmul.mubr.bf16.gmra.mxu0 %v6095
        %v7800 = vpop.f32.mrf.mxu0
        %v7801 = vadd.f32 %v7000, %v7800
        %v7802 = vpop.f32.mrf.mxu0
        %v7803 = vpop.f32.mrf.mxu0
        %v7804 = vadd.f32 %v7003, %v7803
        %v7805 = vpop.f32.mrf.mxu0
        %7806 = vmatprep.mubr.bf16.mxu0 %v6100
        %7807 = vmatmul.mubr.bf16.gmra.mxu0 %v6099
        %v7808 = vpop.f32.mrf.mxu0
        %v7809 = vadd.f32 %v7008, %v7808
        %v7810 = vpop.f32.mrf.mxu0
        %v7811 = vpop.f32.mrf.mxu0
        %v7812 = vadd.f32 %v7011, %v7811
        %v7813 = vpop.f32.mrf.mxu0
        %7814 = vmatprep.mubr.bf16.mxu0 %v6104
        %7815 = vmatmul.mubr.bf16.gmra.mxu0 %v6103
        %v7816 = vpop.f32.mrf.mxu0
        %v7817 = vadd.f32 %v7016, %v7816
        %v7818 = vpop.f32.mrf.mxu0
        %v7819 = vpop.f32.mrf.mxu0
        %v7820 = vadd.f32 %v7019, %v7819
        %v7821 = vpop.f32.mrf.mxu0
        %7822 = vmatprep.mubr.bf16.mxu0 %v6108
        %7823 = vmatmul.mubr.bf16.gmra.mxu0 %v6107
        %v7824 = vpop.f32.mrf.mxu0
        %v7825 = vadd.f32 %v7024, %v7824
        %v7826 = vpop.f32.mrf.mxu0
        %v7827 = vpop.f32.mrf.mxu0
        %v7828 = vadd.f32 %v7027, %v7827
        %v7829 = vpop.f32.mrf.mxu0
        %7830 = vmatprep.mubr.bf16.mxu0 %v6112
        %7831 = vmatmul.mubr.bf16.gmra.mxu0 %v6111
        %v7832 = vpop.f32.mrf.mxu0
        %v7833 = vadd.f32 %v7032, %v7832
        %v7834 = vpop.f32.mrf.mxu0
        %v7835 = vpop.f32.mrf.mxu0
        %v7836 = vadd.f32 %v7035, %v7835
        %v7837 = vpop.f32.mrf.mxu0
        %7838 = vmatprep.mubr.bf16.mxu0 %v6116
        %7839 = vmatmul.mubr.bf16.gmra.mxu0 %v6115
        %v7840 = vpop.f32.mrf.mxu0
        %v7841 = vadd.f32 %v7040, %v7840
        %v7842 = vpop.f32.mrf.mxu0
        %v7843 = vpop.f32.mrf.mxu0
        %v7844 = vadd.f32 %v7043, %v7843
        %v7845 = vpop.f32.mrf.mxu0
        %7846 = vmatprep.mubr.bf16.mxu0 %v6120
        %7847 = vmatmul.mubr.bf16.gmra.mxu0 %v6119
        %v7848 = vpop.f32.mrf.mxu0
        %v7849 = vadd.f32 %v7048, %v7848
        %v7850 = vpop.f32.mrf.mxu0
        %v7851 = vpop.f32.mrf.mxu0
        %v7852 = vadd.f32 %v7051, %v7851
        %v7853 = vpop.f32.mrf.mxu0
        %7854 = vmatprep.mubr.bf16.mxu0 %v6124
        %7855 = vmatmul.mubr.bf16.gmra.mxu0 %v6123
        %v7856 = vpop.f32.mrf.mxu0
        %v7857 = vadd.f32 %v7056, %v7856
        %v7858 = vpop.f32.mrf.mxu0
        %v7859 = vpop.f32.mrf.mxu0
        %v7860 = vadd.f32 %v7059, %v7859
        %v7861 = vpop.f32.mrf.mxu0
        %7862 = vmatprep.mubr.bf16.mxu0 %v6128
        %7863 = vmatmul.mubr.bf16.gmra.mxu0 %v6127
        %v7864 = vpop.f32.mrf.mxu0
        %v7865 = vadd.f32 %v7064, %v7864
        %v7866 = vpop.f32.mrf.mxu0
        %v7867 = vpop.f32.mrf.mxu0
        %v7868 = vadd.f32 %v7067, %v7867
        %v7869 = vpop.f32.mrf.mxu0
        %7870 = vmatprep.mubr.bf16.mxu0 %v6132
        %7871 = vmatmul.mubr.bf16.gmra.mxu0 %v6131
        %v7872 = vpop.f32.mrf.mxu0
        %v7873 = vadd.f32 %v7072, %v7872
        %v7874 = vpop.f32.mrf.mxu0
        %v7875 = vpop.f32.mrf.mxu0
        %v7876 = vadd.f32 %v7075, %v7875
        %v7877 = vpop.f32.mrf.mxu0
        %7878 = vmatprep.mubr.bf16.mxu0 %v6136
        %7879 = vmatmul.mubr.bf16.gmra.mxu0 %v6135
        %v7880 = vpop.f32.mrf.mxu0
        %v7881 = vadd.f32 %v7080, %v7880
        %v7882 = vpop.f32.mrf.mxu0
        %v7883 = vpop.f32.mrf.mxu0
        %v7884 = vadd.f32 %v7083, %v7883
        %v7885 = vpop.f32.mrf.mxu0
        %7886 = vmatprep.mubr.bf16.mxu0 %v6140
        %7887 = vmatmul.mubr.bf16.gmra.mxu0 %v6139
        %v7888 = vpop.f32.mrf.mxu0
        %v7889 = vadd.f32 %v7088, %v7888
        %v7890 = vpop.f32.mrf.mxu0
        %v7891 = vpop.f32.mrf.mxu0
        %v7892 = vadd.f32 %v7091, %v7891
        %v7893 = vpop.f32.mrf.mxu0
        %7894 = vmatprep.mubr.bf16.mxu0 %v6144
        %7895 = vmatmul.mubr.bf16.gmra.mxu0 %v6143
        %v7896 = vpop.f32.mrf.mxu0
        %v7897 = vadd.f32 %v7096, %v7896
        %v7898 = vpop.f32.mrf.mxu0
        %v7899 = vpop.f32.mrf.mxu0
        %v7900 = vadd.f32 %v7099, %v7899
        %v7901 = vpop.f32.mrf.mxu0
        %7902 = vmatprep.mubr.bf16.mxu0 %v6148
        %7903 = vmatmul.mubr.bf16.gmra.mxu0 %v6147
        %v7904 = vpop.f32.mrf.mxu0
        %v7905 = vadd.f32 %v7104, %v7904
        %v7906 = vpop.f32.mrf.mxu0
        %v7907 = vpop.f32.mrf.mxu0
        %v7908 = vadd.f32 %v7107, %v7907
        %v7909 = vpop.f32.mrf.mxu0
        %7910 = vmatprep.mubr.bf16.mxu0 %v6152
        %7911 = vmatmul.mubr.bf16.gmra.mxu0 %v6151
        %v7912 = vpop.f32.mrf.mxu0
        %v7913 = vadd.f32 %v7112, %v7912
        %v7914 = vpop.f32.mrf.mxu0
        %v7915 = vpop.f32.mrf.mxu0
        %v7916 = vadd.f32 %v7115, %v7915
        %v7917 = vpop.f32.mrf.mxu0
        %7918 = vmatprep.mubr.bf16.mxu0 %v6156
        %7919 = vmatmul.mubr.bf16.gmra.mxu0 %v6155
        %v7920 = vpop.f32.mrf.mxu0
        %v7921 = vadd.f32 %v7120, %v7920
        %v7922 = vpop.f32.mrf.mxu0
        %v7923 = vpop.f32.mrf.mxu0
        %v7924 = vadd.f32 %v7123, %v7923
        %v7925 = vpop.f32.mrf.mxu0
        %7926 = vmatprep.mubr.bf16.mxu0 %v6160
        %7927 = vmatmul.mubr.bf16.gmra.mxu0 %v6159
        %v7928 = vpop.f32.mrf.mxu0
        %v7929 = vadd.f32 %v7128, %v7928
        %v7930 = vpop.f32.mrf.mxu0
        %v7931 = vpop.f32.mrf.mxu0
        %v7932 = vadd.f32 %v7131, %v7931
        %v7933 = vpop.f32.mrf.mxu0
        %7934 = vmatprep.mubr.bf16.mxu0 %v6164
        %7935 = vmatmul.mubr.bf16.gmra.mxu0 %v6163
        %v7936 = vpop.f32.mrf.mxu0
        %v7937 = vadd.f32 %v7136, %v7936
        %v7938 = vpop.f32.mrf.mxu0
        %v7939 = vpop.f32.mrf.mxu0
        %v7940 = vadd.f32 %v7139, %v7939
        %v7941 = vpop.f32.mrf.mxu0
        %7942 = vmatprep.mubr.bf16.mxu0 %v6168
        %7943 = vmatmul.mubr.bf16.gmra.mxu0 %v6167
        %v7944 = vpop.f32.mrf.mxu0
        %v7945 = vadd.f32 %v7144, %v7944
        %v7946 = vpop.f32.mrf.mxu0
        %v7947 = vpop.f32.mrf.mxu0
        %v7948 = vadd.f32 %v7147, %v7947
        %v7949 = vpop.f32.mrf.mxu0
        %7950 = vmatprep.mubr.bf16.mxu0 %v6172
        %7951 = vmatmul.mubr.bf16.gmra.mxu0 %v6171
        %v7952 = vpop.f32.mrf.mxu0
        %v7953 = vadd.f32 %v7152, %v7952
        %v7954 = vpop.f32.mrf.mxu0
        %v7955 = vpop.f32.mrf.mxu0
        %v7956 = vadd.f32 %v7155, %v7955
        %v7957 = vpop.f32.mrf.mxu0
        %7958 = vmatprep.mubr.bf16.mxu0 %v6176
        %7959 = vmatmul.mubr.bf16.gmra.mxu0 %v6175
        %v7960 = vpop.f32.mrf.mxu0
        %v7961 = vadd.f32 %v7160, %v7960
        %v7962 = vpop.f32.mrf.mxu0
        %v7963 = vpop.f32.mrf.mxu0
        %v7964 = vadd.f32 %v7163, %v7963
        %v7965 = vpop.f32.mrf.mxu0
        %7966 = vmatprep.mubr.bf16.mxu0 %v6180
        %7967 = vmatmul.mubr.bf16.gmra.mxu0 %v6179
        %v7968 = vpop.f32.mrf.mxu0
        %v7969 = vadd.f32 %v7168, %v7968
        %v7970 = vpop.f32.mrf.mxu0
        %v7971 = vpop.f32.mrf.mxu0
        %v7972 = vadd.f32 %v7171, %v7971
        %v7973 = vpop.f32.mrf.mxu0
        %7974 = vmatprep.mubr.bf16.mxu0 %v6184
        %7975 = vmatmul.mubr.bf16.gmra.mxu0 %v6183
        %v7976 = vpop.f32.mrf.mxu0
        %v7977 = vadd.f32 %v7176, %v7976
        %v7978 = vpop.f32.mrf.mxu0
        %v7979 = vpop.f32.mrf.mxu0
        %v7980 = vadd.f32 %v7179, %v7979
        %v7981 = vpop.f32.mrf.mxu0
        %7982 = vmatprep.mubr.bf16.mxu0 %v6188
        %7983 = vmatmul.mubr.bf16.gmra.mxu0 %v6187
        %v7984 = vpop.f32.mrf.mxu0
        %v7985 = vadd.f32 %v7184, %v7984
        %v7986 = vpop.f32.mrf.mxu0
        %v7987 = vpop.f32.mrf.mxu0
        %v7988 = vadd.f32 %v7187, %v7987
        %v7989 = vpop.f32.mrf.mxu0
        %7990 = vmatprep.mubr.bf16.mxu0 %v6192
        %7991 = vmatmul.mubr.bf16.gmra.mxu0 %v6191
        %v7992 = vpop.f32.mrf.mxu0
        %v7993 = vadd.f32 %v7192, %v7992
        %v7994 = vpop.f32.mrf.mxu0
        %v7995 = vpop.f32.mrf.mxu0
        %v7996 = vadd.f32 %v7195, %v7995
        %v7997 = vpop.f32.mrf.mxu0
        %7998 = vmatprep.mubr.bf16.mxu0 %v6196
        %7999 = vmatmul.mubr.bf16.gmra.mxu0 %v6195
        %v8000 = vpop.f32.mrf.mxu0
        %v8001 = vadd.f32 %v7200, %v8000
        %v8002 = vpop.f32.mrf.mxu0
        %v8003 = vpop.f32.mrf.mxu0
        %v8004 = vadd.f32 %v7203, %v8003
        %v8005 = vpop.f32.mrf.mxu0
        %8006 = vmatprep.mubr.bf16.mxu0 %v6200
        %8007 = vmatmul.mubr.bf16.gmra.mxu0 %v6199
        %v8008 = vpop.f32.mrf.mxu0
        %v8009 = vadd.f32 %v7208, %v8008
        %v8010 = vpop.f32.mrf.mxu0
        %v8011 = vpop.f32.mrf.mxu0
        %v8012 = vadd.f32 %v7211, %v8011
        %v8013 = vpop.f32.mrf.mxu0
        %8014 = vmatprep.mubr.bf16.mxu0 %v6204
        %8015 = vmatmul.mubr.bf16.gmra.mxu0 %v6203
        %v8016 = vpop.f32.mrf.mxu0
        %v8017 = vadd.f32 %v7216, %v8016
        %v8018 = vpop.f32.mrf.mxu0
        %v8019 = vpop.f32.mrf.mxu0
        %v8020 = vadd.f32 %v7219, %v8019
        %v8021 = vpop.f32.mrf.mxu0
        %8022 = vmatprep.mubr.bf16.mxu0 %v6208
        %8023 = vmatmul.mubr.bf16.gmra.mxu0 %v6207
        %v8024 = vpop.f32.mrf.mxu0
        %v8025 = vadd.f32 %v7224, %v8024
        %v8026 = vpop.f32.mrf.mxu0
        %v8027 = vpop.f32.mrf.mxu0
        %v8028 = vadd.f32 %v7227, %v8027
        %v8029 = vpop.f32.mrf.mxu0
        %8030 = vmatprep.mubr.bf16.mxu0 %v6212
        %8031 = vmatmul.mubr.bf16.gmra.mxu0 %v6211
        %v8032 = vpop.f32.mrf.mxu0
        %v8033 = vadd.f32 %v7232, %v8032
        %v8034 = vpop.f32.mrf.mxu0
        %v8035 = vpop.f32.mrf.mxu0
        %v8036 = vadd.f32 %v7235, %v8035
        %v8037 = vpop.f32.mrf.mxu0
        %8038 = vmatprep.mubr.bf16.mxu0 %v6216
        %8039 = vmatmul.mubr.bf16.gmra.mxu0 %v6215
        %v8040 = vpop.f32.mrf.mxu0
        %v8041 = vadd.f32 %v7240, %v8040
        %v8042 = vpop.f32.mrf.mxu0
        %v8043 = vpop.f32.mrf.mxu0
        %v8044 = vadd.f32 %v7243, %v8043
        %v8045 = vpop.f32.mrf.mxu0
        %8046 = vmatprep.mubr.bf16.mxu0 %v6220
        %8047 = vmatmul.mubr.bf16.gmra.mxu0 %v6219
        %v8048 = vpop.f32.mrf.mxu0
        %v8049 = vadd.f32 %v7248, %v8048
        %v8050 = vpop.f32.mrf.mxu0
        %v8051 = vpop.f32.mrf.mxu0
        %v8052 = vadd.f32 %v7251, %v8051
        %v8053 = vpop.f32.mrf.mxu0
        %8054 = vmatprep.mubr.bf16.mxu0 %v6224
        %8055 = vmatmul.mubr.bf16.gmra.mxu0 %v6223
        %v8056 = vpop.f32.mrf.mxu0
        %v8057 = vadd.f32 %v7256, %v8056
        %v8058 = vpop.f32.mrf.mxu0
        %v8059 = vpop.f32.mrf.mxu0
        %v8060 = vadd.f32 %v7259, %v8059
        %v8061 = vpop.f32.mrf.mxu0
        %8062 = vmatprep.mubr.bf16.mxu0 %v6228
        %8063 = vmatmul.mubr.bf16.gmra.mxu0 %v6227
        %v8064 = vpop.f32.mrf.mxu0
        %v8065 = vadd.f32 %v7264, %v8064
        %v8066 = vpop.f32.mrf.mxu0
        %v8067 = vpop.f32.mrf.mxu0
        %v8068 = vadd.f32 %v7267, %v8067
        %v8069 = vpop.f32.mrf.mxu0
        %8070 = vmatprep.mubr.bf16.mxu0 %v6232
        %8071 = vmatmul.mubr.bf16.gmra.mxu0 %v6231
        %v8072 = vpop.f32.mrf.mxu0
        %v8073 = vadd.f32 %v7272, %v8072
        %v8074 = vpop.f32.mrf.mxu0
        %v8075 = vpop.f32.mrf.mxu0
        %v8076 = vadd.f32 %v7275, %v8075
        %v8077 = vpop.f32.mrf.mxu0
        %8078 = vmatprep.mubr.bf16.mxu0 %v6236
        %8079 = vmatmul.mubr.bf16.gmra.mxu0 %v6235
        %v8080 = vpop.f32.mrf.mxu0
        %v8081 = vadd.f32 %v7280, %v8080
        %v8082 = vpop.f32.mrf.mxu0
        %v8083 = vpop.f32.mrf.mxu0
        %v8084 = vadd.f32 %v7283, %v8083
        %v8085 = vpop.f32.mrf.mxu0
        %8086 = vmatprep.mubr.bf16.mxu0 %v6240
        %8087 = vmatmul.mubr.bf16.gmra.mxu0 %v6239
        %v8088 = vpop.f32.mrf.mxu0
        %v8089 = vadd.f32 %v7288, %v8088
        %v8090 = vpop.f32.mrf.mxu0
        %v8091 = vpop.f32.mrf.mxu0
        %v8092 = vadd.f32 %v7291, %v8091
        %v8093 = vpop.f32.mrf.mxu0
        %8094 = vmatprep.mubr.bf16.mxu0 %v6244
        %8095 = vmatmul.mubr.bf16.gmra.mxu0 %v6243
        %v8096 = vpop.f32.mrf.mxu0
        %v8097 = vadd.f32 %v7296, %v8096
        %v8098 = vpop.f32.mrf.mxu0
        %v8099 = vpop.f32.mrf.mxu0
        %v8100 = vadd.f32 %v7299, %v8099
        %v8101 = vpop.f32.mrf.mxu0
        %8102 = vmatprep.mubr.bf16.mxu0 %v6248
        %8103 = vmatmul.mubr.bf16.gmra.mxu0 %v6247
        %v8104 = vpop.f32.mrf.mxu0
        %v8105 = vadd.f32 %v7304, %v8104
        %v8106 = vpop.f32.mrf.mxu0
        %v8107 = vpop.f32.mrf.mxu0
        %v8108 = vadd.f32 %v7307, %v8107
        %v8109 = vpop.f32.mrf.mxu0
        %8110 = vmatprep.mubr.bf16.mxu0 %v6252
        %8111 = vmatmul.mubr.bf16.gmra.mxu0 %v6251
        %v8112 = vpop.f32.mrf.mxu0
        %v8113 = vadd.f32 %v7312, %v8112
        %v8114 = vpop.f32.mrf.mxu0
        %v8115 = vpop.f32.mrf.mxu0
        %v8116 = vadd.f32 %v7315, %v8115
        %v8117 = vpop.f32.mrf.mxu0
        %8118 = vmatprep.mubr.bf16.mxu0 %v6256
        %8119 = vmatmul.mubr.bf16.gmra.mxu0 %v6255
        %v8120 = vpop.f32.mrf.mxu0
        %v8121 = vadd.f32 %v7320, %v8120
        %v8122 = vpop.f32.mrf.mxu0
        %v8123 = vpop.f32.mrf.mxu0
        %v8124 = vadd.f32 %v7323, %v8123
        %v8125 = vpop.f32.mrf.mxu0
        %8126 = vmatprep.mubr.bf16.mxu0 %v6260
        %8127 = vmatmul.mubr.bf16.gmra.mxu0 %v6259
        %v8128 = vpop.f32.mrf.mxu0
        %v8129 = vadd.f32 %v7328, %v8128
        %v8130 = vpop.f32.mrf.mxu0
        %v8131 = vpop.f32.mrf.mxu0
        %v8132 = vadd.f32 %v7331, %v8131
        %v8133 = vpop.f32.mrf.mxu0
        %8134 = vmatprep.mubr.bf16.mxu0 %v6264
        %8135 = vmatmul.mubr.bf16.gmra.mxu0 %v6263
        %v8136 = vpop.f32.mrf.mxu0
        %v8137 = vadd.f32 %v7336, %v8136
        %v8138 = vpop.f32.mrf.mxu0
        %v8139 = vpop.f32.mrf.mxu0
        %v8140 = vadd.f32 %v7339, %v8139
        %v8141 = vpop.f32.mrf.mxu0
        %8142 = vmatprep.mubr.bf16.mxu0 %v6268
        %8143 = vmatmul.mubr.bf16.gmra.mxu0 %v6267
        %v8144 = vpop.f32.mrf.mxu0
        %v8145 = vadd.f32 %v7344, %v8144
        %v8146 = vpop.f32.mrf.mxu0
        %v8147 = vpop.f32.mrf.mxu0
        %v8148 = vadd.f32 %v7347, %v8147
        %v8149 = vpop.f32.mrf.mxu0
        %8150 = vmatprep.mubr.bf16.mxu0 %v6272
        %8151 = vmatmul.mubr.bf16.gmra.mxu0 %v6271
        %v8152 = vpop.f32.mrf.mxu0
        %v8153 = vadd.f32 %v7352, %v8152
        %v8154 = vpop.f32.mrf.mxu0
        %v8155 = vpop.f32.mrf.mxu0
        %v8156 = vadd.f32 %v7355, %v8155
        %v8157 = vpop.f32.mrf.mxu0
        %8158 = vmatprep.mubr.bf16.mxu0 %v6276
        %8159 = vmatmul.mubr.bf16.gmra.mxu0 %v6275
        %v8160 = vpop.f32.mrf.mxu0
        %v8161 = vadd.f32 %v7360, %v8160
        %v8162 = vpop.f32.mrf.mxu0
        %v8163 = vpop.f32.mrf.mxu0
        %v8164 = vadd.f32 %v7363, %v8163
        %v8165 = vpop.f32.mrf.mxu0
        %8166 = vmatprep.mubr.bf16.mxu0 %v6280
        %8167 = vmatmul.mubr.bf16.gmra.mxu0 %v6279
        %v8168 = vpop.f32.mrf.mxu0
        %v8169 = vadd.f32 %v7368, %v8168
        %v8170 = vpop.f32.mrf.mxu0
        %v8171 = vpop.f32.mrf.mxu0
        %v8172 = vadd.f32 %v7371, %v8171
        %v8173 = vpop.f32.mrf.mxu0
        %8174 = vmatprep.mubr.bf16.mxu0 %v6284
        %8175 = vmatmul.mubr.bf16.gmra.mxu0 %v6283
        %v8176 = vpop.f32.mrf.mxu0
        %v8177 = vadd.f32 %v7376, %v8176
        %v8178 = vpop.f32.mrf.mxu0
        %v8179 = vpop.f32.mrf.mxu0
        %v8180 = vadd.f32 %v7379, %v8179
        %v8181 = vpop.f32.mrf.mxu0
        %8182 = vmatprep.mubr.bf16.mxu0 %v6288
        %8183 = vmatmul.mubr.bf16.gmra.mxu0 %v6287
        %v8184 = vpop.f32.mrf.mxu0
        %v8185 = vadd.f32 %v7384, %v8184
        %v8186 = vpop.f32.mrf.mxu0
        %v8187 = vpop.f32.mrf.mxu0
        %v8188 = vadd.f32 %v7387, %v8187
        %v8189 = vpop.f32.mrf.mxu0
        %8190 = vmatprep.mubr.bf16.mxu0 %v6292
        %8191 = vmatmul.mubr.bf16.gmra.mxu0 %v6291
        %v8192 = vpop.f32.mrf.mxu0
        %v8193 = vadd.f32 %v7392, %v8192
        %v8194 = vpop.f32.mrf.mxu0
        %v8195 = vpop.f32.mrf.mxu0
        %v8196 = vadd.f32 %v7395, %v8195
        %v8197 = vpop.f32.mrf.mxu0
        %8198 = vmatprep.mubr.bf16.mxu0 %v6296
        %8199 = vmatmul.mubr.bf16.gmra.mxu0 %v6295
        %v8200 = vpop.f32.mrf.mxu0
        %v8201 = vadd.f32 %v7400, %v8200
        %v8202 = vpop.f32.mrf.mxu0
        %v8203 = vpop.f32.mrf.mxu0
        %v8204 = vadd.f32 %v7403, %v8203
        %v8205 = vpop.f32.mrf.mxu0
        %8206 = vmatprep.mubr.bf16.mxu0 %v6300
        %8207 = vmatmul.mubr.bf16.gmra.mxu0 %v6299
        %v8208 = vpop.f32.mrf.mxu0
        %v8209 = vadd.f32 %v7408, %v8208
        %v8210 = vpop.f32.mrf.mxu0
        %v8211 = vpop.f32.mrf.mxu0
        %v8212 = vadd.f32 %v7411, %v8211
        %v8213 = vpop.f32.mrf.mxu0
        %8214 = vmatprep.mubr.bf16.mxu0 %v6304
        %8215 = vmatmul.mubr.bf16.gmra.mxu0 %v6303
        %v8216 = vpop.f32.mrf.mxu0
        %v8217 = vadd.f32 %v7416, %v8216
        %v8218 = vpop.f32.mrf.mxu0
        %v8219 = vpop.f32.mrf.mxu0
        %v8220 = vadd.f32 %v7419, %v8219
        %v8221 = vpop.f32.mrf.mxu0
        %8222 = vmatprep.mubr.bf16.mxu0 %v6308
        %8223 = vmatmul.mubr.bf16.gmra.mxu0 %v6307
        %v8224 = vpop.f32.mrf.mxu0
        %v8225 = vadd.f32 %v7424, %v8224
        %v8226 = vpop.f32.mrf.mxu0
        %v8227 = vpop.f32.mrf.mxu0
        %v8228 = vadd.f32 %v7427, %v8227
        %v8229 = vpop.f32.mrf.mxu0
        %8230 = vmatprep.mubr.bf16.mxu0 %v6312
        %8231 = vmatmul.mubr.bf16.gmra.mxu0 %v6311
        %v8232 = vpop.f32.mrf.mxu0
        %v8233 = vadd.f32 %v7432, %v8232
        %v8234 = vpop.f32.mrf.mxu0
        %v8235 = vpop.f32.mrf.mxu0
        %v8236 = vadd.f32 %v7435, %v8235
        %v8237 = vpop.f32.mrf.mxu0
        %8238 = vmatprep.mubr.bf16.mxu0 %v6316
        %8239 = vmatmul.mubr.bf16.gmra.mxu0 %v6315
        %v8240 = vpop.f32.mrf.mxu0
        %v8241 = vadd.f32 %v7440, %v8240
        %v8242 = vpop.f32.mrf.mxu0
        %v8243 = vpop.f32.mrf.mxu0
        %v8244 = vadd.f32 %v7443, %v8243
        %v8245 = vpop.f32.mrf.mxu0
        %8246 = vmatprep.mubr.bf16.mxu0 %v6320
        %8247 = vmatmul.mubr.bf16.gmra.mxu0 %v6319
        %v8248 = vpop.f32.mrf.mxu0
        %v8249 = vadd.f32 %v7448, %v8248
        %v8250 = vpop.f32.mrf.mxu0
        %v8251 = vpop.f32.mrf.mxu0
        %v8252 = vadd.f32 %v7451, %v8251
        %v8253 = vpop.f32.mrf.mxu0
        %8254 = vmatprep.mubr.bf16.mxu0 %v6324
        %8255 = vmatmul.mubr.bf16.gmra.mxu0 %v6323
        %v8256 = vpop.f32.mrf.mxu0
        %v8257 = vadd.f32 %v7456, %v8256
        %v8258 = vpop.f32.mrf.mxu0
        %v8259 = vpop.f32.mrf.mxu0
        %v8260 = vadd.f32 %v7459, %v8259
        %v8261 = vpop.f32.mrf.mxu0
        %8262 = vmatprep.mubr.bf16.mxu0 %v6328
        %8263 = vmatmul.mubr.bf16.gmra.mxu0 %v6327
        %v8264 = vpop.f32.mrf.mxu0
        %v8265 = vadd.f32 %v7464, %v8264
        %v8266 = vpop.f32.mrf.mxu0
        %v8267 = vpop.f32.mrf.mxu0
        %v8268 = vadd.f32 %v7467, %v8267
        %v8269 = vpop.f32.mrf.mxu0
        %8270 = vmatprep.mubr.bf16.mxu0 %v6332
        %8271 = vmatmul.mubr.bf16.gmra.mxu0 %v6331
        %v8272 = vpop.f32.mrf.mxu0
        %v8273 = vadd.f32 %v7472, %v8272
        %v8274 = vpop.f32.mrf.mxu0
        %v8275 = vpop.f32.mrf.mxu0
        %v8276 = vadd.f32 %v7475, %v8275
        %v8277 = vpop.f32.mrf.mxu0
        %8278 = vmatprep.mubr.bf16.mxu0 %v6336
        %8279 = vmatmul.mubr.bf16.gmra.mxu0 %v6335
        %v8280 = vpop.f32.mrf.mxu0
        %v8281 = vadd.f32 %v7480, %v8280
        %v8282 = vpop.f32.mrf.mxu0
        %v8283 = vpop.f32.mrf.mxu0
        %v8284 = vadd.f32 %v7483, %v8283
        %v8285 = vpop.f32.mrf.mxu0
        %8286 = vmatprep.mubr.bf16.mxu0 %v6340
        %8287 = vmatmul.mubr.bf16.gmra.mxu0 %v6339
        %v8288 = vpop.f32.mrf.mxu0
        %v8289 = vadd.f32 %v7488, %v8288
        %v8290 = vpop.f32.mrf.mxu0
        %v8291 = vpop.f32.mrf.mxu0
        %v8292 = vadd.f32 %v7491, %v8291
        %v8293 = vpop.f32.mrf.mxu0
        %8294 = vmatprep.mubr.bf16.mxu0 %v6344
        %8295 = vmatmul.mubr.bf16.gmra.mxu0 %v6343
        %v8296 = vpop.f32.mrf.mxu0
        %v8297 = vadd.f32 %v7496, %v8296
        %v8298 = vpop.f32.mrf.mxu0
        %v8299 = vpop.f32.mrf.mxu0
        %v8300 = vadd.f32 %v7499, %v8299
        %v8301 = vpop.f32.mrf.mxu0
        %8302 = vmatprep.mubr.bf16.mxu0 %v6348
        %8303 = vmatmul.mubr.bf16.gmra.mxu0 %v6347
        %v8304 = vpop.f32.mrf.mxu0
        %v8305 = vadd.f32 %v7504, %v8304
        %v8306 = vpop.f32.mrf.mxu0
        %v8307 = vpop.f32.mrf.mxu0
        %v8308 = vadd.f32 %v7507, %v8307
        %v8309 = vpop.f32.mrf.mxu0
        %8310 = vmatprep.mubr.bf16.mxu0 %v6352
        %8311 = vmatmul.mubr.bf16.gmra.mxu0 %v6351
        %v8312 = vpop.f32.mrf.mxu0
        %v8313 = vadd.f32 %v7512, %v8312
        %v8314 = vpop.f32.mrf.mxu0
        %v8315 = vpop.f32.mrf.mxu0
        %v8316 = vadd.f32 %v7515, %v8315
        %v8317 = vpop.f32.mrf.mxu0
        %8318 = vmatprep.mubr.bf16.mxu0 %v6356
        %8319 = vmatmul.mubr.bf16.gmra.mxu0 %v6355
        %v8320 = vpop.f32.mrf.mxu0
        %v8321 = vadd.f32 %v7520, %v8320
        %v8322 = vpop.f32.mrf.mxu0
        %v8323 = vpop.f32.mrf.mxu0
        %v8324 = vadd.f32 %v7523, %v8323
        %v8325 = vpop.f32.mrf.mxu0
        %8326 = vmatprep.mubr.bf16.mxu0 %v6360
        %8327 = vmatmul.mubr.bf16.gmra.mxu0 %v6359
        %v8328 = vpop.f32.mrf.mxu0
        %v8329 = vadd.f32 %v7528, %v8328
        %v8330 = vpop.f32.mrf.mxu0
        %v8331 = vpop.f32.mrf.mxu0
        %v8332 = vadd.f32 %v7531, %v8331
        %v8333 = vpop.f32.mrf.mxu0
        %8334 = vmatprep.mubr.bf16.mxu0 %v6364
        %8335 = vmatmul.mubr.bf16.gmra.mxu0 %v6363
        %v8336 = vpop.f32.mrf.mxu0
        %v8337 = vadd.f32 %v7536, %v8336
        %v8338 = vpop.f32.mrf.mxu0
        %v8339 = vpop.f32.mrf.mxu0
        %v8340 = vadd.f32 %v7539, %v8339
        %v8341 = vpop.f32.mrf.mxu0
        %8342 = vmatprep.mubr.bf16.mxu0 %v6368
        %8343 = vmatmul.mubr.bf16.gmra.mxu0 %v6367
        %v8344 = vpop.f32.mrf.mxu0
        %v8345 = vadd.f32 %v7544, %v8344
        %v8346 = vpop.f32.mrf.mxu0
        %v8347 = vpop.f32.mrf.mxu0
        %v8348 = vadd.f32 %v7547, %v8347
        %v8349 = vpop.f32.mrf.mxu0
        %8350 = vmatprep.mubr.bf16.mxu0 %v6372
        %8351 = vmatmul.mubr.bf16.gmra.mxu0 %v6371
        %v8352 = vpop.f32.mrf.mxu0
        %v8353 = vadd.f32 %v7552, %v8352
        %v8354 = vpop.f32.mrf.mxu0
        %v8355 = vpop.f32.mrf.mxu0
        %v8356 = vadd.f32 %v7555, %v8355
        %v8357 = vpop.f32.mrf.mxu0
        %8358 = vdwg.mxu0
        %v8359 = vmax.f32 %v7593, 0.0
        %v8360 = vmax.f32 %v7596, 0.0
        %v8361 = vmax.f32 %v7601, 0.0
        %v8362 = vmax.f32 %v7604, 0.0
        %v8363 = vmax.f32 %v7609, 0.0
        %v8364 = vmax.f32 %v7612, 0.0
        %v8365 = vmax.f32 %v7617, 0.0
        %v8366 = vmax.f32 %v7620, 0.0
        %v8367 = vmax.f32 %v7625, 0.0
        %v8368 = vmax.f32 %v7628, 0.0
        %v8369 = vmax.f32 %v7633, 0.0
        %v8370 = vmax.f32 %v7636, 0.0
        %v8371 = vmax.f32 %v7641, 0.0
        %v8372 = vmax.f32 %v7644, 0.0
        %v8373 = vmax.f32 %v7649, 0.0
        %v8374 = vmax.f32 %v7652, 0.0
        %v8375 = vmax.f32 %v7657, 0.0
        %v8376 = vmax.f32 %v7660, 0.0
        %v8377 = vmax.f32 %v7665, 0.0
        %v8378 = vmax.f32 %v7668, 0.0
        %v8379 = vmax.f32 %v7673, 0.0
        %v8380 = vmax.f32 %v7676, 0.0
        %v8381 = vmax.f32 %v7681, 0.0
        %v8382 = vmax.f32 %v7684, 0.0
        %v8383 = vmax.f32 %v7689, 0.0
        %v8384 = vmax.f32 %v7692, 0.0
        %v8385 = vmax.f32 %v7697, 0.0
        %v8386 = vmax.f32 %v7700, 0.0
        %v8387 = vmax.f32 %v7705, 0.0
        %v8388 = vmax.f32 %v7708, 0.0
        %v8389 = vmax.f32 %v7713, 0.0
        %v8390 = vmax.f32 %v7716, 0.0
        %v8391 = vmax.f32 %v7721, 0.0
        %v8392 = vmax.f32 %v7724, 0.0
        %v8393 = vmax.f32 %v7729, 0.0
        %v8394 = vmax.f32 %v7732, 0.0
        %v8395 = vmax.f32 %v7737, 0.0
        %v8396 = vmax.f32 %v7740, 0.0
        %v8397 = vmax.f32 %v7745, 0.0
        %v8398 = vmax.f32 %v7748, 0.0
        %v8399 = vmax.f32 %v7753, 0.0
        %v8400 = vmax.f32 %v7756, 0.0
        %v8401 = vmax.f32 %v7761, 0.0
        %v8402 = vmax.f32 %v7764, 0.0
        %v8403 = vmax.f32 %v7769, 0.0
        %v8404 = vmax.f32 %v7772, 0.0
        %v8405 = vmax.f32 %v7777, 0.0
        %v8406 = vmax.f32 %v7780, 0.0
        %v8407 = vmax.f32 %v7785, 0.0
        %v8408 = vmax.f32 %v7788, 0.0
        %v8409 = vmax.f32 %v7793, 0.0
        %v8410 = vmax.f32 %v7796, 0.0
        %v8411 = vmax.f32 %v7801, 0.0
        %v8412 = vmax.f32 %v7804, 0.0
        %v8413 = vmax.f32 %v7809, 0.0
        %v8414 = vmax.f32 %v7812, 0.0
        %v8415 = vmax.f32 %v7817, 0.0
        %v8416 = vmax.f32 %v7820, 0.0
        %v8417 = vmax.f32 %v7825, 0.0
        %v8418 = vmax.f32 %v7828, 0.0
        %v8419 = vmax.f32 %v7833, 0.0
        %v8420 = vmax.f32 %v7836, 0.0
        %v8421 = vmax.f32 %v7841, 0.0
        %v8422 = vmax.f32 %v7844, 0.0
        %v8423 = vmax.f32 %v7849, 0.0
        %v8424 = vmax.f32 %v7852, 0.0
        %v8425 = vmax.f32 %v7857, 0.0
        %v8426 = vmax.f32 %v7860, 0.0
        %v8427 = vmax.f32 %v7865, 0.0
        %v8428 = vmax.f32 %v7868, 0.0
        %v8429 = vmax.f32 %v7873, 0.0
        %v8430 = vmax.f32 %v7876, 0.0
        %v8431 = vmax.f32 %v7881, 0.0
        %v8432 = vmax.f32 %v7884, 0.0
        %v8433 = vmax.f32 %v7889, 0.0
        %v8434 = vmax.f32 %v7892, 0.0
        %v8435 = vmax.f32 %v7897, 0.0
        %v8436 = vmax.f32 %v7900, 0.0
        %v8437 = vmax.f32 %v7905, 0.0
        %v8438 = vmax.f32 %v7908, 0.0
        %v8439 = vmax.f32 %v7913, 0.0
        %v8440 = vmax.f32 %v7916, 0.0
        %v8441 = vmax.f32 %v7921, 0.0
        %v8442 = vmax.f32 %v7924, 0.0
        %v8443 = vmax.f32 %v7929, 0.0
        %v8444 = vmax.f32 %v7932, 0.0
        %v8445 = vmax.f32 %v7937, 0.0
        %v8446 = vmax.f32 %v7940, 0.0
        %v8447 = vmax.f32 %v7945, 0.0
        %v8448 = vmax.f32 %v7948, 0.0
        %v8449 = vmax.f32 %v7953, 0.0
        %v8450 = vmax.f32 %v7956, 0.0
        %v8451 = vmax.f32 %v7961, 0.0
        %v8452 = vmax.f32 %v7964, 0.0
        %v8453 = vmax.f32 %v7969, 0.0
        %v8454 = vmax.f32 %v7972, 0.0
        %v8455 = vmax.f32 %v7977, 0.0
        %v8456 = vmax.f32 %v7980, 0.0
        %v8457 = vmax.f32 %v7985, 0.0
        %v8458 = vmax.f32 %v7988, 0.0
        %v8459 = vmax.f32 %v7993, 0.0
        %v8460 = vmax.f32 %v7996, 0.0
        %v8461 = vmax.f32 %v8001, 0.0
        %v8462 = vmax.f32 %v8004, 0.0
        %v8463 = vmax.f32 %v8009, 0.0
        %v8464 = vmax.f32 %v8012, 0.0
        %v8465 = vmax.f32 %v8017, 0.0
        %v8466 = vmax.f32 %v8020, 0.0
        %v8467 = vmax.f32 %v8025, 0.0
        %v8468 = vmax.f32 %v8028, 0.0
        %v8469 = vmax.f32 %v8033, 0.0
        %v8470 = vmax.f32 %v8036, 0.0
        %v8471 = vmax.f32 %v8041, 0.0
        %v8472 = vmax.f32 %v8044, 0.0
        %v8473 = vmax.f32 %v8049, 0.0
        %v8474 = vmax.f32 %v8052, 0.0
        %v8475 = vmax.f32 %v8057, 0.0
        %v8476 = vmax.f32 %v8060, 0.0
        %v8477 = vmax.f32 %v8065, 0.0
        %v8478 = vmax.f32 %v8068, 0.0
        %v8479 = vmax.f32 %v8073, 0.0
        %v8480 = vmax.f32 %v8076, 0.0
        %v8481 = vmax.f32 %v8081, 0.0
        %v8482 = vmax.f32 %v8084, 0.0
        %v8483 = vmax.f32 %v8089, 0.0
        %v8484 = vmax.f32 %v8092, 0.0
        %v8485 = vmax.f32 %v8097, 0.0
        %v8486 = vmax.f32 %v8100, 0.0
        %v8487 = vmax.f32 %v8105, 0.0
        %v8488 = vmax.f32 %v8108, 0.0
        %v8489 = vmax.f32 %v8113, 0.0
        %v8490 = vmax.f32 %v8116, 0.0
        %v8491 = vmax.f32 %v8121, 0.0
        %v8492 = vmax.f32 %v8124, 0.0
        %v8493 = vmax.f32 %v8129, 0.0
        %v8494 = vmax.f32 %v8132, 0.0
        %v8495 = vmax.f32 %v8137, 0.0
        %v8496 = vmax.f32 %v8140, 0.0
        %v8497 = vmax.f32 %v8145, 0.0
        %v8498 = vmax.f32 %v8148, 0.0
        %v8499 = vmax.f32 %v8153, 0.0
        %v8500 = vmax.f32 %v8156, 0.0
        %v8501 = vmax.f32 %v8161, 0.0
        %v8502 = vmax.f32 %v8164, 0.0
        %v8503 = vmax.f32 %v8169, 0.0
        %v8504 = vmax.f32 %v8172, 0.0
        %v8505 = vmax.f32 %v8177, 0.0
        %v8506 = vmax.f32 %v8180, 0.0
        %v8507 = vmax.f32 %v8185, 0.0
        %v8508 = vmax.f32 %v8188, 0.0
        %v8509 = vmax.f32 %v8193, 0.0
        %v8510 = vmax.f32 %v8196, 0.0
        %v8511 = vmax.f32 %v8201, 0.0
        %v8512 = vmax.f32 %v8204, 0.0
        %v8513 = vmax.f32 %v8209, 0.0
        %v8514 = vmax.f32 %v8212, 0.0
        %v8515 = vmax.f32 %v8217, 0.0
        %v8516 = vmax.f32 %v8220, 0.0
        %v8517 = vmax.f32 %v8225, 0.0
        %v8518 = vmax.f32 %v8228, 0.0
        %v8519 = vmax.f32 %v8233, 0.0
        %v8520 = vmax.f32 %v8236, 0.0
        %v8521 = vmax.f32 %v8241, 0.0
        %v8522 = vmax.f32 %v8244, 0.0
        %v8523 = vmax.f32 %v8249, 0.0
        %v8524 = vmax.f32 %v8252, 0.0
        %v8525 = vmax.f32 %v8257, 0.0
        %v8526 = vmax.f32 %v8260, 0.0
        %v8527 = vmax.f32 %v8265, 0.0
        %v8528 = vmax.f32 %v8268, 0.0
        %v8529 = vmax.f32 %v8273, 0.0
        %v8530 = vmax.f32 %v8276, 0.0
        %v8531 = vmax.f32 %v8281, 0.0
        %v8532 = vmax.f32 %v8284, 0.0
        %v8533 = vmax.f32 %v8289, 0.0
        %v8534 = vmax.f32 %v8292, 0.0
        %v8535 = vmax.f32 %v8297, 0.0
        %v8536 = vmax.f32 %v8300, 0.0
        %v8537 = vmax.f32 %v8305, 0.0
        %v8538 = vmax.f32 %v8308, 0.0
        %v8539 = vmax.f32 %v8313, 0.0
        %v8540 = vmax.f32 %v8316, 0.0
        %v8541 = vmax.f32 %v8321, 0.0
        %v8542 = vmax.f32 %v8324, 0.0
        %v8543 = vmax.f32 %v8329, 0.0
        %v8544 = vmax.f32 %v8332, 0.0
        %v8545 = vmax.f32 %v8337, 0.0
        %v8546 = vmax.f32 %v8340, 0.0
        %v8547 = vmax.f32 %v8345, 0.0
        %v8548 = vmax.f32 %v8348, 0.0
        %v8549 = vmax.f32 %v8353, 0.0
        %v8550 = vmax.f32 %v8356, 0.0
        %v8551 = vpack.c.bf16 %v8360, %v8359
        %v8552 = vpack.c.bf16 %v8362, %v8361
        %v8553 = vpack.c.bf16 %v8364, %v8363
        %v8554 = vpack.c.bf16 %v8366, %v8365
        %v8555 = vpack.c.bf16 %v8368, %v8367
        %v8556 = vpack.c.bf16 %v8370, %v8369
        %v8557 = vpack.c.bf16 %v8372, %v8371
        %v8558 = vpack.c.bf16 %v8374, %v8373
        %v8559 = vpack.c.bf16 %v8376, %v8375
        %v8560 = vpack.c.bf16 %v8378, %v8377
        %v8561 = vpack.c.bf16 %v8380, %v8379
        %v8562 = vpack.c.bf16 %v8382, %v8381
        %v8563 = vpack.c.bf16 %v8384, %v8383
        %v8564 = vpack.c.bf16 %v8386, %v8385
        %v8565 = vpack.c.bf16 %v8388, %v8387
        %v8566 = vpack.c.bf16 %v8390, %v8389
        %v8567 = vpack.c.bf16 %v8392, %v8391
        %v8568 = vpack.c.bf16 %v8394, %v8393
        %v8569 = vpack.c.bf16 %v8396, %v8395
        %v8570 = vpack.c.bf16 %v8398, %v8397
        %v8571 = vpack.c.bf16 %v8400, %v8399
        %v8572 = vpack.c.bf16 %v8402, %v8401
        %v8573 = vpack.c.bf16 %v8404, %v8403
        %v8574 = vpack.c.bf16 %v8406, %v8405
        %v8575 = vpack.c.bf16 %v8408, %v8407
        %v8576 = vpack.c.bf16 %v8410, %v8409
        %v8577 = vpack.c.bf16 %v8412, %v8411
        %v8578 = vpack.c.bf16 %v8414, %v8413
        %v8579 = vpack.c.bf16 %v8416, %v8415
        %v8580 = vpack.c.bf16 %v8418, %v8417
        %v8581 = vpack.c.bf16 %v8420, %v8419
        %v8582 = vpack.c.bf16 %v8422, %v8421
        %v8583 = vpack.c.bf16 %v8424, %v8423
        %v8584 = vpack.c.bf16 %v8426, %v8425
        %v8585 = vpack.c.bf16 %v8428, %v8427
        %v8586 = vpack.c.bf16 %v8430, %v8429
        %v8587 = vpack.c.bf16 %v8432, %v8431
        %v8588 = vpack.c.bf16 %v8434, %v8433
        %v8589 = vpack.c.bf16 %v8436, %v8435
        %v8590 = vpack.c.bf16 %v8438, %v8437
        %v8591 = vpack.c.bf16 %v8440, %v8439
        %v8592 = vpack.c.bf16 %v8442, %v8441
        %v8593 = vpack.c.bf16 %v8444, %v8443
        %v8594 = vpack.c.bf16 %v8446, %v8445
        %v8595 = vpack.c.bf16 %v8448, %v8447
        %v8596 = vpack.c.bf16 %v8450, %v8449
        %v8597 = vpack.c.bf16 %v8452, %v8451
        %v8598 = vpack.c.bf16 %v8454, %v8453
        %v8599 = vpack.c.bf16 %v8456, %v8455
        %v8600 = vpack.c.bf16 %v8458, %v8457
        %v8601 = vpack.c.bf16 %v8460, %v8459
        %v8602 = vpack.c.bf16 %v8462, %v8461
        %v8603 = vpack.c.bf16 %v8464, %v8463
        %v8604 = vpack.c.bf16 %v8466, %v8465
        %v8605 = vpack.c.bf16 %v8468, %v8467
        %v8606 = vpack.c.bf16 %v8470, %v8469
        %v8607 = vpack.c.bf16 %v8472, %v8471
        %v8608 = vpack.c.bf16 %v8474, %v8473
        %v8609 = vpack.c.bf16 %v8476, %v8475
        %v8610 = vpack.c.bf16 %v8478, %v8477
        %v8611 = vpack.c.bf16 %v8480, %v8479
        %v8612 = vpack.c.bf16 %v8482, %v8481
        %v8613 = vpack.c.bf16 %v8484, %v8483
        %v8614 = vpack.c.bf16 %v8486, %v8485
        %v8615 = vpack.c.bf16 %v8488, %v8487
        %v8616 = vpack.c.bf16 %v8490, %v8489
        %v8617 = vpack.c.bf16 %v8492, %v8491
        %v8618 = vpack.c.bf16 %v8494, %v8493
        %v8619 = vpack.c.bf16 %v8496, %v8495
        %v8620 = vpack.c.bf16 %v8498, %v8497
        %v8621 = vpack.c.bf16 %v8500, %v8499
        %v8622 = vpack.c.bf16 %v8502, %v8501
        %v8623 = vpack.c.bf16 %v8504, %v8503
        %v8624 = vpack.c.bf16 %v8506, %v8505
        %v8625 = vpack.c.bf16 %v8508, %v8507
        %v8626 = vpack.c.bf16 %v8510, %v8509
        %v8627 = vpack.c.bf16 %v8512, %v8511
        %v8628 = vpack.c.bf16 %v8514, %v8513
        %v8629 = vpack.c.bf16 %v8516, %v8515
        %v8630 = vpack.c.bf16 %v8518, %v8517
        %v8631 = vpack.c.bf16 %v8520, %v8519
        %v8632 = vpack.c.bf16 %v8522, %v8521
        %v8633 = vpack.c.bf16 %v8524, %v8523
        %v8634 = vpack.c.bf16 %v8526, %v8525
        %v8635 = vpack.c.bf16 %v8528, %v8527
        %v8636 = vpack.c.bf16 %v8530, %v8529
        %v8637 = vpack.c.bf16 %v8532, %v8531
        %v8638 = vpack.c.bf16 %v8534, %v8533
        %v8639 = vpack.c.bf16 %v8536, %v8535
        %v8640 = vpack.c.bf16 %v8538, %v8537
        %v8641 = vpack.c.bf16 %v8540, %v8539
        %v8642 = vpack.c.bf16 %v8542, %v8541
        %v8643 = vpack.c.bf16 %v8544, %v8543
        %v8644 = vpack.c.bf16 %v8546, %v8545
        %v8645 = vpack.c.bf16 %v8548, %v8547
        %v8646 = vpack.c.bf16 %v8550, %v8549
        %v8647 = vld [vmem:[#allocation3] sm:$0xff]
        %v8648 = vld [vmem:[#allocation3 + $0x8] sm:$0xff]
        %v8649 = vld [vmem:[#allocation3 + $0x10] sm:$0xff]
        %v8650 = vld [vmem:[#allocation3 + $0x18] sm:$0xff]
        %v8651 = vld [vmem:[#allocation3 + $0x20] sm:$0xff]
        %v8652 = vld [vmem:[#allocation3 + $0x28] sm:$0xff]
        %v8653 = vld [vmem:[#allocation3 + $0x30] sm:$0xff]
        %v8654 = vld [vmem:[#allocation3 + $0x38] sm:$0xff]
        %v8655 = vld [vmem:[#allocation3 + $0x40] sm:$0xff]
        %v8656 = vld [vmem:[#allocation3 + $0x48] sm:$0xff]
        %v8657 = vld [vmem:[#allocation3 + $0x50] sm:$0xff]
        %v8658 = vld [vmem:[#allocation3 + $0x58] sm:$0xff]
        %v8659 = vld [vmem:[#allocation3 + $0x60] sm:$0xff]
        %v8660 = vld [vmem:[#allocation3 + $0x68] sm:$0xff]
        %v8661 = vld [vmem:[#allocation3 + $0x70] sm:$0xff]
        %v8662 = vld [vmem:[#allocation3 + $0x78] sm:$0xff]
        %v8663 = vld [vmem:[#allocation3 + $0x80] sm:$0xff]
        %v8664 = vld [vmem:[#allocation3 + $0x88] sm:$0xff]
        %v8665 = vld [vmem:[#allocation3 + $0x90] sm:$0xff]
        %v8666 = vld [vmem:[#allocation3 + $0x98] sm:$0xff]
        %v8667 = vld [vmem:[#allocation3 + $0xa0] sm:$0xff]
        %v8668 = vld [vmem:[#allocation3 + $0xa8] sm:$0xff]
        %v8669 = vld [vmem:[#allocation3 + $0xb0] sm:$0xff]
        %v8670 = vld [vmem:[#allocation3 + $0xb8] sm:$0xff]
        %v8671 = vld [vmem:[#allocation3 + $0xc0] sm:$0xff]
        %v8672 = vld [vmem:[#allocation3 + $0xc8] sm:$0xff]
        %v8673 = vld [vmem:[#allocation3 + $0xd0] sm:$0xff]
        %v8674 = vld [vmem:[#allocation3 + $0xd8] sm:$0xff]
        %v8675 = vld [vmem:[#allocation3 + $0xe0] sm:$0xff]
        %v8676 = vld [vmem:[#allocation3 + $0xe8] sm:$0xff]
        %v8677 = vld [vmem:[#allocation3 + $0xf0] sm:$0xff]
        %v8678 = vld [vmem:[#allocation3 + $0xf8] sm:$0xff]
        %v8679 = vld [vmem:[#allocation3 + $0x100] sm:$0xff]
        %v8680 = vld [vmem:[#allocation3 + $0x108] sm:$0xff]
        %v8681 = vld [vmem:[#allocation3 + $0x110] sm:$0xff]
        %v8682 = vld [vmem:[#allocation3 + $0x118] sm:$0xff]
        %v8683 = vld [vmem:[#allocation3 + $0x120] sm:$0xff]
        %v8684 = vld [vmem:[#allocation3 + $0x128] sm:$0xff]
        %v8685 = vld [vmem:[#allocation3 + $0x130] sm:$0xff]
        %v8686 = vld [vmem:[#allocation3 + $0x138] sm:$0xff]
        %v8687 = vld [vmem:[#allocation3 + $0x140] sm:$0xff]
        %v8688 = vld [vmem:[#allocation3 + $0x148] sm:$0xff]
        %v8689 = vld [vmem:[#allocation3 + $0x150] sm:$0xff]
        %v8690 = vld [vmem:[#allocation3 + $0x158] sm:$0xff]
        %v8691 = vld [vmem:[#allocation3 + $0x160] sm:$0xff]
        %v8692 = vld [vmem:[#allocation3 + $0x168] sm:$0xff]
        %v8693 = vld [vmem:[#allocation3 + $0x170] sm:$0xff]
        %v8694 = vld [vmem:[#allocation3 + $0x178] sm:$0xff]
        %v8695 = vld [vmem:[#allocation3 + $0x180] sm:$0xff]
        %v8696 = vld [vmem:[#allocation3 + $0x188] sm:$0xff]
        %v8697 = vld [vmem:[#allocation3 + $0x190] sm:$0xff]
        %v8698 = vld [vmem:[#allocation3 + $0x198] sm:$0xff]
        %v8699 = vld [vmem:[#allocation3 + $0x1a0] sm:$0xff]
        %v8700 = vld [vmem:[#allocation3 + $0x1a8] sm:$0xff]
        %v8701 = vld [vmem:[#allocation3 + $0x1b0] sm:$0xff]
        %v8702 = vld [vmem:[#allocation3 + $0x1b8] sm:$0xff]
        %v8703 = vld [vmem:[#allocation3 + $0x1c0] sm:$0xff]
        %v8704 = vld [vmem:[#allocation3 + $0x1c8] sm:$0xff]
        %v8705 = vld [vmem:[#allocation3 + $0x1d0] sm:$0xff]
        %v8706 = vld [vmem:[#allocation3 + $0x1d8] sm:$0xff]
        %v8707 = vld [vmem:[#allocation3 + $0x1e0] sm:$0xff]
        %v8708 = vld [vmem:[#allocation3 + $0x1e8] sm:$0xff]
        %v8709 = vld [vmem:[#allocation3 + $0x1f0] sm:$0xff]
        %v8710 = vld [vmem:[#allocation3 + $0x1f8] sm:$0xff]
        %v8711 = vld [vmem:[#allocation3 + $0x200] sm:$0xff]
        %v8712 = vld [vmem:[#allocation3 + $0x208] sm:$0xff]
        %v8713 = vld [vmem:[#allocation3 + $0x210] sm:$0xff]
        %v8714 = vld [vmem:[#allocation3 + $0x218] sm:$0xff]
        %v8715 = vld [vmem:[#allocation3 + $0x220] sm:$0xff]
        %v8716 = vld [vmem:[#allocation3 + $0x228] sm:$0xff]
        %v8717 = vld [vmem:[#allocation3 + $0x230] sm:$0xff]
        %v8718 = vld [vmem:[#allocation3 + $0x238] sm:$0xff]
        %v8719 = vld [vmem:[#allocation3 + $0x240] sm:$0xff]
        %v8720 = vld [vmem:[#allocation3 + $0x248] sm:$0xff]
        %v8721 = vld [vmem:[#allocation3 + $0x250] sm:$0xff]
        %v8722 = vld [vmem:[#allocation3 + $0x258] sm:$0xff]
        %v8723 = vld [vmem:[#allocation3 + $0x260] sm:$0xff]
        %v8724 = vld [vmem:[#allocation3 + $0x268] sm:$0xff]
        %v8725 = vld [vmem:[#allocation3 + $0x270] sm:$0xff]
        %v8726 = vld [vmem:[#allocation3 + $0x278] sm:$0xff]
        %v8727 = vld [vmem:[#allocation3 + $0x280] sm:$0xff]
        %v8728 = vld [vmem:[#allocation3 + $0x288] sm:$0xff]
        %v8729 = vld [vmem:[#allocation3 + $0x290] sm:$0xff]
        %v8730 = vld [vmem:[#allocation3 + $0x298] sm:$0xff]
        %v8731 = vld [vmem:[#allocation3 + $0x2a0] sm:$0xff]
        %v8732 = vld [vmem:[#allocation3 + $0x2a8] sm:$0xff]
        %v8733 = vld [vmem:[#allocation3 + $0x2b0] sm:$0xff]
        %v8734 = vld [vmem:[#allocation3 + $0x2b8] sm:$0xff]
        %v8735 = vld [vmem:[#allocation3 + $0x2c0] sm:$0xff]
        %v8736 = vld [vmem:[#allocation3 + $0x2c8] sm:$0xff]
        %v8737 = vld [vmem:[#allocation3 + $0x2d0] sm:$0xff]
        %v8738 = vld [vmem:[#allocation3 + $0x2d8] sm:$0xff]
        %v8739 = vld [vmem:[#allocation3 + $0x2e0] sm:$0xff]
        %v8740 = vld [vmem:[#allocation3 + $0x2e8] sm:$0xff]
        %v8741 = vld [vmem:[#allocation3 + $0x2f0] sm:$0xff]
        %v8742 = vld [vmem:[#allocation3 + $0x2f8] sm:$0xff]
        %v8743 = vld [vmem:[#allocation3 + $0x300] sm:$0xff]
        %v8744 = vld [vmem:[#allocation3 + $0x308] sm:$0xff]
        %v8745 = vld [vmem:[#allocation3 + $0x310] sm:$0xff]
        %v8746 = vld [vmem:[#allocation3 + $0x318] sm:$0xff]
        %v8747 = vld [vmem:[#allocation3 + $0x320] sm:$0xff]
        %v8748 = vld [vmem:[#allocation3 + $0x328] sm:$0xff]
        %v8749 = vld [vmem:[#allocation3 + $0x330] sm:$0xff]
        %v8750 = vld [vmem:[#allocation3 + $0x338] sm:$0xff]
        %v8751 = vld [vmem:[#allocation3 + $0x340] sm:$0xff]
        %v8752 = vld [vmem:[#allocation3 + $0x348] sm:$0xff]
        %v8753 = vld [vmem:[#allocation3 + $0x350] sm:$0xff]
        %v8754 = vld [vmem:[#allocation3 + $0x358] sm:$0xff]
        %v8755 = vld [vmem:[#allocation3 + $0x360] sm:$0xff]
        %v8756 = vld [vmem:[#allocation3 + $0x368] sm:$0xff]
        %v8757 = vld [vmem:[#allocation3 + $0x370] sm:$0xff]
        %v8758 = vld [vmem:[#allocation3 + $0x378] sm:$0xff]
        %v8759 = vld [vmem:[#allocation3 + $0x380] sm:$0xff]
        %v8760 = vld [vmem:[#allocation3 + $0x388] sm:$0xff]
        %v8761 = vld [vmem:[#allocation3 + $0x390] sm:$0xff]
        %v8762 = vld [vmem:[#allocation3 + $0x398] sm:$0xff]
        %v8763 = vld [vmem:[#allocation3 + $0x3a0] sm:$0xff]
        %v8764 = vld [vmem:[#allocation3 + $0x3a8] sm:$0xff]
        %v8765 = vld [vmem:[#allocation3 + $0x3b0] sm:$0xff]
        %v8766 = vld [vmem:[#allocation3 + $0x3b8] sm:$0xff]
        %v8767 = vld [vmem:[#allocation3 + $0x3c0] sm:$0xff]
        %v8768 = vld [vmem:[#allocation3 + $0x3c8] sm:$0xff]
        %v8769 = vld [vmem:[#allocation3 + $0x3d0] sm:$0xff]
        %v8770 = vld [vmem:[#allocation3 + $0x3d8] sm:$0xff]
        %v8771 = vld [vmem:[#allocation3 + $0x3e0] sm:$0xff]
        %v8772 = vld [vmem:[#allocation3 + $0x3e8] sm:$0xff]
        %v8773 = vld [vmem:[#allocation3 + $0x3f0] sm:$0xff]
        %v8774 = vld [vmem:[#allocation3 + $0x3f8] sm:$0xff]
        %v8775 = vld [vmem:[#allocation3 + $0x400] sm:$0xff]
        %v8776 = vld [vmem:[#allocation3 + $0x408] sm:$0xff]
        %v8777 = vld [vmem:[#allocation3 + $0x410] sm:$0xff]
        %v8778 = vld [vmem:[#allocation3 + $0x418] sm:$0xff]
        %v8779 = vld [vmem:[#allocation3 + $0x420] sm:$0xff]
        %v8780 = vld [vmem:[#allocation3 + $0x428] sm:$0xff]
        %v8781 = vld [vmem:[#allocation3 + $0x430] sm:$0xff]
        %v8782 = vld [vmem:[#allocation3 + $0x438] sm:$0xff]
        %v8783 = vld [vmem:[#allocation3 + $0x440] sm:$0xff]
        %v8784 = vld [vmem:[#allocation3 + $0x448] sm:$0xff]
        %v8785 = vld [vmem:[#allocation3 + $0x450] sm:$0xff]
        %v8786 = vld [vmem:[#allocation3 + $0x458] sm:$0xff]
        %v8787 = vld [vmem:[#allocation3 + $0x460] sm:$0xff]
        %v8788 = vld [vmem:[#allocation3 + $0x468] sm:$0xff]
        %v8789 = vld [vmem:[#allocation3 + $0x470] sm:$0xff]
        %v8790 = vld [vmem:[#allocation3 + $0x478] sm:$0xff]
        %v8791 = vld [vmem:[#allocation3 + $0x480] sm:$0xff]
        %v8792 = vld [vmem:[#allocation3 + $0x488] sm:$0xff]
        %v8793 = vld [vmem:[#allocation3 + $0x490] sm:$0xff]
        %v8794 = vld [vmem:[#allocation3 + $0x498] sm:$0xff]
        %v8795 = vld [vmem:[#allocation3 + $0x4a0] sm:$0xff]
        %v8796 = vld [vmem:[#allocation3 + $0x4a8] sm:$0xff]
        %v8797 = vld [vmem:[#allocation3 + $0x4b0] sm:$0xff]
        %v8798 = vld [vmem:[#allocation3 + $0x4b8] sm:$0xff]
        %v8799 = vld [vmem:[#allocation3 + $0x4c0] sm:$0xff]
        %v8800 = vld [vmem:[#allocation3 + $0x4c8] sm:$0xff]
        %v8801 = vld [vmem:[#allocation3 + $0x4d0] sm:$0xff]
        %v8802 = vld [vmem:[#allocation3 + $0x4d8] sm:$0xff]
        %v8803 = vld [vmem:[#allocation3 + $0x4e0] sm:$0xff]
        %v8804 = vld [vmem:[#allocation3 + $0x4e8] sm:$0xff]
        %v8805 = vld [vmem:[#allocation3 + $0x4f0] sm:$0xff]
        %v8806 = vld [vmem:[#allocation3 + $0x4f8] sm:$0xff]
        %v8807 = vld [vmem:[#allocation3 + $0x500] sm:$0xff]
        %v8808 = vld [vmem:[#allocation3 + $0x508] sm:$0xff]
        %v8809 = vld [vmem:[#allocation3 + $0x510] sm:$0xff]
        %v8810 = vld [vmem:[#allocation3 + $0x518] sm:$0xff]
        %v8811 = vld [vmem:[#allocation3 + $0x520] sm:$0xff]
        %v8812 = vld [vmem:[#allocation3 + $0x528] sm:$0xff]
        %v8813 = vld [vmem:[#allocation3 + $0x530] sm:$0xff]
        %v8814 = vld [vmem:[#allocation3 + $0x538] sm:$0xff]
        %v8815 = vld [vmem:[#allocation3 + $0x540] sm:$0xff]
        %v8816 = vld [vmem:[#allocation3 + $0x548] sm:$0xff]
        %v8817 = vld [vmem:[#allocation3 + $0x550] sm:$0xff]
        %v8818 = vld [vmem:[#allocation3 + $0x558] sm:$0xff]
        %v8819 = vld [vmem:[#allocation3 + $0x560] sm:$0xff]
        %v8820 = vld [vmem:[#allocation3 + $0x568] sm:$0xff]
        %v8821 = vld [vmem:[#allocation3 + $0x570] sm:$0xff]
        %v8822 = vld [vmem:[#allocation3 + $0x578] sm:$0xff]
        %v8823 = vld [vmem:[#allocation3 + $0x580] sm:$0xff]
        %v8824 = vld [vmem:[#allocation3 + $0x588] sm:$0xff]
        %v8825 = vld [vmem:[#allocation3 + $0x590] sm:$0xff]
        %v8826 = vld [vmem:[#allocation3 + $0x598] sm:$0xff]
        %v8827 = vld [vmem:[#allocation3 + $0x5a0] sm:$0xff]
        %v8828 = vld [vmem:[#allocation3 + $0x5a8] sm:$0xff]
        %v8829 = vld [vmem:[#allocation3 + $0x5b0] sm:$0xff]
        %v8830 = vld [vmem:[#allocation3 + $0x5b8] sm:$0xff]
        %v8831 = vld [vmem:[#allocation3 + $0x5c0] sm:$0xff]
        %v8832 = vld [vmem:[#allocation3 + $0x5c8] sm:$0xff]
        %v8833 = vld [vmem:[#allocation3 + $0x5d0] sm:$0xff]
        %v8834 = vld [vmem:[#allocation3 + $0x5d8] sm:$0xff]
        %v8835 = vld [vmem:[#allocation3 + $0x5e0] sm:$0xff]
        %v8836 = vld [vmem:[#allocation3 + $0x5e8] sm:$0xff]
        %v8837 = vld [vmem:[#allocation3 + $0x5f0] sm:$0xff]
        %v8838 = vld [vmem:[#allocation3 + $0x5f8] sm:$0xff]
        %v8839 = vld [vmem:[#allocation3 + $0x600] sm:$0xff]
        %v8840 = vld [vmem:[#allocation3 + $0x608] sm:$0xff]
        %v8841 = vld [vmem:[#allocation3 + $0x610] sm:$0xff]
        %v8842 = vld [vmem:[#allocation3 + $0x618] sm:$0xff]
        %v8843 = vld [vmem:[#allocation3 + $0x620] sm:$0xff]
        %v8844 = vld [vmem:[#allocation3 + $0x628] sm:$0xff]
        %v8845 = vld [vmem:[#allocation3 + $0x630] sm:$0xff]
        %v8846 = vld [vmem:[#allocation3 + $0x638] sm:$0xff]
        %v8847 = vld [vmem:[#allocation3 + $0x640] sm:$0xff]
        %v8848 = vld [vmem:[#allocation3 + $0x648] sm:$0xff]
        %v8849 = vld [vmem:[#allocation3 + $0x650] sm:$0xff]
        %v8850 = vld [vmem:[#allocation3 + $0x658] sm:$0xff]
        %v8851 = vld [vmem:[#allocation3 + $0x660] sm:$0xff]
        %v8852 = vld [vmem:[#allocation3 + $0x668] sm:$0xff]
        %v8853 = vld [vmem:[#allocation3 + $0x670] sm:$0xff]
        %v8854 = vld [vmem:[#allocation3 + $0x678] sm:$0xff]
        %v8855 = vld [vmem:[#allocation3 + $0x680] sm:$0xff]
        %v8856 = vld [vmem:[#allocation3 + $0x688] sm:$0xff]
        %v8857 = vld [vmem:[#allocation3 + $0x690] sm:$0xff]
        %v8858 = vld [vmem:[#allocation3 + $0x698] sm:$0xff]
        %v8859 = vld [vmem:[#allocation3 + $0x6a0] sm:$0xff]
        %v8860 = vld [vmem:[#allocation3 + $0x6a8] sm:$0xff]
        %v8861 = vld [vmem:[#allocation3 + $0x6b0] sm:$0xff]
        %v8862 = vld [vmem:[#allocation3 + $0x6b8] sm:$0xff]
        %v8863 = vld [vmem:[#allocation3 + $0x6c0] sm:$0xff]
        %v8864 = vld [vmem:[#allocation3 + $0x6c8] sm:$0xff]
        %v8865 = vld [vmem:[#allocation3 + $0x6d0] sm:$0xff]
        %v8866 = vld [vmem:[#allocation3 + $0x6d8] sm:$0xff]
        %v8867 = vld [vmem:[#allocation3 + $0x6e0] sm:$0xff]
        %v8868 = vld [vmem:[#allocation3 + $0x6e8] sm:$0xff]
        %v8869 = vld [vmem:[#allocation3 + $0x6f0] sm:$0xff]
        %v8870 = vld [vmem:[#allocation3 + $0x6f8] sm:$0xff]
        %v8871 = vld [vmem:[#allocation3 + $0x700] sm:$0xff]
        %v8872 = vld [vmem:[#allocation3 + $0x708] sm:$0xff]
        %v8873 = vld [vmem:[#allocation3 + $0x710] sm:$0xff]
        %v8874 = vld [vmem:[#allocation3 + $0x718] sm:$0xff]
        %v8875 = vld [vmem:[#allocation3 + $0x720] sm:$0xff]
        %v8876 = vld [vmem:[#allocation3 + $0x728] sm:$0xff]
        %v8877 = vld [vmem:[#allocation3 + $0x730] sm:$0xff]
        %v8878 = vld [vmem:[#allocation3 + $0x738] sm:$0xff]
        %v8879 = vld [vmem:[#allocation3 + $0x740] sm:$0xff]
        %v8880 = vld [vmem:[#allocation3 + $0x748] sm:$0xff]
        %v8881 = vld [vmem:[#allocation3 + $0x750] sm:$0xff]
        %v8882 = vld [vmem:[#allocation3 + $0x758] sm:$0xff]
        %v8883 = vld [vmem:[#allocation3 + $0x760] sm:$0xff]
        %v8884 = vld [vmem:[#allocation3 + $0x768] sm:$0xff]
        %v8885 = vld [vmem:[#allocation3 + $0x770] sm:$0xff]
        %v8886 = vld [vmem:[#allocation3 + $0x778] sm:$0xff]
        %v8887 = vld [vmem:[#allocation3 + $0x780] sm:$0xff]
        %v8888 = vld [vmem:[#allocation3 + $0x788] sm:$0xff]
        %v8889 = vld [vmem:[#allocation3 + $0x790] sm:$0xff]
        %v8890 = vld [vmem:[#allocation3 + $0x798] sm:$0xff]
        %v8891 = vld [vmem:[#allocation3 + $0x7a0] sm:$0xff]
        %v8892 = vld [vmem:[#allocation3 + $0x7a8] sm:$0xff]
        %v8893 = vld [vmem:[#allocation3 + $0x7b0] sm:$0xff]
        %v8894 = vld [vmem:[#allocation3 + $0x7b8] sm:$0xff]
        %v8895 = vld [vmem:[#allocation3 + $0x7c0] sm:$0xff]
        %v8896 = vld [vmem:[#allocation3 + $0x7c8] sm:$0xff]
        %v8897 = vld [vmem:[#allocation3 + $0x7d0] sm:$0xff]
        %v8898 = vld [vmem:[#allocation3 + $0x7d8] sm:$0xff]
        %v8899 = vld [vmem:[#allocation3 + $0x7e0] sm:$0xff]
        %v8900 = vld [vmem:[#allocation3 + $0x7e8] sm:$0xff]
        %v8901 = vld [vmem:[#allocation3 + $0x7f0] sm:$0xff]
        %v8902 = vld [vmem:[#allocation3 + $0x7f8] sm:$0xff]
        %v8903 = vld [vmem:[%s6] sm:$0xff]
        %v8904 = vld [vmem:[%s6 + $0x8] sm:$0xff]
        %v8905 = vld [vmem:[%s6 + $0x10] sm:$0xff]
        %v8906 = vld [vmem:[%s6 + $0x18] sm:$0xff]
        %v8907 = vld [vmem:[%s6 + $0x20] sm:$0xff]
        %v8908 = vld [vmem:[%s6 + $0x28] sm:$0xff]
        %v8909 = vld [vmem:[%s6 + $0x30] sm:$0xff]
        %v8910 = vld [vmem:[%s6 + $0x38] sm:$0xff]
        %v8911 = vld [vmem:[%s6 + $0x40] sm:$0xff]
        %v8912 = vld [vmem:[%s6 + $0x48] sm:$0xff]
        %v8913 = vld [vmem:[%s6 + $0x50] sm:$0xff]
        %v8914 = vld [vmem:[%s6 + $0x58] sm:$0xff]
        %v8915 = vld [vmem:[%s6 + $0x60] sm:$0xff]
        %v8916 = vld [vmem:[%s6 + $0x68] sm:$0xff]
        %v8917 = vld [vmem:[%s6 + $0x70] sm:$0xff]
        %v8918 = vld [vmem:[%s6 + $0x78] sm:$0xff]
        %v8919 = vld [vmem:[%s6 + $0x80] sm:$0xff]
        %v8920 = vld [vmem:[%s6 + $0x88] sm:$0xff]
        %v8921 = vld [vmem:[%s6 + $0x90] sm:$0xff]
        %v8922 = vld [vmem:[%s6 + $0x98] sm:$0xff]
        %v8923 = vld [vmem:[%s6 + $0xa0] sm:$0xff]
        %v8924 = vld [vmem:[%s6 + $0xa8] sm:$0xff]
        %v8925 = vld [vmem:[%s6 + $0xb0] sm:$0xff]
        %v8926 = vld [vmem:[%s6 + $0xb8] sm:$0xff]
        %v8927 = vld [vmem:[%s6 + $0xc0] sm:$0xff]
        %v8928 = vld [vmem:[%s6 + $0xc8] sm:$0xff]
        %v8929 = vld [vmem:[%s6 + $0xd0] sm:$0xff]
        %v8930 = vld [vmem:[%s6 + $0xd8] sm:$0xff]
        %v8931 = vld [vmem:[%s6 + $0xe0] sm:$0xff]
        %v8932 = vld [vmem:[%s6 + $0xe8] sm:$0xff]
        %v8933 = vld [vmem:[%s6 + $0xf0] sm:$0xff]
        %v8934 = vld [vmem:[%s6 + $0xf8] sm:$0xff]
        %v8935 = vld [vmem:[%s6 + $0x100] sm:$0xff]
        %v8936 = vld [vmem:[%s6 + $0x108] sm:$0xff]
        %v8937 = vld [vmem:[%s6 + $0x110] sm:$0xff]
        %v8938 = vld [vmem:[%s6 + $0x118] sm:$0xff]
        %v8939 = vld [vmem:[%s6 + $0x120] sm:$0xff]
        %v8940 = vld [vmem:[%s6 + $0x128] sm:$0xff]
        %v8941 = vld [vmem:[%s6 + $0x130] sm:$0xff]
        %v8942 = vld [vmem:[%s6 + $0x138] sm:$0xff]
        %v8943 = vld [vmem:[%s6 + $0x140] sm:$0xff]
        %v8944 = vld [vmem:[%s6 + $0x148] sm:$0xff]
        %v8945 = vld [vmem:[%s6 + $0x150] sm:$0xff]
        %v8946 = vld [vmem:[%s6 + $0x158] sm:$0xff]
        %v8947 = vld [vmem:[%s6 + $0x160] sm:$0xff]
        %v8948 = vld [vmem:[%s6 + $0x168] sm:$0xff]
        %v8949 = vld [vmem:[%s6 + $0x170] sm:$0xff]
        %v8950 = vld [vmem:[%s6 + $0x178] sm:$0xff]
        %v8951 = vld [vmem:[%s6 + $0x180] sm:$0xff]
        %v8952 = vld [vmem:[%s6 + $0x188] sm:$0xff]
        %v8953 = vld [vmem:[%s6 + $0x190] sm:$0xff]
        %v8954 = vld [vmem:[%s6 + $0x198] sm:$0xff]
        %v8955 = vld [vmem:[%s6 + $0x1a0] sm:$0xff]
        %v8956 = vld [vmem:[%s6 + $0x1a8] sm:$0xff]
        %v8957 = vld [vmem:[%s6 + $0x1b0] sm:$0xff]
        %v8958 = vld [vmem:[%s6 + $0x1b8] sm:$0xff]
        %v8959 = vld [vmem:[%s6 + $0x1c0] sm:$0xff]
        %v8960 = vld [vmem:[%s6 + $0x1c8] sm:$0xff]
        %v8961 = vld [vmem:[%s6 + $0x1d0] sm:$0xff]
        %v8962 = vld [vmem:[%s6 + $0x1d8] sm:$0xff]
        %v8963 = vld [vmem:[%s6 + $0x1e0] sm:$0xff]
        %v8964 = vld [vmem:[%s6 + $0x1e8] sm:$0xff]
        %v8965 = vld [vmem:[%s6 + $0x1f0] sm:$0xff]
        %v8966 = vld [vmem:[%s6 + $0x1f8] sm:$0xff]
        %v9223 = vunpack.c.l.b16 %v8647
        %v9224 = vunpack.c.h.b16 %v8647
        %v9225 = vunpack.c.l.b16 %v8648
        %v9226 = vunpack.c.h.b16 %v8648
        %v9227 = vunpack.c.l.b16 %v8649
        %v9228 = vunpack.c.h.b16 %v8649
        %v9229 = vunpack.c.l.b16 %v8650
        %v9230 = vunpack.c.h.b16 %v8650
        %v9231 = vunpack.c.l.b16 %v8651
        %v9232 = vunpack.c.h.b16 %v8651
        %v9233 = vunpack.c.l.b16 %v8652
        %v9234 = vunpack.c.h.b16 %v8652
        %v9235 = vunpack.c.l.b16 %v8653
        %v9236 = vunpack.c.h.b16 %v8653
        %v9237 = vunpack.c.l.b16 %v8654
        %v9238 = vunpack.c.h.b16 %v8654
        %v9239 = vunpack.c.l.b16 %v8655
        %v9240 = vunpack.c.h.b16 %v8655
        %v9241 = vunpack.c.l.b16 %v8656
        %v9242 = vunpack.c.h.b16 %v8656
        %v9243 = vunpack.c.l.b16 %v8657
        %v9244 = vunpack.c.h.b16 %v8657
        %v9245 = vunpack.c.l.b16 %v8658
        %v9246 = vunpack.c.h.b16 %v8658
        %v9247 = vunpack.c.l.b16 %v8659
        %v9248 = vunpack.c.h.b16 %v8659
        %v9249 = vunpack.c.l.b16 %v8660
        %v9250 = vunpack.c.h.b16 %v8660
        %v9251 = vunpack.c.l.b16 %v8661
        %v9252 = vunpack.c.h.b16 %v8661
        %v9253 = vunpack.c.l.b16 %v8662
        %v9254 = vunpack.c.h.b16 %v8662
        %v9255 = vunpack.c.l.b16 %v8663
        %v9256 = vunpack.c.h.b16 %v8663
        %v9257 = vunpack.c.l.b16 %v8664
        %v9258 = vunpack.c.h.b16 %v8664
        %v9259 = vunpack.c.l.b16 %v8665
        %v9260 = vunpack.c.h.b16 %v8665
        %v9261 = vunpack.c.l.b16 %v8666
        %v9262 = vunpack.c.h.b16 %v8666
        %v9263 = vunpack.c.l.b16 %v8667
        %v9264 = vunpack.c.h.b16 %v8667
        %v9265 = vunpack.c.l.b16 %v8668
        %v9266 = vunpack.c.h.b16 %v8668
        %v9267 = vunpack.c.l.b16 %v8669
        %v9268 = vunpack.c.h.b16 %v8669
        %v9269 = vunpack.c.l.b16 %v8670
        %v9270 = vunpack.c.h.b16 %v8670
        %v9271 = vunpack.c.l.b16 %v8671
        %v9272 = vunpack.c.h.b16 %v8671
        %v9273 = vunpack.c.l.b16 %v8672
        %v9274 = vunpack.c.h.b16 %v8672
        %v9275 = vunpack.c.l.b16 %v8673
        %v9276 = vunpack.c.h.b16 %v8673
        %v9277 = vunpack.c.l.b16 %v8674
        %v9278 = vunpack.c.h.b16 %v8674
        %v9279 = vunpack.c.l.b16 %v8675
        %v9280 = vunpack.c.h.b16 %v8675
        %v9281 = vunpack.c.l.b16 %v8676
        %v9282 = vunpack.c.h.b16 %v8676
        %v9283 = vunpack.c.l.b16 %v8677
        %v9284 = vunpack.c.h.b16 %v8677
        %v9285 = vunpack.c.l.b16 %v8678
        %v9286 = vunpack.c.h.b16 %v8678
        %v9287 = vunpack.c.l.b16 %v8679
        %v9288 = vunpack.c.h.b16 %v8679
        %v9289 = vunpack.c.l.b16 %v8680
        %v9290 = vunpack.c.h.b16 %v8680
        %v9291 = vunpack.c.l.b16 %v8681
        %v9292 = vunpack.c.h.b16 %v8681
        %v9293 = vunpack.c.l.b16 %v8682
        %v9294 = vunpack.c.h.b16 %v8682
        %v9295 = vunpack.c.l.b16 %v8683
        %v9296 = vunpack.c.h.b16 %v8683
        %v9297 = vunpack.c.l.b16 %v8684
        %v9298 = vunpack.c.h.b16 %v8684
        %v9299 = vunpack.c.l.b16 %v8685
        %v9300 = vunpack.c.h.b16 %v8685
        %v9301 = vunpack.c.l.b16 %v8686
        %v9302 = vunpack.c.h.b16 %v8686
        %v9303 = vunpack.c.l.b16 %v8687
        %v9304 = vunpack.c.h.b16 %v8687
        %v9305 = vunpack.c.l.b16 %v8688
        %v9306 = vunpack.c.h.b16 %v8688
        %v9307 = vunpack.c.l.b16 %v8689
        %v9308 = vunpack.c.h.b16 %v8689
        %v9309 = vunpack.c.l.b16 %v8690
        %v9310 = vunpack.c.h.b16 %v8690
        %v9311 = vunpack.c.l.b16 %v8691
        %v9312 = vunpack.c.h.b16 %v8691
        %v9313 = vunpack.c.l.b16 %v8692
        %v9314 = vunpack.c.h.b16 %v8692
        %v9315 = vunpack.c.l.b16 %v8693
        %v9316 = vunpack.c.h.b16 %v8693
        %v9317 = vunpack.c.l.b16 %v8694
        %v9318 = vunpack.c.h.b16 %v8694
        %v9319 = vunpack.c.l.b16 %v8695
        %v9320 = vunpack.c.h.b16 %v8695
        %v9321 = vunpack.c.l.b16 %v8696
        %v9322 = vunpack.c.h.b16 %v8696
        %v9323 = vunpack.c.l.b16 %v8697
        %v9324 = vunpack.c.h.b16 %v8697
        %v9325 = vunpack.c.l.b16 %v8698
        %v9326 = vunpack.c.h.b16 %v8698
        %v9327 = vunpack.c.l.b16 %v8699
        %v9328 = vunpack.c.h.b16 %v8699
        %v9329 = vunpack.c.l.b16 %v8700
        %v9330 = vunpack.c.h.b16 %v8700
        %v9331 = vunpack.c.l.b16 %v8701
        %v9332 = vunpack.c.h.b16 %v8701
        %v9333 = vunpack.c.l.b16 %v8702
        %v9334 = vunpack.c.h.b16 %v8702
        %v9335 = vunpack.c.l.b16 %v8703
        %v9336 = vunpack.c.h.b16 %v8703
        %v9337 = vunpack.c.l.b16 %v8704
        %v9338 = vunpack.c.h.b16 %v8704
        %v9339 = vunpack.c.l.b16 %v8705
        %v9340 = vunpack.c.h.b16 %v8705
        %v9341 = vunpack.c.l.b16 %v8706
        %v9342 = vunpack.c.h.b16 %v8706
        %v9343 = vunpack.c.l.b16 %v8707
        %v9344 = vunpack.c.h.b16 %v8707
        %v9345 = vunpack.c.l.b16 %v8708
        %v9346 = vunpack.c.h.b16 %v8708
        %v9347 = vunpack.c.l.b16 %v8709
        %v9348 = vunpack.c.h.b16 %v8709
        %v9349 = vunpack.c.l.b16 %v8710
        %v9350 = vunpack.c.h.b16 %v8710
        %v9351 = vunpack.c.l.b16 %v8711
        %v9352 = vunpack.c.h.b16 %v8711
        %v9353 = vunpack.c.l.b16 %v8712
        %v9354 = vunpack.c.h.b16 %v8712
        %v9355 = vunpack.c.l.b16 %v8713
        %v9356 = vunpack.c.h.b16 %v8713
        %v9357 = vunpack.c.l.b16 %v8714
        %v9358 = vunpack.c.h.b16 %v8714
        %v9359 = vunpack.c.l.b16 %v8715
        %v9360 = vunpack.c.h.b16 %v8715
        %v9361 = vunpack.c.l.b16 %v8716
        %v9362 = vunpack.c.h.b16 %v8716
        %v9363 = vunpack.c.l.b16 %v8717
        %v9364 = vunpack.c.h.b16 %v8717
        %v9365 = vunpack.c.l.b16 %v8718
        %v9366 = vunpack.c.h.b16 %v8718
        %v9367 = vunpack.c.l.b16 %v8719
        %v9368 = vunpack.c.h.b16 %v8719
        %v9369 = vunpack.c.l.b16 %v8720
        %v9370 = vunpack.c.h.b16 %v8720
        %v9371 = vunpack.c.l.b16 %v8721
        %v9372 = vunpack.c.h.b16 %v8721
        %v9373 = vunpack.c.l.b16 %v8722
        %v9374 = vunpack.c.h.b16 %v8722
        %v9375 = vunpack.c.l.b16 %v8723
        %v9376 = vunpack.c.h.b16 %v8723
        %v9377 = vunpack.c.l.b16 %v8724
        %v9378 = vunpack.c.h.b16 %v8724
        %v9379 = vunpack.c.l.b16 %v8725
        %v9380 = vunpack.c.h.b16 %v8725
        %v9381 = vunpack.c.l.b16 %v8726
        %v9382 = vunpack.c.h.b16 %v8726
        %v9383 = vunpack.c.l.b16 %v8727
        %v9384 = vunpack.c.h.b16 %v8727
        %v9385 = vunpack.c.l.b16 %v8728
        %v9386 = vunpack.c.h.b16 %v8728
        %v9387 = vunpack.c.l.b16 %v8729
        %v9388 = vunpack.c.h.b16 %v8729
        %v9389 = vunpack.c.l.b16 %v8730
        %v9390 = vunpack.c.h.b16 %v8730
        %v9391 = vunpack.c.l.b16 %v8731
        %v9392 = vunpack.c.h.b16 %v8731
        %v9393 = vunpack.c.l.b16 %v8732
        %v9394 = vunpack.c.h.b16 %v8732
        %v9395 = vunpack.c.l.b16 %v8733
        %v9396 = vunpack.c.h.b16 %v8733
        %v9397 = vunpack.c.l.b16 %v8734
        %v9398 = vunpack.c.h.b16 %v8734
        %v9399 = vunpack.c.l.b16 %v8735
        %v9400 = vunpack.c.h.b16 %v8735
        %v9401 = vunpack.c.l.b16 %v8736
        %v9402 = vunpack.c.h.b16 %v8736
        %v9403 = vunpack.c.l.b16 %v8737
        %v9404 = vunpack.c.h.b16 %v8737
        %v9405 = vunpack.c.l.b16 %v8738
        %v9406 = vunpack.c.h.b16 %v8738
        %v9407 = vunpack.c.l.b16 %v8739
        %v9408 = vunpack.c.h.b16 %v8739
        %v9409 = vunpack.c.l.b16 %v8740
        %v9410 = vunpack.c.h.b16 %v8740
        %v9411 = vunpack.c.l.b16 %v8741
        %v9412 = vunpack.c.h.b16 %v8741
        %v9413 = vunpack.c.l.b16 %v8742
        %v9414 = vunpack.c.h.b16 %v8742
        %v9415 = vunpack.c.l.b16 %v8743
        %v9416 = vunpack.c.h.b16 %v8743
        %v9417 = vunpack.c.l.b16 %v8744
        %v9418 = vunpack.c.h.b16 %v8744
        %v9419 = vunpack.c.l.b16 %v8745
        %v9420 = vunpack.c.h.b16 %v8745
        %v9421 = vunpack.c.l.b16 %v8746
        %v9422 = vunpack.c.h.b16 %v8746
        %v9423 = vunpack.c.l.b16 %v8747
        %v9424 = vunpack.c.h.b16 %v8747
        %v9425 = vunpack.c.l.b16 %v8748
        %v9426 = vunpack.c.h.b16 %v8748
        %v9427 = vunpack.c.l.b16 %v8749
        %v9428 = vunpack.c.h.b16 %v8749
        %v9429 = vunpack.c.l.b16 %v8750
        %v9430 = vunpack.c.h.b16 %v8750
        %v9431 = vunpack.c.l.b16 %v8751
        %v9432 = vunpack.c.h.b16 %v8751
        %v9433 = vunpack.c.l.b16 %v8752
        %v9434 = vunpack.c.h.b16 %v8752
        %v9435 = vunpack.c.l.b16 %v8753
        %v9436 = vunpack.c.h.b16 %v8753
        %v9437 = vunpack.c.l.b16 %v8754
        %v9438 = vunpack.c.h.b16 %v8754
        %v9439 = vunpack.c.l.b16 %v8755
        %v9440 = vunpack.c.h.b16 %v8755
        %v9441 = vunpack.c.l.b16 %v8756
        %v9442 = vunpack.c.h.b16 %v8756
        %v9443 = vunpack.c.l.b16 %v8757
        %v9444 = vunpack.c.h.b16 %v8757
        %v9445 = vunpack.c.l.b16 %v8758
        %v9446 = vunpack.c.h.b16 %v8758
        %v9447 = vunpack.c.l.b16 %v8759
        %v9448 = vunpack.c.h.b16 %v8759
        %v9449 = vunpack.c.l.b16 %v8760
        %v9450 = vunpack.c.h.b16 %v8760
        %v9451 = vunpack.c.l.b16 %v8761
        %v9452 = vunpack.c.h.b16 %v8761
        %v9453 = vunpack.c.l.b16 %v8762
        %v9454 = vunpack.c.h.b16 %v8762
        %v9455 = vunpack.c.l.b16 %v8763
        %v9456 = vunpack.c.h.b16 %v8763
        %v9457 = vunpack.c.l.b16 %v8764
        %v9458 = vunpack.c.h.b16 %v8764
        %v9459 = vunpack.c.l.b16 %v8765
        %v9460 = vunpack.c.h.b16 %v8765
        %v9461 = vunpack.c.l.b16 %v8766
        %v9462 = vunpack.c.h.b16 %v8766
        %v9463 = vunpack.c.l.b16 %v8767
        %v9464 = vunpack.c.h.b16 %v8767
        %v9465 = vunpack.c.l.b16 %v8768
        %v9466 = vunpack.c.h.b16 %v8768
        %v9467 = vunpack.c.l.b16 %v8769
        %v9468 = vunpack.c.h.b16 %v8769
        %v9469 = vunpack.c.l.b16 %v8770
        %v9470 = vunpack.c.h.b16 %v8770
        %v9471 = vunpack.c.l.b16 %v8771
        %v9472 = vunpack.c.h.b16 %v8771
        %v9473 = vunpack.c.l.b16 %v8772
        %v9474 = vunpack.c.h.b16 %v8772
        %v9475 = vunpack.c.l.b16 %v8773
        %v9476 = vunpack.c.h.b16 %v8773
        %v9477 = vunpack.c.l.b16 %v8774
        %v9478 = vunpack.c.h.b16 %v8774
        %v9479 = vunpack.c.l.b16 %v8775
        %v9480 = vunpack.c.h.b16 %v8775
        %v9481 = vunpack.c.l.b16 %v8776
        %v9482 = vunpack.c.h.b16 %v8776
        %v9483 = vunpack.c.l.b16 %v8777
        %v9484 = vunpack.c.h.b16 %v8777
        %v9485 = vunpack.c.l.b16 %v8778
        %v9486 = vunpack.c.h.b16 %v8778
        %v9487 = vunpack.c.l.b16 %v8779
        %v9488 = vunpack.c.h.b16 %v8779
        %v9489 = vunpack.c.l.b16 %v8780
        %v9490 = vunpack.c.h.b16 %v8780
        %v9491 = vunpack.c.l.b16 %v8781
        %v9492 = vunpack.c.h.b16 %v8781
        %v9493 = vunpack.c.l.b16 %v8782
        %v9494 = vunpack.c.h.b16 %v8782
        %v9495 = vunpack.c.l.b16 %v8783
        %v9496 = vunpack.c.h.b16 %v8783
        %v9497 = vunpack.c.l.b16 %v8784
        %v9498 = vunpack.c.h.b16 %v8784
        %v9499 = vunpack.c.l.b16 %v8785
        %v9500 = vunpack.c.h.b16 %v8785
        %v9501 = vunpack.c.l.b16 %v8786
        %v9502 = vunpack.c.h.b16 %v8786
        %v9503 = vunpack.c.l.b16 %v8787
        %v9504 = vunpack.c.h.b16 %v8787
        %v9505 = vunpack.c.l.b16 %v8788
        %v9506 = vunpack.c.h.b16 %v8788
        %v9507 = vunpack.c.l.b16 %v8789
        %v9508 = vunpack.c.h.b16 %v8789
        %v9509 = vunpack.c.l.b16 %v8790
        %v9510 = vunpack.c.h.b16 %v8790
        %v9511 = vunpack.c.l.b16 %v8791
        %v9512 = vunpack.c.h.b16 %v8791
        %v9513 = vunpack.c.l.b16 %v8792
        %v9514 = vunpack.c.h.b16 %v8792
        %v9515 = vunpack.c.l.b16 %v8793
        %v9516 = vunpack.c.h.b16 %v8793
        %v9517 = vunpack.c.l.b16 %v8794
        %v9518 = vunpack.c.h.b16 %v8794
        %v9519 = vunpack.c.l.b16 %v8795
        %v9520 = vunpack.c.h.b16 %v8795
        %v9521 = vunpack.c.l.b16 %v8796
        %v9522 = vunpack.c.h.b16 %v8796
        %v9523 = vunpack.c.l.b16 %v8797
        %v9524 = vunpack.c.h.b16 %v8797
        %v9525 = vunpack.c.l.b16 %v8798
        %v9526 = vunpack.c.h.b16 %v8798
        %v9527 = vunpack.c.l.b16 %v8799
        %v9528 = vunpack.c.h.b16 %v8799
        %v9529 = vunpack.c.l.b16 %v8800
        %v9530 = vunpack.c.h.b16 %v8800
        %v9531 = vunpack.c.l.b16 %v8801
        %v9532 = vunpack.c.h.b16 %v8801
        %v9533 = vunpack.c.l.b16 %v8802
        %v9534 = vunpack.c.h.b16 %v8802
        %v9535 = vunpack.c.l.b16 %v8803
        %v9536 = vunpack.c.h.b16 %v8803
        %v9537 = vunpack.c.l.b16 %v8804
        %v9538 = vunpack.c.h.b16 %v8804
        %v9539 = vunpack.c.l.b16 %v8805
        %v9540 = vunpack.c.h.b16 %v8805
        %v9541 = vunpack.c.l.b16 %v8806
        %v9542 = vunpack.c.h.b16 %v8806
        %v9543 = vunpack.c.l.b16 %v8807
        %v9544 = vunpack.c.h.b16 %v8807
        %v9545 = vunpack.c.l.b16 %v8808
        %v9546 = vunpack.c.h.b16 %v8808
        %v9547 = vunpack.c.l.b16 %v8809
        %v9548 = vunpack.c.h.b16 %v8809
        %v9549 = vunpack.c.l.b16 %v8810
        %v9550 = vunpack.c.h.b16 %v8810
        %v9551 = vunpack.c.l.b16 %v8811
        %v9552 = vunpack.c.h.b16 %v8811
        %v9553 = vunpack.c.l.b16 %v8812
        %v9554 = vunpack.c.h.b16 %v8812
        %v9555 = vunpack.c.l.b16 %v8813
        %v9556 = vunpack.c.h.b16 %v8813
        %v9557 = vunpack.c.l.b16 %v8814
        %v9558 = vunpack.c.h.b16 %v8814
        %v9559 = vunpack.c.l.b16 %v8815
        %v9560 = vunpack.c.h.b16 %v8815
        %v9561 = vunpack.c.l.b16 %v8816
        %v9562 = vunpack.c.h.b16 %v8816
        %v9563 = vunpack.c.l.b16 %v8817
        %v9564 = vunpack.c.h.b16 %v8817
        %v9565 = vunpack.c.l.b16 %v8818
        %v9566 = vunpack.c.h.b16 %v8818
        %v9567 = vunpack.c.l.b16 %v8819
        %v9568 = vunpack.c.h.b16 %v8819
        %v9569 = vunpack.c.l.b16 %v8820
        %v9570 = vunpack.c.h.b16 %v8820
        %v9571 = vunpack.c.l.b16 %v8821
        %v9572 = vunpack.c.h.b16 %v8821
        %v9573 = vunpack.c.l.b16 %v8822
        %v9574 = vunpack.c.h.b16 %v8822
        %v9575 = vunpack.c.l.b16 %v8823
        %v9576 = vunpack.c.h.b16 %v8823
        %v9577 = vunpack.c.l.b16 %v8824
        %v9578 = vunpack.c.h.b16 %v8824
        %v9579 = vunpack.c.l.b16 %v8825
        %v9580 = vunpack.c.h.b16 %v8825
        %v9581 = vunpack.c.l.b16 %v8826
        %v9582 = vunpack.c.h.b16 %v8826
        %v9583 = vunpack.c.l.b16 %v8827
        %v9584 = vunpack.c.h.b16 %v8827
        %v9585 = vunpack.c.l.b16 %v8828
        %v9586 = vunpack.c.h.b16 %v8828
        %v9587 = vunpack.c.l.b16 %v8829
        %v9588 = vunpack.c.h.b16 %v8829
        %v9589 = vunpack.c.l.b16 %v8830
        %v9590 = vunpack.c.h.b16 %v8830
        %v9591 = vunpack.c.l.b16 %v8831
        %v9592 = vunpack.c.h.b16 %v8831
        %v9593 = vunpack.c.l.b16 %v8832
        %v9594 = vunpack.c.h.b16 %v8832
        %v9595 = vunpack.c.l.b16 %v8833
        %v9596 = vunpack.c.h.b16 %v8833
        %v9597 = vunpack.c.l.b16 %v8834
        %v9598 = vunpack.c.h.b16 %v8834
        %v9599 = vunpack.c.l.b16 %v8835
        %v9600 = vunpack.c.h.b16 %v8835
        %v9601 = vunpack.c.l.b16 %v8836
        %v9602 = vunpack.c.h.b16 %v8836
        %v9603 = vunpack.c.l.b16 %v8837
        %v9604 = vunpack.c.h.b16 %v8837
        %v9605 = vunpack.c.l.b16 %v8838
        %v9606 = vunpack.c.h.b16 %v8838
        %v9607 = vunpack.c.l.b16 %v8839
        %v9608 = vunpack.c.h.b16 %v8839
        %v9609 = vunpack.c.l.b16 %v8840
        %v9610 = vunpack.c.h.b16 %v8840
        %v9611 = vunpack.c.l.b16 %v8841
        %v9612 = vunpack.c.h.b16 %v8841
        %v9613 = vunpack.c.l.b16 %v8842
        %v9614 = vunpack.c.h.b16 %v8842
        %v9615 = vunpack.c.l.b16 %v8843
        %v9616 = vunpack.c.h.b16 %v8843
        %v9617 = vunpack.c.l.b16 %v8844
        %v9618 = vunpack.c.h.b16 %v8844
        %v9619 = vunpack.c.l.b16 %v8845
        %v9620 = vunpack.c.h.b16 %v8845
        %v9621 = vunpack.c.l.b16 %v8846
        %v9622 = vunpack.c.h.b16 %v8846
        %v9623 = vunpack.c.l.b16 %v8847
        %v9624 = vunpack.c.h.b16 %v8847
        %v9625 = vunpack.c.l.b16 %v8848
        %v9626 = vunpack.c.h.b16 %v8848
        %v9627 = vunpack.c.l.b16 %v8849
        %v9628 = vunpack.c.h.b16 %v8849
        %v9629 = vunpack.c.l.b16 %v8850
        %v9630 = vunpack.c.h.b16 %v8850
        %v9631 = vunpack.c.l.b16 %v8851
        %v9632 = vunpack.c.h.b16 %v8851
        %v9633 = vunpack.c.l.b16 %v8852
        %v9634 = vunpack.c.h.b16 %v8852
        %v9635 = vunpack.c.l.b16 %v8853
        %v9636 = vunpack.c.h.b16 %v8853
        %v9637 = vunpack.c.l.b16 %v8854
        %v9638 = vunpack.c.h.b16 %v8854
        %v9639 = vunpack.c.l.b16 %v8855
        %v9640 = vunpack.c.h.b16 %v8855
        %v9641 = vunpack.c.l.b16 %v8856
        %v9642 = vunpack.c.h.b16 %v8856
        %v9643 = vunpack.c.l.b16 %v8857
        %v9644 = vunpack.c.h.b16 %v8857
        %v9645 = vunpack.c.l.b16 %v8858
        %v9646 = vunpack.c.h.b16 %v8858
        %v9647 = vunpack.c.l.b16 %v8859
        %v9648 = vunpack.c.h.b16 %v8859
        %v9649 = vunpack.c.l.b16 %v8860
        %v9650 = vunpack.c.h.b16 %v8860
        %v9651 = vunpack.c.l.b16 %v8861
        %v9652 = vunpack.c.h.b16 %v8861
        %v9653 = vunpack.c.l.b16 %v8862
        %v9654 = vunpack.c.h.b16 %v8862
        %v9655 = vunpack.c.l.b16 %v8863
        %v9656 = vunpack.c.h.b16 %v8863
        %v9657 = vunpack.c.l.b16 %v8864
        %v9658 = vunpack.c.h.b16 %v8864
        %v9659 = vunpack.c.l.b16 %v8865
        %v9660 = vunpack.c.h.b16 %v8865
        %v9661 = vunpack.c.l.b16 %v8866
        %v9662 = vunpack.c.h.b16 %v8866
        %v9663 = vunpack.c.l.b16 %v8867
        %v9664 = vunpack.c.h.b16 %v8867
        %v9665 = vunpack.c.l.b16 %v8868
        %v9666 = vunpack.c.h.b16 %v8868
        %v9667 = vunpack.c.l.b16 %v8869
        %v9668 = vunpack.c.h.b16 %v8869
        %v9669 = vunpack.c.l.b16 %v8870
        %v9670 = vunpack.c.h.b16 %v8870
        %v9671 = vunpack.c.l.b16 %v8871
        %v9672 = vunpack.c.h.b16 %v8871
        %v9673 = vunpack.c.l.b16 %v8872
        %v9674 = vunpack.c.h.b16 %v8872
        %v9675 = vunpack.c.l.b16 %v8873
        %v9676 = vunpack.c.h.b16 %v8873
        %v9677 = vunpack.c.l.b16 %v8874
        %v9678 = vunpack.c.h.b16 %v8874
        %v9679 = vunpack.c.l.b16 %v8875
        %v9680 = vunpack.c.h.b16 %v8875
        %v9681 = vunpack.c.l.b16 %v8876
        %v9682 = vunpack.c.h.b16 %v8876
        %v9683 = vunpack.c.l.b16 %v8877
        %v9684 = vunpack.c.h.b16 %v8877
        %v9685 = vunpack.c.l.b16 %v8878
        %v9686 = vunpack.c.h.b16 %v8878
        %v9687 = vunpack.c.l.b16 %v8879
        %v9688 = vunpack.c.h.b16 %v8879
        %v9689 = vunpack.c.l.b16 %v8880
        %v9690 = vunpack.c.h.b16 %v8880
        %v9691 = vunpack.c.l.b16 %v8881
        %v9692 = vunpack.c.h.b16 %v8881
        %v9693 = vunpack.c.l.b16 %v8882
        %v9694 = vunpack.c.h.b16 %v8882
        %v9695 = vunpack.c.l.b16 %v8883
        %v9696 = vunpack.c.h.b16 %v8883
        %v9697 = vunpack.c.l.b16 %v8884
        %v9698 = vunpack.c.h.b16 %v8884
        %v9699 = vunpack.c.l.b16 %v8885
        %v9700 = vunpack.c.h.b16 %v8885
        %v9701 = vunpack.c.l.b16 %v8886
        %v9702 = vunpack.c.h.b16 %v8886
        %v9703 = vunpack.c.l.b16 %v8887
        %v9704 = vunpack.c.h.b16 %v8887
        %v9705 = vunpack.c.l.b16 %v8888
        %v9706 = vunpack.c.h.b16 %v8888
        %v9707 = vunpack.c.l.b16 %v8889
        %v9708 = vunpack.c.h.b16 %v8889
        %v9709 = vunpack.c.l.b16 %v8890
        %v9710 = vunpack.c.h.b16 %v8890
        %v9711 = vunpack.c.l.b16 %v8891
        %v9712 = vunpack.c.h.b16 %v8891
        %v9713 = vunpack.c.l.b16 %v8892
        %v9714 = vunpack.c.h.b16 %v8892
        %v9715 = vunpack.c.l.b16 %v8893
        %v9716 = vunpack.c.h.b16 %v8893
        %v9717 = vunpack.c.l.b16 %v8894
        %v9718 = vunpack.c.h.b16 %v8894
        %v9719 = vunpack.c.l.b16 %v8895
        %v9720 = vunpack.c.h.b16 %v8895
        %v9721 = vunpack.c.l.b16 %v8896
        %v9722 = vunpack.c.h.b16 %v8896
        %v9723 = vunpack.c.l.b16 %v8897
        %v9724 = vunpack.c.h.b16 %v8897
        %v9725 = vunpack.c.l.b16 %v8898
        %v9726 = vunpack.c.h.b16 %v8898
        %v9727 = vunpack.c.l.b16 %v8899
        %v9728 = vunpack.c.h.b16 %v8899
        %v9729 = vunpack.c.l.b16 %v8900
        %v9730 = vunpack.c.h.b16 %v8900
        %v9731 = vunpack.c.l.b16 %v8901
        %v9732 = vunpack.c.h.b16 %v8901
        %v9733 = vunpack.c.l.b16 %v8902
        %v9734 = vunpack.c.h.b16 %v8902
        %v9735 = vpack.c.b16 %v9231, %v9223
        %v9736 = vpack.c.b16 %v9232, %v9224
        %v9737 = vpack.c.b16 %v9233, %v9225
        %v9738 = vpack.c.b16 %v9234, %v9226
        %v9739 = vpack.c.b16 %v9235, %v9227
        %v9740 = vpack.c.b16 %v9236, %v9228
        %v9741 = vpack.c.b16 %v9237, %v9229
        %v9742 = vpack.c.b16 %v9238, %v9230
        %v9743 = vpack.c.b16 %v9247, %v9239
        %v9744 = vpack.c.b16 %v9248, %v9240
        %v9745 = vpack.c.b16 %v9249, %v9241
        %v9746 = vpack.c.b16 %v9250, %v9242
        %v9747 = vpack.c.b16 %v9251, %v9243
        %v9748 = vpack.c.b16 %v9252, %v9244
        %v9749 = vpack.c.b16 %v9253, %v9245
        %v9750 = vpack.c.b16 %v9254, %v9246
        %v9751 = vpack.c.b16 %v9263, %v9255
        %v9752 = vpack.c.b16 %v9264, %v9256
        %v9753 = vpack.c.b16 %v9265, %v9257
        %v9754 = vpack.c.b16 %v9266, %v9258
        %v9755 = vpack.c.b16 %v9267, %v9259
        %v9756 = vpack.c.b16 %v9268, %v9260
        %v9757 = vpack.c.b16 %v9269, %v9261
        %v9758 = vpack.c.b16 %v9270, %v9262
        %v9759 = vpack.c.b16 %v9279, %v9271
        %v9760 = vpack.c.b16 %v9280, %v9272
        %v9761 = vpack.c.b16 %v9281, %v9273
        %v9762 = vpack.c.b16 %v9282, %v9274
        %v9763 = vpack.c.b16 %v9283, %v9275
        %v9764 = vpack.c.b16 %v9284, %v9276
        %v9765 = vpack.c.b16 %v9285, %v9277
        %v9766 = vpack.c.b16 %v9286, %v9278
        %v9767 = vpack.c.b16 %v9295, %v9287
        %v9768 = vpack.c.b16 %v9296, %v9288
        %v9769 = vpack.c.b16 %v9297, %v9289
        %v9770 = vpack.c.b16 %v9298, %v9290
        %v9771 = vpack.c.b16 %v9299, %v9291
        %v9772 = vpack.c.b16 %v9300, %v9292
        %v9773 = vpack.c.b16 %v9301, %v9293
        %v9774 = vpack.c.b16 %v9302, %v9294
        %v9775 = vpack.c.b16 %v9311, %v9303
        %v9776 = vpack.c.b16 %v9312, %v9304
        %v9777 = vpack.c.b16 %v9313, %v9305
        %v9778 = vpack.c.b16 %v9314, %v9306
        %v9779 = vpack.c.b16 %v9315, %v9307
        %v9780 = vpack.c.b16 %v9316, %v9308
        %v9781 = vpack.c.b16 %v9317, %v9309
        %v9782 = vpack.c.b16 %v9318, %v9310
        %v9783 = vpack.c.b16 %v9327, %v9319
        %v9784 = vpack.c.b16 %v9328, %v9320
        %v9785 = vpack.c.b16 %v9329, %v9321
        %v9786 = vpack.c.b16 %v9330, %v9322
        %v9787 = vpack.c.b16 %v9331, %v9323
        %v9788 = vpack.c.b16 %v9332, %v9324
        %v9789 = vpack.c.b16 %v9333, %v9325
        %v9790 = vpack.c.b16 %v9334, %v9326
        %v9791 = vpack.c.b16 %v9343, %v9335
        %v9792 = vpack.c.b16 %v9344, %v9336
        %v9793 = vpack.c.b16 %v9345, %v9337
        %v9794 = vpack.c.b16 %v9346, %v9338
        %v9795 = vpack.c.b16 %v9347, %v9339
        %v9796 = vpack.c.b16 %v9348, %v9340
        %v9797 = vpack.c.b16 %v9349, %v9341
        %v9798 = vpack.c.b16 %v9350, %v9342
        %v9799 = vpack.c.b16 %v9359, %v9351
        %v9800 = vpack.c.b16 %v9360, %v9352
        %v9801 = vpack.c.b16 %v9361, %v9353
        %v9802 = vpack.c.b16 %v9362, %v9354
        %v9803 = vpack.c.b16 %v9363, %v9355
        %v9804 = vpack.c.b16 %v9364, %v9356
        %v9805 = vpack.c.b16 %v9365, %v9357
        %v9806 = vpack.c.b16 %v9366, %v9358
        %v9807 = vpack.c.b16 %v9375, %v9367
        %v9808 = vpack.c.b16 %v9376, %v9368
        %v9809 = vpack.c.b16 %v9377, %v9369
        %v9810 = vpack.c.b16 %v9378, %v9370
        %v9811 = vpack.c.b16 %v9379, %v9371
        %v9812 = vpack.c.b16 %v9380, %v9372
        %v9813 = vpack.c.b16 %v9381, %v9373
        %v9814 = vpack.c.b16 %v9382, %v9374
        %v9815 = vpack.c.b16 %v9391, %v9383
        %v9816 = vpack.c.b16 %v9392, %v9384
        %v9817 = vpack.c.b16 %v9393, %v9385
        %v9818 = vpack.c.b16 %v9394, %v9386
        %v9819 = vpack.c.b16 %v9395, %v9387
        %v9820 = vpack.c.b16 %v9396, %v9388
        %v9821 = vpack.c.b16 %v9397, %v9389
        %v9822 = vpack.c.b16 %v9398, %v9390
        %v9823 = vpack.c.b16 %v9407, %v9399
        %v9824 = vpack.c.b16 %v9408, %v9400
        %v9825 = vpack.c.b16 %v9409, %v9401
        %v9826 = vpack.c.b16 %v9410, %v9402
        %v9827 = vpack.c.b16 %v9411, %v9403
        %v9828 = vpack.c.b16 %v9412, %v9404
        %v9829 = vpack.c.b16 %v9413, %v9405
        %v9830 = vpack.c.b16 %v9414, %v9406
        %v9831 = vpack.c.b16 %v9423, %v9415
        %v9832 = vpack.c.b16 %v9424, %v9416
        %v9833 = vpack.c.b16 %v9425, %v9417
        %v9834 = vpack.c.b16 %v9426, %v9418
        %v9835 = vpack.c.b16 %v9427, %v9419
        %v9836 = vpack.c.b16 %v9428, %v9420
        %v9837 = vpack.c.b16 %v9429, %v9421
        %v9838 = vpack.c.b16 %v9430, %v9422
        %v9839 = vpack.c.b16 %v9439, %v9431
        %v9840 = vpack.c.b16 %v9440, %v9432
        %v9841 = vpack.c.b16 %v9441, %v9433
        %v9842 = vpack.c.b16 %v9442, %v9434
        %v9843 = vpack.c.b16 %v9443, %v9435
        %v9844 = vpack.c.b16 %v9444, %v9436
        %v9845 = vpack.c.b16 %v9445, %v9437
        %v9846 = vpack.c.b16 %v9446, %v9438
        %v9847 = vpack.c.b16 %v9455, %v9447
        %v9848 = vpack.c.b16 %v9456, %v9448
        %v9849 = vpack.c.b16 %v9457, %v9449
        %v9850 = vpack.c.b16 %v9458, %v9450
        %v9851 = vpack.c.b16 %v9459, %v9451
        %v9852 = vpack.c.b16 %v9460, %v9452
        %v9853 = vpack.c.b16 %v9461, %v9453
        %v9854 = vpack.c.b16 %v9462, %v9454
        %v9855 = vpack.c.b16 %v9471, %v9463
        %v9856 = vpack.c.b16 %v9472, %v9464
        %v9857 = vpack.c.b16 %v9473, %v9465
        %v9858 = vpack.c.b16 %v9474, %v9466
        %v9859 = vpack.c.b16 %v9475, %v9467
        %v9860 = vpack.c.b16 %v9476, %v9468
        %v9861 = vpack.c.b16 %v9477, %v9469
        %v9862 = vpack.c.b16 %v9478, %v9470
        %v9863 = vpack.c.b16 %v9487, %v9479
        %v9864 = vpack.c.b16 %v9488, %v9480
        %v9865 = vpack.c.b16 %v9489, %v9481
        %v9866 = vpack.c.b16 %v9490, %v9482
        %v9867 = vpack.c.b16 %v9491, %v9483
        %v9868 = vpack.c.b16 %v9492, %v9484
        %v9869 = vpack.c.b16 %v9493, %v9485
        %v9870 = vpack.c.b16 %v9494, %v9486
        %v9871 = vpack.c.b16 %v9503, %v9495
        %v9872 = vpack.c.b16 %v9504, %v9496
        %v9873 = vpack.c.b16 %v9505, %v9497
        %v9874 = vpack.c.b16 %v9506, %v9498
        %v9875 = vpack.c.b16 %v9507, %v9499
        %v9876 = vpack.c.b16 %v9508, %v9500
        %v9877 = vpack.c.b16 %v9509, %v9501
        %v9878 = vpack.c.b16 %v9510, %v9502
        %v9879 = vpack.c.b16 %v9519, %v9511
        %v9880 = vpack.c.b16 %v9520, %v9512
        %v9881 = vpack.c.b16 %v9521, %v9513
        %v9882 = vpack.c.b16 %v9522, %v9514
        %v9883 = vpack.c.b16 %v9523, %v9515
        %v9884 = vpack.c.b16 %v9524, %v9516
        %v9885 = vpack.c.b16 %v9525, %v9517
        %v9886 = vpack.c.b16 %v9526, %v9518
        %v9887 = vpack.c.b16 %v9535, %v9527
        %v9888 = vpack.c.b16 %v9536, %v9528
        %v9889 = vpack.c.b16 %v9537, %v9529
        %v9890 = vpack.c.b16 %v9538, %v9530
        %v9891 = vpack.c.b16 %v9539, %v9531
        %v9892 = vpack.c.b16 %v9540, %v9532
        %v9893 = vpack.c.b16 %v9541, %v9533
        %v9894 = vpack.c.b16 %v9542, %v9534
        %v9895 = vpack.c.b16 %v9551, %v9543
        %v9896 = vpack.c.b16 %v9552, %v9544
        %v9897 = vpack.c.b16 %v9553, %v9545
        %v9898 = vpack.c.b16 %v9554, %v9546
        %v9899 = vpack.c.b16 %v9555, %v9547
        %v9900 = vpack.c.b16 %v9556, %v9548
        %v9901 = vpack.c.b16 %v9557, %v9549
        %v9902 = vpack.c.b16 %v9558, %v9550
        %v9903 = vpack.c.b16 %v9567, %v9559
        %v9904 = vpack.c.b16 %v9568, %v9560
        %v9905 = vpack.c.b16 %v9569, %v9561
        %v9906 = vpack.c.b16 %v9570, %v9562
        %v9907 = vpack.c.b16 %v9571, %v9563
        %v9908 = vpack.c.b16 %v9572, %v9564
        %v9909 = vpack.c.b16 %v9573, %v9565
        %v9910 = vpack.c.b16 %v9574, %v9566
        %v9911 = vpack.c.b16 %v9583, %v9575
        %v9912 = vpack.c.b16 %v9584, %v9576
        %v9913 = vpack.c.b16 %v9585, %v9577
        %v9914 = vpack.c.b16 %v9586, %v9578
        %v9915 = vpack.c.b16 %v9587, %v9579
        %v9916 = vpack.c.b16 %v9588, %v9580
        %v9917 = vpack.c.b16 %v9589, %v9581
        %v9918 = vpack.c.b16 %v9590, %v9582
        %v9919 = vpack.c.b16 %v9599, %v9591
        %v9920 = vpack.c.b16 %v9600, %v9592
        %v9921 = vpack.c.b16 %v9601, %v9593
        %v9922 = vpack.c.b16 %v9602, %v9594
        %v9923 = vpack.c.b16 %v9603, %v9595
        %v9924 = vpack.c.b16 %v9604, %v9596
        %v9925 = vpack.c.b16 %v9605, %v9597
        %v9926 = vpack.c.b16 %v9606, %v9598
        %v9927 = vpack.c.b16 %v9615, %v9607
        %v9928 = vpack.c.b16 %v9616, %v9608
        %v9929 = vpack.c.b16 %v9617, %v9609
        %v9930 = vpack.c.b16 %v9618, %v9610
        %v9931 = vpack.c.b16 %v9619, %v9611
        %v9932 = vpack.c.b16 %v9620, %v9612
        %v9933 = vpack.c.b16 %v9621, %v9613
        %v9934 = vpack.c.b16 %v9622, %v9614
        %v9935 = vpack.c.b16 %v9631, %v9623
        %v9936 = vpack.c.b16 %v9632, %v9624
        %v9937 = vpack.c.b16 %v9633, %v9625
        %v9938 = vpack.c.b16 %v9634, %v9626
        %v9939 = vpack.c.b16 %v9635, %v9627
        %v9940 = vpack.c.b16 %v9636, %v9628
        %v9941 = vpack.c.b16 %v9637, %v9629
        %v9942 = vpack.c.b16 %v9638, %v9630
        %v9943 = vpack.c.b16 %v9647, %v9639
        %v9944 = vpack.c.b16 %v9648, %v9640
        %v9945 = vpack.c.b16 %v9649, %v9641
        %v9946 = vpack.c.b16 %v9650, %v9642
        %v9947 = vpack.c.b16 %v9651, %v9643
        %v9948 = vpack.c.b16 %v9652, %v9644
        %v9949 = vpack.c.b16 %v9653, %v9645
        %v9950 = vpack.c.b16 %v9654, %v9646
        %v9951 = vpack.c.b16 %v9663, %v9655
        %v9952 = vpack.c.b16 %v9664, %v9656
        %v9953 = vpack.c.b16 %v9665, %v9657
        %v9954 = vpack.c.b16 %v9666, %v9658
        %v9955 = vpack.c.b16 %v9667, %v9659
        %v9956 = vpack.c.b16 %v9668, %v9660
        %v9957 = vpack.c.b16 %v9669, %v9661
        %v9958 = vpack.c.b16 %v9670, %v9662
        %v9959 = vpack.c.b16 %v9679, %v9671
        %v9960 = vpack.c.b16 %v9680, %v9672
        %v9961 = vpack.c.b16 %v9681, %v9673
        %v9962 = vpack.c.b16 %v9682, %v9674
        %v9963 = vpack.c.b16 %v9683, %v9675
        %v9964 = vpack.c.b16 %v9684, %v9676
        %v9965 = vpack.c.b16 %v9685, %v9677
        %v9966 = vpack.c.b16 %v9686, %v9678
        %v9967 = vpack.c.b16 %v9695, %v9687
        %v9968 = vpack.c.b16 %v9696, %v9688
        %v9969 = vpack.c.b16 %v9697, %v9689
        %v9970 = vpack.c.b16 %v9698, %v9690
        %v9971 = vpack.c.b16 %v9699, %v9691
        %v9972 = vpack.c.b16 %v9700, %v9692
        %v9973 = vpack.c.b16 %v9701, %v9693
        %v9974 = vpack.c.b16 %v9702, %v9694
        %v9975 = vpack.c.b16 %v9711, %v9703
        %v9976 = vpack.c.b16 %v9712, %v9704
        %v9977 = vpack.c.b16 %v9713, %v9705
        %v9978 = vpack.c.b16 %v9714, %v9706
        %v9979 = vpack.c.b16 %v9715, %v9707
        %v9980 = vpack.c.b16 %v9716, %v9708
        %v9981 = vpack.c.b16 %v9717, %v9709
        %v9982 = vpack.c.b16 %v9718, %v9710
        %v9983 = vpack.c.b16 %v9727, %v9719
        %v9984 = vpack.c.b16 %v9728, %v9720
        %v9985 = vpack.c.b16 %v9729, %v9721
        %v9986 = vpack.c.b16 %v9730, %v9722
        %v9987 = vpack.c.b16 %v9731, %v9723
        %v9988 = vpack.c.b16 %v9732, %v9724
        %v9989 = vpack.c.b16 %v9733, %v9725
        %v9990 = vpack.c.b16 %v9734, %v9726
        %10247 = vmatprep.subr.bf16.mxu0 0
        %10248 = vmatpush1.bf16.msra.mxu0 %v8558
        %10249 = vmatprep.subr.bf16.mxu0 0
        %10250 = vmatpush1.bf16.msra.mxu0 %v8557
        %10251 = vmatprep.subr.bf16.mxu0 0
        %10252 = vmatpush1.bf16.msra.mxu0 %v8556
        %10253 = vmatprep.subr.bf16.mxu0 0
        %10254 = vmatpush1.bf16.msra.mxu0 %v8555
        %10255 = vmatprep.subr.bf16.mxu0 0
        %10256 = vmatpush1.bf16.msra.mxu0 %v8554
        %10257 = vmatprep.subr.bf16.mxu0 0
        %10258 = vmatpush1.bf16.msra.mxu0 %v8553
        %10259 = vmatprep.subr.bf16.mxu0 0
        %10260 = vmatpush1.bf16.msra.mxu0 %v8552
        %10261 = vmatprep.subr.bf16.mxu0 0
        %10262 = vmatpush1.bf16.msra.mxu0 %v8551
        %10263 = vmatprep.subr.bf16.mxu0 0
        %10264 = vmatpush2.bf16.msra.mxu0 %v8566
        %10265 = vmatprep.subr.bf16.mxu0 0
        %10266 = vmatpush2.bf16.msra.mxu0 %v8565
        %10267 = vmatprep.subr.bf16.mxu0 0
        %10268 = vmatpush2.bf16.msra.mxu0 %v8564
        %10269 = vmatprep.subr.bf16.mxu0 0
        %10270 = vmatpush2.bf16.msra.mxu0 %v8563
        %10271 = vmatprep.subr.bf16.mxu0 0
        %10272 = vmatpush2.bf16.msra.mxu0 %v8562
        %10273 = vmatprep.subr.bf16.mxu0 0
        %10274 = vmatpush2.bf16.msra.mxu0 %v8561
        %10275 = vmatprep.subr.bf16.mxu0 0
        %10276 = vmatpush2.bf16.msra.mxu0 %v8560
        %10277 = vmatprep.subr.bf16.mxu0 0
        %10278 = vmatpush2.bf16.msra.mxu0 %v8559
        %10279 = vmatprep.mubr.bf16.mxu0 %v9736
        %10280 = vmatmul.mubr.bf16.gmra.mxu0 %v9735
        %v10281 = vpop.f32.mrf.mxu0
        %v10282 = vadd.f32 %v8903, %v10281
        %v10283 = vpop.f32.mrf.mxu0
        %v10284 = vpop.f32.mrf.mxu0
        %v10285 = vadd.f32 %v8904, %v10284
        %v10286 = vpop.f32.mrf.mxu0
        %10287 = vmatprep.mubr.bf16.mxu0 %v9744
        %10288 = vmatmul.mubr.bf16.gmra.mxu0 %v9743
        %v10289 = vpop.f32.mrf.mxu0
        %v10290 = vadd.f32 %v8905, %v10289
        %v10291 = vpop.f32.mrf.mxu0
        %v10292 = vpop.f32.mrf.mxu0
        %v10293 = vadd.f32 %v8906, %v10292
        %v10294 = vpop.f32.mrf.mxu0
        %10295 = vmatprep.mubr.bf16.mxu0 %v9752
        %10296 = vmatmul.mubr.bf16.gmra.mxu0 %v9751
        %v10297 = vpop.f32.mrf.mxu0
        %v10298 = vadd.f32 %v8907, %v10297
        %v10299 = vpop.f32.mrf.mxu0
        %v10300 = vpop.f32.mrf.mxu0
        %v10301 = vadd.f32 %v8908, %v10300
        %v10302 = vpop.f32.mrf.mxu0
        %10303 = vmatprep.mubr.bf16.mxu0 %v9760
        %10304 = vmatmul.mubr.bf16.gmra.mxu0 %v9759
        %v10305 = vpop.f32.mrf.mxu0
        %v10306 = vadd.f32 %v8909, %v10305
        %v10307 = vpop.f32.mrf.mxu0
        %v10308 = vpop.f32.mrf.mxu0
        %v10309 = vadd.f32 %v8910, %v10308
        %v10310 = vpop.f32.mrf.mxu0
        %10311 = vmatprep.mubr.bf16.mxu0 %v9768
        %10312 = vmatmul.mubr.bf16.gmra.mxu0 %v9767
        %v10313 = vpop.f32.mrf.mxu0
        %v10314 = vadd.f32 %v8911, %v10313
        %v10315 = vpop.f32.mrf.mxu0
        %v10316 = vpop.f32.mrf.mxu0
        %v10317 = vadd.f32 %v8912, %v10316
        %v10318 = vpop.f32.mrf.mxu0
        %10319 = vmatprep.mubr.bf16.mxu0 %v9776
        %10320 = vmatmul.mubr.bf16.gmra.mxu0 %v9775
        %v10321 = vpop.f32.mrf.mxu0
        %v10322 = vadd.f32 %v8913, %v10321
        %v10323 = vpop.f32.mrf.mxu0
        %v10324 = vpop.f32.mrf.mxu0
        %v10325 = vadd.f32 %v8914, %v10324
        %v10326 = vpop.f32.mrf.mxu0
        %10327 = vmatprep.mubr.bf16.mxu0 %v9784
        %10328 = vmatmul.mubr.bf16.gmra.mxu0 %v9783
        %v10329 = vpop.f32.mrf.mxu0
        %v10330 = vadd.f32 %v8915, %v10329
        %v10331 = vpop.f32.mrf.mxu0
        %v10332 = vpop.f32.mrf.mxu0
        %v10333 = vadd.f32 %v8916, %v10332
        %v10334 = vpop.f32.mrf.mxu0
        %10335 = vmatprep.mubr.bf16.mxu0 %v9792
        %10336 = vmatmul.mubr.bf16.gmra.mxu0 %v9791
        %v10337 = vpop.f32.mrf.mxu0
        %v10338 = vadd.f32 %v8917, %v10337
        %v10339 = vpop.f32.mrf.mxu0
        %v10340 = vpop.f32.mrf.mxu0
        %v10341 = vadd.f32 %v8918, %v10340
        %v10342 = vpop.f32.mrf.mxu0
        %10343 = vmatprep.mubr.bf16.mxu0 %v9800
        %10344 = vmatmul.mubr.bf16.gmra.mxu0 %v9799
        %v10345 = vpop.f32.mrf.mxu0
        %v10346 = vadd.f32 %v8919, %v10345
        %v10347 = vpop.f32.mrf.mxu0
        %v10348 = vpop.f32.mrf.mxu0
        %v10349 = vadd.f32 %v8920, %v10348
        %v10350 = vpop.f32.mrf.mxu0
        %10351 = vmatprep.mubr.bf16.mxu0 %v9808
        %10352 = vmatmul.mubr.bf16.gmra.mxu0 %v9807
        %v10353 = vpop.f32.mrf.mxu0
        %v10354 = vadd.f32 %v8921, %v10353
        %v10355 = vpop.f32.mrf.mxu0
        %v10356 = vpop.f32.mrf.mxu0
        %v10357 = vadd.f32 %v8922, %v10356
        %v10358 = vpop.f32.mrf.mxu0
        %10359 = vmatprep.mubr.bf16.mxu0 %v9816
        %10360 = vmatmul.mubr.bf16.gmra.mxu0 %v9815
        %v10361 = vpop.f32.mrf.mxu0
        %v10362 = vadd.f32 %v8923, %v10361
        %v10363 = vpop.f32.mrf.mxu0
        %v10364 = vpop.f32.mrf.mxu0
        %v10365 = vadd.f32 %v8924, %v10364
        %v10366 = vpop.f32.mrf.mxu0
        %10367 = vmatprep.mubr.bf16.mxu0 %v9824
        %10368 = vmatmul.mubr.bf16.gmra.mxu0 %v9823
        %v10369 = vpop.f32.mrf.mxu0
        %v10370 = vadd.f32 %v8925, %v10369
        %v10371 = vpop.f32.mrf.mxu0
        %v10372 = vpop.f32.mrf.mxu0
        %v10373 = vadd.f32 %v8926, %v10372
        %v10374 = vpop.f32.mrf.mxu0
        %10375 = vmatprep.mubr.bf16.mxu0 %v9832
        %10376 = vmatmul.mubr.bf16.gmra.mxu0 %v9831
        %v10377 = vpop.f32.mrf.mxu0
        %v10378 = vadd.f32 %v8927, %v10377
        %v10379 = vpop.f32.mrf.mxu0
        %v10380 = vpop.f32.mrf.mxu0
        %v10381 = vadd.f32 %v8928, %v10380
        %v10382 = vpop.f32.mrf.mxu0
        %10383 = vmatprep.mubr.bf16.mxu0 %v9840
        %10384 = vmatmul.mubr.bf16.gmra.mxu0 %v9839
        %v10385 = vpop.f32.mrf.mxu0
        %v10386 = vadd.f32 %v8929, %v10385
        %v10387 = vpop.f32.mrf.mxu0
        %v10388 = vpop.f32.mrf.mxu0
        %v10389 = vadd.f32 %v8930, %v10388
        %v10390 = vpop.f32.mrf.mxu0
        %10391 = vmatprep.mubr.bf16.mxu0 %v9848
        %10392 = vmatmul.mubr.bf16.gmra.mxu0 %v9847
        %v10393 = vpop.f32.mrf.mxu0
        %v10394 = vadd.f32 %v8931, %v10393
        %v10395 = vpop.f32.mrf.mxu0
        %v10396 = vpop.f32.mrf.mxu0
        %v10397 = vadd.f32 %v8932, %v10396
        %v10398 = vpop.f32.mrf.mxu0
        %10399 = vmatprep.mubr.bf16.mxu0 %v9856
        %10400 = vmatmul.mubr.bf16.gmra.mxu0 %v9855
        %v10401 = vpop.f32.mrf.mxu0
        %v10402 = vadd.f32 %v8933, %v10401
        %v10403 = vpop.f32.mrf.mxu0
        %v10404 = vpop.f32.mrf.mxu0
        %v10405 = vadd.f32 %v8934, %v10404
        %v10406 = vpop.f32.mrf.mxu0
        %10407 = vmatprep.mubr.bf16.mxu0 %v9864
        %10408 = vmatmul.mubr.bf16.gmra.mxu0 %v9863
        %v10409 = vpop.f32.mrf.mxu0
        %v10410 = vadd.f32 %v8935, %v10409
        %v10411 = vpop.f32.mrf.mxu0
        %v10412 = vpop.f32.mrf.mxu0
        %v10413 = vadd.f32 %v8936, %v10412
        %v10414 = vpop.f32.mrf.mxu0
        %10415 = vmatprep.mubr.bf16.mxu0 %v9872
        %10416 = vmatmul.mubr.bf16.gmra.mxu0 %v9871
        %v10417 = vpop.f32.mrf.mxu0
        %v10418 = vadd.f32 %v8937, %v10417
        %v10419 = vpop.f32.mrf.mxu0
        %v10420 = vpop.f32.mrf.mxu0
        %v10421 = vadd.f32 %v8938, %v10420
        %v10422 = vpop.f32.mrf.mxu0
        %10423 = vmatprep.mubr.bf16.mxu0 %v9880
        %10424 = vmatmul.mubr.bf16.gmra.mxu0 %v9879
        %v10425 = vpop.f32.mrf.mxu0
        %v10426 = vadd.f32 %v8939, %v10425
        %v10427 = vpop.f32.mrf.mxu0
        %v10428 = vpop.f32.mrf.mxu0
        %v10429 = vadd.f32 %v8940, %v10428
        %v10430 = vpop.f32.mrf.mxu0
        %10431 = vmatprep.mubr.bf16.mxu0 %v9888
        %10432 = vmatmul.mubr.bf16.gmra.mxu0 %v9887
        %v10433 = vpop.f32.mrf.mxu0
        %v10434 = vadd.f32 %v8941, %v10433
        %v10435 = vpop.f32.mrf.mxu0
        %v10436 = vpop.f32.mrf.mxu0
        %v10437 = vadd.f32 %v8942, %v10436
        %v10438 = vpop.f32.mrf.mxu0
        %10439 = vmatprep.mubr.bf16.mxu0 %v9896
        %10440 = vmatmul.mubr.bf16.gmra.mxu0 %v9895
        %v10441 = vpop.f32.mrf.mxu0
        %v10442 = vadd.f32 %v8943, %v10441
        %v10443 = vpop.f32.mrf.mxu0
        %v10444 = vpop.f32.mrf.mxu0
        %v10445 = vadd.f32 %v8944, %v10444
        %v10446 = vpop.f32.mrf.mxu0
        %10447 = vmatprep.mubr.bf16.mxu0 %v9904
        %10448 = vmatmul.mubr.bf16.gmra.mxu0 %v9903
        %v10449 = vpop.f32.mrf.mxu0
        %v10450 = vadd.f32 %v8945, %v10449
        %v10451 = vpop.f32.mrf.mxu0
        %v10452 = vpop.f32.mrf.mxu0
        %v10453 = vadd.f32 %v8946, %v10452
        %v10454 = vpop.f32.mrf.mxu0
        %10455 = vmatprep.mubr.bf16.mxu0 %v9912
        %10456 = vmatmul.mubr.bf16.gmra.mxu0 %v9911
        %v10457 = vpop.f32.mrf.mxu0
        %v10458 = vadd.f32 %v8947, %v10457
        %v10459 = vpop.f32.mrf.mxu0
        %v10460 = vpop.f32.mrf.mxu0
        %v10461 = vadd.f32 %v8948, %v10460
        %v10462 = vpop.f32.mrf.mxu0
        %10463 = vmatprep.mubr.bf16.mxu0 %v9920
        %10464 = vmatmul.mubr.bf16.gmra.mxu0 %v9919
        %v10465 = vpop.f32.mrf.mxu0
        %v10466 = vadd.f32 %v8949, %v10465
        %v10467 = vpop.f32.mrf.mxu0
        %v10468 = vpop.f32.mrf.mxu0
        %v10469 = vadd.f32 %v8950, %v10468
        %v10470 = vpop.f32.mrf.mxu0
        %10471 = vmatprep.mubr.bf16.mxu0 %v9928
        %10472 = vmatmul.mubr.bf16.gmra.mxu0 %v9927
        %v10473 = vpop.f32.mrf.mxu0
        %v10474 = vadd.f32 %v8951, %v10473
        %v10475 = vpop.f32.mrf.mxu0
        %v10476 = vpop.f32.mrf.mxu0
        %v10477 = vadd.f32 %v8952, %v10476
        %v10478 = vpop.f32.mrf.mxu0
        %10479 = vmatprep.mubr.bf16.mxu0 %v9936
        %10480 = vmatmul.mubr.bf16.gmra.mxu0 %v9935
        %v10481 = vpop.f32.mrf.mxu0
        %v10482 = vadd.f32 %v8953, %v10481
        %v10483 = vpop.f32.mrf.mxu0
        %v10484 = vpop.f32.mrf.mxu0
        %v10485 = vadd.f32 %v8954, %v10484
        %v10486 = vpop.f32.mrf.mxu0
        %10487 = vmatprep.mubr.bf16.mxu0 %v9944
        %10488 = vmatmul.mubr.bf16.gmra.mxu0 %v9943
        %v10489 = vpop.f32.mrf.mxu0
        %v10490 = vadd.f32 %v8955, %v10489
        %v10491 = vpop.f32.mrf.mxu0
        %v10492 = vpop.f32.mrf.mxu0
        %v10493 = vadd.f32 %v8956, %v10492
        %v10494 = vpop.f32.mrf.mxu0
        %10495 = vmatprep.mubr.bf16.mxu0 %v9952
        %10496 = vmatmul.mubr.bf16.gmra.mxu0 %v9951
        %v10497 = vpop.f32.mrf.mxu0
        %v10498 = vadd.f32 %v8957, %v10497
        %v10499 = vpop.f32.mrf.mxu0
        %v10500 = vpop.f32.mrf.mxu0
        %v10501 = vadd.f32 %v8958, %v10500
        %v10502 = vpop.f32.mrf.mxu0
        %10503 = vmatprep.mubr.bf16.mxu0 %v9960
        %10504 = vmatmul.mubr.bf16.gmra.mxu0 %v9959
        %v10505 = vpop.f32.mrf.mxu0
        %v10506 = vadd.f32 %v8959, %v10505
        %v10507 = vpop.f32.mrf.mxu0
        %v10508 = vpop.f32.mrf.mxu0
        %v10509 = vadd.f32 %v8960, %v10508
        %v10510 = vpop.f32.mrf.mxu0
        %10511 = vmatprep.mubr.bf16.mxu0 %v9968
        %10512 = vmatmul.mubr.bf16.gmra.mxu0 %v9967
        %v10513 = vpop.f32.mrf.mxu0
        %v10514 = vadd.f32 %v8961, %v10513
        %v10515 = vpop.f32.mrf.mxu0
        %v10516 = vpop.f32.mrf.mxu0
        %v10517 = vadd.f32 %v8962, %v10516
        %v10518 = vpop.f32.mrf.mxu0
        %10519 = vmatprep.mubr.bf16.mxu0 %v9976
        %10520 = vmatmul.mubr.bf16.gmra.mxu0 %v9975
        %v10521 = vpop.f32.mrf.mxu0
        %v10522 = vadd.f32 %v8963, %v10521
        %v10523 = vpop.f32.mrf.mxu0
        %v10524 = vpop.f32.mrf.mxu0
        %v10525 = vadd.f32 %v8964, %v10524
        %v10526 = vpop.f32.mrf.mxu0
        %10527 = vmatprep.mubr.bf16.mxu0 %v9984
        %10528 = vmatmul.mubr.bf16.gmra.mxu0 %v9983
        %v10529 = vpop.f32.mrf.mxu0
        %v10530 = vadd.f32 %v8965, %v10529
        %v10531 = vpop.f32.mrf.mxu0
        %v10532 = vpop.f32.mrf.mxu0
        %v10533 = vadd.f32 %v8966, %v10532
        %v10534 = vpop.f32.mrf.mxu0
        %10535 = vdwg.mxu0
        %10536 = vmatprep.subr.bf16.mxu0 0
        %10537 = vmatpush1.bf16.msra.mxu0 %v8574
        %10538 = vmatprep.subr.bf16.mxu0 0
        %10539 = vmatpush1.bf16.msra.mxu0 %v8573
        %10540 = vmatprep.subr.bf16.mxu0 0
        %10541 = vmatpush1.bf16.msra.mxu0 %v8572
        %10542 = vmatprep.subr.bf16.mxu0 0
        %10543 = vmatpush1.bf16.msra.mxu0 %v8571
        %10544 = vmatprep.subr.bf16.mxu0 0
        %10545 = vmatpush1.bf16.msra.mxu0 %v8570
        %10546 = vmatprep.subr.bf16.mxu0 0
        %10547 = vmatpush1.bf16.msra.mxu0 %v8569
        %10548 = vmatprep.subr.bf16.mxu0 0
        %10549 = vmatpush1.bf16.msra.mxu0 %v8568
        %10550 = vmatprep.subr.bf16.mxu0 0
        %10551 = vmatpush1.bf16.msra.mxu0 %v8567
        %10552 = vmatprep.subr.bf16.mxu0 0
        %10553 = vmatpush2.bf16.msra.mxu0 %v8582
        %10554 = vmatprep.subr.bf16.mxu0 0
        %10555 = vmatpush2.bf16.msra.mxu0 %v8581
        %10556 = vmatprep.subr.bf16.mxu0 0
        %10557 = vmatpush2.bf16.msra.mxu0 %v8580
        %10558 = vmatprep.subr.bf16.mxu0 0
        %10559 = vmatpush2.bf16.msra.mxu0 %v8579
        %10560 = vmatprep.subr.bf16.mxu0 0
        %10561 = vmatpush2.bf16.msra.mxu0 %v8578
        %10562 = vmatprep.subr.bf16.mxu0 0
        %10563 = vmatpush2.bf16.msra.mxu0 %v8577
        %10564 = vmatprep.subr.bf16.mxu0 0
        %10565 = vmatpush2.bf16.msra.mxu0 %v8576
        %10566 = vmatprep.subr.bf16.mxu0 0
        %10567 = vmatpush2.bf16.msra.mxu0 %v8575
        %10568 = vmatprep.mubr.bf16.mxu0 %v9738
        %10569 = vmatmul.mubr.bf16.gmra.mxu0 %v9737
        %v10570 = vpop.f32.mrf.mxu0
        %v10571 = vadd.f32 %v10282, %v10570
        %v10572 = vpop.f32.mrf.mxu0
        %v10573 = vpop.f32.mrf.mxu0
        %v10574 = vadd.f32 %v10285, %v10573
        %v10575 = vpop.f32.mrf.mxu0
        %10576 = vmatprep.mubr.bf16.mxu0 %v9746
        %10577 = vmatmul.mubr.bf16.gmra.mxu0 %v9745
        %v10578 = vpop.f32.mrf.mxu0
        %v10579 = vadd.f32 %v10290, %v10578
        %v10580 = vpop.f32.mrf.mxu0
        %v10581 = vpop.f32.mrf.mxu0
        %v10582 = vadd.f32 %v10293, %v10581
        %v10583 = vpop.f32.mrf.mxu0
        %10584 = vmatprep.mubr.bf16.mxu0 %v9754
        %10585 = vmatmul.mubr.bf16.gmra.mxu0 %v9753
        %v10586 = vpop.f32.mrf.mxu0
        %v10587 = vadd.f32 %v10298, %v10586
        %v10588 = vpop.f32.mrf.mxu0
        %v10589 = vpop.f32.mrf.mxu0
        %v10590 = vadd.f32 %v10301, %v10589
        %v10591 = vpop.f32.mrf.mxu0
        %10592 = vmatprep.mubr.bf16.mxu0 %v9762
        %10593 = vmatmul.mubr.bf16.gmra.mxu0 %v9761
        %v10594 = vpop.f32.mrf.mxu0
        %v10595 = vadd.f32 %v10306, %v10594
        %v10596 = vpop.f32.mrf.mxu0
        %v10597 = vpop.f32.mrf.mxu0
        %v10598 = vadd.f32 %v10309, %v10597
        %v10599 = vpop.f32.mrf.mxu0
        %10600 = vmatprep.mubr.bf16.mxu0 %v9770
        %10601 = vmatmul.mubr.bf16.gmra.mxu0 %v9769
        %v10602 = vpop.f32.mrf.mxu0
        %v10603 = vadd.f32 %v10314, %v10602
        %v10604 = vpop.f32.mrf.mxu0
        %v10605 = vpop.f32.mrf.mxu0
        %v10606 = vadd.f32 %v10317, %v10605
        %v10607 = vpop.f32.mrf.mxu0
        %10608 = vmatprep.mubr.bf16.mxu0 %v9778
        %10609 = vmatmul.mubr.bf16.gmra.mxu0 %v9777
        %v10610 = vpop.f32.mrf.mxu0
        %v10611 = vadd.f32 %v10322, %v10610
        %v10612 = vpop.f32.mrf.mxu0
        %v10613 = vpop.f32.mrf.mxu0
        %v10614 = vadd.f32 %v10325, %v10613
        %v10615 = vpop.f32.mrf.mxu0
        %10616 = vmatprep.mubr.bf16.mxu0 %v9786
        %10617 = vmatmul.mubr.bf16.gmra.mxu0 %v9785
        %v10618 = vpop.f32.mrf.mxu0
        %v10619 = vadd.f32 %v10330, %v10618
        %v10620 = vpop.f32.mrf.mxu0
        %v10621 = vpop.f32.mrf.mxu0
        %v10622 = vadd.f32 %v10333, %v10621
        %v10623 = vpop.f32.mrf.mxu0
        %10624 = vmatprep.mubr.bf16.mxu0 %v9794
        %10625 = vmatmul.mubr.bf16.gmra.mxu0 %v9793
        %v10626 = vpop.f32.mrf.mxu0
        %v10627 = vadd.f32 %v10338, %v10626
        %v10628 = vpop.f32.mrf.mxu0
        %v10629 = vpop.f32.mrf.mxu0
        %v10630 = vadd.f32 %v10341, %v10629
        %v10631 = vpop.f32.mrf.mxu0
        %10632 = vmatprep.mubr.bf16.mxu0 %v9802
        %10633 = vmatmul.mubr.bf16.gmra.mxu0 %v9801
        %v10634 = vpop.f32.mrf.mxu0
        %v10635 = vadd.f32 %v10346, %v10634
        %v10636 = vpop.f32.mrf.mxu0
        %v10637 = vpop.f32.mrf.mxu0
        %v10638 = vadd.f32 %v10349, %v10637
        %v10639 = vpop.f32.mrf.mxu0
        %10640 = vmatprep.mubr.bf16.mxu0 %v9810
        %10641 = vmatmul.mubr.bf16.gmra.mxu0 %v9809
        %v10642 = vpop.f32.mrf.mxu0
        %v10643 = vadd.f32 %v10354, %v10642
        %v10644 = vpop.f32.mrf.mxu0
        %v10645 = vpop.f32.mrf.mxu0
        %v10646 = vadd.f32 %v10357, %v10645
        %v10647 = vpop.f32.mrf.mxu0
        %10648 = vmatprep.mubr.bf16.mxu0 %v9818
        %10649 = vmatmul.mubr.bf16.gmra.mxu0 %v9817
        %v10650 = vpop.f32.mrf.mxu0
        %v10651 = vadd.f32 %v10362, %v10650
        %v10652 = vpop.f32.mrf.mxu0
        %v10653 = vpop.f32.mrf.mxu0
        %v10654 = vadd.f32 %v10365, %v10653
        %v10655 = vpop.f32.mrf.mxu0
        %10656 = vmatprep.mubr.bf16.mxu0 %v9826
        %10657 = vmatmul.mubr.bf16.gmra.mxu0 %v9825
        %v10658 = vpop.f32.mrf.mxu0
        %v10659 = vadd.f32 %v10370, %v10658
        %v10660 = vpop.f32.mrf.mxu0
        %v10661 = vpop.f32.mrf.mxu0
        %v10662 = vadd.f32 %v10373, %v10661
        %v10663 = vpop.f32.mrf.mxu0
        %10664 = vmatprep.mubr.bf16.mxu0 %v9834
        %10665 = vmatmul.mubr.bf16.gmra.mxu0 %v9833
        %v10666 = vpop.f32.mrf.mxu0
        %v10667 = vadd.f32 %v10378, %v10666
        %v10668 = vpop.f32.mrf.mxu0
        %v10669 = vpop.f32.mrf.mxu0
        %v10670 = vadd.f32 %v10381, %v10669
        %v10671 = vpop.f32.mrf.mxu0
        %10672 = vmatprep.mubr.bf16.mxu0 %v9842
        %10673 = vmatmul.mubr.bf16.gmra.mxu0 %v9841
        %v10674 = vpop.f32.mrf.mxu0
        %v10675 = vadd.f32 %v10386, %v10674
        %v10676 = vpop.f32.mrf.mxu0
        %v10677 = vpop.f32.mrf.mxu0
        %v10678 = vadd.f32 %v10389, %v10677
        %v10679 = vpop.f32.mrf.mxu0
        %10680 = vmatprep.mubr.bf16.mxu0 %v9850
        %10681 = vmatmul.mubr.bf16.gmra.mxu0 %v9849
        %v10682 = vpop.f32.mrf.mxu0
        %v10683 = vadd.f32 %v10394, %v10682
        %v10684 = vpop.f32.mrf.mxu0
        %v10685 = vpop.f32.mrf.mxu0
        %v10686 = vadd.f32 %v10397, %v10685
        %v10687 = vpop.f32.mrf.mxu0
        %10688 = vmatprep.mubr.bf16.mxu0 %v9858
        %10689 = vmatmul.mubr.bf16.gmra.mxu0 %v9857
        %v10690 = vpop.f32.mrf.mxu0
        %v10691 = vadd.f32 %v10402, %v10690
        %v10692 = vpop.f32.mrf.mxu0
        %v10693 = vpop.f32.mrf.mxu0
        %v10694 = vadd.f32 %v10405, %v10693
        %v10695 = vpop.f32.mrf.mxu0
        %10696 = vmatprep.mubr.bf16.mxu0 %v9866
        %10697 = vmatmul.mubr.bf16.gmra.mxu0 %v9865
        %v10698 = vpop.f32.mrf.mxu0
        %v10699 = vadd.f32 %v10410, %v10698
        %v10700 = vpop.f32.mrf.mxu0
        %v10701 = vpop.f32.mrf.mxu0
        %v10702 = vadd.f32 %v10413, %v10701
        %v10703 = vpop.f32.mrf.mxu0
        %10704 = vmatprep.mubr.bf16.mxu0 %v9874
        %10705 = vmatmul.mubr.bf16.gmra.mxu0 %v9873
        %v10706 = vpop.f32.mrf.mxu0
        %v10707 = vadd.f32 %v10418, %v10706
        %v10708 = vpop.f32.mrf.mxu0
        %v10709 = vpop.f32.mrf.mxu0
        %v10710 = vadd.f32 %v10421, %v10709
        %v10711 = vpop.f32.mrf.mxu0
        %10712 = vmatprep.mubr.bf16.mxu0 %v9882
        %10713 = vmatmul.mubr.bf16.gmra.mxu0 %v9881
        %v10714 = vpop.f32.mrf.mxu0
        %v10715 = vadd.f32 %v10426, %v10714
        %v10716 = vpop.f32.mrf.mxu0
        %v10717 = vpop.f32.mrf.mxu0
        %v10718 = vadd.f32 %v10429, %v10717
        %v10719 = vpop.f32.mrf.mxu0
        %10720 = vmatprep.mubr.bf16.mxu0 %v9890
        %10721 = vmatmul.mubr.bf16.gmra.mxu0 %v9889
        %v10722 = vpop.f32.mrf.mxu0
        %v10723 = vadd.f32 %v10434, %v10722
        %v10724 = vpop.f32.mrf.mxu0
        %v10725 = vpop.f32.mrf.mxu0
        %v10726 = vadd.f32 %v10437, %v10725
        %v10727 = vpop.f32.mrf.mxu0
        %10728 = vmatprep.mubr.bf16.mxu0 %v9898
        %10729 = vmatmul.mubr.bf16.gmra.mxu0 %v9897
        %v10730 = vpop.f32.mrf.mxu0
        %v10731 = vadd.f32 %v10442, %v10730
        %v10732 = vpop.f32.mrf.mxu0
        %v10733 = vpop.f32.mrf.mxu0
        %v10734 = vadd.f32 %v10445, %v10733
        %v10735 = vpop.f32.mrf.mxu0
        %10736 = vmatprep.mubr.bf16.mxu0 %v9906
        %10737 = vmatmul.mubr.bf16.gmra.mxu0 %v9905
        %v10738 = vpop.f32.mrf.mxu0
        %v10739 = vadd.f32 %v10450, %v10738
        %v10740 = vpop.f32.mrf.mxu0
        %v10741 = vpop.f32.mrf.mxu0
        %v10742 = vadd.f32 %v10453, %v10741
        %v10743 = vpop.f32.mrf.mxu0
        %10744 = vmatprep.mubr.bf16.mxu0 %v9914
        %10745 = vmatmul.mubr.bf16.gmra.mxu0 %v9913
        %v10746 = vpop.f32.mrf.mxu0
        %v10747 = vadd.f32 %v10458, %v10746
        %v10748 = vpop.f32.mrf.mxu0
        %v10749 = vpop.f32.mrf.mxu0
        %v10750 = vadd.f32 %v10461, %v10749
        %v10751 = vpop.f32.mrf.mxu0
        %10752 = vmatprep.mubr.bf16.mxu0 %v9922
        %10753 = vmatmul.mubr.bf16.gmra.mxu0 %v9921
        %v10754 = vpop.f32.mrf.mxu0
        %v10755 = vadd.f32 %v10466, %v10754
        %v10756 = vpop.f32.mrf.mxu0
        %v10757 = vpop.f32.mrf.mxu0
        %v10758 = vadd.f32 %v10469, %v10757
        %v10759 = vpop.f32.mrf.mxu0
        %10760 = vmatprep.mubr.bf16.mxu0 %v9930
        %10761 = vmatmul.mubr.bf16.gmra.mxu0 %v9929
        %v10762 = vpop.f32.mrf.mxu0
        %v10763 = vadd.f32 %v10474, %v10762
        %v10764 = vpop.f32.mrf.mxu0
        %v10765 = vpop.f32.mrf.mxu0
        %v10766 = vadd.f32 %v10477, %v10765
        %v10767 = vpop.f32.mrf.mxu0
        %10768 = vmatprep.mubr.bf16.mxu0 %v9938
        %10769 = vmatmul.mubr.bf16.gmra.mxu0 %v9937
        %v10770 = vpop.f32.mrf.mxu0
        %v10771 = vadd.f32 %v10482, %v10770
        %v10772 = vpop.f32.mrf.mxu0
        %v10773 = vpop.f32.mrf.mxu0
        %v10774 = vadd.f32 %v10485, %v10773
        %v10775 = vpop.f32.mrf.mxu0
        %10776 = vmatprep.mubr.bf16.mxu0 %v9946
        %10777 = vmatmul.mubr.bf16.gmra.mxu0 %v9945
        %v10778 = vpop.f32.mrf.mxu0
        %v10779 = vadd.f32 %v10490, %v10778
        %v10780 = vpop.f32.mrf.mxu0
        %v10781 = vpop.f32.mrf.mxu0
        %v10782 = vadd.f32 %v10493, %v10781
        %v10783 = vpop.f32.mrf.mxu0
        %10784 = vmatprep.mubr.bf16.mxu0 %v9954
        %10785 = vmatmul.mubr.bf16.gmra.mxu0 %v9953
        %v10786 = vpop.f32.mrf.mxu0
        %v10787 = vadd.f32 %v10498, %v10786
        %v10788 = vpop.f32.mrf.mxu0
        %v10789 = vpop.f32.mrf.mxu0
        %v10790 = vadd.f32 %v10501, %v10789
        %v10791 = vpop.f32.mrf.mxu0
        %10792 = vmatprep.mubr.bf16.mxu0 %v9962
        %10793 = vmatmul.mubr.bf16.gmra.mxu0 %v9961
        %v10794 = vpop.f32.mrf.mxu0
        %v10795 = vadd.f32 %v10506, %v10794
        %v10796 = vpop.f32.mrf.mxu0
        %v10797 = vpop.f32.mrf.mxu0
        %v10798 = vadd.f32 %v10509, %v10797
        %v10799 = vpop.f32.mrf.mxu0
        %10800 = vmatprep.mubr.bf16.mxu0 %v9970
        %10801 = vmatmul.mubr.bf16.gmra.mxu0 %v9969
        %v10802 = vpop.f32.mrf.mxu0
        %v10803 = vadd.f32 %v10514, %v10802
        %v10804 = vpop.f32.mrf.mxu0
        %v10805 = vpop.f32.mrf.mxu0
        %v10806 = vadd.f32 %v10517, %v10805
        %v10807 = vpop.f32.mrf.mxu0
        %10808 = vmatprep.mubr.bf16.mxu0 %v9978
        %10809 = vmatmul.mubr.bf16.gmra.mxu0 %v9977
        %v10810 = vpop.f32.mrf.mxu0
        %v10811 = vadd.f32 %v10522, %v10810
        %v10812 = vpop.f32.mrf.mxu0
        %v10813 = vpop.f32.mrf.mxu0
        %v10814 = vadd.f32 %v10525, %v10813
        %v10815 = vpop.f32.mrf.mxu0
        %10816 = vmatprep.mubr.bf16.mxu0 %v9986
        %10817 = vmatmul.mubr.bf16.gmra.mxu0 %v9985
        %v10818 = vpop.f32.mrf.mxu0
        %v10819 = vadd.f32 %v10530, %v10818
        %v10820 = vpop.f32.mrf.mxu0
        %v10821 = vpop.f32.mrf.mxu0
        %v10822 = vadd.f32 %v10533, %v10821
        %v10823 = vpop.f32.mrf.mxu0
        %10824 = vdwg.mxu0
        %10825 = vmatprep.subr.bf16.mxu0 0
        %10826 = vmatpush1.bf16.msra.mxu0 %v8590
        %10827 = vmatprep.subr.bf16.mxu0 0
        %10828 = vmatpush1.bf16.msra.mxu0 %v8589
        %10829 = vmatprep.subr.bf16.mxu0 0
        %10830 = vmatpush1.bf16.msra.mxu0 %v8588
        %10831 = vmatprep.subr.bf16.mxu0 0
        %10832 = vmatpush1.bf16.msra.mxu0 %v8587
        %10833 = vmatprep.subr.bf16.mxu0 0
        %10834 = vmatpush1.bf16.msra.mxu0 %v8586
        %10835 = vmatprep.subr.bf16.mxu0 0
        %10836 = vmatpush1.bf16.msra.mxu0 %v8585
        %10837 = vmatprep.subr.bf16.mxu0 0
        %10838 = vmatpush1.bf16.msra.mxu0 %v8584
        %10839 = vmatprep.subr.bf16.mxu0 0
        %10840 = vmatpush1.bf16.msra.mxu0 %v8583
        %10841 = vmatprep.subr.bf16.mxu0 0
        %10842 = vmatpush2.bf16.msra.mxu0 %v8598
        %10843 = vmatprep.subr.bf16.mxu0 0
        %10844 = vmatpush2.bf16.msra.mxu0 %v8597
        %10845 = vmatprep.subr.bf16.mxu0 0
        %10846 = vmatpush2.bf16.msra.mxu0 %v8596
        %10847 = vmatprep.subr.bf16.mxu0 0
        %10848 = vmatpush2.bf16.msra.mxu0 %v8595
        %10849 = vmatprep.subr.bf16.mxu0 0
        %10850 = vmatpush2.bf16.msra.mxu0 %v8594
        %10851 = vmatprep.subr.bf16.mxu0 0
        %10852 = vmatpush2.bf16.msra.mxu0 %v8593
        %10853 = vmatprep.subr.bf16.mxu0 0
        %10854 = vmatpush2.bf16.msra.mxu0 %v8592
        %10855 = vmatprep.subr.bf16.mxu0 0
        %10856 = vmatpush2.bf16.msra.mxu0 %v8591
        %10857 = vmatprep.mubr.bf16.mxu0 %v9740
        %10858 = vmatmul.mubr.bf16.gmra.mxu0 %v9739
        %v10859 = vpop.f32.mrf.mxu0
        %v10860 = vadd.f32 %v10571, %v10859
        %v10861 = vpop.f32.mrf.mxu0
        %v10862 = vpop.f32.mrf.mxu0
        %v10863 = vadd.f32 %v10574, %v10862
        %v10864 = vpop.f32.mrf.mxu0
        %10865 = vmatprep.mubr.bf16.mxu0 %v9748
        %10866 = vmatmul.mubr.bf16.gmra.mxu0 %v9747
        %v10867 = vpop.f32.mrf.mxu0
        %v10868 = vadd.f32 %v10579, %v10867
        %v10869 = vpop.f32.mrf.mxu0
        %v10870 = vpop.f32.mrf.mxu0
        %v10871 = vadd.f32 %v10582, %v10870
        %v10872 = vpop.f32.mrf.mxu0
        %10873 = vmatprep.mubr.bf16.mxu0 %v9756
        %10874 = vmatmul.mubr.bf16.gmra.mxu0 %v9755
        %v10875 = vpop.f32.mrf.mxu0
        %v10876 = vadd.f32 %v10587, %v10875
        %v10877 = vpop.f32.mrf.mxu0
        %v10878 = vpop.f32.mrf.mxu0
        %v10879 = vadd.f32 %v10590, %v10878
        %v10880 = vpop.f32.mrf.mxu0
        %10881 = vmatprep.mubr.bf16.mxu0 %v9764
        %10882 = vmatmul.mubr.bf16.gmra.mxu0 %v9763
        %v10883 = vpop.f32.mrf.mxu0
        %v10884 = vadd.f32 %v10595, %v10883
        %v10885 = vpop.f32.mrf.mxu0
        %v10886 = vpop.f32.mrf.mxu0
        %v10887 = vadd.f32 %v10598, %v10886
        %v10888 = vpop.f32.mrf.mxu0
        %10889 = vmatprep.mubr.bf16.mxu0 %v9772
        %10890 = vmatmul.mubr.bf16.gmra.mxu0 %v9771
        %v10891 = vpop.f32.mrf.mxu0
        %v10892 = vadd.f32 %v10603, %v10891
        %v10893 = vpop.f32.mrf.mxu0
        %v10894 = vpop.f32.mrf.mxu0
        %v10895 = vadd.f32 %v10606, %v10894
        %v10896 = vpop.f32.mrf.mxu0
        %10897 = vmatprep.mubr.bf16.mxu0 %v9780
        %10898 = vmatmul.mubr.bf16.gmra.mxu0 %v9779
        %v10899 = vpop.f32.mrf.mxu0
        %v10900 = vadd.f32 %v10611, %v10899
        %v10901 = vpop.f32.mrf.mxu0
        %v10902 = vpop.f32.mrf.mxu0
        %v10903 = vadd.f32 %v10614, %v10902
        %v10904 = vpop.f32.mrf.mxu0
        %10905 = vmatprep.mubr.bf16.mxu0 %v9788
        %10906 = vmatmul.mubr.bf16.gmra.mxu0 %v9787
        %v10907 = vpop.f32.mrf.mxu0
        %v10908 = vadd.f32 %v10619, %v10907
        %v10909 = vpop.f32.mrf.mxu0
        %v10910 = vpop.f32.mrf.mxu0
        %v10911 = vadd.f32 %v10622, %v10910
        %v10912 = vpop.f32.mrf.mxu0
        %10913 = vmatprep.mubr.bf16.mxu0 %v9796
        %10914 = vmatmul.mubr.bf16.gmra.mxu0 %v9795
        %v10915 = vpop.f32.mrf.mxu0
        %v10916 = vadd.f32 %v10627, %v10915
        %v10917 = vpop.f32.mrf.mxu0
        %v10918 = vpop.f32.mrf.mxu0
        %v10919 = vadd.f32 %v10630, %v10918
        %v10920 = vpop.f32.mrf.mxu0
        %10921 = vmatprep.mubr.bf16.mxu0 %v9804
        %10922 = vmatmul.mubr.bf16.gmra.mxu0 %v9803
        %v10923 = vpop.f32.mrf.mxu0
        %v10924 = vadd.f32 %v10635, %v10923
        %v10925 = vpop.f32.mrf.mxu0
        %v10926 = vpop.f32.mrf.mxu0
        %v10927 = vadd.f32 %v10638, %v10926
        %v10928 = vpop.f32.mrf.mxu0
        %10929 = vmatprep.mubr.bf16.mxu0 %v9812
        %10930 = vmatmul.mubr.bf16.gmra.mxu0 %v9811
        %v10931 = vpop.f32.mrf.mxu0
        %v10932 = vadd.f32 %v10643, %v10931
        %v10933 = vpop.f32.mrf.mxu0
        %v10934 = vpop.f32.mrf.mxu0
        %v10935 = vadd.f32 %v10646, %v10934
        %v10936 = vpop.f32.mrf.mxu0
        %10937 = vmatprep.mubr.bf16.mxu0 %v9820
        %10938 = vmatmul.mubr.bf16.gmra.mxu0 %v9819
        %v10939 = vpop.f32.mrf.mxu0
        %v10940 = vadd.f32 %v10651, %v10939
        %v10941 = vpop.f32.mrf.mxu0
        %v10942 = vpop.f32.mrf.mxu0
        %v10943 = vadd.f32 %v10654, %v10942
        %v10944 = vpop.f32.mrf.mxu0
        %10945 = vmatprep.mubr.bf16.mxu0 %v9828
        %10946 = vmatmul.mubr.bf16.gmra.mxu0 %v9827
        %v10947 = vpop.f32.mrf.mxu0
        %v10948 = vadd.f32 %v10659, %v10947
        %v10949 = vpop.f32.mrf.mxu0
        %v10950 = vpop.f32.mrf.mxu0
        %v10951 = vadd.f32 %v10662, %v10950
        %v10952 = vpop.f32.mrf.mxu0
        %10953 = vmatprep.mubr.bf16.mxu0 %v9836
        %10954 = vmatmul.mubr.bf16.gmra.mxu0 %v9835
        %v10955 = vpop.f32.mrf.mxu0
        %v10956 = vadd.f32 %v10667, %v10955
        %v10957 = vpop.f32.mrf.mxu0
        %v10958 = vpop.f32.mrf.mxu0
        %v10959 = vadd.f32 %v10670, %v10958
        %v10960 = vpop.f32.mrf.mxu0
        %10961 = vmatprep.mubr.bf16.mxu0 %v9844
        %10962 = vmatmul.mubr.bf16.gmra.mxu0 %v9843
        %v10963 = vpop.f32.mrf.mxu0
        %v10964 = vadd.f32 %v10675, %v10963
        %v10965 = vpop.f32.mrf.mxu0
        %v10966 = vpop.f32.mrf.mxu0
        %v10967 = vadd.f32 %v10678, %v10966
        %v10968 = vpop.f32.mrf.mxu0
        %10969 = vmatprep.mubr.bf16.mxu0 %v9852
        %10970 = vmatmul.mubr.bf16.gmra.mxu0 %v9851
        %v10971 = vpop.f32.mrf.mxu0
        %v10972 = vadd.f32 %v10683, %v10971
        %v10973 = vpop.f32.mrf.mxu0
        %v10974 = vpop.f32.mrf.mxu0
        %v10975 = vadd.f32 %v10686, %v10974
        %v10976 = vpop.f32.mrf.mxu0
        %10977 = vmatprep.mubr.bf16.mxu0 %v9860
        %10978 = vmatmul.mubr.bf16.gmra.mxu0 %v9859
        %v10979 = vpop.f32.mrf.mxu0
        %v10980 = vadd.f32 %v10691, %v10979
        %v10981 = vpop.f32.mrf.mxu0
        %v10982 = vpop.f32.mrf.mxu0
        %v10983 = vadd.f32 %v10694, %v10982
        %v10984 = vpop.f32.mrf.mxu0
        %10985 = vmatprep.mubr.bf16.mxu0 %v9868
        %10986 = vmatmul.mubr.bf16.gmra.mxu0 %v9867
        %v10987 = vpop.f32.mrf.mxu0
        %v10988 = vadd.f32 %v10699, %v10987
        %v10989 = vpop.f32.mrf.mxu0
        %v10990 = vpop.f32.mrf.mxu0
        %v10991 = vadd.f32 %v10702, %v10990
        %v10992 = vpop.f32.mrf.mxu0
        %10993 = vmatprep.mubr.bf16.mxu0 %v9876
        %10994 = vmatmul.mubr.bf16.gmra.mxu0 %v9875
        %v10995 = vpop.f32.mrf.mxu0
        %v10996 = vadd.f32 %v10707, %v10995
        %v10997 = vpop.f32.mrf.mxu0
        %v10998 = vpop.f32.mrf.mxu0
        %v10999 = vadd.f32 %v10710, %v10998
        %v11000 = vpop.f32.mrf.mxu0
        %11001 = vmatprep.mubr.bf16.mxu0 %v9884
        %11002 = vmatmul.mubr.bf16.gmra.mxu0 %v9883
        %v11003 = vpop.f32.mrf.mxu0
        %v11004 = vadd.f32 %v10715, %v11003
        %v11005 = vpop.f32.mrf.mxu0
        %v11006 = vpop.f32.mrf.mxu0
        %v11007 = vadd.f32 %v10718, %v11006
        %v11008 = vpop.f32.mrf.mxu0
        %11009 = vmatprep.mubr.bf16.mxu0 %v9892
        %11010 = vmatmul.mubr.bf16.gmra.mxu0 %v9891
        %v11011 = vpop.f32.mrf.mxu0
        %v11012 = vadd.f32 %v10723, %v11011
        %v11013 = vpop.f32.mrf.mxu0
        %v11014 = vpop.f32.mrf.mxu0
        %v11015 = vadd.f32 %v10726, %v11014
        %v11016 = vpop.f32.mrf.mxu0
        %11017 = vmatprep.mubr.bf16.mxu0 %v9900
        %11018 = vmatmul.mubr.bf16.gmra.mxu0 %v9899
        %v11019 = vpop.f32.mrf.mxu0
        %v11020 = vadd.f32 %v10731, %v11019
        %v11021 = vpop.f32.mrf.mxu0
        %v11022 = vpop.f32.mrf.mxu0
        %v11023 = vadd.f32 %v10734, %v11022
        %v11024 = vpop.f32.mrf.mxu0
        %11025 = vmatprep.mubr.bf16.mxu0 %v9908
        %11026 = vmatmul.mubr.bf16.gmra.mxu0 %v9907
        %v11027 = vpop.f32.mrf.mxu0
        %v11028 = vadd.f32 %v10739, %v11027
        %v11029 = vpop.f32.mrf.mxu0
        %v11030 = vpop.f32.mrf.mxu0
        %v11031 = vadd.f32 %v10742, %v11030
        %v11032 = vpop.f32.mrf.mxu0
        %11033 = vmatprep.mubr.bf16.mxu0 %v9916
        %11034 = vmatmul.mubr.bf16.gmra.mxu0 %v9915
        %v11035 = vpop.f32.mrf.mxu0
        %v11036 = vadd.f32 %v10747, %v11035
        %v11037 = vpop.f32.mrf.mxu0
        %v11038 = vpop.f32.mrf.mxu0
        %v11039 = vadd.f32 %v10750, %v11038
        %v11040 = vpop.f32.mrf.mxu0
        %11041 = vmatprep.mubr.bf16.mxu0 %v9924
        %11042 = vmatmul.mubr.bf16.gmra.mxu0 %v9923
        %v11043 = vpop.f32.mrf.mxu0
        %v11044 = vadd.f32 %v10755, %v11043
        %v11045 = vpop.f32.mrf.mxu0
        %v11046 = vpop.f32.mrf.mxu0
        %v11047 = vadd.f32 %v10758, %v11046
        %v11048 = vpop.f32.mrf.mxu0
        %11049 = vmatprep.mubr.bf16.mxu0 %v9932
        %11050 = vmatmul.mubr.bf16.gmra.mxu0 %v9931
        %v11051 = vpop.f32.mrf.mxu0
        %v11052 = vadd.f32 %v10763, %v11051
        %v11053 = vpop.f32.mrf.mxu0
        %v11054 = vpop.f32.mrf.mxu0
        %v11055 = vadd.f32 %v10766, %v11054
        %v11056 = vpop.f32.mrf.mxu0
        %11057 = vmatprep.mubr.bf16.mxu0 %v9940
        %11058 = vmatmul.mubr.bf16.gmra.mxu0 %v9939
        %v11059 = vpop.f32.mrf.mxu0
        %v11060 = vadd.f32 %v10771, %v11059
        %v11061 = vpop.f32.mrf.mxu0
        %v11062 = vpop.f32.mrf.mxu0
        %v11063 = vadd.f32 %v10774, %v11062
        %v11064 = vpop.f32.mrf.mxu0
        %11065 = vmatprep.mubr.bf16.mxu0 %v9948
        %11066 = vmatmul.mubr.bf16.gmra.mxu0 %v9947
        %v11067 = vpop.f32.mrf.mxu0
        %v11068 = vadd.f32 %v10779, %v11067
        %v11069 = vpop.f32.mrf.mxu0
        %v11070 = vpop.f32.mrf.mxu0
        %v11071 = vadd.f32 %v10782, %v11070
        %v11072 = vpop.f32.mrf.mxu0
        %11073 = vmatprep.mubr.bf16.mxu0 %v9956
        %11074 = vmatmul.mubr.bf16.gmra.mxu0 %v9955
        %v11075 = vpop.f32.mrf.mxu0
        %v11076 = vadd.f32 %v10787, %v11075
        %v11077 = vpop.f32.mrf.mxu0
        %v11078 = vpop.f32.mrf.mxu0
        %v11079 = vadd.f32 %v10790, %v11078
        %v11080 = vpop.f32.mrf.mxu0
        %11081 = vmatprep.mubr.bf16.mxu0 %v9964
        %11082 = vmatmul.mubr.bf16.gmra.mxu0 %v9963
        %v11083 = vpop.f32.mrf.mxu0
        %v11084 = vadd.f32 %v10795, %v11083
        %v11085 = vpop.f32.mrf.mxu0
        %v11086 = vpop.f32.mrf.mxu0
        %v11087 = vadd.f32 %v10798, %v11086
        %v11088 = vpop.f32.mrf.mxu0
        %11089 = vmatprep.mubr.bf16.mxu0 %v9972
        %11090 = vmatmul.mubr.bf16.gmra.mxu0 %v9971
        %v11091 = vpop.f32.mrf.mxu0
        %v11092 = vadd.f32 %v10803, %v11091
        %v11093 = vpop.f32.mrf.mxu0
        %v11094 = vpop.f32.mrf.mxu0
        %v11095 = vadd.f32 %v10806, %v11094
        %v11096 = vpop.f32.mrf.mxu0
        %11097 = vmatprep.mubr.bf16.mxu0 %v9980
        %11098 = vmatmul.mubr.bf16.gmra.mxu0 %v9979
        %v11099 = vpop.f32.mrf.mxu0
        %v11100 = vadd.f32 %v10811, %v11099
        %v11101 = vpop.f32.mrf.mxu0
        %v11102 = vpop.f32.mrf.mxu0
        %v11103 = vadd.f32 %v10814, %v11102
        %v11104 = vpop.f32.mrf.mxu0
        %11105 = vmatprep.mubr.bf16.mxu0 %v9988
        %11106 = vmatmul.mubr.bf16.gmra.mxu0 %v9987
        %v11107 = vpop.f32.mrf.mxu0
        %v11108 = vadd.f32 %v10819, %v11107
        %v11109 = vpop.f32.mrf.mxu0
        %v11110 = vpop.f32.mrf.mxu0
        %v11111 = vadd.f32 %v10822, %v11110
        %v11112 = vpop.f32.mrf.mxu0
        %11113 = vdwg.mxu0
        %11114 = vmatprep.subr.bf16.mxu0 0
        %11115 = vmatpush1.bf16.msra.mxu0 %v8606
        %11116 = vmatprep.subr.bf16.mxu0 0
        %11117 = vmatpush1.bf16.msra.mxu0 %v8605
        %11118 = vmatprep.subr.bf16.mxu0 0
        %11119 = vmatpush1.bf16.msra.mxu0 %v8604
        %11120 = vmatprep.subr.bf16.mxu0 0
        %11121 = vmatpush1.bf16.msra.mxu0 %v8603
        %11122 = vmatprep.subr.bf16.mxu0 0
        %11123 = vmatpush1.bf16.msra.mxu0 %v8602
        %11124 = vmatprep.subr.bf16.mxu0 0
        %11125 = vmatpush1.bf16.msra.mxu0 %v8601
        %11126 = vmatprep.subr.bf16.mxu0 0
        %11127 = vmatpush1.bf16.msra.mxu0 %v8600
        %11128 = vmatprep.subr.bf16.mxu0 0
        %11129 = vmatpush1.bf16.msra.mxu0 %v8599
        %11130 = vmatprep.subr.bf16.mxu0 0
        %11131 = vmatpush2.bf16.msra.mxu0 %v8614
        %11132 = vmatprep.subr.bf16.mxu0 0
        %11133 = vmatpush2.bf16.msra.mxu0 %v8613
        %11134 = vmatprep.subr.bf16.mxu0 0
        %11135 = vmatpush2.bf16.msra.mxu0 %v8612
        %11136 = vmatprep.subr.bf16.mxu0 0
        %11137 = vmatpush2.bf16.msra.mxu0 %v8611
        %11138 = vmatprep.subr.bf16.mxu0 0
        %11139 = vmatpush2.bf16.msra.mxu0 %v8610
        %11140 = vmatprep.subr.bf16.mxu0 0
        %11141 = vmatpush2.bf16.msra.mxu0 %v8609
        %11142 = vmatprep.subr.bf16.mxu0 0
        %11143 = vmatpush2.bf16.msra.mxu0 %v8608
        %11144 = vmatprep.subr.bf16.mxu0 0
        %11145 = vmatpush2.bf16.msra.mxu0 %v8607
        %11146 = vmatprep.mubr.bf16.mxu0 %v9742
        %11147 = vmatmul.mubr.bf16.gmra.mxu0 %v9741
        %v11148 = vpop.f32.mrf.mxu0
        %v11149 = vadd.f32 %v10860, %v11148
        %v11150 = vpop.f32.mrf.mxu0
        %v11151 = vpop.f32.mrf.mxu0
        %v11152 = vadd.f32 %v10863, %v11151
        %v11153 = vpop.f32.mrf.mxu0
        %11154 = vmatprep.mubr.bf16.mxu0 %v9750
        %11155 = vmatmul.mubr.bf16.gmra.mxu0 %v9749
        %v11156 = vpop.f32.mrf.mxu0
        %v11157 = vadd.f32 %v10868, %v11156
        %v11158 = vpop.f32.mrf.mxu0
        %v11159 = vpop.f32.mrf.mxu0
        %v11160 = vadd.f32 %v10871, %v11159
        %v11161 = vpop.f32.mrf.mxu0
        %11162 = vmatprep.mubr.bf16.mxu0 %v9758
        %11163 = vmatmul.mubr.bf16.gmra.mxu0 %v9757
        %v11164 = vpop.f32.mrf.mxu0
        %v11165 = vadd.f32 %v10876, %v11164
        %v11166 = vpop.f32.mrf.mxu0
        %v11167 = vpop.f32.mrf.mxu0
        %v11168 = vadd.f32 %v10879, %v11167
        %v11169 = vpop.f32.mrf.mxu0
        %11170 = vmatprep.mubr.bf16.mxu0 %v9766
        %11171 = vmatmul.mubr.bf16.gmra.mxu0 %v9765
        %v11172 = vpop.f32.mrf.mxu0
        %v11173 = vadd.f32 %v10884, %v11172
        %v11174 = vpop.f32.mrf.mxu0
        %v11175 = vpop.f32.mrf.mxu0
        %v11176 = vadd.f32 %v10887, %v11175
        %v11177 = vpop.f32.mrf.mxu0
        %11178 = vmatprep.mubr.bf16.mxu0 %v9774
        %11179 = vmatmul.mubr.bf16.gmra.mxu0 %v9773
        %v11180 = vpop.f32.mrf.mxu0
        %v11181 = vadd.f32 %v10892, %v11180
        %v11182 = vpop.f32.mrf.mxu0
        %v11183 = vpop.f32.mrf.mxu0
        %v11184 = vadd.f32 %v10895, %v11183
        %v11185 = vpop.f32.mrf.mxu0
        %11186 = vmatprep.mubr.bf16.mxu0 %v9782
        %11187 = vmatmul.mubr.bf16.gmra.mxu0 %v9781
        %v11188 = vpop.f32.mrf.mxu0
        %v11189 = vadd.f32 %v10900, %v11188
        %v11190 = vpop.f32.mrf.mxu0
        %v11191 = vpop.f32.mrf.mxu0
        %v11192 = vadd.f32 %v10903, %v11191
        %v11193 = vpop.f32.mrf.mxu0
        %11194 = vmatprep.mubr.bf16.mxu0 %v9790
        %11195 = vmatmul.mubr.bf16.gmra.mxu0 %v9789
        %v11196 = vpop.f32.mrf.mxu0
        %v11197 = vadd.f32 %v10908, %v11196
        %v11198 = vpop.f32.mrf.mxu0
        %v11199 = vpop.f32.mrf.mxu0
        %v11200 = vadd.f32 %v10911, %v11199
        %v11201 = vpop.f32.mrf.mxu0
        %11202 = vmatprep.mubr.bf16.mxu0 %v9798
        %11203 = vmatmul.mubr.bf16.gmra.mxu0 %v9797
        %v11204 = vpop.f32.mrf.mxu0
        %v11205 = vadd.f32 %v10916, %v11204
        %v11206 = vpop.f32.mrf.mxu0
        %v11207 = vpop.f32.mrf.mxu0
        %v11208 = vadd.f32 %v10919, %v11207
        %v11209 = vpop.f32.mrf.mxu0
        %11210 = vmatprep.mubr.bf16.mxu0 %v9806
        %11211 = vmatmul.mubr.bf16.gmra.mxu0 %v9805
        %v11212 = vpop.f32.mrf.mxu0
        %v11213 = vadd.f32 %v10924, %v11212
        %v11214 = vpop.f32.mrf.mxu0
        %v11215 = vpop.f32.mrf.mxu0
        %v11216 = vadd.f32 %v10927, %v11215
        %v11217 = vpop.f32.mrf.mxu0
        %11218 = vmatprep.mubr.bf16.mxu0 %v9814
        %11219 = vmatmul.mubr.bf16.gmra.mxu0 %v9813
        %v11220 = vpop.f32.mrf.mxu0
        %v11221 = vadd.f32 %v10932, %v11220
        %v11222 = vpop.f32.mrf.mxu0
        %v11223 = vpop.f32.mrf.mxu0
        %v11224 = vadd.f32 %v10935, %v11223
        %v11225 = vpop.f32.mrf.mxu0
        %11226 = vmatprep.mubr.bf16.mxu0 %v9822
        %11227 = vmatmul.mubr.bf16.gmra.mxu0 %v9821
        %v11228 = vpop.f32.mrf.mxu0
        %v11229 = vadd.f32 %v10940, %v11228
        %v11230 = vpop.f32.mrf.mxu0
        %v11231 = vpop.f32.mrf.mxu0
        %v11232 = vadd.f32 %v10943, %v11231
        %v11233 = vpop.f32.mrf.mxu0
        %11234 = vmatprep.mubr.bf16.mxu0 %v9830
        %11235 = vmatmul.mubr.bf16.gmra.mxu0 %v9829
        %v11236 = vpop.f32.mrf.mxu0
        %v11237 = vadd.f32 %v10948, %v11236
        %v11238 = vpop.f32.mrf.mxu0
        %v11239 = vpop.f32.mrf.mxu0
        %v11240 = vadd.f32 %v10951, %v11239
        %v11241 = vpop.f32.mrf.mxu0
        %11242 = vmatprep.mubr.bf16.mxu0 %v9838
        %11243 = vmatmul.mubr.bf16.gmra.mxu0 %v9837
        %v11244 = vpop.f32.mrf.mxu0
        %v11245 = vadd.f32 %v10956, %v11244
        %v11246 = vpop.f32.mrf.mxu0
        %v11247 = vpop.f32.mrf.mxu0
        %v11248 = vadd.f32 %v10959, %v11247
        %v11249 = vpop.f32.mrf.mxu0
        %11250 = vmatprep.mubr.bf16.mxu0 %v9846
        %11251 = vmatmul.mubr.bf16.gmra.mxu0 %v9845
        %v11252 = vpop.f32.mrf.mxu0
        %v11253 = vadd.f32 %v10964, %v11252
        %v11254 = vpop.f32.mrf.mxu0
        %v11255 = vpop.f32.mrf.mxu0
        %v11256 = vadd.f32 %v10967, %v11255
        %v11257 = vpop.f32.mrf.mxu0
        %11258 = vmatprep.mubr.bf16.mxu0 %v9854
        %11259 = vmatmul.mubr.bf16.gmra.mxu0 %v9853
        %v11260 = vpop.f32.mrf.mxu0
        %v11261 = vadd.f32 %v10972, %v11260
        %v11262 = vpop.f32.mrf.mxu0
        %v11263 = vpop.f32.mrf.mxu0
        %v11264 = vadd.f32 %v10975, %v11263
        %v11265 = vpop.f32.mrf.mxu0
        %11266 = vmatprep.mubr.bf16.mxu0 %v9862
        %11267 = vmatmul.mubr.bf16.gmra.mxu0 %v9861
        %v11268 = vpop.f32.mrf.mxu0
        %v11269 = vadd.f32 %v10980, %v11268
        %v11270 = vpop.f32.mrf.mxu0
        %v11271 = vpop.f32.mrf.mxu0
        %v11272 = vadd.f32 %v10983, %v11271
        %v11273 = vpop.f32.mrf.mxu0
        %11274 = vmatprep.mubr.bf16.mxu0 %v9870
        %11275 = vmatmul.mubr.bf16.gmra.mxu0 %v9869
        %v11276 = vpop.f32.mrf.mxu0
        %v11277 = vadd.f32 %v10988, %v11276
        %v11278 = vpop.f32.mrf.mxu0
        %v11279 = vpop.f32.mrf.mxu0
        %v11280 = vadd.f32 %v10991, %v11279
        %v11281 = vpop.f32.mrf.mxu0
        %11282 = vmatprep.mubr.bf16.mxu0 %v9878
        %11283 = vmatmul.mubr.bf16.gmra.mxu0 %v9877
        %v11284 = vpop.f32.mrf.mxu0
        %v11285 = vadd.f32 %v10996, %v11284
        %v11286 = vpop.f32.mrf.mxu0
        %v11287 = vpop.f32.mrf.mxu0
        %v11288 = vadd.f32 %v10999, %v11287
        %v11289 = vpop.f32.mrf.mxu0
        %11290 = vmatprep.mubr.bf16.mxu0 %v9886
        %11291 = vmatmul.mubr.bf16.gmra.mxu0 %v9885
        %v11292 = vpop.f32.mrf.mxu0
        %v11293 = vadd.f32 %v11004, %v11292
        %v11294 = vpop.f32.mrf.mxu0
        %v11295 = vpop.f32.mrf.mxu0
        %v11296 = vadd.f32 %v11007, %v11295
        %v11297 = vpop.f32.mrf.mxu0
        %11298 = vmatprep.mubr.bf16.mxu0 %v9894
        %11299 = vmatmul.mubr.bf16.gmra.mxu0 %v9893
        %v11300 = vpop.f32.mrf.mxu0
        %v11301 = vadd.f32 %v11012, %v11300
        %v11302 = vpop.f32.mrf.mxu0
        %v11303 = vpop.f32.mrf.mxu0
        %v11304 = vadd.f32 %v11015, %v11303
        %v11305 = vpop.f32.mrf.mxu0
        %11306 = vmatprep.mubr.bf16.mxu0 %v9902
        %11307 = vmatmul.mubr.bf16.gmra.mxu0 %v9901
        %v11308 = vpop.f32.mrf.mxu0
        %v11309 = vadd.f32 %v11020, %v11308
        %v11310 = vpop.f32.mrf.mxu0
        %v11311 = vpop.f32.mrf.mxu0
        %v11312 = vadd.f32 %v11023, %v11311
        %v11313 = vpop.f32.mrf.mxu0
        %11314 = vmatprep.mubr.bf16.mxu0 %v9910
        %11315 = vmatmul.mubr.bf16.gmra.mxu0 %v9909
        %v11316 = vpop.f32.mrf.mxu0
        %v11317 = vadd.f32 %v11028, %v11316
        %v11318 = vpop.f32.mrf.mxu0
        %v11319 = vpop.f32.mrf.mxu0
        %v11320 = vadd.f32 %v11031, %v11319
        %v11321 = vpop.f32.mrf.mxu0
        %11322 = vmatprep.mubr.bf16.mxu0 %v9918
        %11323 = vmatmul.mubr.bf16.gmra.mxu0 %v9917
        %v11324 = vpop.f32.mrf.mxu0
        %v11325 = vadd.f32 %v11036, %v11324
        %v11326 = vpop.f32.mrf.mxu0
        %v11327 = vpop.f32.mrf.mxu0
        %v11328 = vadd.f32 %v11039, %v11327
        %v11329 = vpop.f32.mrf.mxu0
        %11330 = vmatprep.mubr.bf16.mxu0 %v9926
        %11331 = vmatmul.mubr.bf16.gmra.mxu0 %v9925
        %v11332 = vpop.f32.mrf.mxu0
        %v11333 = vadd.f32 %v11044, %v11332
        %v11334 = vpop.f32.mrf.mxu0
        %v11335 = vpop.f32.mrf.mxu0
        %v11336 = vadd.f32 %v11047, %v11335
        %v11337 = vpop.f32.mrf.mxu0
        %11338 = vmatprep.mubr.bf16.mxu0 %v9934
        %11339 = vmatmul.mubr.bf16.gmra.mxu0 %v9933
        %v11340 = vpop.f32.mrf.mxu0
        %v11341 = vadd.f32 %v11052, %v11340
        %v11342 = vpop.f32.mrf.mxu0
        %v11343 = vpop.f32.mrf.mxu0
        %v11344 = vadd.f32 %v11055, %v11343
        %v11345 = vpop.f32.mrf.mxu0
        %11346 = vmatprep.mubr.bf16.mxu0 %v9942
        %11347 = vmatmul.mubr.bf16.gmra.mxu0 %v9941
        %v11348 = vpop.f32.mrf.mxu0
        %v11349 = vadd.f32 %v11060, %v11348
        %v11350 = vpop.f32.mrf.mxu0
        %v11351 = vpop.f32.mrf.mxu0
        %v11352 = vadd.f32 %v11063, %v11351
        %v11353 = vpop.f32.mrf.mxu0
        %11354 = vmatprep.mubr.bf16.mxu0 %v9950
        %11355 = vmatmul.mubr.bf16.gmra.mxu0 %v9949
        %v11356 = vpop.f32.mrf.mxu0
        %v11357 = vadd.f32 %v11068, %v11356
        %v11358 = vpop.f32.mrf.mxu0
        %v11359 = vpop.f32.mrf.mxu0
        %v11360 = vadd.f32 %v11071, %v11359
        %v11361 = vpop.f32.mrf.mxu0
        %11362 = vmatprep.mubr.bf16.mxu0 %v9958
        %11363 = vmatmul.mubr.bf16.gmra.mxu0 %v9957
        %v11364 = vpop.f32.mrf.mxu0
        %v11365 = vadd.f32 %v11076, %v11364
        %v11366 = vpop.f32.mrf.mxu0
        %v11367 = vpop.f32.mrf.mxu0
        %v11368 = vadd.f32 %v11079, %v11367
        %v11369 = vpop.f32.mrf.mxu0
        %11370 = vmatprep.mubr.bf16.mxu0 %v9966
        %11371 = vmatmul.mubr.bf16.gmra.mxu0 %v9965
        %v11372 = vpop.f32.mrf.mxu0
        %v11373 = vadd.f32 %v11084, %v11372
        %v11374 = vpop.f32.mrf.mxu0
        %v11375 = vpop.f32.mrf.mxu0
        %v11376 = vadd.f32 %v11087, %v11375
        %v11377 = vpop.f32.mrf.mxu0
        %11378 = vmatprep.mubr.bf16.mxu0 %v9974
        %11379 = vmatmul.mubr.bf16.gmra.mxu0 %v9973
        %v11380 = vpop.f32.mrf.mxu0
        %v11381 = vadd.f32 %v11092, %v11380
        %v11382 = vpop.f32.mrf.mxu0
        %v11383 = vpop.f32.mrf.mxu0
        %v11384 = vadd.f32 %v11095, %v11383
        %v11385 = vpop.f32.mrf.mxu0
        %11386 = vmatprep.mubr.bf16.mxu0 %v9982
        %11387 = vmatmul.mubr.bf16.gmra.mxu0 %v9981
        %v11388 = vpop.f32.mrf.mxu0
        %v11389 = vadd.f32 %v11100, %v11388
        %v11390 = vpop.f32.mrf.mxu0
        %v11391 = vpop.f32.mrf.mxu0
        %v11392 = vadd.f32 %v11103, %v11391
        %v11393 = vpop.f32.mrf.mxu0
        %11394 = vmatprep.mubr.bf16.mxu0 %v9990
        %11395 = vmatmul.mubr.bf16.gmra.mxu0 %v9989
        %v11396 = vpop.f32.mrf.mxu0
        %v11397 = vadd.f32 %v11108, %v11396
        %v11398 = vpop.f32.mrf.mxu0
        %v11399 = vpop.f32.mrf.mxu0
        %v11400 = vadd.f32 %v11111, %v11399
        %v11401 = vpop.f32.mrf.mxu0
        %11402 = vdwg.mxu0
        %v11403 = vmax.f32 %v11149, 0.0
        %v11404 = vmax.f32 %v11152, 0.0
        %v11405 = vmax.f32 %v11157, 0.0
        %v11406 = vmax.f32 %v11160, 0.0
        %v11407 = vmax.f32 %v11165, 0.0
        %v11408 = vmax.f32 %v11168, 0.0
        %v11409 = vmax.f32 %v11173, 0.0
        %v11410 = vmax.f32 %v11176, 0.0
        %v11411 = vmax.f32 %v11181, 0.0
        %v11412 = vmax.f32 %v11184, 0.0
        %v11413 = vmax.f32 %v11189, 0.0
        %v11414 = vmax.f32 %v11192, 0.0
        %v11415 = vmax.f32 %v11197, 0.0
        %v11416 = vmax.f32 %v11200, 0.0
        %v11417 = vmax.f32 %v11205, 0.0
        %v11418 = vmax.f32 %v11208, 0.0
        %v11419 = vmax.f32 %v11213, 0.0
        %v11420 = vmax.f32 %v11216, 0.0
        %v11421 = vmax.f32 %v11221, 0.0
        %v11422 = vmax.f32 %v11224, 0.0
        %v11423 = vmax.f32 %v11229, 0.0
        %v11424 = vmax.f32 %v11232, 0.0
        %v11425 = vmax.f32 %v11237, 0.0
        %v11426 = vmax.f32 %v11240, 0.0
        %v11427 = vmax.f32 %v11245, 0.0
        %v11428 = vmax.f32 %v11248, 0.0
        %v11429 = vmax.f32 %v11253, 0.0
        %v11430 = vmax.f32 %v11256, 0.0
        %v11431 = vmax.f32 %v11261, 0.0
        %v11432 = vmax.f32 %v11264, 0.0
        %v11433 = vmax.f32 %v11269, 0.0
        %v11434 = vmax.f32 %v11272, 0.0
        %v11435 = vmax.f32 %v11277, 0.0
        %v11436 = vmax.f32 %v11280, 0.0
        %v11437 = vmax.f32 %v11285, 0.0
        %v11438 = vmax.f32 %v11288, 0.0
        %v11439 = vmax.f32 %v11293, 0.0
        %v11440 = vmax.f32 %v11296, 0.0
        %v11441 = vmax.f32 %v11301, 0.0
        %v11442 = vmax.f32 %v11304, 0.0
        %v11443 = vmax.f32 %v11309, 0.0
        %v11444 = vmax.f32 %v11312, 0.0
        %v11445 = vmax.f32 %v11317, 0.0
        %v11446 = vmax.f32 %v11320, 0.0
        %v11447 = vmax.f32 %v11325, 0.0
        %v11448 = vmax.f32 %v11328, 0.0
        %v11449 = vmax.f32 %v11333, 0.0
        %v11450 = vmax.f32 %v11336, 0.0
        %v11451 = vmax.f32 %v11341, 0.0
        %v11452 = vmax.f32 %v11344, 0.0
        %v11453 = vmax.f32 %v11349, 0.0
        %v11454 = vmax.f32 %v11352, 0.0
        %v11455 = vmax.f32 %v11357, 0.0
        %v11456 = vmax.f32 %v11360, 0.0
        %v11457 = vmax.f32 %v11365, 0.0
        %v11458 = vmax.f32 %v11368, 0.0
        %v11459 = vmax.f32 %v11373, 0.0
        %v11460 = vmax.f32 %v11376, 0.0
        %v11461 = vmax.f32 %v11381, 0.0
        %v11462 = vmax.f32 %v11384, 0.0
        %v11463 = vmax.f32 %v11389, 0.0
        %v11464 = vmax.f32 %v11392, 0.0
        %v11465 = vmax.f32 %v11397, 0.0
        %v11466 = vmax.f32 %v11400, 0.0
        %v11467 = vpack.c.bf16 %v11404, %v11403
        %v11468 = vpack.c.bf16 %v11406, %v11405
        %v11469 = vpack.c.bf16 %v11408, %v11407
        %v11470 = vpack.c.bf16 %v11410, %v11409
        %v11471 = vpack.c.bf16 %v11412, %v11411
        %v11472 = vpack.c.bf16 %v11414, %v11413
        %v11473 = vpack.c.bf16 %v11416, %v11415
        %v11474 = vpack.c.bf16 %v11418, %v11417
        %v11475 = vpack.c.bf16 %v11420, %v11419
        %v11476 = vpack.c.bf16 %v11422, %v11421
        %v11477 = vpack.c.bf16 %v11424, %v11423
        %v11478 = vpack.c.bf16 %v11426, %v11425
        %v11479 = vpack.c.bf16 %v11428, %v11427
        %v11480 = vpack.c.bf16 %v11430, %v11429
        %v11481 = vpack.c.bf16 %v11432, %v11431
        %v11482 = vpack.c.bf16 %v11434, %v11433
        %v11483 = vpack.c.bf16 %v11436, %v11435
        %v11484 = vpack.c.bf16 %v11438, %v11437
        %v11485 = vpack.c.bf16 %v11440, %v11439
        %v11486 = vpack.c.bf16 %v11442, %v11441
        %v11487 = vpack.c.bf16 %v11444, %v11443
        %v11488 = vpack.c.bf16 %v11446, %v11445
        %v11489 = vpack.c.bf16 %v11448, %v11447
        %v11490 = vpack.c.bf16 %v11450, %v11449
        %v11491 = vpack.c.bf16 %v11452, %v11451
        %v11492 = vpack.c.bf16 %v11454, %v11453
        %v11493 = vpack.c.bf16 %v11456, %v11455
        %v11494 = vpack.c.bf16 %v11458, %v11457
        %v11495 = vpack.c.bf16 %v11460, %v11459
        %v11496 = vpack.c.bf16 %v11462, %v11461
        %v11497 = vpack.c.bf16 %v11464, %v11463
        %v11498 = vpack.c.bf16 %v11466, %v11465
        %v11499 = vld [vmem:[%s7] sm:$0xff]
        %v11500 = vld [vmem:[%s7 + $0x8] sm:$0xff]
        %v11501 = vld [vmem:[%s8] sm:$0xff]
        %v11504 = vunpack.c.l.b16 %v11499
        %v11505 = vunpack.c.h.b16 %v11499
        %v11506 = vunpack.c.l.b16 %v11500
        %v11507 = vunpack.c.h.b16 %v11500
        %v11508 = vpack.c.b16 %v11504, %v11504
        %v11509 = vpack.c.b16 %v11505, %v11505
        %v11510 = vpack.c.b16 %v11506, %v11506
        %v11511 = vpack.c.b16 %v11507, %v11507
        %11516 = vmatprep.subr.bf16.mxu0 0
        %11517 = vmatpush1.bf16.msra.mxu0 %v11474
        %11518 = vmatprep.subr.bf16.mxu0 0
        %11519 = vmatpush1.bf16.msra.mxu0 %v11473
        %11520 = vmatprep.subr.bf16.mxu0 0
        %11521 = vmatpush1.bf16.msra.mxu0 %v11472
        %11522 = vmatprep.subr.bf16.mxu0 0
        %11523 = vmatpush1.bf16.msra.mxu0 %v11471
        %11524 = vmatprep.subr.bf16.mxu0 0
        %11525 = vmatpush1.bf16.msra.mxu0 %v11470
        %11526 = vmatprep.subr.bf16.mxu0 0
        %11527 = vmatpush1.bf16.msra.mxu0 %v11469
        %11528 = vmatprep.subr.bf16.mxu0 0
        %11529 = vmatpush1.bf16.msra.mxu0 %v11468
        %11530 = vmatprep.subr.bf16.mxu0 0
        %11531 = vmatpush1.bf16.msra.mxu0 %v11467
        %11532 = vmatprep.subr.bf16.mxu0 0
        %11533 = vmatpush2.bf16.msra.mxu0 %v11482
        %11534 = vmatprep.subr.bf16.mxu0 0
        %11535 = vmatpush2.bf16.msra.mxu0 %v11481
        %11536 = vmatprep.subr.bf16.mxu0 0
        %11537 = vmatpush2.bf16.msra.mxu0 %v11480
        %11538 = vmatprep.subr.bf16.mxu0 0
        %11539 = vmatpush2.bf16.msra.mxu0 %v11479
        %11540 = vmatprep.subr.bf16.mxu0 0
        %11541 = vmatpush2.bf16.msra.mxu0 %v11478
        %11542 = vmatprep.subr.bf16.mxu0 0
        %11543 = vmatpush2.bf16.msra.mxu0 %v11477
        %11544 = vmatprep.subr.bf16.mxu0 0
        %11545 = vmatpush2.bf16.msra.mxu0 %v11476
        %11546 = vmatprep.subr.bf16.mxu0 0
        %11547 = vmatpush2.bf16.msra.mxu0 %v11475
        %11548 = vmatprep.mubr.bf16.mxu0 %v11509
        %11549 = vmatmul.mubr.bf16.gmra.mxu0 %v11508
        %v11550 = vpop.f32.mrf.mxu0
        %v11551 = vadd.f32 %v11501, %v11550
        %v11552 = vpop.f32.mrf.mxu0
        %v11553 = vpop.f32.mrf.mxu0
        %v11554 = vpop.f32.mrf.mxu0
        %11555 = vdwg.mxu0
        %11556 = vmatprep.subr.bf16.mxu0 0
        %11557 = vmatpush1.bf16.msra.mxu0 %v11490
        %11558 = vmatprep.subr.bf16.mxu0 0
        %11559 = vmatpush1.bf16.msra.mxu0 %v11489
        %11560 = vmatprep.subr.bf16.mxu0 0
        %11561 = vmatpush1.bf16.msra.mxu0 %v11488
        %11562 = vmatprep.subr.bf16.mxu0 0
        %11563 = vmatpush1.bf16.msra.mxu0 %v11487
        %11564 = vmatprep.subr.bf16.mxu0 0
        %11565 = vmatpush1.bf16.msra.mxu0 %v11486
        %11566 = vmatprep.subr.bf16.mxu0 0
        %11567 = vmatpush1.bf16.msra.mxu0 %v11485
        %11568 = vmatprep.subr.bf16.mxu0 0
        %11569 = vmatpush1.bf16.msra.mxu0 %v11484
        %11570 = vmatprep.subr.bf16.mxu0 0
        %11571 = vmatpush1.bf16.msra.mxu0 %v11483
        %11572 = vmatprep.subr.bf16.mxu0 0
        %11573 = vmatpush2.bf16.msra.mxu0 %v11498
        %11574 = vmatprep.subr.bf16.mxu0 0
        %11575 = vmatpush2.bf16.msra.mxu0 %v11497
        %11576 = vmatprep.subr.bf16.mxu0 0
        %11577 = vmatpush2.bf16.msra.mxu0 %v11496
        %11578 = vmatprep.subr.bf16.mxu0 0
        %11579 = vmatpush2.bf16.msra.mxu0 %v11495
        %11580 = vmatprep.subr.bf16.mxu0 0
        %11581 = vmatpush2.bf16.msra.mxu0 %v11494
        %11582 = vmatprep.subr.bf16.mxu0 0
        %11583 = vmatpush2.bf16.msra.mxu0 %v11493
        %11584 = vmatprep.subr.bf16.mxu0 0
        %11585 = vmatpush2.bf16.msra.mxu0 %v11492
        %11586 = vmatprep.subr.bf16.mxu0 0
        %11587 = vmatpush2.bf16.msra.mxu0 %v11491
        %11588 = vmatprep.mubr.bf16.mxu0 %v11511
        %11589 = vmatmul.mubr.bf16.gmra.mxu0 %v11510
        %v11590 = vpop.f32.mrf.mxu0
        %v11591 = vadd.f32 %v11551, %v11590
        %v11592 = vpop.f32.mrf.mxu0
        %v11593 = vpop.f32.mrf.mxu0
        %v11594 = vpop.f32.mrf.mxu0
        %11595 = vdwg.mxu0
        %v11596 = vlaneseq
        %v11597 = vshrl.u32 %v11596, 7
        %vm11598 = vcmp.ge.s32.totalorder %v11597, 3
        %vm11599 = vcmp.lt.s32.totalorder %v11597, 6
        %vm11600 = vmand %vm11598, %vm11599
        %v11601 = vmul.f32 %v11591, 1.442695
        %v11602 = vpow.pop %v11601
        %v11603 = vsel %vm11600, %v11602, %v11591
        %v11604 = vld [vmem:[%s9] sm:$0xff]
        %v11605 = vld [vmem:[%s9 + $0x8] sm:$0xff]
        %v11606 = vld [vmem:[%s10] sm:$0xff]
        %v11609 = vunpack.c.l.b16 %v11604
        %v11610 = vunpack.c.h.b16 %v11604
        %v11611 = vunpack.c.l.b16 %v11605
        %v11612 = vunpack.c.h.b16 %v11605
        %v11613 = vpack.c.b16 %v11609, %v11609
        %v11614 = vpack.c.b16 %v11610, %v11610
        %v11615 = vpack.c.b16 %v11611, %v11611
        %v11616 = vpack.c.b16 %v11612, %v11612
        %11621 = vmatprep.subr.bf16.mxu0 0
        %11622 = vmatpush1.bf16.msra.mxu0 %v8622
        %11623 = vmatprep.subr.bf16.mxu0 0
        %11624 = vmatpush1.bf16.msra.mxu0 %v8621
        %11625 = vmatprep.subr.bf16.mxu0 0
        %11626 = vmatpush1.bf16.msra.mxu0 %v8620
        %11627 = vmatprep.subr.bf16.mxu0 0
        %11628 = vmatpush1.bf16.msra.mxu0 %v8619
        %11629 = vmatprep.subr.bf16.mxu0 0
        %11630 = vmatpush1.bf16.msra.mxu0 %v8618
        %11631 = vmatprep.subr.bf16.mxu0 0
        %11632 = vmatpush1.bf16.msra.mxu0 %v8617
        %11633 = vmatprep.subr.bf16.mxu0 0
        %11634 = vmatpush1.bf16.msra.mxu0 %v8616
        %11635 = vmatprep.subr.bf16.mxu0 0
        %11636 = vmatpush1.bf16.msra.mxu0 %v8615
        %11637 = vmatprep.subr.bf16.mxu0 0
        %11638 = vmatpush2.bf16.msra.mxu0 %v8630
        %11639 = vmatprep.subr.bf16.mxu0 0
        %11640 = vmatpush2.bf16.msra.mxu0 %v8629
        %11641 = vmatprep.subr.bf16.mxu0 0
        %11642 = vmatpush2.bf16.msra.mxu0 %v8628
        %11643 = vmatprep.subr.bf16.mxu0 0
        %11644 = vmatpush2.bf16.msra.mxu0 %v8627
        %11645 = vmatprep.subr.bf16.mxu0 0
        %11646 = vmatpush2.bf16.msra.mxu0 %v8626
        %11647 = vmatprep.subr.bf16.mxu0 0
        %11648 = vmatpush2.bf16.msra.mxu0 %v8625
        %11649 = vmatprep.subr.bf16.mxu0 0
        %11650 = vmatpush2.bf16.msra.mxu0 %v8624
        %11651 = vmatprep.subr.bf16.mxu0 0
        %11652 = vmatpush2.bf16.msra.mxu0 %v8623
        %11653 = vmatprep.mubr.bf16.mxu0 %v11614
        %11654 = vmatmul.mubr.bf16.gmra.mxu0 %v11613
        %v11655 = vpop.f32.mrf.mxu0
        %v11656 = vadd.f32 %v11606, %v11655
        %v11657 = vpop.f32.mrf.mxu0
        %v11658 = vpop.f32.mrf.mxu0
        %v11659 = vpop.f32.mrf.mxu0
        %11660 = vdwg.mxu0
        %11661 = vmatprep.subr.bf16.mxu0 0
        %11662 = vmatpush1.bf16.msra.mxu0 %v8638
        %11663 = vmatprep.subr.bf16.mxu0 0
        %11664 = vmatpush1.bf16.msra.mxu0 %v8637
        %11665 = vmatprep.subr.bf16.mxu0 0
        %11666 = vmatpush1.bf16.msra.mxu0 %v8636
        %11667 = vmatprep.subr.bf16.mxu0 0
        %11668 = vmatpush1.bf16.msra.mxu0 %v8635
        %11669 = vmatprep.subr.bf16.mxu0 0
        %11670 = vmatpush1.bf16.msra.mxu0 %v8634
        %11671 = vmatprep.subr.bf16.mxu0 0
        %11672 = vmatpush1.bf16.msra.mxu0 %v8633
        %11673 = vmatprep.subr.bf16.mxu0 0
        %11674 = vmatpush1.bf16.msra.mxu0 %v8632
        %11675 = vmatprep.subr.bf16.mxu0 0
        %11676 = vmatpush1.bf16.msra.mxu0 %v8631
        %11677 = vmatprep.subr.bf16.mxu0 0
        %11678 = vmatpush2.bf16.msra.mxu0 %v8646
        %11679 = vmatprep.subr.bf16.mxu0 0
        %11680 = vmatpush2.bf16.msra.mxu0 %v8645
        %11681 = vmatprep.subr.bf16.mxu0 0
        %11682 = vmatpush2.bf16.msra.mxu0 %v8644
        %11683 = vmatprep.subr.bf16.mxu0 0
        %11684 = vmatpush2.bf16.msra.mxu0 %v8643
        %11685 = vmatprep.subr.bf16.mxu0 0
        %11686 = vmatpush2.bf16.msra.mxu0 %v8642
        %11687 = vmatprep.subr.bf16.mxu0 0
        %11688 = vmatpush2.bf16.msra.mxu0 %v8641
        %11689 = vmatprep.subr.bf16.mxu0 0
        %11690 = vmatpush2.bf16.msra.mxu0 %v8640
        %11691 = vmatprep.subr.bf16.mxu0 0
        %11692 = vmatpush2.bf16.msra.mxu0 %v8639
        %11693 = vmatprep.mubr.bf16.mxu0 %v11616
        %11694 = vmatmul.mubr.bf16.gmra.mxu0 %v11615
        %v11695 = vpop.f32.mrf.mxu0
        %v11696 = vadd.f32 %v11656, %v11695
        %v11697 = vpop.f32.mrf.mxu0
        %v11698 = vpop.f32.mrf.mxu0
        %v11699 = vpop.f32.mrf.mxu0
        %11700 = vdwg.mxu0
        %vm11701 = vcmask 7168
        %11702 = vst.msk [vmem:[%s433] sm:$0xff] %vm11701, %v11603
        %11703 = vst.msk [vmem:[%s437] sm:$0xff] %vm11701, %v11696
        %p11704 = scmp.lt.s32.totalorder %s25, 1
        %s11705 = scalar_select %p11704, %s25, 1
        %s11706 = smul.addr %s11705, 8
        %s11707 = scalar_lea.vmem %s11, %s11706
        %p11708 = scmp.lt.s32.totalorder %s25, 1
        %s11709 = scalar_select %p11708, %s25, 1
        %s11710 = smul.addr %s11709, 8
        %s11711 = scalar_lea.vmem %s12, %s11710
        // Predicated region
        $region69: #{layout_estimation_forward.1} parent=63 // pred_check
          %p11712 = pneg %p279
        $region70: #{layout_estimation_forward.1} parent=63 // pred_check_branch
          %11714 = sbr.rel (%p11712) target = $region72
        $region71: #{layout_estimation_forward.1} parent=63 // pred_region
          _
        $region72: #{layout_estimation_forward.1} parent=63 // pred_fallthru
          _
        // Predicated region
        $region73: #{layout_estimation_forward.1} parent=63 // pred_check
          %p11715 = pneg %p305
        $region74: #{layout_estimation_forward.1} parent=63 // pred_check_branch
          %11717 = sbr.rel (%p11715) target = $region76
        $region75: #{layout_estimation_forward.1} parent=63 // pred_region
          _
        $region76: #{layout_estimation_forward.1} parent=63 // pred_fallthru
          _
      $region64: #{layout_estimation_forward.1} parent=5 // pred_fallthru
        _
      %p11718 = scmp.le.s32.totalorder 2, %s20
      // Predicated region
      $region77: #{layout_estimation_forward.1} parent=5 // pred_check
        %p11719 = pneg %p11718
      $region78: #{layout_estimation_forward.1} parent=5 // pred_check_branch
        %11721 = sbr.rel (%p11719) target = $region80
      $region79: #{layout_estimation_forward.1} parent=5 // pred_region
        %s11722 = ssub.s32 %s20, 2
        // Predicated region
        $region81: #{layout_estimation_forward.1} parent=79 // pred_check
          %p11723 = pneg %p285
        $region82: #{layout_estimation_forward.1} parent=79 // pred_check_branch
          %11725 = sbr.rel (%p11723) target = $region84
        $region83: #{layout_estimation_forward.1} parent=79 // pred_region
          %p11726 = scmp.lt.s32.totalorder %s26, 1
          %s11727 = scalar_select %p11726, %s26, 1
          %s11728 = smul.addr %s11727, 8
          %s11729 = scalar_lea.vmem %s11, %s11728
        $region84: #{layout_estimation_forward.1} parent=79 // pred_fallthru
          _
        // Predicated region
        $region85: #{layout_estimation_forward.1} parent=79 // pred_check
          %p11730 = pneg %p311
        $region86: #{layout_estimation_forward.1} parent=79 // pred_check_branch
          %11732 = sbr.rel (%p11730) target = $region88
        $region87: #{layout_estimation_forward.1} parent=79 // pred_region
          %p11733 = scmp.lt.s32.totalorder %s26, 1
          %s11734 = scalar_select %p11733, %s26, 1
          %s11735 = smul.addr %s11734, 8
          %s11736 = scalar_lea.vmem %s12, %s11735
        $region88: #{layout_estimation_forward.1} parent=79 // pred_fallthru
          _
      $region80: #{layout_estimation_forward.1} parent=5 // pred_fallthru
        _
    $region6: #{layout_estimation_forward.1} parent=1 // loop_footer
      %s24 = sadd.s32 1, %s20
    $region7: #{layout_estimation_forward.1} parent=1 // loop_footer_branch
      %19 = sbr.rel target = $region3
    $region8: #{layout_estimation_forward.1} parent=1 // loop_exit
      _
    %11737 = vsyncpa [#allocation4], 1
    %s11738 = scalar_lea.sflag [#allocation4], 1
    %11739 = vsyncpa %s11738, 1

</llo_original>
